<compile_context>
chip_gen: v5e
topology: v5e:2x2
jax: 0.10.0
libtpu: 0.0.40
codegen_flags: <defaults>
</compile_context>

<pallas_src>
import functools
import math

import jax
import jax.numpy as jnp
from jax.experimental import pallas as pl
from jax.experimental.pallas import tpu as pltpu

BN_EPS = 1e-5
LANE = 128


def _rnd(x, m):
    return (x + m - 1) // m * m


def _pick_tn(cop):
    """Output-channel lane tile.  v5e's MXU is 4x128^2, so tn=256 only adds
    f32 store-slot pressure there; use 256 on v6e/v7x when it divides."""
    if cop % 256 != 0:
        return LANE
    try:
        kind = jax.devices()[0].device_kind.lower()
        if "v5 lite" in kind or "v5e" in kind:
            return LANE
    except Exception:
        pass
    return 256


def _compiler_params(block_bytes):
    # ~2x the static block footprint (double buffering + compiler scratch),
    # floor at the 32 MiB default, cap at 64 MiB (v7x physical VMEM).
    limit = int(min(max(2 * block_bytes + (2 << 20), 32 << 20), 64 << 20))
    return pltpu.CompilerParams(
        dimension_semantics=("parallel", "arbitrary"),
        vmem_limit_bytes=limit)


# ------------------------------ kernels --------------------------------------

def _conv1_kernel(x_ref, w_ref, s_ref, b_ref, m_ref, o_ref, x32_ref, *,
                  W2, Fo, chunk):
    """3x3 conv (stride 1, pad 1) + folded BN + ReLU, emitted directly in the
    spatially padded flat layout (pad (1,2),(1,1)) consumed by the 2nd conv.

    x_ref : (1, Fi, Ck)  bf16  x padded ((2,4),(2,0)), flattened, resident per n
    w_ref : (9, Ck, tn)  bf16  one (Ck, tn) weight slab per kernel tap
    s_ref : (1, tn)      f32   folded BN scale
    b_ref : (1, tn)      f32   folded BN bias (includes conv bias)
    m_ref : (Fo, 1)      f32   interior mask (0 at halo rows / pad columns)
    o_ref : (1, Fo, tn)  bf16  padded-layout output, Fo = (H+3)*(W+2)
    x32   : (Fi, Ck)     f32   scratch: widened x (robust 32-bit tap slicing)
    """
    @pl.when(pl.program_id(1) == 0)
    def _():
        x32_ref[...] = x_ref[0].astype(jnp.float32)

    s = s_ref[...]
    b = b_ref[...]
    for r0 in range(0, Fo, chunk):           # static row sub-tiles
        rows = min(chunk, Fo - r0)
        acc = None
        for t in range(9):
            off = (t // 3) * W2 + (t % 3) + r0       # static shifted window
            xt = x32_ref[pl.ds(off, rows), :].astype(jnp.bfloat16)
            d = jnp.dot(xt, w_ref[t], preferred_element_type=jnp.float32)
            acc = d if acc is None else acc + d
        y = jnp.maximum(acc * s + b, 0.0) * m_ref[pl.ds(r0, rows), :]
        o_ref[0, pl.ds(r0, rows), :] = y.astype(o_ref.dtype)


def _conv2_kernel(h_ref, x_ref, w_ref, wi_ref, s_ref, b_ref, si_ref, bi_ref,
                  o_ref, h32_ref, x32_ref, *, W2, Mw, chunk):
    """Fused: 3x3 conv + BN2, 1x1 identity conv + BNid, residual add, ReLU.

    h_ref : (1, Fo, Cop) bf16  conv1 output (already in padded flat layout)
    x_ref : (1, Fi, Ck)  bf16  padded x (identity-branch input), resident per n
    w_ref : (9, Cop, tn) bf16  conv2 taps ; wi_ref: (Ck, tn) bf16 1x1 weights
    o_ref : (1, Mw, tn)  f32   wide output (W+2 cols per row, 2 garbage cols)
    """
    @pl.when(pl.program_id(1) == 0)
    def _():
        h32_ref[...] = h_ref[0].astype(jnp.float32)
        x32_ref[...] = x_ref[0].astype(jnp.float32)

    s, b = s_ref[...], b_ref[...]
    si, bi = si_ref[...], bi_ref[...]
    ioff = 2 * W2 + 2                        # center-tap window of padded x
    for r0 in range(0, Mw, chunk):
        rows = min(chunk, Mw - r0)
        acc = None
        for t in range(9):
            off = (t // 3) * W2 + (t % 3) + r0
            ht = h32_ref[pl.ds(off, rows), :].astype(jnp.bfloat16)
            d = jnp.dot(ht, w_ref[t], preferred_element_type=jnp.float32)
            acc = d if acc is None else acc + d
        y = acc * s + b                                          # conv2 + BN2
        xi = x32_ref[pl.ds(ioff + r0, rows), :].astype(jnp.bfloat16)
        iden = jnp.dot(xi, wi_ref[...], preferred_element_type=jnp.float32)
        o_ref[0, pl.ds(r0, rows), :] = jnp.maximum(y + (iden * si + bi), 0.0)


# --------------------------- kernel wrappers ----------------------------------

def conv1_bn_relu(xf, w9, scale, bias, mask, *, H, W, cin, cout):
    N, Fi, Ck = xf.shape
    Cop = w9.shape[-1]
    W2 = W + 2
    Fo = (H + 3) * W2
    tn = _pick_tn(Cop)
    chunk = 256 if tn == LANE else 128

    block_bytes = (Fi * Ck * 2 + 9 * Ck * tn * 2 + Fo * tn * 2
                   + Fi * Ck * 4 + Fo * 4 + 4 * tn * 4)
    flops = 2 * 9 * N * Fo * cin * cout
    bytes_acc = N * (Fi * Ck * 2 + Fo * Cop * 2) + 9 * Ck * Cop * 2

    return pl.pallas_call(
        functools.partial(_conv1_kernel, W2=W2, Fo=Fo, chunk=chunk),
        out_shape=jax.ShapeDtypeStruct((N, Fo, Cop), jnp.bfloat16),
        grid_spec=pltpu.PrefetchScalarGridSpec(
            num_scalar_prefetch=0,
            grid=(N, Cop // tn),
            in_specs=[
                pl.BlockSpec((1, Fi, Ck), lambda n, j: (n, 0, 0)),  # resident/n
                pl.BlockSpec((9, Ck, tn), lambda n, j: (0, 0, j)),
                pl.BlockSpec((1, tn), lambda n, j: (0, j)),
                pl.BlockSpec((1, tn), lambda n, j: (0, j)),
                pl.BlockSpec((Fo, 1), lambda n, j: (0, 0)),
            ],
            out_specs=pl.BlockSpec((1, Fo, tn), lambda n, j: (n, 0, j)),
            scratch_shapes=[pltpu.VMEM((Fi, Ck), jnp.float32)],
        ),
        compiler_params=_compiler_params(block_bytes),
        cost_estimate=pl.CostEstimate(flops=flops, transcendentals=0,
                                      bytes_accessed=bytes_acc),
    )(xf, w9, scale, bias, mask)


def conv2_identity_fused(h, xf, w9, wid, s2, b2, si, bi, *, H, W, cin, cout):
    N, Fo, Cop = h.shape
    _, Fi, Ck = xf.shape
    W2 = W + 2
    Mw = H * W2
    tn = _pick_tn(Cop)
    chunk = 256 if tn == LANE else 128

    block_bytes = (Fo * Cop * 2 + Fi * Ck * 2 + 9 * Cop * tn * 2 + Ck * tn * 2
                   + Mw * tn * 4 + Fo * Cop * 4 + Fi * Ck * 4)
    flops = 2 * N * Mw * (9 * cout + cin) * cout
    bytes_acc = (N * (Fo * Cop * 2 + Fi * Ck * 2 + Mw * Cop * 4)
                 + (9 * Cop + Ck) * Cop * 2)

    return pl.pallas_call(
        functools.partial(_conv2_kernel, W2=W2, Mw=Mw, chunk=chunk),
        out_shape=jax.ShapeDtypeStruct((N, Mw, Cop), jnp.float32),
        grid_spec=pltpu.PrefetchScalarGridSpec(
            num_scalar_prefetch=0,
            grid=(N, Cop // tn),
            in_specs=[
                pl.BlockSpec((1, Fo, Cop), lambda n, j: (n, 0, 0)),  # resident
                pl.BlockSpec((1, Fi, Ck), lambda n, j: (n, 0, 0)),   # resident
                pl.BlockSpec((9, Cop, tn), lambda n, j: (0, 0, j)),
                pl.BlockSpec((Ck, tn), lambda n, j: (0, j)),
                pl.BlockSpec((1, tn), lambda n, j: (0, j)),
                pl.BlockSpec((1, tn), lambda n, j: (0, j)),
                pl.BlockSpec((1, tn), lambda n, j: (0, j)),
                pl.BlockSpec((1, tn), lambda n, j: (0, j)),
            ],
            out_specs=pl.BlockSpec((1, Mw, tn), lambda n, j: (n, 0, j)),
            scratch_shapes=[pltpu.VMEM((Fo, Cop), jnp.float32),
                            pltpu.VMEM((Fi, Ck), jnp.float32)],
        ),
        compiler_params=_compiler_params(block_bytes),
        cost_estimate=pl.CostEstimate(flops=flops, transcendentals=0,
                                      bytes_accessed=bytes_acc),
    )(h, xf, w9, wid, s2, b2, si, bi)


# ------------------------------ parameters ------------------------------------

def _fold_bn(gamma, beta, mean, var, conv_bias):
    scale = gamma / jnp.sqrt(var + BN_EPS)
    bias = (conv_bias - mean) * scale + beta
    return scale, bias


def init_params(key, in_channels, out_channels):
    """Random DoubleConv params, pre-padded / pre-laid-out for the kernels."""
    Ck = _rnd(in_channels, LANE)
    Cop = _rnd(out_channels, LANE)
    keys = jax.random.split(key, 6)

    def conv_w(k, kh, kw, cin, cout):
        bound = 1.0 / math.sqrt(kh * kw * cin)
        return jax.random.uniform(k, (kh, kw, cin, cout), jnp.float32,
                                  -bound, bound)

    def conv_b(k, fan_in, cout):
        bound = 1.0 / math.sqrt(fan_in)
        return jax.random.uniform(k, (cout,), jnp.float32, -bound, bound)

    def bn_default(c):  # fresh nn.BatchNorm2d: gamma=1, beta=0, mean=0, var=1
        return (jnp.ones((c,), jnp.float32), jnp.zeros((c,), jnp.float32),
                jnp.zeros((c,), jnp.float32), jnp.ones((c,), jnp.float32))

    def pad_sb(sb):
        s, b = sb
        pad = Cop - out_channels
        return (jnp.pad(s, (0, pad)).reshape(1, Cop),
                jnp.pad(b, (0, pad)).reshape(1, Cop))

    # conv1: 3x3 in -> out
    w1 = conv_w(keys[0], 3, 3, in_channels, out_channels).reshape(
        9, in_channels, out_channels)
    w1 = jnp.pad(w1, ((0, 0), (0, Ck - in_channels), (0, Cop - out_channels)))
    s1, b1 = pad_sb(_fold_bn(*bn_default(out_channels),
                             conv_b(keys[3], 9 * in_channels, out_channels)))
    # conv2: 3x3 out -> out
    w2 = conv_w(keys[1], 3, 3, out_channels, out_channels).reshape(
        9, out_channels, out_channels)
    w2 = jnp.pad(w2, ((0, 0), (0, Cop - out_channels), (0, Cop - out_channels)))
    s2, b2 = pad_sb(_fold_bn(*bn_default(out_channels),
                             conv_b(keys[4], 9 * out_channels, out_channels)))
    # identity: 1x1 in -> out
    wi = conv_w(keys[2], 1, 1, in_channels, out_channels).reshape(
        in_channels, out_channels)
    wi = jnp.pad(wi, ((0, Ck - in_channels), (0, Cop - out_channels)))
    si, bi = pad_sb(_fold_bn(*bn_default(out_channels),
                             conv_b(keys[5], in_channels, out_channels)))

    return {
        'w1': w1.astype(jnp.bfloat16), 's1': s1, 'b1': b1,
        'w2': w2.astype(jnp.bfloat16), 's2': s2, 'b2': b2,
        'w_id': wi.astype(jnp.bfloat16), 's_id': si, 'b_id': bi,
        'in_channels': in_channels, 'out_channels': out_channels,
    }


# -------------------------------- forward --------------------------------------

def double_conv_forward(params, x_nchw):
    """relu( bn2(conv2(relu(bn1(conv1(x))))) + bn_id(conv_id(x)) ), NCHW in/out."""
    N, Cin, H, W = x_nchw.shape
    Ck, Cop = params['w_id'].shape
    cout = params['out_channels']
    W2 = W + 2
    Fi = (H + 6) * W2            # x padding: top 2, bottom 4, left 2, right 0
    Fo = (H + 3) * W2            # conv2's input layout: top 1, bottom 2, l/r 1

    # NCHW -> NHWC, bf16, spatial pad + lane-pad of C, flatten: ONE copy pass.
    x = jnp.transpose(x_nchw, (0, 2, 3, 1)).astype(jnp.bfloat16)
    xf = jnp.pad(x, ((0, 0), (2, 4), (2, 0), (0, Ck - Cin))).reshape(N, Fi, Ck)

    # Interior mask for conv1's padded-layout output: 1 at real pixels, 0 at
    # the 3 halo rows and the 2 pad columns of every row.
    r = jnp.arange(Fo, dtype=jnp.int32)
    p, q = r // W2, r % W2
    mask = (((p >= 1) & (p <= H) & (q >= 1) & (q <= W))
            .astype(jnp.float32).reshape(Fo, 1))

    # conv1 + BN1 + ReLU, emitted directly in conv2's padded input layout.
    h = conv1_bn_relu(xf, params['w1'], params['s1'], params['b1'], mask,
                      H=H, W=W, cin=Cin, cout=cout)
    # conv2 + BN2 fused with the 1x1 identity branch, residual add and ReLU.
    y = conv2_identity_fused(h, xf, params['w2'], params['w_id'],
                             params['s2'], params['b2'],
                             params['s_id'], params['b_id'],
                             H=H, W=W, cin=Cin, cout=cout)

    y = y.reshape(N, H, W2, Cop)[:, :, :W, :cout]   # drop garbage cols / pad C
    return jnp.transpose(y, (0, 3, 1, 2))           # NHWC -> NCHW


# ---------------------------- pure-JAX reference --------------------------------

def _reference(params, x_nchw, cin, cout):
    """Same math in plain JAX/XLA (bf16-stored weights, f32 compute)."""
    def conv3(x, w9, s, b, ci, co):
        wt = w9.astype(jnp.float32)[:, :ci, :co].reshape(3, 3, ci, co)
        y = jax.lax.conv_general_dilated(
            x, wt, (1, 1), ((1, 1), (1, 1)),
            dimension_numbers=('NHWC', 'HWIO', 'NHWC'))
        return y * s[0, :co] + b[0, :co]

    xh = jnp.transpose(x_nchw, (0, 2, 3, 1)).astype(jnp.float32)
    h = jax.nn.relu(conv3(xh, params['w1'], params['s1'], params['b1'], cin, cout))
    h = conv3(h, params['w2'], params['s2'], params['b2'], cout, cout)
    iden = jnp.einsum('nhwc,cd->nhwd', xh,
                      params['w_id'].astype(jnp.float32)[:cin, :cout])
    iden = iden * params['s_id'][0, :cout] + params['b_id'][0, :cout]
    return jnp.transpose(jax.nn.relu(h + iden), (0, 3, 1, 2))


if __name__ == "__main__":
    key = jax.random.PRNGKey(0)
    pkey, xkey = jax.random.split(key)
    in_channels, out_channels = 4, 8
    params = init_params(pkey, in_channels, out_channels)
    x = jax.random.normal(xkey, (2, in_channels, 16, 16), jnp.float32)

    fwd = jax.jit(lambda inp: double_conv_forward(params, inp))
    out = jax.block_until_ready(fwd(x))

    assert out.shape == (2, out_channels, 16, 16), out.shape
    assert bool(jnp.all(jnp.isfinite(out)))
    assert bool(jnp.all(out >= 0.0))  # final ReLU

    ref = _reference(params, x, in_channels, out_channels)
    assert bool(jnp.allclose(out, ref, atol=5e-2, rtol=5e-2)), (
        float(jnp.max(jnp.abs(out - ref))))

    print("KERNEL_OK")
</pallas_src>

<mosaic_0001>
module attributes {stable_mosaic.version = 11 : i64} {
  func.func @_conv1_kernel(%arg0: i32, %arg1: i32, %arg2: memref<1x396x128xbf16, #tpu.memory_space<vmem>>, %arg3: memref<9x128x128xbf16, #tpu.memory_space<vmem>>, %arg4: memref<1x128xf32, #tpu.memory_space<vmem>>, %arg5: memref<1x128xf32, #tpu.memory_space<vmem>>, %arg6: memref<342x1xf32, #tpu.memory_space<vmem>>, %arg7: memref<1x342x128xbf16, #tpu.memory_space<vmem>>, %arg8: memref<396x128xf32, #tpu.memory_space<vmem>>) attributes {dimension_semantics = [#tpu.dimension_semantics<parallel>, #tpu.dimension_semantics<arbitrary>], iteration_bounds = array<i64: 2, 1>, scalar_prefetch = 0 : i64, scratch_operands = 1 : i64, tpu.core_type = #tpu.core_type<tc>, window_params = [{transform_indices = @transform_0, window_bounds = array<i64: 1, 396, 128>}, {transform_indices = @transform_1, window_bounds = array<i64: 9, 128, 128>}, {transform_indices = @transform_2, window_bounds = array<i64: 1, 128>}, {transform_indices = @transform_3, window_bounds = array<i64: 1, 128>}, {pipeline_mode = #tpu.pipeline_mode<synchronous>, transform_indices = @transform_4, window_bounds = array<i64: 342, 1>}, {transform_indices = @transform_5, window_bounds = array<i64: 1, 342, 128>}]} {
    %c0_i32 = arith.constant 0 : i32
    %0 = arith.cmpi eq, %arg1, %c0_i32 : i32
    %1 = arith.extui %0 : i1 to i32
    %c0_i32_0 = arith.constant 0 : i32
    %2 = arith.cmpi ne, %1, %c0_i32_0 : i32
    scf.if %2 {
      %c0_100 = arith.constant 0 : index
      %c0_101 = arith.constant 0 : index
      %c0_102 = arith.constant 0 : index
      %137 = vector.load %arg2[%c0_100, %c0_101, %c0_102] : memref<1x396x128xbf16, #tpu.memory_space<vmem>>, vector<1x396x128xbf16>
      %138 = vector.shape_cast %137 : vector<1x396x128xbf16> to vector<396x128xbf16>
      %139 = arith.extf %138 : vector<396x128xbf16> to vector<396x128xf32>
      %c0_103 = arith.constant 0 : index
      %c0_104 = arith.constant 0 : index
      %140 = vector.load %arg8[%c0_103, %c0_104] : memref<396x128xf32, #tpu.memory_space<vmem>>, vector<396x128xf32>
      tpu.vector_store %arg8[%c0_103, %c0_104], %139 {strides = array<i32>} : memref<396x128xf32, #tpu.memory_space<vmem>>, vector<396x128xf32>,
    } else {
    }
    %c0 = arith.constant 0 : index
    %c0_1 = arith.constant 0 : index
    %3 = vector.load %arg4[%c0, %c0_1] : memref<1x128xf32, #tpu.memory_space<vmem>>, vector<1x128xf32>
    %c0_2 = arith.constant 0 : index
    %c0_3 = arith.constant 0 : index
    %4 = vector.load %arg5[%c0_2, %c0_3] : memref<1x128xf32, #tpu.memory_space<vmem>>, vector<1x128xf32>
    %c0_4 = arith.constant 0 : index
    %c0_5 = arith.constant 0 : index
    %5 = vector.load %arg8[%c0_4, %c0_5] : memref<396x128xf32, #tpu.memory_space<vmem>>, vector<256x128xf32>
    %6 = arith.truncf %5 : vector<256x128xf32> to vector<256x128xbf16>
    %c0_6 = arith.constant 0 : index
    %c0_7 = arith.constant 0 : index
    %c0_8 = arith.constant 0 : index
    %7 = vector.load %arg3[%c0_6, %c0_7, %c0_8] : memref<9x128x128xbf16, #tpu.memory_space<vmem>>, vector<1x128x128xbf16>
    %8 = vector.shape_cast %7 : vector<1x128x128xbf16> to vector<128x128xbf16>
    %cst = arith.constant dense<0.000000e+00> : vector<256x128xf32>
    %9 = tpu.matmul %6, %8, %cst {dimension_numbers = #tpu.dot_dimension_numbers<[1], [0], [0], [1], [0, 0, 1, 1], [], []>} : vector<256x128xbf16>, vector<128x128xbf16>, vector<256x128xf32> -> vector<256x128xf32>
    %c1 = arith.constant 1 : index
    %c0_9 = arith.constant 0 : index
    %10 = vector.load %arg8[%c1, %c0_9] : memref<396x128xf32, #tpu.memory_space<vmem>>, vector<256x128xf32>
    %11 = arith.truncf %10 : vector<256x128xf32> to vector<256x128xbf16>
    %c1_10 = arith.constant 1 : index
    %c0_11 = arith.constant 0 : index
    %c0_12 = arith.constant 0 : index
    %12 = vector.load %arg3[%c1_10, %c0_11, %c0_12] : memref<9x128x128xbf16, #tpu.memory_space<vmem>>, vector<1x128x128xbf16>
    %13 = vector.shape_cast %12 : vector<1x128x128xbf16> to vector<128x128xbf16>
    %cst_13 = arith.constant dense<0.000000e+00> : vector<256x128xf32>
    %14 = tpu.matmul %11, %13, %cst_13 {dimension_numbers = #tpu.dot_dimension_numbers<[1], [0], [0], [1], [0, 0, 1, 1], [], []>} : vector<256x128xbf16>, vector<128x128xbf16>, vector<256x128xf32> -> vector<256x128xf32>
    %15 = arith.addf %9, %14 : vector<256x128xf32>
    %c2 = arith.constant 2 : index
    %c0_14 = arith.constant 0 : index
    %16 = vector.load %arg8[%c2, %c0_14] : memref<396x128xf32, #tpu.memory_space<vmem>>, vector<256x128xf32>
    %17 = arith.truncf %16 : vector<256x128xf32> to vector<256x128xbf16>
    %c2_15 = arith.constant 2 : index
    %c0_16 = arith.constant 0 : index
    %c0_17 = arith.constant 0 : index
    %18 = vector.load %arg3[%c2_15, %c0_16, %c0_17] : memref<9x128x128xbf16, #tpu.memory_space<vmem>>, vector<1x128x128xbf16>
    %19 = vector.shape_cast %18 : vector<1x128x128xbf16> to vector<128x128xbf16>
    %cst_18 = arith.constant dense<0.000000e+00> : vector<256x128xf32>
    %20 = tpu.matmul %17, %19, %cst_18 {dimension_numbers = #tpu.dot_dimension_numbers<[1], [0], [0], [1], [0, 0, 1, 1], [], []>} : vector<256x128xbf16>, vector<128x128xbf16>, vector<256x128xf32> -> vector<256x128xf32>
    %21 = arith.addf %15, %20 : vector<256x128xf32>
    %c18 = arith.constant 18 : index
    %c0_19 = arith.constant 0 : index
    %22 = vector.load %arg8[%c18, %c0_19] : memref<396x128xf32, #tpu.memory_space<vmem>>, vector<256x128xf32>
    %23 = arith.truncf %22 : vector<256x128xf32> to vector<256x128xbf16>
    %c3 = arith.constant 3 : index
    %c0_20 = arith.constant 0 : index
    %c0_21 = arith.constant 0 : index
    %24 = vector.load %arg3[%c3, %c0_20, %c0_21] : memref<9x128x128xbf16, #tpu.memory_space<vmem>>, vector<1x128x128xbf16>
    %25 = vector.shape_cast %24 : vector<1x128x128xbf16> to vector<128x128xbf16>
    %cst_22 = arith.constant dense<0.000000e+00> : vector<256x128xf32>
    %26 = tpu.matmul %23, %25, %cst_22 {dimension_numbers = #tpu.dot_dimension_numbers<[1], [0], [0], [1], [0, 0, 1, 1], [], []>} : vector<256x128xbf16>, vector<128x128xbf16>, vector<256x128xf32> -> vector<256x128xf32>
    %27 = arith.addf %21, %26 : vector<256x128xf32>
    %c19 = arith.constant 19 : index
    %c0_23 = arith.constant 0 : index
    %28 = vector.load %arg8[%c19, %c0_23] : memref<396x128xf32, #tpu.memory_space<vmem>>, vector<256x128xf32>
    %29 = arith.truncf %28 : vector<256x128xf32> to vector<256x128xbf16>
    %c4 = arith.constant 4 : index
    %c0_24 = arith.constant 0 : index
    %c0_25 = arith.constant 0 : index
    %30 = vector.load %arg3[%c4, %c0_24, %c0_25] : memref<9x128x128xbf16, #tpu.memory_space<vmem>>, vector<1x128x128xbf16>
    %31 = vector.shape_cast %30 : vector<1x128x128xbf16> to vector<128x128xbf16>
    %cst_26 = arith.constant dense<0.000000e+00> : vector<256x128xf32>
    %32 = tpu.matmul %29, %31, %cst_26 {dimension_numbers = #tpu.dot_dimension_numbers<[1], [0], [0], [1], [0, 0, 1, 1], [], []>} : vector<256x128xbf16>, vector<128x128xbf16>, vector<256x128xf32> -> vector<256x128xf32>
    %33 = arith.addf %27, %32 : vector<256x128xf32>
    %c20 = arith.constant 20 : index
    %c0_27 = arith.constant 0 : index
    %34 = vector.load %arg8[%c20, %c0_27] : memref<396x128xf32, #tpu.memory_space<vmem>>, vector<256x128xf32>
    %35 = arith.truncf %34 : vector<256x128xf32> to vector<256x128xbf16>
    %c5 = arith.constant 5 : index
    %c0_28 = arith.constant 0 : index
    %c0_29 = arith.constant 0 : index
    %36 = vector.load %arg3[%c5, %c0_28, %c0_29] : memref<9x128x128xbf16, #tpu.memory_space<vmem>>, vector<1x128x128xbf16>
    %37 = vector.shape_cast %36 : vector<1x128x128xbf16> to vector<128x128xbf16>
    %cst_30 = arith.constant dense<0.000000e+00> : vector<256x128xf32>
    %38 = tpu.matmul %35, %37, %cst_30 {dimension_numbers = #tpu.dot_dimension_numbers<[1], [0], [0], [1], [0, 0, 1, 1], [], []>} : vector<256x128xbf16>, vector<128x128xbf16>, vector<256x128xf32> -> vector<256x128xf32>
    %39 = arith.addf %33, %38 : vector<256x128xf32>
    %c36 = arith.constant 36 : index
    %c0_31 = arith.constant 0 : index
    %40 = vector.load %arg8[%c36, %c0_31] : memref<396x128xf32, #tpu.memory_space<vmem>>, vector<256x128xf32>
    %41 = arith.truncf %40 : vector<256x128xf32> to vector<256x128xbf16>
    %c6 = arith.constant 6 : index
    %c0_32 = arith.constant 0 : index
    %c0_33 = arith.constant 0 : index
    %42 = vector.load %arg3[%c6, %c0_32, %c0_33] : memref<9x128x128xbf16, #tpu.memory_space<vmem>>, vector<1x128x128xbf16>
    %43 = vector.shape_cast %42 : vector<1x128x128xbf16> to vector<128x128xbf16>
    %cst_34 = arith.constant dense<0.000000e+00> : vector<256x128xf32>
    %44 = tpu.matmul %41, %43, %cst_34 {dimension_numbers = #tpu.dot_dimension_numbers<[1], [0], [0], [1], [0, 0, 1, 1], [], []>} : vector<256x128xbf16>, vector<128x128xbf16>, vector<256x128xf32> -> vector<256x128xf32>
    %45 = arith.addf %39, %44 : vector<256x128xf32>
    %c37 = arith.constant 37 : index
    %c0_35 = arith.constant 0 : index
    %46 = vector.load %arg8[%c37, %c0_35] : memref<396x128xf32, #tpu.memory_space<vmem>>, vector<256x128xf32>
    %47 = arith.truncf %46 : vector<256x128xf32> to vector<256x128xbf16>
    %c7 = arith.constant 7 : index
    %c0_36 = arith.constant 0 : index
    %c0_37 = arith.constant 0 : index
    %48 = vector.load %arg3[%c7, %c0_36, %c0_37] : memref<9x128x128xbf16, #tpu.memory_space<vmem>>, vector<1x128x128xbf16>
    %49 = vector.shape_cast %48 : vector<1x128x128xbf16> to vector<128x128xbf16>
    %cst_38 = arith.constant dense<0.000000e+00> : vector<256x128xf32>
    %50 = tpu.matmul %47, %49, %cst_38 {dimension_numbers = #tpu.dot_dimension_numbers<[1], [0], [0], [1], [0, 0, 1, 1], [], []>} : vector<256x128xbf16>, vector<128x128xbf16>, vector<256x128xf32> -> vector<256x128xf32>
    %51 = arith.addf %45, %50 : vector<256x128xf32>
    %c38 = arith.constant 38 : index
    %c0_39 = arith.constant 0 : index
    %52 = vector.load %arg8[%c38, %c0_39] : memref<396x128xf32, #tpu.memory_space<vmem>>, vector<256x128xf32>
    %53 = arith.truncf %52 : vector<256x128xf32> to vector<256x128xbf16>
    %c8 = arith.constant 8 : index
    %c0_40 = arith.constant 0 : index
    %c0_41 = arith.constant 0 : index
    %54 = vector.load %arg3[%c8, %c0_40, %c0_41] : memref<9x128x128xbf16, #tpu.memory_space<vmem>>, vector<1x128x128xbf16>
    %55 = vector.shape_cast %54 : vector<1x128x128xbf16> to vector<128x128xbf16>
    %cst_42 = arith.constant dense<0.000000e+00> : vector<256x128xf32>
    %56 = tpu.matmul %53, %55, %cst_42 {dimension_numbers = #tpu.dot_dimension_numbers<[1], [0], [0], [1], [0, 0, 1, 1], [], []>} : vector<256x128xbf16>, vector<128x128xbf16>, vector<256x128xf32> -> vector<256x128xf32>
    %57 = arith.addf %51, %56 : vector<256x128xf32>
    %58 = vector.broadcast %3 : vector<1x128xf32> to vector<256x128xf32>
    %59 = arith.mulf %57, %58 : vector<256x128xf32>
    %60 = vector.broadcast %4 : vector<1x128xf32> to vector<256x128xf32>
    %61 = arith.addf %59, %60 : vector<256x128xf32>
    %cst_43 = arith.constant 0.000000e+00 : f32
    %62 = vector.broadcast %cst_43 : f32 to vector<256x128xf32>
    %63 = arith.maximumf %61, %62 : vector<256x128xf32>
    %c0_44 = arith.constant 0 : index
    %c0_45 = arith.constant 0 : index
    %64 = vector.load %arg6[%c0_44, %c0_45] : memref<342x1xf32, #tpu.memory_space<vmem>>, vector<256x1xf32>
    %65 = vector.broadcast %64 : vector<256x1xf32> to vector<256x128xf32>
    %66 = arith.mulf %63, %65 : vector<256x128xf32>
    %67 = arith.truncf %66 : vector<256x128xf32> to vector<256x128xbf16>
    %c0_46 = arith.constant 0 : index
    %c0_47 = arith.constant 0 : index
    %c0_48 = arith.constant 0 : index
    %68 = vector.load %arg7[%c0_46, %c0_47, %c0_48] : memref<1x342x128xbf16, #tpu.memory_space<vmem>>, vector<1x256x128xbf16>
    %69 = vector.shape_cast %68 : vector<1x256x128xbf16> to vector<256x128xbf16>
    %70 = vector.shape_cast %67 : vector<256x128xbf16> to vector<1x256x128xbf16>
    tpu.vector_store %arg7[%c0_46, %c0_47, %c0_48], %70 {strides = array<i32>} : memref<1x342x128xbf16, #tpu.memory_space<vmem>>, vector<1x256x128xbf16>,
    %c256 = arith.constant 256 : index
    %c0_49 = arith.constant 0 : index
    %71 = vector.load %arg8[%c256, %c0_49] : memref<396x128xf32, #tpu.memory_space<vmem>>, vector<86x128xf32>
    %72 = arith.truncf %71 : vector<86x128xf32> to vector<86x128xbf16>
    %c0_50 = arith.constant 0 : index
    %c0_51 = arith.constant 0 : index
    %c0_52 = arith.constant 0 : index
    %73 = vector.load %arg3[%c0_50, %c0_51, %c0_52] : memref<9x128x128xbf16, #tpu.memory_space<vmem>>, vector<1x128x128xbf16>
    %74 = vector.shape_cast %73 : vector<1x128x128xbf16> to vector<128x128xbf16>
    %cst_53 = arith.constant dense<0.000000e+00> : vector<86x128xf32>
    %75 = tpu.matmul %72, %74, %cst_53 {dimension_numbers = #tpu.dot_dimension_numbers<[1], [0], [0], [1], [0, 0, 1, 1], [], []>} : vector<86x128xbf16>, vector<128x128xbf16>, vector<86x128xf32> -> vector<86x128xf32>
    %c257 = arith.constant 257 : index
    %c0_54 = arith.constant 0 : index
    %76 = vector.load %arg8[%c257, %c0_54] : memref<396x128xf32, #tpu.memory_space<vmem>>, vector<86x128xf32>
    %77 = arith.truncf %76 : vector<86x128xf32> to vector<86x128xbf16>
    %c1_55 = arith.constant 1 : index
    %c0_56 = arith.constant 0 : index
    %c0_57 = arith.constant 0 : index
    %78 = vector.load %arg3[%c1_55, %c0_56, %c0_57] : memref<9x128x128xbf16, #tpu.memory_space<vmem>>, vector<1x128x128xbf16>
    %79 = vector.shape_cast %78 : vector<1x128x128xbf16> to vector<128x128xbf16>
    %cst_58 = arith.constant dense<0.000000e+00> : vector<86x128xf32>
    %80 = tpu.matmul %77, %79, %cst_58 {dimension_numbers = #tpu.dot_dimension_numbers<[1], [0], [0], [1], [0, 0, 1, 1], [], []>} : vector<86x128xbf16>, vector<128x128xbf16>, vector<86x128xf32> -> vector<86x128xf32>
    %81 = arith.addf %75, %80 : vector<86x128xf32>
    %c258 = arith.constant 258 : index
    %c0_59 = arith.constant 0 : index
    %82 = vector.load %arg8[%c258, %c0_59] : memref<396x128xf32, #tpu.memory_space<vmem>>, vector<86x128xf32>
    %83 = arith.truncf %82 : vector<86x128xf32> to vector<86x128xbf16>
    %c2_60 = arith.constant 2 : index
    %c0_61 = arith.constant 0 : index
    %c0_62 = arith.constant 0 : index
    %84 = vector.load %arg3[%c2_60, %c0_61, %c0_62] : memref<9x128x128xbf16, #tpu.memory_space<vmem>>, vector<1x128x128xbf16>
    %85 = vector.shape_cast %84 : vector<1x128x128xbf16> to vector<128x128xbf16>
    %cst_63 = arith.constant dense<0.000000e+00> : vector<86x128xf32>
    %86 = tpu.matmul %83, %85, %cst_63 {dimension_numbers = #tpu.dot_dimension_numbers<[1], [0], [0], [1], [0, 0, 1, 1], [], []>} : vector<86x128xbf16>, vector<128x128xbf16>, vector<86x128xf32> -> vector<86x128xf32>
    %87 = arith.addf %81, %86 : vector<86x128xf32>
    %c274 = arith.constant 274 : index
    %c0_64 = arith.constant 0 : index
    %88 = vector.load %arg8[%c274, %c0_64] : memref<396x128xf32, #tpu.memory_space<vmem>>, vector<86x128xf32>
    %89 = arith.truncf %88 : vector<86x128xf32> to vector<86x128xbf16>
    %c3_65 = arith.constant 3 : index
    %c0_66 = arith.constant 0 : index
    %c0_67 = arith.constant 0 : index
    %90 = vector.load %arg3[%c3_65, %c0_66, %c0_67] : memref<9x128x128xbf16, #tpu.memory_space<vmem>>, vector<1x128x128xbf16>
    %91 = vector.shape_cast %90 : vector<1x128x128xbf16> to vector<128x128xbf16>
    %cst_68 = arith.constant dense<0.000000e+00> : vector<86x128xf32>
    %92 = tpu.matmul %89, %91, %cst_68 {dimension_numbers = #tpu.dot_dimension_numbers<[1], [0], [0], [1], [0, 0, 1, 1], [], []>} : vector<86x128xbf16>, vector<128x128xbf16>, vector<86x128xf32> -> vector<86x128xf32>
    %93 = arith.addf %87, %92 : vector<86x128xf32>
    %c275 = arith.constant 275 : index
    %c0_69 = arith.constant 0 : index
    %94 = vector.load %arg8[%c275, %c0_69] : memref<396x128xf32, #tpu.memory_space<vmem>>, vector<86x128xf32>
    %95 = arith.truncf %94 : vector<86x128xf32> to vector<86x128xbf16>
    %c4_70 = arith.constant 4 : index
    %c0_71 = arith.constant 0 : index
    %c0_72 = arith.constant 0 : index
    %96 = vector.load %arg3[%c4_70, %c0_71, %c0_72] : memref<9x128x128xbf16, #tpu.memory_space<vmem>>, vector<1x128x128xbf16>
    %97 = vector.shape_cast %96 : vector<1x128x128xbf16> to vector<128x128xbf16>
    %cst_73 = arith.constant dense<0.000000e+00> : vector<86x128xf32>
    %98 = tpu.matmul %95, %97, %cst_73 {dimension_numbers = #tpu.dot_dimension_numbers<[1], [0], [0], [1], [0, 0, 1, 1], [], []>} : vector<86x128xbf16>, vector<128x128xbf16>, vector<86x128xf32> -> vector<86x128xf32>
    %99 = arith.addf %93, %98 : vector<86x128xf32>
    %c276 = arith.constant 276 : index
    %c0_74 = arith.constant 0 : index
    %100 = vector.load %arg8[%c276, %c0_74] : memref<396x128xf32, #tpu.memory_space<vmem>>, vector<86x128xf32>
    %101 = arith.truncf %100 : vector<86x128xf32> to vector<86x128xbf16>
    %c5_75 = arith.constant 5 : index
    %c0_76 = arith.constant 0 : index
    %c0_77 = arith.constant 0 : index
    %102 = vector.load %arg3[%c5_75, %c0_76, %c0_77] : memref<9x128x128xbf16, #tpu.memory_space<vmem>>, vector<1x128x128xbf16>
    %103 = vector.shape_cast %102 : vector<1x128x128xbf16> to vector<128x128xbf16>
    %cst_78 = arith.constant dense<0.000000e+00> : vector<86x128xf32>
    %104 = tpu.matmul %101, %103, %cst_78 {dimension_numbers = #tpu.dot_dimension_numbers<[1], [0], [0], [1], [0, 0, 1, 1], [], []>} : vector<86x128xbf16>, vector<128x128xbf16>, vector<86x128xf32> -> vector<86x128xf32>
    %105 = arith.addf %99, %104 : vector<86x128xf32>
    %c292 = arith.constant 292 : index
    %c0_79 = arith.constant 0 : index
    %106 = vector.load %arg8[%c292, %c0_79] : memref<396x128xf32, #tpu.memory_space<vmem>>, vector<86x128xf32>
    %107 = arith.truncf %106 : vector<86x128xf32> to vector<86x128xbf16>
    %c6_80 = arith.constant 6 : index
    %c0_81 = arith.constant 0 : index
    %c0_82 = arith.constant 0 : index
    %108 = vector.load %arg3[%c6_80, %c0_81, %c0_82] : memref<9x128x128xbf16, #tpu.memory_space<vmem>>, vector<1x128x128xbf16>
    %109 = vector.shape_cast %108 : vector<1x128x128xbf16> to vector<128x128xbf16>
    %cst_83 = arith.constant dense<0.000000e+00> : vector<86x128xf32>
    %110 = tpu.matmul %107, %109, %cst_83 {dimension_numbers = #tpu.dot_dimension_numbers<[1], [0], [0], [1], [0, 0, 1, 1], [], []>} : vector<86x128xbf16>, vector<128x128xbf16>, vector<86x128xf32> -> vector<86x128xf32>
    %111 = arith.addf %105, %110 : vector<86x128xf32>
    %c293 = arith.constant 293 : index
    %c0_84 = arith.constant 0 : index
    %112 = vector.load %arg8[%c293, %c0_84] : memref<396x128xf32, #tpu.memory_space<vmem>>, vector<86x128xf32>
    %113 = arith.truncf %112 : vector<86x128xf32> to vector<86x128xbf16>
    %c7_85 = arith.constant 7 : index
    %c0_86 = arith.constant 0 : index
    %c0_87 = arith.constant 0 : index
    %114 = vector.load %arg3[%c7_85, %c0_86, %c0_87] : memref<9x128x128xbf16, #tpu.memory_space<vmem>>, vector<1x128x128xbf16>
    %115 = vector.shape_cast %114 : vector<1x128x128xbf16> to vector<128x128xbf16>
    %cst_88 = arith.constant dense<0.000000e+00> : vector<86x128xf32>
    %116 = tpu.matmul %113, %115, %cst_88 {dimension_numbers = #tpu.dot_dimension_numbers<[1], [0], [0], [1], [0, 0, 1, 1], [], []>} : vector<86x128xbf16>, vector<128x128xbf16>, vector<86x128xf32> -> vector<86x128xf32>
    %117 = arith.addf %111, %116 : vector<86x128xf32>
    %c294 = arith.constant 294 : index
    %c0_89 = arith.constant 0 : index
    %118 = vector.load %arg8[%c294, %c0_89] : memref<396x128xf32, #tpu.memory_space<vmem>>, vector<86x128xf32>
    %119 = arith.truncf %118 : vector<86x128xf32> to vector<86x128xbf16>
    %c8_90 = arith.constant 8 : index
    %c0_91 = arith.constant 0 : index
    %c0_92 = arith.constant 0 : index
    %120 = vector.load %arg3[%c8_90, %c0_91, %c0_92] : memref<9x128x128xbf16, #tpu.memory_space<vmem>>, vector<1x128x128xbf16>
    %121 = vector.shape_cast %120 : vector<1x128x128xbf16> to vector<128x128xbf16>
    %cst_93 = arith.constant dense<0.000000e+00> : vector<86x128xf32>
    %122 = tpu.matmul %119, %121, %cst_93 {dimension_numbers = #tpu.dot_dimension_numbers<[1], [0], [0], [1], [0, 0, 1, 1], [], []>} : vector<86x128xbf16>, vector<128x128xbf16>, vector<86x128xf32> -> vector<86x128xf32>
    %123 = arith.addf %117, %122 : vector<86x128xf32>
    %124 = vector.broadcast %3 : vector<1x128xf32> to vector<86x128xf32>
    %125 = arith.mulf %123, %124 : vector<86x128xf32>
    %126 = vector.broadcast %4 : vector<1x128xf32> to vector<86x128xf32>
    %127 = arith.addf %125, %126 : vector<86x128xf32>
    %cst_94 = arith.constant 0.000000e+00 : f32
    %128 = vector.broadcast %cst_94 : f32 to vector<86x128xf32>
    %129 = arith.maximumf %127, %128 : vector<86x128xf32>
    %c256_95 = arith.constant 256 : index
    %c0_96 = arith.constant 0 : index
    %130 = vector.load %arg6[%c256_95, %c0_96] : memref<342x1xf32, #tpu.memory_space<vmem>>, vector<86x1xf32>
    %131 = vector.broadcast %130 : vector<86x1xf32> to vector<86x128xf32>
    %132 = arith.mulf %129, %131 : vector<86x128xf32>
    %133 = arith.truncf %132 : vector<86x128xf32> to vector<86x128xbf16>
    %c0_97 = arith.constant 0 : index
    %c256_98 = arith.constant 256 : index
    %c0_99 = arith.constant 0 : index
    %134 = vector.load %arg7[%c0_97, %c256_98, %c0_99] : memref<1x342x128xbf16, #tpu.memory_space<vmem>>, vector<1x86x128xbf16>
    %135 = vector.shape_cast %134 : vector<1x86x128xbf16> to vector<86x128xbf16>
    %136 = vector.shape_cast %133 : vector<86x128xbf16> to vector<1x86x128xbf16>
    tpu.vector_store %arg7[%c0_97, %c256_98, %c0_99], %136 {strides = array<i32>} : memref<1x342x128xbf16, #tpu.memory_space<vmem>>, vector<1x86x128xbf16>,
    return
  }
  func.func @transform_0(%arg0: i32, %arg1: i32) -> (i32, i32, i32) {
    %c0_i32 = arith.constant 0 : i32
    %c0_i32_0 = arith.constant 0 : i32
    %c0_i32_1 = arith.constant 0 : i32
    return %arg0, %c0_i32, %c0_i32_0 : i32, i32, i32
  }
  func.func @transform_1(%arg0: i32, %arg1: i32) -> (i32, i32, i32) {
    %c0_i32 = arith.constant 0 : i32
    %c0_i32_0 = arith.constant 0 : i32
    %c0_i32_1 = arith.constant 0 : i32
    return %c0_i32, %c0_i32_0, %arg1 : i32, i32, i32
  }
  func.func @transform_2(%arg0: i32, %arg1: i32) -> (i32, i32) {
    %c0_i32 = arith.constant 0 : i32
    %c0_i32_0 = arith.constant 0 : i32
    return %c0_i32, %arg1 : i32, i32
  }
  func.func @transform_3(%arg0: i32, %arg1: i32) -> (i32, i32) {
    %c0_i32 = arith.constant 0 : i32
    %c0_i32_0 = arith.constant 0 : i32
    return %c0_i32, %arg1 : i32, i32
  }
  func.func @transform_4(%arg0: i32, %arg1: i32) -> (i32, i32) {
    %c0_i32 = arith.constant 0 : i32
    %c0_i32_0 = arith.constant 0 : i32
    %c0_i32_1 = arith.constant 0 : i32
    return %c0_i32, %c0_i32_0 : i32, i32
  }
  func.func @transform_5(%arg0: i32, %arg1: i32) -> (i32, i32, i32) {
    %c0_i32 = arith.constant 0 : i32
    %c0_i32_0 = arith.constant 0 : i32
    return %arg0, %c0_i32, %arg1 : i32, i32, i32
  }
}

module attributes {stable_mosaic.version = 11 : i64} {
  func.func @_conv2_kernel(%arg0: i32, %arg1: i32, %arg2: memref<1x342x128xbf16, #tpu.memory_space<vmem>>, %arg3: memref<1x396x128xbf16, #tpu.memory_space<vmem>>, %arg4: memref<9x128x128xbf16, #tpu.memory_space<vmem>>, %arg5: memref<128x128xbf16, #tpu.memory_space<vmem>>, %arg6: memref<1x128xf32, #tpu.memory_space<vmem>>, %arg7: memref<1x128xf32, #tpu.memory_space<vmem>>, %arg8: memref<1x128xf32, #tpu.memory_space<vmem>>, %arg9: memref<1x128xf32, #tpu.memory_space<vmem>>, %arg10: memref<1x288x128xf32, #tpu.memory_space<vmem>>, %arg11: memref<342x128xf32, #tpu.memory_space<vmem>>, %arg12: memref<396x128xf32, #tpu.memory_space<vmem>>) attributes {dimension_semantics = [#tpu.dimension_semantics<parallel>, #tpu.dimension_semantics<arbitrary>], iteration_bounds = array<i64: 2, 1>, scalar_prefetch = 0 : i64, scratch_operands = 2 : i64, tpu.core_type = #tpu.core_type<tc>, window_params = [{transform_indices = @transform_0, window_bounds = array<i64: 1, 342, 128>}, {transform_indices = @transform_1, window_bounds = array<i64: 1, 396, 128>}, {transform_indices = @transform_2, window_bounds = array<i64: 9, 128, 128>}, {transform_indices = @transform_3, window_bounds = array<i64: 128, 128>}, {transform_indices = @transform_4, window_bounds = array<i64: 1, 128>}, {transform_indices = @transform_5, window_bounds = array<i64: 1, 128>}, {transform_indices = @transform_6, window_bounds = array<i64: 1, 128>}, {transform_indices = @transform_7, window_bounds = array<i64: 1, 128>}, {transform_indices = @transform_8, window_bounds = array<i64: 1, 288, 128>}]} {
    %c0_i32 = arith.constant 0 : i32
    %0 = arith.cmpi eq, %arg1, %c0_i32 : i32
    %1 = arith.extui %0 : i1 to i32
    %c0_i32_0 = arith.constant 0 : i32
    %2 = arith.cmpi ne, %1, %c0_i32_0 : i32
    scf.if %2 {
      %c0_110 = arith.constant 0 : index
      %c0_111 = arith.constant 0 : index
      %c0_112 = arith.constant 0 : index
      %149 = vector.load %arg2[%c0_110, %c0_111, %c0_112] : memref<1x342x128xbf16, #tpu.memory_space<vmem>>, vector<1x342x128xbf16>
      %150 = vector.shape_cast %149 : vector<1x342x128xbf16> to vector<342x128xbf16>
      %151 = arith.extf %150 : vector<342x128xbf16> to vector<342x128xf32>
      %c0_113 = arith.constant 0 : index
      %c0_114 = arith.constant 0 : index
      %152 = vector.load %arg11[%c0_113, %c0_114] : memref<342x128xf32, #tpu.memory_space<vmem>>, vector<342x128xf32>
      tpu.vector_store %arg11[%c0_113, %c0_114], %151 {strides = array<i32>} : memref<342x128xf32, #tpu.memory_space<vmem>>, vector<342x128xf32>,
      %c0_115 = arith.constant 0 : index
      %c0_116 = arith.constant 0 : index
      %c0_117 = arith.constant 0 : index
      %153 = vector.load %arg3[%c0_115, %c0_116, %c0_117] : memref<1x396x128xbf16, #tpu.memory_space<vmem>>, vector<1x396x128xbf16>
      %154 = vector.shape_cast %153 : vector<1x396x128xbf16> to vector<396x128xbf16>
      %155 = arith.extf %154 : vector<396x128xbf16> to vector<396x128xf32>
      %c0_118 = arith.constant 0 : index
      %c0_119 = arith.constant 0 : index
      %156 = vector.load %arg12[%c0_118, %c0_119] : memref<396x128xf32, #tpu.memory_space<vmem>>, vector<396x128xf32>
      tpu.vector_store %arg12[%c0_118, %c0_119], %155 {strides = array<i32>} : memref<396x128xf32, #tpu.memory_space<vmem>>, vector<396x128xf32>,
    } else {
    }
    %c0 = arith.constant 0 : index
    %c0_1 = arith.constant 0 : index
    %3 = vector.load %arg6[%c0, %c0_1] : memref<1x128xf32, #tpu.memory_space<vmem>>, vector<1x128xf32>
    %c0_2 = arith.constant 0 : index
    %c0_3 = arith.constant 0 : index
    %4 = vector.load %arg7[%c0_2, %c0_3] : memref<1x128xf32, #tpu.memory_space<vmem>>, vector<1x128xf32>
    %c0_4 = arith.constant 0 : index
    %c0_5 = arith.constant 0 : index
    %5 = vector.load %arg8[%c0_4, %c0_5] : memref<1x128xf32, #tpu.memory_space<vmem>>, vector<1x128xf32>
    %c0_6 = arith.constant 0 : index
    %c0_7 = arith.constant 0 : index
    %6 = vector.load %arg9[%c0_6, %c0_7] : memref<1x128xf32, #tpu.memory_space<vmem>>, vector<1x128xf32>
    %c0_8 = arith.constant 0 : index
    %c0_9 = arith.constant 0 : index
    %7 = vector.load %arg11[%c0_8, %c0_9] : memref<342x128xf32, #tpu.memory_space<vmem>>, vector<256x128xf32>
    %8 = arith.truncf %7 : vector<256x128xf32> to vector<256x128xbf16>
    %c0_10 = arith.constant 0 : index
    %c0_11 = arith.constant 0 : index
    %c0_12 = arith.constant 0 : index
    %9 = vector.load %arg4[%c0_10, %c0_11, %c0_12] : memref<9x128x128xbf16, #tpu.memory_space<vmem>>, vector<1x128x128xbf16>
    %10 = vector.shape_cast %9 : vector<1x128x128xbf16> to vector<128x128xbf16>
    %cst = arith.constant dense<0.000000e+00> : vector<256x128xf32>
    %11 = tpu.matmul %8, %10, %cst {dimension_numbers = #tpu.dot_dimension_numbers<[1], [0], [0], [1], [0, 0, 1, 1], [], []>} : vector<256x128xbf16>, vector<128x128xbf16>, vector<256x128xf32> -> vector<256x128xf32>
    %c1 = arith.constant 1 : index
    %c0_13 = arith.constant 0 : index
    %12 = vector.load %arg11[%c1, %c0_13] : memref<342x128xf32, #tpu.memory_space<vmem>>, vector<256x128xf32>
    %13 = arith.truncf %12 : vector<256x128xf32> to vector<256x128xbf16>
    %c1_14 = arith.constant 1 : index
    %c0_15 = arith.constant 0 : index
    %c0_16 = arith.constant 0 : index
    %14 = vector.load %arg4[%c1_14, %c0_15, %c0_16] : memref<9x128x128xbf16, #tpu.memory_space<vmem>>, vector<1x128x128xbf16>
    %15 = vector.shape_cast %14 : vector<1x128x128xbf16> to vector<128x128xbf16>
    %cst_17 = arith.constant dense<0.000000e+00> : vector<256x128xf32>
    %16 = tpu.matmul %13, %15, %cst_17 {dimension_numbers = #tpu.dot_dimension_numbers<[1], [0], [0], [1], [0, 0, 1, 1], [], []>} : vector<256x128xbf16>, vector<128x128xbf16>, vector<256x128xf32> -> vector<256x128xf32>
    %17 = arith.addf %11, %16 : vector<256x128xf32>
    %c2 = arith.constant 2 : index
    %c0_18 = arith.constant 0 : index
    %18 = vector.load %arg11[%c2, %c0_18] : memref<342x128xf32, #tpu.memory_space<vmem>>, vector<256x128xf32>
    %19 = arith.truncf %18 : vector<256x128xf32> to vector<256x128xbf16>
    %c2_19 = arith.constant 2 : index
    %c0_20 = arith.constant 0 : index
    %c0_21 = arith.constant 0 : index
    %20 = vector.load %arg4[%c2_19, %c0_20, %c0_21] : memref<9x128x128xbf16, #tpu.memory_space<vmem>>, vector<1x128x128xbf16>
    %21 = vector.shape_cast %20 : vector<1x128x128xbf16> to vector<128x128xbf16>
    %cst_22 = arith.constant dense<0.000000e+00> : vector<256x128xf32>
    %22 = tpu.matmul %19, %21, %cst_22 {dimension_numbers = #tpu.dot_dimension_numbers<[1], [0], [0], [1], [0, 0, 1, 1], [], []>} : vector<256x128xbf16>, vector<128x128xbf16>, vector<256x128xf32> -> vector<256x128xf32>
    %23 = arith.addf %17, %22 : vector<256x128xf32>
    %c18 = arith.constant 18 : index
    %c0_23 = arith.constant 0 : index
    %24 = vector.load %arg11[%c18, %c0_23] : memref<342x128xf32, #tpu.memory_space<vmem>>, vector<256x128xf32>
    %25 = arith.truncf %24 : vector<256x128xf32> to vector<256x128xbf16>
    %c3 = arith.constant 3 : index
    %c0_24 = arith.constant 0 : index
    %c0_25 = arith.constant 0 : index
    %26 = vector.load %arg4[%c3, %c0_24, %c0_25] : memref<9x128x128xbf16, #tpu.memory_space<vmem>>, vector<1x128x128xbf16>
    %27 = vector.shape_cast %26 : vector<1x128x128xbf16> to vector<128x128xbf16>
    %cst_26 = arith.constant dense<0.000000e+00> : vector<256x128xf32>
    %28 = tpu.matmul %25, %27, %cst_26 {dimension_numbers = #tpu.dot_dimension_numbers<[1], [0], [0], [1], [0, 0, 1, 1], [], []>} : vector<256x128xbf16>, vector<128x128xbf16>, vector<256x128xf32> -> vector<256x128xf32>
    %29 = arith.addf %23, %28 : vector<256x128xf32>
    %c19 = arith.constant 19 : index
    %c0_27 = arith.constant 0 : index
    %30 = vector.load %arg11[%c19, %c0_27] : memref<342x128xf32, #tpu.memory_space<vmem>>, vector<256x128xf32>
    %31 = arith.truncf %30 : vector<256x128xf32> to vector<256x128xbf16>
    %c4 = arith.constant 4 : index
    %c0_28 = arith.constant 0 : index
    %c0_29 = arith.constant 0 : index
    %32 = vector.load %arg4[%c4, %c0_28, %c0_29] : memref<9x128x128xbf16, #tpu.memory_space<vmem>>, vector<1x128x128xbf16>
    %33 = vector.shape_cast %32 : vector<1x128x128xbf16> to vector<128x128xbf16>
    %cst_30 = arith.constant dense<0.000000e+00> : vector<256x128xf32>
    %34 = tpu.matmul %31, %33, %cst_30 {dimension_numbers = #tpu.dot_dimension_numbers<[1], [0], [0], [1], [0, 0, 1, 1], [], []>} : vector<256x128xbf16>, vector<128x128xbf16>, vector<256x128xf32> -> vector<256x128xf32>
    %35 = arith.addf %29, %34 : vector<256x128xf32>
    %c20 = arith.constant 20 : index
    %c0_31 = arith.constant 0 : index
    %36 = vector.load %arg11[%c20, %c0_31] : memref<342x128xf32, #tpu.memory_space<vmem>>, vector<256x128xf32>
    %37 = arith.truncf %36 : vector<256x128xf32> to vector<256x128xbf16>
    %c5 = arith.constant 5 : index
    %c0_32 = arith.constant 0 : index
    %c0_33 = arith.constant 0 : index
    %38 = vector.load %arg4[%c5, %c0_32, %c0_33] : memref<9x128x128xbf16, #tpu.memory_space<vmem>>, vector<1x128x128xbf16>
    %39 = vector.shape_cast %38 : vector<1x128x128xbf16> to vector<128x128xbf16>
    %cst_34 = arith.constant dense<0.000000e+00> : vector<256x128xf32>
    %40 = tpu.matmul %37, %39, %cst_34 {dimension_numbers = #tpu.dot_dimension_numbers<[1], [0], [0], [1], [0, 0, 1, 1], [], []>} : vector<256x128xbf16>, vector<128x128xbf16>, vector<256x128xf32> -> vector<256x128xf32>
    %41 = arith.addf %35, %40 : vector<256x128xf32>
    %c36 = arith.constant 36 : index
    %c0_35 = arith.constant 0 : index
    %42 = vector.load %arg11[%c36, %c0_35] : memref<342x128xf32, #tpu.memory_space<vmem>>, vector<256x128xf32>
    %43 = arith.truncf %42 : vector<256x128xf32> to vector<256x128xbf16>
    %c6 = arith.constant 6 : index
    %c0_36 = arith.constant 0 : index
    %c0_37 = arith.constant 0 : index
    %44 = vector.load %arg4[%c6, %c0_36, %c0_37] : memref<9x128x128xbf16, #tpu.memory_space<vmem>>, vector<1x128x128xbf16>
    %45 = vector.shape_cast %44 : vector<1x128x128xbf16> to vector<128x128xbf16>
    %cst_38 = arith.constant dense<0.000000e+00> : vector<256x128xf32>
    %46 = tpu.matmul %43, %45, %cst_38 {dimension_numbers = #tpu.dot_dimension_numbers<[1], [0], [0], [1], [0, 0, 1, 1], [], []>} : vector<256x128xbf16>, vector<128x128xbf16>, vector<256x128xf32> -> vector<256x128xf32>
    %47 = arith.addf %41, %46 : vector<256x128xf32>
    %c37 = arith.constant 37 : index
    %c0_39 = arith.constant 0 : index
    %48 = vector.load %arg11[%c37, %c0_39] : memref<342x128xf32, #tpu.memory_space<vmem>>, vector<256x128xf32>
    %49 = arith.truncf %48 : vector<256x128xf32> to vector<256x128xbf16>
    %c7 = arith.constant 7 : index
    %c0_40 = arith.constant 0 : index
    %c0_41 = arith.constant 0 : index
    %50 = vector.load %arg4[%c7, %c0_40, %c0_41] : memref<9x128x128xbf16, #tpu.memory_space<vmem>>, vector<1x128x128xbf16>
    %51 = vector.shape_cast %50 : vector<1x128x128xbf16> to vector<128x128xbf16>
    %cst_42 = arith.constant dense<0.000000e+00> : vector<256x128xf32>
    %52 = tpu.matmul %49, %51, %cst_42 {dimension_numbers = #tpu.dot_dimension_numbers<[1], [0], [0], [1], [0, 0, 1, 1], [], []>} : vector<256x128xbf16>, vector<128x128xbf16>, vector<256x128xf32> -> vector<256x128xf32>
    %53 = arith.addf %47, %52 : vector<256x128xf32>
    %c38 = arith.constant 38 : index
    %c0_43 = arith.constant 0 : index
    %54 = vector.load %arg11[%c38, %c0_43] : memref<342x128xf32, #tpu.memory_space<vmem>>, vector<256x128xf32>
    %55 = arith.truncf %54 : vector<256x128xf32> to vector<256x128xbf16>
    %c8 = arith.constant 8 : index
    %c0_44 = arith.constant 0 : index
    %c0_45 = arith.constant 0 : index
    %56 = vector.load %arg4[%c8, %c0_44, %c0_45] : memref<9x128x128xbf16, #tpu.memory_space<vmem>>, vector<1x128x128xbf16>
    %57 = vector.shape_cast %56 : vector<1x128x128xbf16> to vector<128x128xbf16>
    %cst_46 = arith.constant dense<0.000000e+00> : vector<256x128xf32>
    %58 = tpu.matmul %55, %57, %cst_46 {dimension_numbers = #tpu.dot_dimension_numbers<[1], [0], [0], [1], [0, 0, 1, 1], [], []>} : vector<256x128xbf16>, vector<128x128xbf16>, vector<256x128xf32> -> vector<256x128xf32>
    %59 = arith.addf %53, %58 : vector<256x128xf32>
    %60 = vector.broadcast %3 : vector<1x128xf32> to vector<256x128xf32>
    %61 = arith.mulf %59, %60 : vector<256x128xf32>
    %62 = vector.broadcast %4 : vector<1x128xf32> to vector<256x128xf32>
    %63 = arith.addf %61, %62 : vector<256x128xf32>
    %c38_47 = arith.constant 38 : index
    %c0_48 = arith.constant 0 : index
    %64 = vector.load %arg12[%c38_47, %c0_48] : memref<396x128xf32, #tpu.memory_space<vmem>>, vector<256x128xf32>
    %65 = arith.truncf %64 : vector<256x128xf32> to vector<256x128xbf16>
    %c0_49 = arith.constant 0 : index
    %c0_50 = arith.constant 0 : index
    %66 = vector.load %arg5[%c0_49, %c0_50] : memref<128x128xbf16, #tpu.memory_space<vmem>>, vector<128x128xbf16>
    %cst_51 = arith.constant dense<0.000000e+00> : vector<256x128xf32>
    %67 = tpu.matmul %65, %66, %cst_51 {dimension_numbers = #tpu.dot_dimension_numbers<[1], [0], [0], [1], [0, 0, 1, 1], [], []>} : vector<256x128xbf16>, vector<128x128xbf16>, vector<256x128xf32> -> vector<256x128xf32>
    %68 = vector.broadcast %5 : vector<1x128xf32> to vector<256x128xf32>
    %69 = arith.mulf %67, %68 : vector<256x128xf32>
    %70 = vector.broadcast %6 : vector<1x128xf32> to vector<256x128xf32>
    %71 = arith.addf %69, %70 : vector<256x128xf32>
    %72 = arith.addf %63, %71 : vector<256x128xf32>
    %cst_52 = arith.constant 0.000000e+00 : f32
    %73 = vector.broadcast %cst_52 : f32 to vector<256x128xf32>
    %74 = arith.maximumf %72, %73 : vector<256x128xf32>
    %c0_53 = arith.constant 0 : index
    %c0_54 = arith.constant 0 : index
    %c0_55 = arith.constant 0 : index
    %75 = vector.load %arg10[%c0_53, %c0_54, %c0_55] : memref<1x288x128xf32, #tpu.memory_space<vmem>>, vector<1x256x128xf32>
    %76 = vector.shape_cast %75 : vector<1x256x128xf32> to vector<256x128xf32>
    %77 = vector.shape_cast %74 : vector<256x128xf32> to vector<1x256x128xf32>
    tpu.vector_store %arg10[%c0_53, %c0_54, %c0_55], %77 {strides = array<i32>} : memref<1x288x128xf32, #tpu.memory_space<vmem>>, vector<1x256x128xf32>,
    %c256 = arith.constant 256 : index
    %c0_56 = arith.constant 0 : index
    %78 = vector.load %arg11[%c256, %c0_56] : memref<342x128xf32, #tpu.memory_space<vmem>>, vector<32x128xf32>
    %79 = arith.truncf %78 : vector<32x128xf32> to vector<32x128xbf16>
    %c0_57 = arith.constant 0 : index
    %c0_58 = arith.constant 0 : index
    %c0_59 = arith.constant 0 : index
    %80 = vector.load %arg4[%c0_57, %c0_58, %c0_59] : memref<9x128x128xbf16, #tpu.memory_space<vmem>>, vector<1x128x128xbf16>
    %81 = vector.shape_cast %80 : vector<1x128x128xbf16> to vector<128x128xbf16>
    %cst_60 = arith.constant dense<0.000000e+00> : vector<32x128xf32>
    %82 = tpu.matmul %79, %81, %cst_60 {dimension_numbers = #tpu.dot_dimension_numbers<[1], [0], [0], [1], [0, 0, 1, 1], [], []>} : vector<32x128xbf16>, vector<128x128xbf16>, vector<32x128xf32> -> vector<32x128xf32>
    %c257 = arith.constant 257 : index
    %c0_61 = arith.constant 0 : index
    %83 = vector.load %arg11[%c257, %c0_61] : memref<342x128xf32, #tpu.memory_space<vmem>>, vector<32x128xf32>
    %84 = arith.truncf %83 : vector<32x128xf32> to vector<32x128xbf16>
    %c1_62 = arith.constant 1 : index
    %c0_63 = arith.constant 0 : index
    %c0_64 = arith.constant 0 : index
    %85 = vector.load %arg4[%c1_62, %c0_63, %c0_64] : memref<9x128x128xbf16, #tpu.memory_space<vmem>>, vector<1x128x128xbf16>
    %86 = vector.shape_cast %85 : vector<1x128x128xbf16> to vector<128x128xbf16>
    %cst_65 = arith.constant dense<0.000000e+00> : vector<32x128xf32>
    %87 = tpu.matmul %84, %86, %cst_65 {dimension_numbers = #tpu.dot_dimension_numbers<[1], [0], [0], [1], [0, 0, 1, 1], [], []>} : vector<32x128xbf16>, vector<128x128xbf16>, vector<32x128xf32> -> vector<32x128xf32>
    %88 = arith.addf %82, %87 : vector<32x128xf32>
    %c258 = arith.constant 258 : index
    %c0_66 = arith.constant 0 : index
    %89 = vector.load %arg11[%c258, %c0_66] : memref<342x128xf32, #tpu.memory_space<vmem>>, vector<32x128xf32>
    %90 = arith.truncf %89 : vector<32x128xf32> to vector<32x128xbf16>
    %c2_67 = arith.constant 2 : index
    %c0_68 = arith.constant 0 : index
    %c0_69 = arith.constant 0 : index
    %91 = vector.load %arg4[%c2_67, %c0_68, %c0_69] : memref<9x128x128xbf16, #tpu.memory_space<vmem>>, vector<1x128x128xbf16>
    %92 = vector.shape_cast %91 : vector<1x128x128xbf16> to vector<128x128xbf16>
    %cst_70 = arith.constant dense<0.000000e+00> : vector<32x128xf32>
    %93 = tpu.matmul %90, %92, %cst_70 {dimension_numbers = #tpu.dot_dimension_numbers<[1], [0], [0], [1], [0, 0, 1, 1], [], []>} : vector<32x128xbf16>, vector<128x128xbf16>, vector<32x128xf32> -> vector<32x128xf32>
    %94 = arith.addf %88, %93 : vector<32x128xf32>
    %c274 = arith.constant 274 : index
    %c0_71 = arith.constant 0 : index
    %95 = vector.load %arg11[%c274, %c0_71] : memref<342x128xf32, #tpu.memory_space<vmem>>, vector<32x128xf32>
    %96 = arith.truncf %95 : vector<32x128xf32> to vector<32x128xbf16>
    %c3_72 = arith.constant 3 : index
    %c0_73 = arith.constant 0 : index
    %c0_74 = arith.constant 0 : index
    %97 = vector.load %arg4[%c3_72, %c0_73, %c0_74] : memref<9x128x128xbf16, #tpu.memory_space<vmem>>, vector<1x128x128xbf16>
    %98 = vector.shape_cast %97 : vector<1x128x128xbf16> to vector<128x128xbf16>
    %cst_75 = arith.constant dense<0.000000e+00> : vector<32x128xf32>
    %99 = tpu.matmul %96, %98, %cst_75 {dimension_numbers = #tpu.dot_dimension_numbers<[1], [0], [0], [1], [0, 0, 1, 1], [], []>} : vector<32x128xbf16>, vector<128x128xbf16>, vector<32x128xf32> -> vector<32x128xf32>
    %100 = arith.addf %94, %99 : vector<32x128xf32>
    %c275 = arith.constant 275 : index
    %c0_76 = arith.constant 0 : index
    %101 = vector.load %arg11[%c275, %c0_76] : memref<342x128xf32, #tpu.memory_space<vmem>>, vector<32x128xf32>
    %102 = arith.truncf %101 : vector<32x128xf32> to vector<32x128xbf16>
    %c4_77 = arith.constant 4 : index
    %c0_78 = arith.constant 0 : index
    %c0_79 = arith.constant 0 : index
    %103 = vector.load %arg4[%c4_77, %c0_78, %c0_79] : memref<9x128x128xbf16, #tpu.memory_space<vmem>>, vector<1x128x128xbf16>
    %104 = vector.shape_cast %103 : vector<1x128x128xbf16> to vector<128x128xbf16>
    %cst_80 = arith.constant dense<0.000000e+00> : vector<32x128xf32>
    %105 = tpu.matmul %102, %104, %cst_80 {dimension_numbers = #tpu.dot_dimension_numbers<[1], [0], [0], [1], [0, 0, 1, 1], [], []>} : vector<32x128xbf16>, vector<128x128xbf16>, vector<32x128xf32> -> vector<32x128xf32>
    %106 = arith.addf %100, %105 : vector<32x128xf32>
    %c276 = arith.constant 276 : index
    %c0_81 = arith.constant 0 : index
    %107 = vector.load %arg11[%c276, %c0_81] : memref<342x128xf32, #tpu.memory_space<vmem>>, vector<32x128xf32>
    %108 = arith.truncf %107 : vector<32x128xf32> to vector<32x128xbf16>
    %c5_82 = arith.constant 5 : index
    %c0_83 = arith.constant 0 : index
    %c0_84 = arith.constant 0 : index
    %109 = vector.load %arg4[%c5_82, %c0_83, %c0_84] : memref<9x128x128xbf16, #tpu.memory_space<vmem>>, vector<1x128x128xbf16>
    %110 = vector.shape_cast %109 : vector<1x128x128xbf16> to vector<128x128xbf16>
    %cst_85 = arith.constant dense<0.000000e+00> : vector<32x128xf32>
    %111 = tpu.matmul %108, %110, %cst_85 {dimension_numbers = #tpu.dot_dimension_numbers<[1], [0], [0], [1], [0, 0, 1, 1], [], []>} : vector<32x128xbf16>, vector<128x128xbf16>, vector<32x128xf32> -> vector<32x128xf32>
    %112 = arith.addf %106, %111 : vector<32x128xf32>
    %c292 = arith.constant 292 : index
    %c0_86 = arith.constant 0 : index
    %113 = vector.load %arg11[%c292, %c0_86] : memref<342x128xf32, #tpu.memory_space<vmem>>, vector<32x128xf32>
    %114 = arith.truncf %113 : vector<32x128xf32> to vector<32x128xbf16>
    %c6_87 = arith.constant 6 : index
    %c0_88 = arith.constant 0 : index
    %c0_89 = arith.constant 0 : index
    %115 = vector.load %arg4[%c6_87, %c0_88, %c0_89] : memref<9x128x128xbf16, #tpu.memory_space<vmem>>, vector<1x128x128xbf16>
    %116 = vector.shape_cast %115 : vector<1x128x128xbf16> to vector<128x128xbf16>
    %cst_90 = arith.constant dense<0.000000e+00> : vector<32x128xf32>
    %117 = tpu.matmul %114, %116, %cst_90 {dimension_numbers = #tpu.dot_dimension_numbers<[1], [0], [0], [1], [0, 0, 1, 1], [], []>} : vector<32x128xbf16>, vector<128x128xbf16>, vector<32x128xf32> -> vector<32x128xf32>
    %118 = arith.addf %112, %117 : vector<32x128xf32>
    %c293 = arith.constant 293 : index
    %c0_91 = arith.constant 0 : index
    %119 = vector.load %arg11[%c293, %c0_91] : memref<342x128xf32, #tpu.memory_space<vmem>>, vector<32x128xf32>
    %120 = arith.truncf %119 : vector<32x128xf32> to vector<32x128xbf16>
    %c7_92 = arith.constant 7 : index
    %c0_93 = arith.constant 0 : index
    %c0_94 = arith.constant 0 : index
    %121 = vector.load %arg4[%c7_92, %c0_93, %c0_94] : memref<9x128x128xbf16, #tpu.memory_space<vmem>>, vector<1x128x128xbf16>
    %122 = vector.shape_cast %121 : vector<1x128x128xbf16> to vector<128x128xbf16>
    %cst_95 = arith.constant dense<0.000000e+00> : vector<32x128xf32>
    %123 = tpu.matmul %120, %122, %cst_95 {dimension_numbers = #tpu.dot_dimension_numbers<[1], [0], [0], [1], [0, 0, 1, 1], [], []>} : vector<32x128xbf16>, vector<128x128xbf16>, vector<32x128xf32> -> vector<32x128xf32>
    %124 = arith.addf %118, %123 : vector<32x128xf32>
    %c294 = arith.constant 294 : index
    %c0_96 = arith.constant 0 : index
    %125 = vector.load %arg11[%c294, %c0_96] : memref<342x128xf32, #tpu.memory_space<vmem>>, vector<32x128xf32>
    %126 = arith.truncf %125 : vector<32x128xf32> to vector<32x128xbf16>
    %c8_97 = arith.constant 8 : index
    %c0_98 = arith.constant 0 : index
    %c0_99 = arith.constant 0 : index
    %127 = vector.load %arg4[%c8_97, %c0_98, %c0_99] : memref<9x128x128xbf16, #tpu.memory_space<vmem>>, vector<1x128x128xbf16>
    %128 = vector.shape_cast %127 : vector<1x128x128xbf16> to vector<128x128xbf16>
    %cst_100 = arith.constant dense<0.000000e+00> : vector<32x128xf32>
    %129 = tpu.matmul %126, %128, %cst_100 {dimension_numbers = #tpu.dot_dimension_numbers<[1], [0], [0], [1], [0, 0, 1, 1], [], []>} : vector<32x128xbf16>, vector<128x128xbf16>, vector<32x128xf32> -> vector<32x128xf32>
    %130 = arith.addf %124, %129 : vector<32x128xf32>
    %131 = vector.broadcast %3 : vector<1x128xf32> to vector<32x128xf32>
    %132 = arith.mulf %130, %131 : vector<32x128xf32>
    %133 = vector.broadcast %4 : vector<1x128xf32> to vector<32x128xf32>
    %134 = arith.addf %132, %133 : vector<32x128xf32>
    %c294_101 = arith.constant 294 : index
    %c0_102 = arith.constant 0 : index
    %135 = vector.load %arg12[%c294_101, %c0_102] : memref<396x128xf32, #tpu.memory_space<vmem>>, vector<32x128xf32>
    %136 = arith.truncf %135 : vector<32x128xf32> to vector<32x128xbf16>
    %c0_103 = arith.constant 0 : index
    %c0_104 = arith.constant 0 : index
    %137 = vector.load %arg5[%c0_103, %c0_104] : memref<128x128xbf16, #tpu.memory_space<vmem>>, vector<128x128xbf16>
    %cst_105 = arith.constant dense<0.000000e+00> : vector<32x128xf32>
    %138 = tpu.matmul %136, %137, %cst_105 {dimension_numbers = #tpu.dot_dimension_numbers<[1], [0], [0], [1], [0, 0, 1, 1], [], []>} : vector<32x128xbf16>, vector<128x128xbf16>, vector<32x128xf32> -> vector<32x128xf32>
    %139 = vector.broadcast %5 : vector<1x128xf32> to vector<32x128xf32>
    %140 = arith.mulf %138, %139 : vector<32x128xf32>
    %141 = vector.broadcast %6 : vector<1x128xf32> to vector<32x128xf32>
    %142 = arith.addf %140, %141 : vector<32x128xf32>
    %143 = arith.addf %134, %142 : vector<32x128xf32>
    %cst_106 = arith.constant 0.000000e+00 : f32
    %144 = vector.broadcast %cst_106 : f32 to vector<32x128xf32>
    %145 = arith.maximumf %143, %144 : vector<32x128xf32>
    %c0_107 = arith.constant 0 : index
    %c256_108 = arith.constant 256 : index
    %c0_109 = arith.constant 0 : index
    %146 = vector.load %arg10[%c0_107, %c256_108, %c0_109] : memref<1x288x128xf32, #tpu.memory_space<vmem>>, vector<1x32x128xf32>
    %147 = vector.shape_cast %146 : vector<1x32x128xf32> to vector<32x128xf32>
    %148 = vector.shape_cast %145 : vector<32x128xf32> to vector<1x32x128xf32>
    tpu.vector_store %arg10[%c0_107, %c256_108, %c0_109], %148 {strides = array<i32>} : memref<1x288x128xf32, #tpu.memory_space<vmem>>, vector<1x32x128xf32>,
    return
  }
  func.func @transform_0(%arg0: i32, %arg1: i32) -> (i32, i32, i32) {
    %c0_i32 = arith.constant 0 : i32
    %c0_i32_0 = arith.constant 0 : i32
    %c0_i32_1 = arith.constant 0 : i32
    return %arg0, %c0_i32, %c0_i32_0 : i32, i32, i32
  }
  func.func @transform_1(%arg0: i32, %arg1: i32) -> (i32, i32, i32) {
    %c0_i32 = arith.constant 0 : i32
    %c0_i32_0 = arith.constant 0 : i32
    %c0_i32_1 = arith.constant 0 : i32
    return %arg0, %c0_i32, %c0_i32_0 : i32, i32, i32
  }
  func.func @transform_2(%arg0: i32, %arg1: i32) -> (i32, i32, i32) {
    %c0_i32 = arith.constant 0 : i32
    %c0_i32_0 = arith.constant 0 : i32
    %c0_i32_1 = arith.constant 0 : i32
    return %c0_i32, %c0_i32_0, %arg1 : i32, i32, i32
  }
  func.func @transform_3(%arg0: i32, %arg1: i32) -> (i32, i32) {
    %c0_i32 = arith.constant 0 : i32
    %c0_i32_0 = arith.constant 0 : i32
    return %c0_i32, %arg1 : i32, i32
  }
  func.func @transform_4(%arg0: i32, %arg1: i32) -> (i32, i32) {
    %c0_i32 = arith.constant 0 : i32
    %c0_i32_0 = arith.constant 0 : i32
    return %c0_i32, %arg1 : i32, i32
  }
  func.func @transform_5(%arg0: i32, %arg1: i32) -> (i32, i32) {
    %c0_i32 = arith.constant 0 : i32
    %c0_i32_0 = arith.constant 0 : i32
    return %c0_i32, %arg1 : i32, i32
  }
  func.func @transform_6(%arg0: i32, %arg1: i32) -> (i32, i32) {
    %c0_i32 = arith.constant 0 : i32
    %c0_i32_0 = arith.constant 0 : i32
    return %c0_i32, %arg1 : i32, i32
  }
  func.func @transform_7(%arg0: i32, %arg1: i32) -> (i32, i32) {
    %c0_i32 = arith.constant 0 : i32
    %c0_i32_0 = arith.constant 0 : i32
    return %c0_i32, %arg1 : i32, i32
  }
  func.func @transform_8(%arg0: i32, %arg1: i32) -> (i32, i32, i32) {
    %c0_i32 = arith.constant 0 : i32
    %c0_i32_0 = arith.constant 0 : i32
    return %arg0, %c0_i32, %arg1 : i32, i32, i32
  }
}

</mosaic_0001>

<llo_original>
// kernel: _lambda_.2
$region0: #{_lambda_.2}
  #allocation0 [shape = 'u32[]', space=smem, size = 0x4, offset = 0x4, fixed_abs, tag = 'smem constant byte address 0x4 - core index']
  #allocation1 [shape = 'u32[72,128]{1,0:T(1,128)}', space=vmem, size = 0x9000, scoped, tag = 'internal scratch']
  #allocation2 [shape = 'f32[396,128]{1,0:T(8,128)}', space=vmem, size = 0x32000, scoped, tag = 'scratch operand']
  %s0 = inlined_call_operand.vmem [shape: bf16[2,396,128], index: 0, kind: input, shape index: {}]
  %s1 = inlined_call_operand.vmem [shape: bf16[9,128,128], index: 1, kind: input, shape index: {}]
  %s2 = inlined_call_operand.vmem [shape: f32[1,128], index: 2, kind: input, shape index: {}]
  %s3 = inlined_call_operand.vmem [shape: f32[1,128], index: 3, kind: input, shape index: {}]
  %s4 = inlined_call_operand.vmem [shape: f32[342,1], index: 4, kind: input, shape index: {}]
  %s5 = inlined_call_operand.vmem [shape: bf16[2,342,128], index: 5, kind: output, shape index: {}]
  %s6 = sld [smem:[#allocation0]]
  $region57: #{_lambda_.2} parent=0
    _
  %s8 = ssub.s32 1, %s6
  %s9 = scalar_select 0, %s8, %s6
  loop: start=0, step=1, limit=4
  $region2: #{_lambda_.2} parent=0 // loop_pre_header
    _
  $region3: #{_lambda_.2} parent=0 // loop_header
    %s11 = sphi 0, %s15
    %p12 = scmp.ge.s32.totalorder %s11, 4
    %s18 = sphi 0, %s30
    %s19 = sphi 0, %s26
    %s20 = sphi 0, %s18
    %s21 = sphi 0, %s19
    %s22 = sphi 0, %s20
    %s23 = sphi 0, %s21
    %s33 = sphi 0, %s35
    %s36 = sphi 0, %s33
    %s37 = sphi 0, %s36
    %s53 = sphi 0, %s37
    %s59 = sphi 0, %s61
    %s62 = sphi 0, %s59
    %s63 = sphi 0, %s62
    %s79 = sphi 0, %s63
    %s85 = sphi 0, %s87
    %s88 = sphi 0, %s85
    %s89 = sphi 0, %s88
    %s105 = sphi 0, %s89
    %s111 = sphi 0, %s113
    %s114 = sphi 0, %s111
    %s115 = sphi 0, %s114
    %s131 = sphi 0, %s115
    %s135 = sphi 0, %s135
    %s137 = sphi 0, %s135
    %s138 = sphi 0, %s137
    %s152 = sphi 0, %s138
    %s160 = sphi 0, %s162
    %s163 = sphi 0, %s160
    %s164 = sphi 0, %s163
    %s180 = sphi 0, %s164
  $region4: #{_lambda_.2} parent=0 // loop_header_branch
    %14 = sbr.rel (%p12) target = $region8
  $region5: #{_lambda_.2} parent=0 // loop_body
    %s16 = ssub.s32 %s11, 1
    %s17 = ssub.s32 %s11, 2
    %s24 = sadd.s32 1, %s19
    %p25 = scmp.ge.s32.totalorder %s24, 1
    %s26 = scalar_select %p25, 0, %s24
    %s27 = sadd.s32 1, %s18
    %s28 = scalar_select %p25, %s27, %s18
    %p29 = scmp.ge.s32.totalorder %s28, 2
    %s30 = scalar_select %p29, 0, %s28
    %s31 = ssub.s32 %s18, %s30
    %p32 = scmp.eq.s32.totalorder %s31, 0
    %s34 = sadd.s32 %s33, 1
    %s35 = scalar_select %p32, %s33, %s34
    %p38 = pneg %p32
    %p39 = scmp.eq.s32.totalorder %s11, 1
    %p40 = por %p38, %p39
    %p41 = scmp.ne.s32.totalorder %s33, %s36
    %p42 = scmp.eq.s32.totalorder %s11, 0
    %p43 = por %p41, %p42
    %p44 = scmp.ne.s32.totalorder %s33, %s36
    %p45 = scmp.eq.s32.totalorder %s16, 1
    %p46 = por %p44, %p45
    %p47 = scmp.ne.s32.totalorder %s36, %s37
    %p48 = scmp.eq.s32.totalorder %s16, 0
    %p49 = por %p47, %p48
    %p50 = scmp.ne.s32.totalorder %s36, %s37
    %p51 = scmp.eq.s32.totalorder %s17, 1
    %p52 = por %p50, %p51
    %p54 = scmp.ne.s32.totalorder %s37, %s53
    %p55 = scmp.eq.s32.totalorder %s17, 0
    %p56 = por %p54, %p55
    %s57 = ssub.s32 %s19, %s26
    %p58 = scmp.eq.s32.totalorder %s57, 0
    %s60 = sadd.s32 %s59, 1
    %s61 = scalar_select %p58, %s59, %s60
    %p64 = pneg %p58
    %p65 = scmp.eq.s32.totalorder %s11, 1
    %p66 = por %p64, %p65
    %p67 = scmp.ne.s32.totalorder %s59, %s62
    %p68 = scmp.eq.s32.totalorder %s11, 0
    %p69 = por %p67, %p68
    %p70 = scmp.ne.s32.totalorder %s59, %s62
    %p71 = scmp.eq.s32.totalorder %s16, 1
    %p72 = por %p70, %p71
    %p73 = scmp.ne.s32.totalorder %s62, %s63
    %p74 = scmp.eq.s32.totalorder %s16, 0
    %p75 = por %p73, %p74
    %p76 = scmp.ne.s32.totalorder %s62, %s63
    %p77 = scmp.eq.s32.totalorder %s17, 1
    %p78 = por %p76, %p77
    %p80 = scmp.ne.s32.totalorder %s63, %s79
    %p81 = scmp.eq.s32.totalorder %s17, 0
    %p82 = por %p80, %p81
    %s83 = ssub.s32 %s19, %s26
    %p84 = scmp.eq.s32.totalorder %s83, 0
    %s86 = sadd.s32 %s85, 1
    %s87 = scalar_select %p84, %s85, %s86
    %p90 = pneg %p84
    %p91 = scmp.eq.s32.totalorder %s11, 1
    %p92 = por %p90, %p91
    %p93 = scmp.ne.s32.totalorder %s85, %s88
    %p94 = scmp.eq.s32.totalorder %s11, 0
    %p95 = por %p93, %p94
    %p96 = scmp.ne.s32.totalorder %s85, %s88
    %p97 = scmp.eq.s32.totalorder %s16, 1
    %p98 = por %p96, %p97
    %p99 = scmp.ne.s32.totalorder %s88, %s89
    %p100 = scmp.eq.s32.totalorder %s16, 0
    %p101 = por %p99, %p100
    %p102 = scmp.ne.s32.totalorder %s88, %s89
    %p103 = scmp.eq.s32.totalorder %s17, 1
    %p104 = por %p102, %p103
    %p106 = scmp.ne.s32.totalorder %s89, %s105
    %p107 = scmp.eq.s32.totalorder %s17, 0
    %p108 = por %p106, %p107
    %s109 = ssub.s32 %s19, %s26
    %p110 = scmp.eq.s32.totalorder %s109, 0
    %s112 = sadd.s32 %s111, 1
    %s113 = scalar_select %p110, %s111, %s112
    %p116 = pneg %p110
    %p117 = scmp.eq.s32.totalorder %s11, 1
    %p118 = por %p116, %p117
    %p119 = scmp.ne.s32.totalorder %s111, %s114
    %p120 = scmp.eq.s32.totalorder %s11, 0
    %p121 = por %p119, %p120
    %p122 = scmp.ne.s32.totalorder %s111, %s114
    %p123 = scmp.eq.s32.totalorder %s16, 1
    %p124 = por %p122, %p123
    %p125 = scmp.ne.s32.totalorder %s114, %s115
    %p126 = scmp.eq.s32.totalorder %s16, 0
    %p127 = por %p125, %p126
    %p128 = scmp.ne.s32.totalorder %s114, %s115
    %p129 = scmp.eq.s32.totalorder %s17, 1
    %p130 = por %p128, %p129
    %p132 = scmp.ne.s32.totalorder %s115, %s131
    %p133 = scmp.eq.s32.totalorder %s17, 0
    %p134 = por %p132, %p133
    %s136 = sadd.s32 %s135, 1
    %p139 = scmp.eq.s32.totalorder %s11, 1
    %p140 = scmp.ne.s32.totalorder %s135, %s137
    %p141 = scmp.eq.s32.totalorder %s11, 0
    %p142 = por %p140, %p141
    %p143 = scmp.ne.s32.totalorder %s135, %s137
    %p144 = scmp.eq.s32.totalorder %s16, 1
    %p145 = por %p143, %p144
    %p146 = scmp.ne.s32.totalorder %s137, %s138
    %p147 = scmp.eq.s32.totalorder %s16, 0
    %p148 = por %p146, %p147
    %p149 = scmp.ne.s32.totalorder %s137, %s138
    %p150 = scmp.eq.s32.totalorder %s17, 1
    %p151 = por %p149, %p150
    %p153 = scmp.ne.s32.totalorder %s138, %s152
    %p154 = scmp.eq.s32.totalorder %s17, 0
    %p155 = por %p153, %p154
    %s156 = ssub.s32 %s18, %s30
    %s157 = ssub.s32 %s19, %s26
    %s158 = sor.u32 %s156, %s157
    %p159 = scmp.eq.s32.totalorder %s158, 0
    %s161 = sadd.s32 %s160, 1
    %s162 = scalar_select %p159, %s160, %s161
    %p165 = pneg %p159
    %p166 = scmp.eq.s32.totalorder %s11, 1
    %p167 = por %p165, %p166
    %p168 = scmp.ne.s32.totalorder %s160, %s163
    %p169 = scmp.eq.s32.totalorder %s11, 0
    %p170 = por %p168, %p169
    %p171 = scmp.ne.s32.totalorder %s160, %s163
    %p172 = scmp.eq.s32.totalorder %s16, 1
    %p173 = por %p171, %p172
    %p174 = scmp.ne.s32.totalorder %s163, %s164
    %p175 = scmp.eq.s32.totalorder %s16, 0
    %p176 = por %p174, %p175
    %p177 = scmp.ne.s32.totalorder %s163, %s164
    %p178 = scmp.eq.s32.totalorder %s17, 1
    %p179 = por %p177, %p178
    %p181 = scmp.ne.s32.totalorder %s164, %s180
    %p182 = scmp.eq.s32.totalorder %s17, 0
    %p183 = por %p181, %p182
    %p184 = scmp.le.s32.totalorder 1, %s11
    %p185 = scmp.lt.s32.totalorder %s11, 3
    %p186 = pnand %p184, %p185
    %p187 = pneg %p186
    // Predicated region
    $region9: #{_lambda_.2} parent=5 // pred_check
      _
    $region10: #{_lambda_.2} parent=5 // pred_check_branch
      %189 = sbr.rel (%p186) target = $region12
    $region11: #{_lambda_.2} parent=5 // pred_region
      %s190 = ssub.s32 %s11, 1
      // Predicated region
      $region13: #{_lambda_.2} parent=11 // pred_check
        %p191 = pneg %p75
      $region14: #{_lambda_.2} parent=11 // pred_check_branch
        %193 = sbr.rel (%p191) target = $region16
      $region15: #{_lambda_.2} parent=11 // pred_region
        %p194 = scmp.lt.s32.totalorder %s21, 0
        %s195 = scalar_select %p194, %s21, 0
        %s196 = smul.addr %s195, 4
        %s197 = scalar_lea.vmem %s1, %s196
      $region16: #{_lambda_.2} parent=11 // pred_fallthru
        _
      // Predicated region
      $region17: #{_lambda_.2} parent=11 // pred_check
        %p198 = pneg %p101
      $region18: #{_lambda_.2} parent=11 // pred_check_branch
        %200 = sbr.rel (%p198) target = $region20
      $region19: #{_lambda_.2} parent=11 // pred_region
        %p201 = scmp.lt.s32.totalorder %s21, 0
        %s202 = scalar_select %p201, %s21, 0
        %s203 = scalar_lea.vmem %s2, %s202
      $region20: #{_lambda_.2} parent=11 // pred_fallthru
        _
      // Predicated region
      $region21: #{_lambda_.2} parent=11 // pred_check
        %p204 = pneg %p127
      $region22: #{_lambda_.2} parent=11 // pred_check_branch
        %206 = sbr.rel (%p204) target = $region24
      $region23: #{_lambda_.2} parent=11 // pred_region
        %p207 = scmp.lt.s32.totalorder %s21, 0
        %s208 = scalar_select %p207, %s21, 0
        %s209 = scalar_lea.vmem %s3, %s208
      $region24: #{_lambda_.2} parent=11 // pred_fallthru
        _
      // Predicated region
      $region25: #{_lambda_.2} parent=11 // pred_check
        %p210 = pneg %p148
      $region26: #{_lambda_.2} parent=11 // pred_check_branch
        %212 = sbr.rel (%p210) target = $region28
      $region27: #{_lambda_.2} parent=11 // pred_region
        _
      $region28: #{_lambda_.2} parent=11 // pred_fallthru
        _
    $region12: #{_lambda_.2} parent=5 // pred_fallthru
      _
    %p213 = scmp.lt.s32.totalorder %s11, 2
    // Predicated region
    $region29: #{_lambda_.2} parent=5 // pred_check
      %p214 = pneg %p213
    $region30: #{_lambda_.2} parent=5 // pred_check_branch
      %216 = sbr.rel (%p214) target = $region32
    $region31: #{_lambda_.2} parent=5 // pred_region
      // Predicated region
      $region33: #{_lambda_.2} parent=31 // pred_check
        %p217 = pneg %p43
      $region34: #{_lambda_.2} parent=31 // pred_check_branch
        %219 = sbr.rel (%p217) target = $region36
      $region35: #{_lambda_.2} parent=31 // pred_region
        %p220 = scmp.lt.s32.totalorder %s18, 1
        %s221 = scalar_select %p220, %s18, 1
        %s222 = smul.addr %s221, 50
        %s223 = smul.addr %s222, 4
        %s224 = scalar_lea.vmem %s0, %s223
      $region36: #{_lambda_.2} parent=31 // pred_fallthru
        _
    $region32: #{_lambda_.2} parent=5 // pred_fallthru
      _
    %p225 = scmp.le.s32.totalorder 1, %s11
    %p226 = scmp.lt.s32.totalorder %s11, 3
    %p227 = pnand %p225, %p226
    %p228 = pneg %p227
    // Predicated region
    $region37: #{_lambda_.2} parent=5 // pred_check
      _
    $region38: #{_lambda_.2} parent=5 // pred_check_branch
      %230 = sbr.rel (%p227) target = $region40
    $region39: #{_lambda_.2} parent=5 // pred_region
      %s231 = ssub.s32 %s11, 1
      %p232 = scmp.lt.s32.totalorder %s20, 1
      %s233 = scalar_select %p232, %s20, 1
      %s234 = smul.addr %s233, 50
      %s235 = smul.addr %s234, 4
      %s236 = scalar_lea.vmem %s0, %s235
      %p237 = pneg %p49
      %p238 = pneg %p46
      %p239 = scmp.lt.s32.totalorder %s21, 0
      %s240 = scalar_select %p239, %s21, 0
      %s241 = smul.addr %s240, 4
      %s242 = scalar_lea.vmem %s1, %s241
      %p243 = pneg %p75
      %p244 = pneg %p72
      %p245 = scmp.lt.s32.totalorder %s21, 0
      %s246 = scalar_select %p245, %s21, 0
      %s247 = scalar_lea.vmem %s2, %s246
      %p248 = pneg %p101
      %p249 = pneg %p98
      %p250 = scmp.lt.s32.totalorder %s21, 0
      %s251 = scalar_select %p250, %s21, 0
      %s252 = scalar_lea.vmem %s3, %s251
      %p253 = pneg %p127
      %p254 = pneg %p124
      %p255 = pneg %p148
      %p256 = pneg %p145
      %p257 = pneg %p176
      %p258 = pneg %p173
      %p259 = scmp.lt.s32.totalorder %s20, 1
      %s260 = scalar_select %p259, %s20, 1
      %p261 = scmp.lt.s32.totalorder %s21, 0
      %s262 = scalar_select %p261, %s21, 0
      %s263 = smul.addr %s260, 43
      %s264 = sadd.s32 %s262, %s263
      %s265 = smul.addr %s264, 4
      %s266 = scalar_lea.vmem %s5, %s265
      %p267 = scmp.lt.s32.totalorder %s20, 1
      %s268 = scalar_select %p267, %s20, 1
      %s269 = smul.addr %s268, 50
      %s270 = smul.addr %s269, 4
      %s271 = scalar_lea.vmem %s0, %s270
      %p272 = scmp.lt.s32.totalorder %s21, 0
      %s273 = scalar_select %p272, %s21, 0
      %s274 = smul.addr %s273, 4
      %s275 = scalar_lea.vmem %s1, %s274
      %p276 = scmp.lt.s32.totalorder %s21, 0
      %s277 = scalar_select %p276, %s21, 0
      %s278 = scalar_lea.vmem %s2, %s277
      %p279 = scmp.lt.s32.totalorder %s21, 0
      %s280 = scalar_select %p279, %s21, 0
      %s281 = scalar_lea.vmem %s3, %s280
      %p282 = scmp.lt.s32.totalorder %s20, 1
      %s283 = scalar_select %p282, %s20, 1
      %p284 = scmp.lt.s32.totalorder %s21, 0
      %s285 = scalar_select %p284, %s21, 0
      %s286 = smul.addr %s283, 43
      %s287 = sadd.s32 %s285, %s286
      %s288 = smul.addr %s287, 4
      %s289 = scalar_lea.vmem %s5, %s288
      %p290 = scmp.eq.s32.totalorder %s21, 0
      // Predicated region
      $region41: #{_lambda_.2} parent=39 // pred_check
        %p291 = pneg %p290
      $region42: #{_lambda_.2} parent=39 // pred_check_branch
        %293 = sbr.rel (%p291) target = $region44
      $region43: #{_lambda_.2} parent=39 // pred_region
        %v294 = vld [vmem:[%s271] sm:$0xf]
        %v295 = vld [vmem:[%s271 + $0x4] sm:$0xf]
        %v296 = vld [vmem:[%s271 + $0x8] sm:$0xf]
        %v297 = vld [vmem:[%s271 + $0xc] sm:$0xf]
        %v298 = vld [vmem:[%s271 + $0x10] sm:$0xf]
        %v299 = vld [vmem:[%s271 + $0x14] sm:$0xf]
        %v300 = vld [vmem:[%s271 + $0x18] sm:$0xf]
        %v301 = vld [vmem:[%s271 + $0x1c] sm:$0xf]
        %v302 = vld [vmem:[%s271 + $0x20] sm:$0xf]
        %v303 = vld [vmem:[%s271 + $0x24] sm:$0xf]
        %v304 = vld [vmem:[%s271 + $0x28] sm:$0xf]
        %v305 = vld [vmem:[%s271 + $0x2c] sm:$0xf]
        %v306 = vld [vmem:[%s271 + $0x30] sm:$0xf]
        %v307 = vld [vmem:[%s271 + $0x34] sm:$0xf]
        %v308 = vld [vmem:[%s271 + $0x38] sm:$0xf]
        %v309 = vld [vmem:[%s271 + $0x3c] sm:$0xf]
        %v310 = vld [vmem:[%s271 + $0x40] sm:$0xf]
        %v311 = vld [vmem:[%s271 + $0x44] sm:$0xf]
        %v312 = vld [vmem:[%s271 + $0x48] sm:$0xf]
        %v313 = vld [vmem:[%s271 + $0x4c] sm:$0xf]
        %v314 = vld [vmem:[%s271 + $0x50] sm:$0xf]
        %v315 = vld [vmem:[%s271 + $0x54] sm:$0xf]
        %v316 = vld [vmem:[%s271 + $0x58] sm:$0xf]
        %v317 = vld [vmem:[%s271 + $0x5c] sm:$0xf]
        %v318 = vld [vmem:[%s271 + $0x60] sm:$0xf]
        %v319 = vld [vmem:[%s271 + $0x64] sm:$0xf]
        %v320 = vld [vmem:[%s271 + $0x68] sm:$0xf]
        %v321 = vld [vmem:[%s271 + $0x6c] sm:$0xf]
        %v322 = vld [vmem:[%s271 + $0x70] sm:$0xf]
        %v323 = vld [vmem:[%s271 + $0x74] sm:$0xf]
        %v324 = vld [vmem:[%s271 + $0x78] sm:$0xf]
        %v325 = vld [vmem:[%s271 + $0x7c] sm:$0xf]
        %v326 = vld [vmem:[%s271 + $0x80] sm:$0xf]
        %v327 = vld [vmem:[%s271 + $0x84] sm:$0xf]
        %v328 = vld [vmem:[%s271 + $0x88] sm:$0xf]
        %v329 = vld [vmem:[%s271 + $0x8c] sm:$0xf]
        %v330 = vld [vmem:[%s271 + $0x90] sm:$0xf]
        %v331 = vld [vmem:[%s271 + $0x94] sm:$0xf]
        %v332 = vld [vmem:[%s271 + $0x98] sm:$0xf]
        %v333 = vld [vmem:[%s271 + $0x9c] sm:$0xf]
        %v334 = vld [vmem:[%s271 + $0xa0] sm:$0xf]
        %v335 = vld [vmem:[%s271 + $0xa4] sm:$0xf]
        %v336 = vld [vmem:[%s271 + $0xa8] sm:$0xf]
        %v337 = vld [vmem:[%s271 + $0xac] sm:$0xf]
        %v338 = vld [vmem:[%s271 + $0xb0] sm:$0xf]
        %v339 = vld [vmem:[%s271 + $0xb4] sm:$0xf]
        %v340 = vld [vmem:[%s271 + $0xb8] sm:$0xf]
        %v341 = vld [vmem:[%s271 + $0xbc] sm:$0xf]
        %v342 = vld [vmem:[%s271 + $0xc0] sm:$0xf]
        %v343 = vld [vmem:[%s271 + $0xc4] sm:$0x3]
        %v344 = vunpack.c.l.bf16 %v294
        %v345 = vunpack.c.l.bf16 %v295
        %v346 = vunpack.c.l.bf16 %v296
        %v347 = vunpack.c.l.bf16 %v297
        %v348 = vunpack.c.l.bf16 %v298
        %v349 = vunpack.c.l.bf16 %v299
        %v350 = vunpack.c.l.bf16 %v300
        %v351 = vunpack.c.l.bf16 %v301
        %v352 = vunpack.c.l.bf16 %v302
        %v353 = vunpack.c.l.bf16 %v303
        %v354 = vunpack.c.l.bf16 %v304
        %v355 = vunpack.c.l.bf16 %v305
        %v356 = vunpack.c.l.bf16 %v306
        %v357 = vunpack.c.l.bf16 %v307
        %v358 = vunpack.c.l.bf16 %v308
        %v359 = vunpack.c.l.bf16 %v309
        %v360 = vunpack.c.l.bf16 %v310
        %v361 = vunpack.c.l.bf16 %v311
        %v362 = vunpack.c.l.bf16 %v312
        %v363 = vunpack.c.l.bf16 %v313
        %v364 = vunpack.c.l.bf16 %v314
        %v365 = vunpack.c.l.bf16 %v315
        %v366 = vunpack.c.l.bf16 %v316
        %v367 = vunpack.c.l.bf16 %v317
        %v368 = vunpack.c.l.bf16 %v318
        %v369 = vunpack.c.l.bf16 %v319
        %v370 = vunpack.c.l.bf16 %v320
        %v371 = vunpack.c.l.bf16 %v321
        %v372 = vunpack.c.l.bf16 %v322
        %v373 = vunpack.c.l.bf16 %v323
        %v374 = vunpack.c.l.bf16 %v324
        %v375 = vunpack.c.l.bf16 %v325
        %v376 = vunpack.c.l.bf16 %v326
        %v377 = vunpack.c.l.bf16 %v327
        %v378 = vunpack.c.l.bf16 %v328
        %v379 = vunpack.c.l.bf16 %v329
        %v380 = vunpack.c.l.bf16 %v330
        %v381 = vunpack.c.l.bf16 %v331
        %v382 = vunpack.c.l.bf16 %v332
        %v383 = vunpack.c.l.bf16 %v333
        %v384 = vunpack.c.l.bf16 %v334
        %v385 = vunpack.c.l.bf16 %v335
        %v386 = vunpack.c.l.bf16 %v336
        %v387 = vunpack.c.l.bf16 %v337
        %v388 = vunpack.c.l.bf16 %v338
        %v389 = vunpack.c.l.bf16 %v339
        %v390 = vunpack.c.l.bf16 %v340
        %v391 = vunpack.c.l.bf16 %v341
        %v392 = vunpack.c.l.bf16 %v342
        %v393 = vunpack.c.l.bf16 %v343
        %394 = vst [vmem:[#allocation2] sm:$0xff] %v344
        %395 = vst [vmem:[#allocation2 + $0x8] sm:$0xff] %v345
        %396 = vst [vmem:[#allocation2 + $0x10] sm:$0xff] %v346
        %397 = vst [vmem:[#allocation2 + $0x18] sm:$0xff] %v347
        %398 = vst [vmem:[#allocation2 + $0x20] sm:$0xff] %v348
        %399 = vst [vmem:[#allocation2 + $0x28] sm:$0xff] %v349
        %400 = vst [vmem:[#allocation2 + $0x30] sm:$0xff] %v350
        %401 = vst [vmem:[#allocation2 + $0x38] sm:$0xff] %v351
        %402 = vst [vmem:[#allocation2 + $0x40] sm:$0xff] %v352
        %403 = vst [vmem:[#allocation2 + $0x48] sm:$0xff] %v353
        %404 = vst [vmem:[#allocation2 + $0x50] sm:$0xff] %v354
        %405 = vst [vmem:[#allocation2 + $0x58] sm:$0xff] %v355
        %406 = vst [vmem:[#allocation2 + $0x60] sm:$0xff] %v356
        %407 = vst [vmem:[#allocation2 + $0x68] sm:$0xff] %v357
        %408 = vst [vmem:[#allocation2 + $0x70] sm:$0xff] %v358
        %409 = vst [vmem:[#allocation2 + $0x78] sm:$0xff] %v359
        %410 = vst [vmem:[#allocation2 + $0x80] sm:$0xff] %v360
        %411 = vst [vmem:[#allocation2 + $0x88] sm:$0xff] %v361
        %412 = vst [vmem:[#allocation2 + $0x90] sm:$0xff] %v362
        %413 = vst [vmem:[#allocation2 + $0x98] sm:$0xff] %v363
        %414 = vst [vmem:[#allocation2 + $0xa0] sm:$0xff] %v364
        %415 = vst [vmem:[#allocation2 + $0xa8] sm:$0xff] %v365
        %416 = vst [vmem:[#allocation2 + $0xb0] sm:$0xff] %v366
        %417 = vst [vmem:[#allocation2 + $0xb8] sm:$0xff] %v367
        %418 = vst [vmem:[#allocation2 + $0xc0] sm:$0xff] %v368
        %419 = vst [vmem:[#allocation2 + $0xc8] sm:$0xff] %v369
        %420 = vst [vmem:[#allocation2 + $0xd0] sm:$0xff] %v370
        %421 = vst [vmem:[#allocation2 + $0xd8] sm:$0xff] %v371
        %422 = vst [vmem:[#allocation2 + $0xe0] sm:$0xff] %v372
        %423 = vst [vmem:[#allocation2 + $0xe8] sm:$0xff] %v373
        %424 = vst [vmem:[#allocation2 + $0xf0] sm:$0xff] %v374
        %425 = vst [vmem:[#allocation2 + $0xf8] sm:$0xff] %v375
        %426 = vst [vmem:[#allocation2 + $0x100] sm:$0xff] %v376
        %427 = vst [vmem:[#allocation2 + $0x108] sm:$0xff] %v377
        %428 = vst [vmem:[#allocation2 + $0x110] sm:$0xff] %v378
        %429 = vst [vmem:[#allocation2 + $0x118] sm:$0xff] %v379
        %430 = vst [vmem:[#allocation2 + $0x120] sm:$0xff] %v380
        %431 = vst [vmem:[#allocation2 + $0x128] sm:$0xff] %v381
        %432 = vst [vmem:[#allocation2 + $0x130] sm:$0xff] %v382
        %433 = vst [vmem:[#allocation2 + $0x138] sm:$0xff] %v383
        %434 = vst [vmem:[#allocation2 + $0x140] sm:$0xff] %v384
        %435 = vst [vmem:[#allocation2 + $0x148] sm:$0xff] %v385
        %436 = vst [vmem:[#allocation2 + $0x150] sm:$0xff] %v386
        %437 = vst [vmem:[#allocation2 + $0x158] sm:$0xff] %v387
        %438 = vst [vmem:[#allocation2 + $0x160] sm:$0xff] %v388
        %439 = vst [vmem:[#allocation2 + $0x168] sm:$0xff] %v389
        %440 = vst [vmem:[#allocation2 + $0x170] sm:$0xff] %v390
        %441 = vst [vmem:[#allocation2 + $0x178] sm:$0xff] %v391
        %442 = vst [vmem:[#allocation2 + $0x180] sm:$0xff] %v392
        %443 = vst [vmem:[#allocation2 + $0x188] sm:$0xf] %v393
      $region44: #{_lambda_.2} parent=39 // pred_fallthru
        _
      %v444 = vld [vmem:[%s278] sm:$0x1]
      %v445 = vld [vmem:[%s281] sm:$0x1]
      %v446 = vld [vmem:[#allocation2] sm:$0xff]
      %v447 = vld [vmem:[#allocation2 + $0x8] sm:$0xff]
      %v448 = vld [vmem:[#allocation2 + $0x10] sm:$0xff]
      %v449 = vld [vmem:[#allocation2 + $0x18] sm:$0xff]
      %v450 = vld [vmem:[#allocation2 + $0x20] sm:$0xff]
      %v451 = vld [vmem:[#allocation2 + $0x28] sm:$0xff]
      %v452 = vld [vmem:[#allocation2 + $0x30] sm:$0xff]
      %v453 = vld [vmem:[#allocation2 + $0x38] sm:$0xff]
      %v454 = vld [vmem:[#allocation2 + $0x40] sm:$0xff]
      %v455 = vld [vmem:[#allocation2 + $0x48] sm:$0xff]
      %v456 = vld [vmem:[#allocation2 + $0x50] sm:$0xff]
      %v457 = vld [vmem:[#allocation2 + $0x58] sm:$0xff]
      %v458 = vld [vmem:[#allocation2 + $0x60] sm:$0xff]
      %v459 = vld [vmem:[#allocation2 + $0x68] sm:$0xff]
      %v460 = vld [vmem:[#allocation2 + $0x70] sm:$0xff]
      %v461 = vld [vmem:[#allocation2 + $0x78] sm:$0xff]
      %v462 = vld [vmem:[#allocation2 + $0x80] sm:$0xff]
      %v463 = vld [vmem:[#allocation2 + $0x88] sm:$0xff]
      %v464 = vld [vmem:[#allocation2 + $0x90] sm:$0xff]
      %v465 = vld [vmem:[#allocation2 + $0x98] sm:$0xff]
      %v466 = vld [vmem:[#allocation2 + $0xa0] sm:$0xff]
      %v467 = vld [vmem:[#allocation2 + $0xa8] sm:$0xff]
      %v468 = vld [vmem:[#allocation2 + $0xb0] sm:$0xff]
      %v469 = vld [vmem:[#allocation2 + $0xb8] sm:$0xff]
      %v470 = vld [vmem:[#allocation2 + $0xc0] sm:$0xff]
      %v471 = vld [vmem:[#allocation2 + $0xc8] sm:$0xff]
      %v472 = vld [vmem:[#allocation2 + $0xd0] sm:$0xff]
      %v473 = vld [vmem:[#allocation2 + $0xd8] sm:$0xff]
      %v474 = vld [vmem:[#allocation2 + $0xe0] sm:$0xff]
      %v475 = vld [vmem:[#allocation2 + $0xe8] sm:$0xff]
      %v476 = vld [vmem:[#allocation2 + $0xf0] sm:$0xff]
      %v477 = vld [vmem:[#allocation2 + $0xf8] sm:$0xff]
      %v478 = vpack.c.bf16 %v447, %v446
      %v479 = vpack.c.bf16 %v449, %v448
      %v480 = vpack.c.bf16 %v451, %v450
      %v481 = vpack.c.bf16 %v453, %v452
      %v482 = vpack.c.bf16 %v455, %v454
      %v483 = vpack.c.bf16 %v457, %v456
      %v484 = vpack.c.bf16 %v459, %v458
      %v485 = vpack.c.bf16 %v461, %v460
      %v486 = vpack.c.bf16 %v463, %v462
      %v487 = vpack.c.bf16 %v465, %v464
      %v488 = vpack.c.bf16 %v467, %v466
      %v489 = vpack.c.bf16 %v469, %v468
      %v490 = vpack.c.bf16 %v471, %v470
      %v491 = vpack.c.bf16 %v473, %v472
      %v492 = vpack.c.bf16 %v475, %v474
      %v493 = vpack.c.bf16 %v477, %v476
      %v494 = vld [vmem:[%s275] sm:$0xf]
      %v495 = vld [vmem:[%s275 + $0x4] sm:$0xf]
      %v496 = vld [vmem:[%s275 + $0x8] sm:$0xf]
      %v497 = vld [vmem:[%s275 + $0xc] sm:$0xf]
      %v498 = vld [vmem:[%s275 + $0x10] sm:$0xf]
      %v499 = vld [vmem:[%s275 + $0x14] sm:$0xf]
      %v500 = vld [vmem:[%s275 + $0x18] sm:$0xf]
      %v501 = vld [vmem:[%s275 + $0x1c] sm:$0xf]
      %v502 = vld [vmem:[%s275 + $0x20] sm:$0xf]
      %v503 = vld [vmem:[%s275 + $0x24] sm:$0xf]
      %v504 = vld [vmem:[%s275 + $0x28] sm:$0xf]
      %v505 = vld [vmem:[%s275 + $0x2c] sm:$0xf]
      %v506 = vld [vmem:[%s275 + $0x30] sm:$0xf]
      %v507 = vld [vmem:[%s275 + $0x34] sm:$0xf]
      %v508 = vld [vmem:[%s275 + $0x38] sm:$0xf]
      %v509 = vld [vmem:[%s275 + $0x3c] sm:$0xf]
      %v510 = vld [vmem:[#allocation2 + $0x1] sm:$0xff]
      %v511 = vld [vmem:[#allocation2 + $0x9] sm:$0xff]
      %v512 = vld [vmem:[#allocation2 + $0x11] sm:$0xff]
      %v513 = vld [vmem:[#allocation2 + $0x19] sm:$0xff]
      %v514 = vld [vmem:[#allocation2 + $0x21] sm:$0xff]
      %v515 = vld [vmem:[#allocation2 + $0x29] sm:$0xff]
      %v516 = vld [vmem:[#allocation2 + $0x31] sm:$0xff]
      %v517 = vld [vmem:[#allocation2 + $0x39] sm:$0xff]
      %v518 = vld [vmem:[#allocation2 + $0x41] sm:$0xff]
      %v519 = vld [vmem:[#allocation2 + $0x49] sm:$0xff]
      %v520 = vld [vmem:[#allocation2 + $0x51] sm:$0xff]
      %v521 = vld [vmem:[#allocation2 + $0x59] sm:$0xff]
      %v522 = vld [vmem:[#allocation2 + $0x61] sm:$0xff]
      %v523 = vld [vmem:[#allocation2 + $0x69] sm:$0xff]
      %v524 = vld [vmem:[#allocation2 + $0x71] sm:$0xff]
      %v525 = vld [vmem:[#allocation2 + $0x79] sm:$0xff]
      %v526 = vld [vmem:[#allocation2 + $0x81] sm:$0xff]
      %v527 = vld [vmem:[#allocation2 + $0x89] sm:$0xff]
      %v528 = vld [vmem:[#allocation2 + $0x91] sm:$0xff]
      %v529 = vld [vmem:[#allocation2 + $0x99] sm:$0xff]
      %v530 = vld [vmem:[#allocation2 + $0xa1] sm:$0xff]
      %v531 = vld [vmem:[#allocation2 + $0xa9] sm:$0xff]
      %v532 = vld [vmem:[#allocation2 + $0xb1] sm:$0xff]
      %v533 = vld [vmem:[#allocation2 + $0xb9] sm:$0xff]
      %v534 = vld [vmem:[#allocation2 + $0xc1] sm:$0xff]
      %v535 = vld [vmem:[#allocation2 + $0xc9] sm:$0xff]
      %v536 = vld [vmem:[#allocation2 + $0xd1] sm:$0xff]
      %v537 = vld [vmem:[#allocation2 + $0xd9] sm:$0xff]
      %v538 = vld [vmem:[#allocation2 + $0xe1] sm:$0xff]
      %v539 = vld [vmem:[#allocation2 + $0xe9] sm:$0xff]
      %v540 = vld [vmem:[#allocation2 + $0xf1] sm:$0xff]
      %v541 = vld [vmem:[#allocation2 + $0xf9] sm:$0xff]
      %v542 = vpack.c.bf16 %v511, %v510
      %v543 = vpack.c.bf16 %v513, %v512
      %v544 = vpack.c.bf16 %v515, %v514
      %v545 = vpack.c.bf16 %v517, %v516
      %v546 = vpack.c.bf16 %v519, %v518
      %v547 = vpack.c.bf16 %v521, %v520
      %v548 = vpack.c.bf16 %v523, %v522
      %v549 = vpack.c.bf16 %v525, %v524
      %v550 = vpack.c.bf16 %v527, %v526
      %v551 = vpack.c.bf16 %v529, %v528
      %v552 = vpack.c.bf16 %v531, %v530
      %v553 = vpack.c.bf16 %v533, %v532
      %v554 = vpack.c.bf16 %v535, %v534
      %v555 = vpack.c.bf16 %v537, %v536
      %v556 = vpack.c.bf16 %v539, %v538
      %v557 = vpack.c.bf16 %v541, %v540
      %s558 = scalar_lea.vmem %s275, 64
      %v559 = vld [vmem:[%s558] sm:$0xf]
      %v560 = vld [vmem:[%s558 + $0x4] sm:$0xf]
      %v561 = vld [vmem:[%s558 + $0x8] sm:$0xf]
      %v562 = vld [vmem:[%s558 + $0xc] sm:$0xf]
      %v563 = vld [vmem:[%s558 + $0x10] sm:$0xf]
      %v564 = vld [vmem:[%s558 + $0x14] sm:$0xf]
      %v565 = vld [vmem:[%s558 + $0x18] sm:$0xf]
      %v566 = vld [vmem:[%s558 + $0x1c] sm:$0xf]
      %v567 = vld [vmem:[%s558 + $0x20] sm:$0xf]
      %v568 = vld [vmem:[%s558 + $0x24] sm:$0xf]
      %v569 = vld [vmem:[%s558 + $0x28] sm:$0xf]
      %v570 = vld [vmem:[%s558 + $0x2c] sm:$0xf]
      %v571 = vld [vmem:[%s558 + $0x30] sm:$0xf]
      %v572 = vld [vmem:[%s558 + $0x34] sm:$0xf]
      %v573 = vld [vmem:[%s558 + $0x38] sm:$0xf]
      %v574 = vld [vmem:[%s558 + $0x3c] sm:$0xf]
      %v591 = vunpack.c.l.b16 %v559
      %v592 = vunpack.c.l.b16 %v560
      %v593 = vunpack.c.l.b16 %v561
      %v594 = vunpack.c.l.b16 %v562
      %v595 = vunpack.c.l.b16 %v563
      %v596 = vunpack.c.l.b16 %v564
      %v597 = vunpack.c.l.b16 %v565
      %v598 = vunpack.c.l.b16 %v566
      %v599 = vunpack.c.l.b16 %v567
      %v600 = vunpack.c.l.b16 %v568
      %v601 = vunpack.c.l.b16 %v569
      %v602 = vunpack.c.l.b16 %v570
      %v603 = vunpack.c.l.b16 %v571
      %v604 = vunpack.c.l.b16 %v572
      %v605 = vunpack.c.l.b16 %v573
      %v606 = vunpack.c.l.b16 %v574
      %v607 = vpack.c.b16 %v592, %v591
      %v608 = vpack.c.b16 %v594, %v593
      %v609 = vpack.c.b16 %v596, %v595
      %v610 = vpack.c.b16 %v598, %v597
      %v611 = vpack.c.b16 %v600, %v599
      %v612 = vpack.c.b16 %v602, %v601
      %v613 = vpack.c.b16 %v604, %v603
      %v614 = vpack.c.b16 %v606, %v605
      %623 = vmatpush.bf16.msra.mxu0 %v614
      %624 = vmatpush.bf16.msra.mxu0 %v613
      %625 = vmatpush.bf16.msra.mxu0 %v612
      %626 = vmatpush.bf16.msra.mxu0 %v611
      %627 = vmatpush.bf16.msra.mxu0 %v610
      %628 = vmatpush.bf16.msra.mxu0 %v609
      %629 = vmatpush.bf16.msra.mxu0 %v608
      %630 = vmatpush.bf16.msra.mxu0 %v607
      %631 = vmatmul.bf16.gmra.mxu0 %v542
      %v632 = vpop.f32.mrf.mxu0
      %v633 = vadd.f32 0.0, %v632
      %v634 = vpop.f32.mrf.mxu0
      %v635 = vadd.f32 0.0, %v634
      %636 = vmatmul.bf16.gmra.mxu0 %v543
      %v637 = vpop.f32.mrf.mxu0
      %v638 = vadd.f32 0.0, %v637
      %v639 = vpop.f32.mrf.mxu0
      %v640 = vadd.f32 0.0, %v639
      %641 = vmatmul.bf16.gmra.mxu0 %v544
      %v642 = vpop.f32.mrf.mxu0
      %v643 = vadd.f32 0.0, %v642
      %v644 = vpop.f32.mrf.mxu0
      %v645 = vadd.f32 0.0, %v644
      %646 = vmatmul.bf16.gmra.mxu0 %v545
      %v647 = vpop.f32.mrf.mxu0
      %v648 = vadd.f32 0.0, %v647
      %v649 = vpop.f32.mrf.mxu0
      %v650 = vadd.f32 0.0, %v649
      %651 = vmatmul.bf16.gmra.mxu0 %v546
      %v652 = vpop.f32.mrf.mxu0
      %v653 = vadd.f32 0.0, %v652
      %v654 = vpop.f32.mrf.mxu0
      %v655 = vadd.f32 0.0, %v654
      %656 = vmatmul.bf16.gmra.mxu0 %v547
      %v657 = vpop.f32.mrf.mxu0
      %v658 = vadd.f32 0.0, %v657
      %v659 = vpop.f32.mrf.mxu0
      %v660 = vadd.f32 0.0, %v659
      %661 = vmatmul.bf16.gmra.mxu0 %v548
      %v662 = vpop.f32.mrf.mxu0
      %v663 = vadd.f32 0.0, %v662
      %v664 = vpop.f32.mrf.mxu0
      %v665 = vadd.f32 0.0, %v664
      %666 = vmatmul.bf16.gmra.mxu0 %v549
      %v667 = vpop.f32.mrf.mxu0
      %v668 = vadd.f32 0.0, %v667
      %v669 = vpop.f32.mrf.mxu0
      %v670 = vadd.f32 0.0, %v669
      %671 = vmatmul.bf16.gmra.mxu0 %v550
      %v672 = vpop.f32.mrf.mxu0
      %v673 = vadd.f32 0.0, %v672
      %v674 = vpop.f32.mrf.mxu0
      %v675 = vadd.f32 0.0, %v674
      %676 = vmatmul.bf16.gmra.mxu0 %v551
      %v677 = vpop.f32.mrf.mxu0
      %v678 = vadd.f32 0.0, %v677
      %v679 = vpop.f32.mrf.mxu0
      %v680 = vadd.f32 0.0, %v679
      %681 = vmatmul.bf16.gmra.mxu0 %v552
      %v682 = vpop.f32.mrf.mxu0
      %v683 = vadd.f32 0.0, %v682
      %v684 = vpop.f32.mrf.mxu0
      %v685 = vadd.f32 0.0, %v684
      %686 = vmatmul.bf16.gmra.mxu0 %v553
      %v687 = vpop.f32.mrf.mxu0
      %v688 = vadd.f32 0.0, %v687
      %v689 = vpop.f32.mrf.mxu0
      %v690 = vadd.f32 0.0, %v689
      %691 = vmatmul.bf16.gmra.mxu0 %v554
      %v692 = vpop.f32.mrf.mxu0
      %v693 = vadd.f32 0.0, %v692
      %v694 = vpop.f32.mrf.mxu0
      %v695 = vadd.f32 0.0, %v694
      %696 = vmatmul.bf16.gmra.mxu0 %v555
      %v697 = vpop.f32.mrf.mxu0
      %v698 = vadd.f32 0.0, %v697
      %v699 = vpop.f32.mrf.mxu0
      %v700 = vadd.f32 0.0, %v699
      %701 = vmatmul.bf16.gmra.mxu0 %v556
      %v702 = vpop.f32.mrf.mxu0
      %v703 = vadd.f32 0.0, %v702
      %v704 = vpop.f32.mrf.mxu0
      %v705 = vadd.f32 0.0, %v704
      %706 = vmatmul.bf16.gmra.mxu0 %v557
      %v707 = vpop.f32.mrf.mxu0
      %v708 = vadd.f32 0.0, %v707
      %v709 = vpop.f32.mrf.mxu0
      %v710 = vadd.f32 0.0, %v709
      %711 = vdwg.mxu0
      %v728 = vunpack.c.l.b16 %v494
      %v729 = vunpack.c.l.b16 %v495
      %v730 = vunpack.c.l.b16 %v496
      %v731 = vunpack.c.l.b16 %v497
      %v732 = vunpack.c.l.b16 %v498
      %v733 = vunpack.c.l.b16 %v499
      %v734 = vunpack.c.l.b16 %v500
      %v735 = vunpack.c.l.b16 %v501
      %v736 = vunpack.c.l.b16 %v502
      %v737 = vunpack.c.l.b16 %v503
      %v738 = vunpack.c.l.b16 %v504
      %v739 = vunpack.c.l.b16 %v505
      %v740 = vunpack.c.l.b16 %v506
      %v741 = vunpack.c.l.b16 %v507
      %v742 = vunpack.c.l.b16 %v508
      %v743 = vunpack.c.l.b16 %v509
      %v744 = vpack.c.b16 %v729, %v728
      %v745 = vpack.c.b16 %v731, %v730
      %v746 = vpack.c.b16 %v733, %v732
      %v747 = vpack.c.b16 %v735, %v734
      %v748 = vpack.c.b16 %v737, %v736
      %v749 = vpack.c.b16 %v739, %v738
      %v750 = vpack.c.b16 %v741, %v740
      %v751 = vpack.c.b16 %v743, %v742
      %760 = vmatpush.bf16.msra.mxu0 %v751
      %761 = vmatpush.bf16.msra.mxu0 %v750
      %762 = vmatpush.bf16.msra.mxu0 %v749
      %763 = vmatpush.bf16.msra.mxu0 %v748
      %764 = vmatpush.bf16.msra.mxu0 %v747
      %765 = vmatpush.bf16.msra.mxu0 %v746
      %766 = vmatpush.bf16.msra.mxu0 %v745
      %767 = vmatpush.bf16.msra.mxu0 %v744
      %768 = vmatmul.bf16.gmra.mxu0 %v478
      %v769 = vpop.f32.mrf.mxu0
      %v770 = vadd.f32 %v633, %v769
      %v771 = vpop.f32.mrf.mxu0
      %v772 = vadd.f32 %v635, %v771
      %773 = vmatmul.bf16.gmra.mxu0 %v479
      %v774 = vpop.f32.mrf.mxu0
      %v775 = vadd.f32 %v638, %v774
      %v776 = vpop.f32.mrf.mxu0
      %v777 = vadd.f32 %v640, %v776
      %778 = vmatmul.bf16.gmra.mxu0 %v480
      %v779 = vpop.f32.mrf.mxu0
      %v780 = vadd.f32 %v643, %v779
      %v781 = vpop.f32.mrf.mxu0
      %v782 = vadd.f32 %v645, %v781
      %783 = vmatmul.bf16.gmra.mxu0 %v481
      %v784 = vpop.f32.mrf.mxu0
      %v785 = vadd.f32 %v648, %v784
      %v786 = vpop.f32.mrf.mxu0
      %v787 = vadd.f32 %v650, %v786
      %788 = vmatmul.bf16.gmra.mxu0 %v482
      %v789 = vpop.f32.mrf.mxu0
      %v790 = vadd.f32 %v653, %v789
      %v791 = vpop.f32.mrf.mxu0
      %v792 = vadd.f32 %v655, %v791
      %793 = vmatmul.bf16.gmra.mxu0 %v483
      %v794 = vpop.f32.mrf.mxu0
      %v795 = vadd.f32 %v658, %v794
      %v796 = vpop.f32.mrf.mxu0
      %v797 = vadd.f32 %v660, %v796
      %798 = vmatmul.bf16.gmra.mxu0 %v484
      %v799 = vpop.f32.mrf.mxu0
      %v800 = vadd.f32 %v663, %v799
      %v801 = vpop.f32.mrf.mxu0
      %v802 = vadd.f32 %v665, %v801
      %803 = vmatmul.bf16.gmra.mxu0 %v485
      %v804 = vpop.f32.mrf.mxu0
      %v805 = vadd.f32 %v668, %v804
      %v806 = vpop.f32.mrf.mxu0
      %v807 = vadd.f32 %v670, %v806
      %808 = vmatmul.bf16.gmra.mxu0 %v486
      %v809 = vpop.f32.mrf.mxu0
      %v810 = vadd.f32 %v673, %v809
      %v811 = vpop.f32.mrf.mxu0
      %v812 = vadd.f32 %v675, %v811
      %813 = vmatmul.bf16.gmra.mxu0 %v487
      %v814 = vpop.f32.mrf.mxu0
      %v815 = vadd.f32 %v678, %v814
      %v816 = vpop.f32.mrf.mxu0
      %v817 = vadd.f32 %v680, %v816
      %818 = vmatmul.bf16.gmra.mxu0 %v488
      %v819 = vpop.f32.mrf.mxu0
      %v820 = vadd.f32 %v683, %v819
      %v821 = vpop.f32.mrf.mxu0
      %v822 = vadd.f32 %v685, %v821
      %823 = vmatmul.bf16.gmra.mxu0 %v489
      %v824 = vpop.f32.mrf.mxu0
      %v825 = vadd.f32 %v688, %v824
      %v826 = vpop.f32.mrf.mxu0
      %v827 = vadd.f32 %v690, %v826
      %828 = vmatmul.bf16.gmra.mxu0 %v490
      %v829 = vpop.f32.mrf.mxu0
      %v830 = vadd.f32 %v693, %v829
      %v831 = vpop.f32.mrf.mxu0
      %v832 = vadd.f32 %v695, %v831
      %833 = vmatmul.bf16.gmra.mxu0 %v491
      %v834 = vpop.f32.mrf.mxu0
      %v835 = vadd.f32 %v698, %v834
      %v836 = vpop.f32.mrf.mxu0
      %v837 = vadd.f32 %v700, %v836
      %838 = vmatmul.bf16.gmra.mxu0 %v492
      %v839 = vpop.f32.mrf.mxu0
      %v840 = vadd.f32 %v703, %v839
      %v841 = vpop.f32.mrf.mxu0
      %v842 = vadd.f32 %v705, %v841
      %843 = vmatmul.bf16.gmra.mxu0 %v493
      %v844 = vpop.f32.mrf.mxu0
      %v845 = vadd.f32 %v708, %v844
      %v846 = vpop.f32.mrf.mxu0
      %v847 = vadd.f32 %v710, %v846
      %848 = vdwg.mxu0
      %v849 = vld [vmem:[#allocation2 + $0x2] sm:$0xff]
      %v850 = vld [vmem:[#allocation2 + $0xa] sm:$0xff]
      %v851 = vld [vmem:[#allocation2 + $0x12] sm:$0xff]
      %v852 = vld [vmem:[#allocation2 + $0x1a] sm:$0xff]
      %v853 = vld [vmem:[#allocation2 + $0x22] sm:$0xff]
      %v854 = vld [vmem:[#allocation2 + $0x2a] sm:$0xff]
      %v855 = vld [vmem:[#allocation2 + $0x32] sm:$0xff]
      %v856 = vld [vmem:[#allocation2 + $0x3a] sm:$0xff]
      %v857 = vld [vmem:[#allocation2 + $0x42] sm:$0xff]
      %v858 = vld [vmem:[#allocation2 + $0x4a] sm:$0xff]
      %v859 = vld [vmem:[#allocation2 + $0x52] sm:$0xff]
      %v860 = vld [vmem:[#allocation2 + $0x5a] sm:$0xff]
      %v861 = vld [vmem:[#allocation2 + $0x62] sm:$0xff]
      %v862 = vld [vmem:[#allocation2 + $0x6a] sm:$0xff]
      %v863 = vld [vmem:[#allocation2 + $0x72] sm:$0xff]
      %v864 = vld [vmem:[#allocation2 + $0x7a] sm:$0xff]
      %v865 = vld [vmem:[#allocation2 + $0x82] sm:$0xff]
      %v866 = vld [vmem:[#allocation2 + $0x8a] sm:$0xff]
      %v867 = vld [vmem:[#allocation2 + $0x92] sm:$0xff]
      %v868 = vld [vmem:[#allocation2 + $0x9a] sm:$0xff]
      %v869 = vld [vmem:[#allocation2 + $0xa2] sm:$0xff]
      %v870 = vld [vmem:[#allocation2 + $0xaa] sm:$0xff]
      %v871 = vld [vmem:[#allocation2 + $0xb2] sm:$0xff]
      %v872 = vld [vmem:[#allocation2 + $0xba] sm:$0xff]
      %v873 = vld [vmem:[#allocation2 + $0xc2] sm:$0xff]
      %v874 = vld [vmem:[#allocation2 + $0xca] sm:$0xff]
      %v875 = vld [vmem:[#allocation2 + $0xd2] sm:$0xff]
      %v876 = vld [vmem:[#allocation2 + $0xda] sm:$0xff]
      %v877 = vld [vmem:[#allocation2 + $0xe2] sm:$0xff]
      %v878 = vld [vmem:[#allocation2 + $0xea] sm:$0xff]
      %v879 = vld [vmem:[#allocation2 + $0xf2] sm:$0xff]
      %v880 = vld [vmem:[#allocation2 + $0xfa] sm:$0xff]
      %v881 = vpack.c.bf16 %v850, %v849
      %v882 = vpack.c.bf16 %v852, %v851
      %v883 = vpack.c.bf16 %v854, %v853
      %v884 = vpack.c.bf16 %v856, %v855
      %v885 = vpack.c.bf16 %v858, %v857
      %v886 = vpack.c.bf16 %v860, %v859
      %v887 = vpack.c.bf16 %v862, %v861
      %v888 = vpack.c.bf16 %v864, %v863
      %v889 = vpack.c.bf16 %v866, %v865
      %v890 = vpack.c.bf16 %v868, %v867
      %v891 = vpack.c.bf16 %v870, %v869
      %v892 = vpack.c.bf16 %v872, %v871
      %v893 = vpack.c.bf16 %v874, %v873
      %v894 = vpack.c.bf16 %v876, %v875
      %v895 = vpack.c.bf16 %v878, %v877
      %v896 = vpack.c.bf16 %v880, %v879
      %s897 = scalar_lea.vmem %s275, 128
      %v898 = vld [vmem:[%s897] sm:$0xf]
      %v899 = vld [vmem:[%s897 + $0x4] sm:$0xf]
      %v900 = vld [vmem:[%s897 + $0x8] sm:$0xf]
      %v901 = vld [vmem:[%s897 + $0xc] sm:$0xf]
      %v902 = vld [vmem:[%s897 + $0x10] sm:$0xf]
      %v903 = vld [vmem:[%s897 + $0x14] sm:$0xf]
      %v904 = vld [vmem:[%s897 + $0x18] sm:$0xf]
      %v905 = vld [vmem:[%s897 + $0x1c] sm:$0xf]
      %v906 = vld [vmem:[%s897 + $0x20] sm:$0xf]
      %v907 = vld [vmem:[%s897 + $0x24] sm:$0xf]
      %v908 = vld [vmem:[%s897 + $0x28] sm:$0xf]
      %v909 = vld [vmem:[%s897 + $0x2c] sm:$0xf]
      %v910 = vld [vmem:[%s897 + $0x30] sm:$0xf]
      %v911 = vld [vmem:[%s897 + $0x34] sm:$0xf]
      %v912 = vld [vmem:[%s897 + $0x38] sm:$0xf]
      %v913 = vld [vmem:[%s897 + $0x3c] sm:$0xf]
      %v930 = vunpack.c.l.b16 %v898
      %v931 = vunpack.c.l.b16 %v899
      %v932 = vunpack.c.l.b16 %v900
      %v933 = vunpack.c.l.b16 %v901
      %v934 = vunpack.c.l.b16 %v902
      %v935 = vunpack.c.l.b16 %v903
      %v936 = vunpack.c.l.b16 %v904
      %v937 = vunpack.c.l.b16 %v905
      %v938 = vunpack.c.l.b16 %v906
      %v939 = vunpack.c.l.b16 %v907
      %v940 = vunpack.c.l.b16 %v908
      %v941 = vunpack.c.l.b16 %v909
      %v942 = vunpack.c.l.b16 %v910
      %v943 = vunpack.c.l.b16 %v911
      %v944 = vunpack.c.l.b16 %v912
      %v945 = vunpack.c.l.b16 %v913
      %v946 = vpack.c.b16 %v931, %v930
      %v947 = vpack.c.b16 %v933, %v932
      %v948 = vpack.c.b16 %v935, %v934
      %v949 = vpack.c.b16 %v937, %v936
      %v950 = vpack.c.b16 %v939, %v938
      %v951 = vpack.c.b16 %v941, %v940
      %v952 = vpack.c.b16 %v943, %v942
      %v953 = vpack.c.b16 %v945, %v944
      %962 = vmatpush.bf16.msra.mxu0 %v953
      %963 = vmatpush.bf16.msra.mxu0 %v952
      %964 = vmatpush.bf16.msra.mxu0 %v951
      %965 = vmatpush.bf16.msra.mxu0 %v950
      %966 = vmatpush.bf16.msra.mxu0 %v949
      %967 = vmatpush.bf16.msra.mxu0 %v948
      %968 = vmatpush.bf16.msra.mxu0 %v947
      %969 = vmatpush.bf16.msra.mxu0 %v946
      %970 = vmatmul.bf16.gmra.mxu0 %v881
      %v971 = vpop.f32.mrf.mxu0
      %v972 = vadd.f32 0.0, %v971
      %v973 = vpop.f32.mrf.mxu0
      %v974 = vadd.f32 0.0, %v973
      %975 = vmatmul.bf16.gmra.mxu0 %v882
      %v976 = vpop.f32.mrf.mxu0
      %v977 = vadd.f32 0.0, %v976
      %v978 = vpop.f32.mrf.mxu0
      %v979 = vadd.f32 0.0, %v978
      %980 = vmatmul.bf16.gmra.mxu0 %v883
      %v981 = vpop.f32.mrf.mxu0
      %v982 = vadd.f32 0.0, %v981
      %v983 = vpop.f32.mrf.mxu0
      %v984 = vadd.f32 0.0, %v983
      %985 = vmatmul.bf16.gmra.mxu0 %v884
      %v986 = vpop.f32.mrf.mxu0
      %v987 = vadd.f32 0.0, %v986
      %v988 = vpop.f32.mrf.mxu0
      %v989 = vadd.f32 0.0, %v988
      %990 = vmatmul.bf16.gmra.mxu0 %v885
      %v991 = vpop.f32.mrf.mxu0
      %v992 = vadd.f32 0.0, %v991
      %v993 = vpop.f32.mrf.mxu0
      %v994 = vadd.f32 0.0, %v993
      %995 = vmatmul.bf16.gmra.mxu0 %v886
      %v996 = vpop.f32.mrf.mxu0
      %v997 = vadd.f32 0.0, %v996
      %v998 = vpop.f32.mrf.mxu0
      %v999 = vadd.f32 0.0, %v998
      %1000 = vmatmul.bf16.gmra.mxu0 %v887
      %v1001 = vpop.f32.mrf.mxu0
      %v1002 = vadd.f32 0.0, %v1001
      %v1003 = vpop.f32.mrf.mxu0
      %v1004 = vadd.f32 0.0, %v1003
      %1005 = vmatmul.bf16.gmra.mxu0 %v888
      %v1006 = vpop.f32.mrf.mxu0
      %v1007 = vadd.f32 0.0, %v1006
      %v1008 = vpop.f32.mrf.mxu0
      %v1009 = vadd.f32 0.0, %v1008
      %1010 = vmatmul.bf16.gmra.mxu0 %v889
      %v1011 = vpop.f32.mrf.mxu0
      %v1012 = vadd.f32 0.0, %v1011
      %v1013 = vpop.f32.mrf.mxu0
      %v1014 = vadd.f32 0.0, %v1013
      %1015 = vmatmul.bf16.gmra.mxu0 %v890
      %v1016 = vpop.f32.mrf.mxu0
      %v1017 = vadd.f32 0.0, %v1016
      %v1018 = vpop.f32.mrf.mxu0
      %v1019 = vadd.f32 0.0, %v1018
      %1020 = vmatmul.bf16.gmra.mxu0 %v891
      %v1021 = vpop.f32.mrf.mxu0
      %v1022 = vadd.f32 0.0, %v1021
      %v1023 = vpop.f32.mrf.mxu0
      %v1024 = vadd.f32 0.0, %v1023
      %1025 = vmatmul.bf16.gmra.mxu0 %v892
      %v1026 = vpop.f32.mrf.mxu0
      %v1027 = vadd.f32 0.0, %v1026
      %v1028 = vpop.f32.mrf.mxu0
      %v1029 = vadd.f32 0.0, %v1028
      %1030 = vmatmul.bf16.gmra.mxu0 %v893
      %v1031 = vpop.f32.mrf.mxu0
      %v1032 = vadd.f32 0.0, %v1031
      %v1033 = vpop.f32.mrf.mxu0
      %v1034 = vadd.f32 0.0, %v1033
      %1035 = vmatmul.bf16.gmra.mxu0 %v894
      %v1036 = vpop.f32.mrf.mxu0
      %v1037 = vadd.f32 0.0, %v1036
      %v1038 = vpop.f32.mrf.mxu0
      %v1039 = vadd.f32 0.0, %v1038
      %1040 = vmatmul.bf16.gmra.mxu0 %v895
      %v1041 = vpop.f32.mrf.mxu0
      %v1042 = vadd.f32 0.0, %v1041
      %v1043 = vpop.f32.mrf.mxu0
      %v1044 = vadd.f32 0.0, %v1043
      %1045 = vmatmul.bf16.gmra.mxu0 %v896
      %v1046 = vpop.f32.mrf.mxu0
      %v1047 = vadd.f32 0.0, %v1046
      %v1048 = vpop.f32.mrf.mxu0
      %v1049 = vadd.f32 0.0, %v1048
      %1050 = vdwg.mxu0
      %v1051 = vadd.f32 %v770, %v972
      %v1052 = vadd.f32 %v772, %v974
      %v1053 = vadd.f32 %v775, %v977
      %v1054 = vadd.f32 %v777, %v979
      %v1055 = vadd.f32 %v780, %v982
      %v1056 = vadd.f32 %v782, %v984
      %v1057 = vadd.f32 %v785, %v987
      %v1058 = vadd.f32 %v787, %v989
      %v1059 = vadd.f32 %v790, %v992
      %v1060 = vadd.f32 %v792, %v994
      %v1061 = vadd.f32 %v795, %v997
      %v1062 = vadd.f32 %v797, %v999
      %v1063 = vadd.f32 %v800, %v1002
      %v1064 = vadd.f32 %v802, %v1004
      %v1065 = vadd.f32 %v805, %v1007
      %v1066 = vadd.f32 %v807, %v1009
      %v1067 = vadd.f32 %v810, %v1012
      %v1068 = vadd.f32 %v812, %v1014
      %v1069 = vadd.f32 %v815, %v1017
      %v1070 = vadd.f32 %v817, %v1019
      %v1071 = vadd.f32 %v820, %v1022
      %v1072 = vadd.f32 %v822, %v1024
      %v1073 = vadd.f32 %v825, %v1027
      %v1074 = vadd.f32 %v827, %v1029
      %v1075 = vadd.f32 %v830, %v1032
      %v1076 = vadd.f32 %v832, %v1034
      %v1077 = vadd.f32 %v835, %v1037
      %v1078 = vadd.f32 %v837, %v1039
      %v1079 = vadd.f32 %v840, %v1042
      %v1080 = vadd.f32 %v842, %v1044
      %v1081 = vadd.f32 %v845, %v1047
      %v1082 = vadd.f32 %v847, %v1049
      %v1083 = vld [vmem:[#allocation2 + $0x12] sm:$0xff]
      %v1084 = vld [vmem:[#allocation2 + $0x1a] sm:$0xff]
      %v1085 = vld [vmem:[#allocation2 + $0x22] sm:$0xff]
      %v1086 = vld [vmem:[#allocation2 + $0x2a] sm:$0xff]
      %v1087 = vld [vmem:[#allocation2 + $0x32] sm:$0xff]
      %v1088 = vld [vmem:[#allocation2 + $0x3a] sm:$0xff]
      %v1089 = vld [vmem:[#allocation2 + $0x42] sm:$0xff]
      %v1090 = vld [vmem:[#allocation2 + $0x4a] sm:$0xff]
      %v1091 = vld [vmem:[#allocation2 + $0x52] sm:$0xff]
      %v1092 = vld [vmem:[#allocation2 + $0x5a] sm:$0xff]
      %v1093 = vld [vmem:[#allocation2 + $0x62] sm:$0xff]
      %v1094 = vld [vmem:[#allocation2 + $0x6a] sm:$0xff]
      %v1095 = vld [vmem:[#allocation2 + $0x72] sm:$0xff]
      %v1096 = vld [vmem:[#allocation2 + $0x7a] sm:$0xff]
      %v1097 = vld [vmem:[#allocation2 + $0x82] sm:$0xff]
      %v1098 = vld [vmem:[#allocation2 + $0x8a] sm:$0xff]
      %v1099 = vld [vmem:[#allocation2 + $0x92] sm:$0xff]
      %v1100 = vld [vmem:[#allocation2 + $0x9a] sm:$0xff]
      %v1101 = vld [vmem:[#allocation2 + $0xa2] sm:$0xff]
      %v1102 = vld [vmem:[#allocation2 + $0xaa] sm:$0xff]
      %v1103 = vld [vmem:[#allocation2 + $0xb2] sm:$0xff]
      %v1104 = vld [vmem:[#allocation2 + $0xba] sm:$0xff]
      %v1105 = vld [vmem:[#allocation2 + $0xc2] sm:$0xff]
      %v1106 = vld [vmem:[#allocation2 + $0xca] sm:$0xff]
      %v1107 = vld [vmem:[#allocation2 + $0xd2] sm:$0xff]
      %v1108 = vld [vmem:[#allocation2 + $0xda] sm:$0xff]
      %v1109 = vld [vmem:[#allocation2 + $0xe2] sm:$0xff]
      %v1110 = vld [vmem:[#allocation2 + $0xea] sm:$0xff]
      %v1111 = vld [vmem:[#allocation2 + $0xf2] sm:$0xff]
      %v1112 = vld [vmem:[#allocation2 + $0xfa] sm:$0xff]
      %v1113 = vld [vmem:[#allocation2 + $0x102] sm:$0xff]
      %v1114 = vld [vmem:[#allocation2 + $0x10a] sm:$0xff]
      %v1115 = vpack.c.bf16 %v1084, %v1083
      %v1116 = vpack.c.bf16 %v1086, %v1085
      %v1117 = vpack.c.bf16 %v1088, %v1087
      %v1118 = vpack.c.bf16 %v1090, %v1089
      %v1119 = vpack.c.bf16 %v1092, %v1091
      %v1120 = vpack.c.bf16 %v1094, %v1093
      %v1121 = vpack.c.bf16 %v1096, %v1095
      %v1122 = vpack.c.bf16 %v1098, %v1097
      %v1123 = vpack.c.bf16 %v1100, %v1099
      %v1124 = vpack.c.bf16 %v1102, %v1101
      %v1125 = vpack.c.bf16 %v1104, %v1103
      %v1126 = vpack.c.bf16 %v1106, %v1105
      %v1127 = vpack.c.bf16 %v1108, %v1107
      %v1128 = vpack.c.bf16 %v1110, %v1109
      %v1129 = vpack.c.bf16 %v1112, %v1111
      %v1130 = vpack.c.bf16 %v1114, %v1113
      %s1131 = scalar_lea.vmem %s275, 192
      %v1132 = vld [vmem:[%s1131] sm:$0xf]
      %v1133 = vld [vmem:[%s1131 + $0x4] sm:$0xf]
      %v1134 = vld [vmem:[%s1131 + $0x8] sm:$0xf]
      %v1135 = vld [vmem:[%s1131 + $0xc] sm:$0xf]
      %v1136 = vld [vmem:[%s1131 + $0x10] sm:$0xf]
      %v1137 = vld [vmem:[%s1131 + $0x14] sm:$0xf]
      %v1138 = vld [vmem:[%s1131 + $0x18] sm:$0xf]
      %v1139 = vld [vmem:[%s1131 + $0x1c] sm:$0xf]
      %v1140 = vld [vmem:[%s1131 + $0x20] sm:$0xf]
      %v1141 = vld [vmem:[%s1131 + $0x24] sm:$0xf]
      %v1142 = vld [vmem:[%s1131 + $0x28] sm:$0xf]
      %v1143 = vld [vmem:[%s1131 + $0x2c] sm:$0xf]
      %v1144 = vld [vmem:[%s1131 + $0x30] sm:$0xf]
      %v1145 = vld [vmem:[%s1131 + $0x34] sm:$0xf]
      %v1146 = vld [vmem:[%s1131 + $0x38] sm:$0xf]
      %v1147 = vld [vmem:[%s1131 + $0x3c] sm:$0xf]
      %v1164 = vunpack.c.l.b16 %v1132
      %v1165 = vunpack.c.l.b16 %v1133
      %v1166 = vunpack.c.l.b16 %v1134
      %v1167 = vunpack.c.l.b16 %v1135
      %v1168 = vunpack.c.l.b16 %v1136
      %v1169 = vunpack.c.l.b16 %v1137
      %v1170 = vunpack.c.l.b16 %v1138
      %v1171 = vunpack.c.l.b16 %v1139
      %v1172 = vunpack.c.l.b16 %v1140
      %v1173 = vunpack.c.l.b16 %v1141
      %v1174 = vunpack.c.l.b16 %v1142
      %v1175 = vunpack.c.l.b16 %v1143
      %v1176 = vunpack.c.l.b16 %v1144
      %v1177 = vunpack.c.l.b16 %v1145
      %v1178 = vunpack.c.l.b16 %v1146
      %v1179 = vunpack.c.l.b16 %v1147
      %v1180 = vpack.c.b16 %v1165, %v1164
      %v1181 = vpack.c.b16 %v1167, %v1166
      %v1182 = vpack.c.b16 %v1169, %v1168
      %v1183 = vpack.c.b16 %v1171, %v1170
      %v1184 = vpack.c.b16 %v1173, %v1172
      %v1185 = vpack.c.b16 %v1175, %v1174
      %v1186 = vpack.c.b16 %v1177, %v1176
      %v1187 = vpack.c.b16 %v1179, %v1178
      %1196 = vmatpush.bf16.msra.mxu0 %v1187
      %1197 = vmatpush.bf16.msra.mxu0 %v1186
      %1198 = vmatpush.bf16.msra.mxu0 %v1185
      %1199 = vmatpush.bf16.msra.mxu0 %v1184
      %1200 = vmatpush.bf16.msra.mxu0 %v1183
      %1201 = vmatpush.bf16.msra.mxu0 %v1182
      %1202 = vmatpush.bf16.msra.mxu0 %v1181
      %1203 = vmatpush.bf16.msra.mxu0 %v1180
      %1204 = vmatmul.bf16.gmra.mxu0 %v1115
      %v1205 = vpop.f32.mrf.mxu0
      %v1206 = vadd.f32 0.0, %v1205
      %v1207 = vpop.f32.mrf.mxu0
      %v1208 = vadd.f32 0.0, %v1207
      %1209 = vmatmul.bf16.gmra.mxu0 %v1116
      %v1210 = vpop.f32.mrf.mxu0
      %v1211 = vadd.f32 0.0, %v1210
      %v1212 = vpop.f32.mrf.mxu0
      %v1213 = vadd.f32 0.0, %v1212
      %1214 = vmatmul.bf16.gmra.mxu0 %v1117
      %v1215 = vpop.f32.mrf.mxu0
      %v1216 = vadd.f32 0.0, %v1215
      %v1217 = vpop.f32.mrf.mxu0
      %v1218 = vadd.f32 0.0, %v1217
      %1219 = vmatmul.bf16.gmra.mxu0 %v1118
      %v1220 = vpop.f32.mrf.mxu0
      %v1221 = vadd.f32 0.0, %v1220
      %v1222 = vpop.f32.mrf.mxu0
      %v1223 = vadd.f32 0.0, %v1222
      %1224 = vmatmul.bf16.gmra.mxu0 %v1119
      %v1225 = vpop.f32.mrf.mxu0
      %v1226 = vadd.f32 0.0, %v1225
      %v1227 = vpop.f32.mrf.mxu0
      %v1228 = vadd.f32 0.0, %v1227
      %1229 = vmatmul.bf16.gmra.mxu0 %v1120
      %v1230 = vpop.f32.mrf.mxu0
      %v1231 = vadd.f32 0.0, %v1230
      %v1232 = vpop.f32.mrf.mxu0
      %v1233 = vadd.f32 0.0, %v1232
      %1234 = vmatmul.bf16.gmra.mxu0 %v1121
      %v1235 = vpop.f32.mrf.mxu0
      %v1236 = vadd.f32 0.0, %v1235
      %v1237 = vpop.f32.mrf.mxu0
      %v1238 = vadd.f32 0.0, %v1237
      %1239 = vmatmul.bf16.gmra.mxu0 %v1122
      %v1240 = vpop.f32.mrf.mxu0
      %v1241 = vadd.f32 0.0, %v1240
      %v1242 = vpop.f32.mrf.mxu0
      %v1243 = vadd.f32 0.0, %v1242
      %1244 = vmatmul.bf16.gmra.mxu0 %v1123
      %v1245 = vpop.f32.mrf.mxu0
      %v1246 = vadd.f32 0.0, %v1245
      %v1247 = vpop.f32.mrf.mxu0
      %v1248 = vadd.f32 0.0, %v1247
      %1249 = vmatmul.bf16.gmra.mxu0 %v1124
      %v1250 = vpop.f32.mrf.mxu0
      %v1251 = vadd.f32 0.0, %v1250
      %v1252 = vpop.f32.mrf.mxu0
      %v1253 = vadd.f32 0.0, %v1252
      %1254 = vmatmul.bf16.gmra.mxu0 %v1125
      %v1255 = vpop.f32.mrf.mxu0
      %v1256 = vadd.f32 0.0, %v1255
      %v1257 = vpop.f32.mrf.mxu0
      %v1258 = vadd.f32 0.0, %v1257
      %1259 = vmatmul.bf16.gmra.mxu0 %v1126
      %v1260 = vpop.f32.mrf.mxu0
      %v1261 = vadd.f32 0.0, %v1260
      %v1262 = vpop.f32.mrf.mxu0
      %v1263 = vadd.f32 0.0, %v1262
      %1264 = vmatmul.bf16.gmra.mxu0 %v1127
      %v1265 = vpop.f32.mrf.mxu0
      %v1266 = vadd.f32 0.0, %v1265
      %v1267 = vpop.f32.mrf.mxu0
      %v1268 = vadd.f32 0.0, %v1267
      %1269 = vmatmul.bf16.gmra.mxu0 %v1128
      %v1270 = vpop.f32.mrf.mxu0
      %v1271 = vadd.f32 0.0, %v1270
      %v1272 = vpop.f32.mrf.mxu0
      %v1273 = vadd.f32 0.0, %v1272
      %1274 = vmatmul.bf16.gmra.mxu0 %v1129
      %v1275 = vpop.f32.mrf.mxu0
      %v1276 = vadd.f32 0.0, %v1275
      %v1277 = vpop.f32.mrf.mxu0
      %v1278 = vadd.f32 0.0, %v1277
      %1279 = vmatmul.bf16.gmra.mxu0 %v1130
      %v1280 = vpop.f32.mrf.mxu0
      %v1281 = vadd.f32 0.0, %v1280
      %v1282 = vpop.f32.mrf.mxu0
      %v1283 = vadd.f32 0.0, %v1282
      %1284 = vdwg.mxu0
      %v1285 = vadd.f32 %v1051, %v1206
      %v1286 = vadd.f32 %v1052, %v1208
      %v1287 = vadd.f32 %v1053, %v1211
      %v1288 = vadd.f32 %v1054, %v1213
      %v1289 = vadd.f32 %v1055, %v1216
      %v1290 = vadd.f32 %v1056, %v1218
      %v1291 = vadd.f32 %v1057, %v1221
      %v1292 = vadd.f32 %v1058, %v1223
      %v1293 = vadd.f32 %v1059, %v1226
      %v1294 = vadd.f32 %v1060, %v1228
      %v1295 = vadd.f32 %v1061, %v1231
      %v1296 = vadd.f32 %v1062, %v1233
      %v1297 = vadd.f32 %v1063, %v1236
      %v1298 = vadd.f32 %v1064, %v1238
      %v1299 = vadd.f32 %v1065, %v1241
      %v1300 = vadd.f32 %v1066, %v1243
      %v1301 = vadd.f32 %v1067, %v1246
      %v1302 = vadd.f32 %v1068, %v1248
      %v1303 = vadd.f32 %v1069, %v1251
      %v1304 = vadd.f32 %v1070, %v1253
      %v1305 = vadd.f32 %v1071, %v1256
      %v1306 = vadd.f32 %v1072, %v1258
      %v1307 = vadd.f32 %v1073, %v1261
      %v1308 = vadd.f32 %v1074, %v1263
      %v1309 = vadd.f32 %v1075, %v1266
      %v1310 = vadd.f32 %v1076, %v1268
      %v1311 = vadd.f32 %v1077, %v1271
      %v1312 = vadd.f32 %v1078, %v1273
      %v1313 = vadd.f32 %v1079, %v1276
      %v1314 = vadd.f32 %v1080, %v1278
      %v1315 = vadd.f32 %v1081, %v1281
      %v1316 = vadd.f32 %v1082, %v1283
      %v1317 = vld [vmem:[#allocation2 + $0x13] sm:$0xff]
      %v1318 = vld [vmem:[#allocation2 + $0x1b] sm:$0xff]
      %v1319 = vld [vmem:[#allocation2 + $0x23] sm:$0xff]
      %v1320 = vld [vmem:[#allocation2 + $0x2b] sm:$0xff]
      %v1321 = vld [vmem:[#allocation2 + $0x33] sm:$0xff]
      %v1322 = vld [vmem:[#allocation2 + $0x3b] sm:$0xff]
      %v1323 = vld [vmem:[#allocation2 + $0x43] sm:$0xff]
      %v1324 = vld [vmem:[#allocation2 + $0x4b] sm:$0xff]
      %v1325 = vld [vmem:[#allocation2 + $0x53] sm:$0xff]
      %v1326 = vld [vmem:[#allocation2 + $0x5b] sm:$0xff]
      %v1327 = vld [vmem:[#allocation2 + $0x63] sm:$0xff]
      %v1328 = vld [vmem:[#allocation2 + $0x6b] sm:$0xff]
      %v1329 = vld [vmem:[#allocation2 + $0x73] sm:$0xff]
      %v1330 = vld [vmem:[#allocation2 + $0x7b] sm:$0xff]
      %v1331 = vld [vmem:[#allocation2 + $0x83] sm:$0xff]
      %v1332 = vld [vmem:[#allocation2 + $0x8b] sm:$0xff]
      %v1333 = vld [vmem:[#allocation2 + $0x93] sm:$0xff]
      %v1334 = vld [vmem:[#allocation2 + $0x9b] sm:$0xff]
      %v1335 = vld [vmem:[#allocation2 + $0xa3] sm:$0xff]
      %v1336 = vld [vmem:[#allocation2 + $0xab] sm:$0xff]
      %v1337 = vld [vmem:[#allocation2 + $0xb3] sm:$0xff]
      %v1338 = vld [vmem:[#allocation2 + $0xbb] sm:$0xff]
      %v1339 = vld [vmem:[#allocation2 + $0xc3] sm:$0xff]
      %v1340 = vld [vmem:[#allocation2 + $0xcb] sm:$0xff]
      %v1341 = vld [vmem:[#allocation2 + $0xd3] sm:$0xff]
      %v1342 = vld [vmem:[#allocation2 + $0xdb] sm:$0xff]
      %v1343 = vld [vmem:[#allocation2 + $0xe3] sm:$0xff]
      %v1344 = vld [vmem:[#allocation2 + $0xeb] sm:$0xff]
      %v1345 = vld [vmem:[#allocation2 + $0xf3] sm:$0xff]
      %v1346 = vld [vmem:[#allocation2 + $0xfb] sm:$0xff]
      %v1347 = vld [vmem:[#allocation2 + $0x103] sm:$0xff]
      %v1348 = vld [vmem:[#allocation2 + $0x10b] sm:$0xff]
      %v1349 = vpack.c.bf16 %v1318, %v1317
      %v1350 = vpack.c.bf16 %v1320, %v1319
      %v1351 = vpack.c.bf16 %v1322, %v1321
      %v1352 = vpack.c.bf16 %v1324, %v1323
      %v1353 = vpack.c.bf16 %v1326, %v1325
      %v1354 = vpack.c.bf16 %v1328, %v1327
      %v1355 = vpack.c.bf16 %v1330, %v1329
      %v1356 = vpack.c.bf16 %v1332, %v1331
      %v1357 = vpack.c.bf16 %v1334, %v1333
      %v1358 = vpack.c.bf16 %v1336, %v1335
      %v1359 = vpack.c.bf16 %v1338, %v1337
      %v1360 = vpack.c.bf16 %v1340, %v1339
      %v1361 = vpack.c.bf16 %v1342, %v1341
      %v1362 = vpack.c.bf16 %v1344, %v1343
      %v1363 = vpack.c.bf16 %v1346, %v1345
      %v1364 = vpack.c.bf16 %v1348, %v1347
      %s1365 = scalar_lea.vmem %s275, 256
      %v1366 = vld [vmem:[%s1365] sm:$0xf]
      %v1367 = vld [vmem:[%s1365 + $0x4] sm:$0xf]
      %v1368 = vld [vmem:[%s1365 + $0x8] sm:$0xf]
      %v1369 = vld [vmem:[%s1365 + $0xc] sm:$0xf]
      %v1370 = vld [vmem:[%s1365 + $0x10] sm:$0xf]
      %v1371 = vld [vmem:[%s1365 + $0x14] sm:$0xf]
      %v1372 = vld [vmem:[%s1365 + $0x18] sm:$0xf]
      %v1373 = vld [vmem:[%s1365 + $0x1c] sm:$0xf]
      %v1374 = vld [vmem:[%s1365 + $0x20] sm:$0xf]
      %v1375 = vld [vmem:[%s1365 + $0x24] sm:$0xf]
      %v1376 = vld [vmem:[%s1365 + $0x28] sm:$0xf]
      %v1377 = vld [vmem:[%s1365 + $0x2c] sm:$0xf]
      %v1378 = vld [vmem:[%s1365 + $0x30] sm:$0xf]
      %v1379 = vld [vmem:[%s1365 + $0x34] sm:$0xf]
      %v1380 = vld [vmem:[%s1365 + $0x38] sm:$0xf]
      %v1381 = vld [vmem:[%s1365 + $0x3c] sm:$0xf]
      %v1398 = vunpack.c.l.b16 %v1366
      %v1399 = vunpack.c.l.b16 %v1367
      %v1400 = vunpack.c.l.b16 %v1368
      %v1401 = vunpack.c.l.b16 %v1369
      %v1402 = vunpack.c.l.b16 %v1370
      %v1403 = vunpack.c.l.b16 %v1371
      %v1404 = vunpack.c.l.b16 %v1372
      %v1405 = vunpack.c.l.b16 %v1373
      %v1406 = vunpack.c.l.b16 %v1374
      %v1407 = vunpack.c.l.b16 %v1375
      %v1408 = vunpack.c.l.b16 %v1376
      %v1409 = vunpack.c.l.b16 %v1377
      %v1410 = vunpack.c.l.b16 %v1378
      %v1411 = vunpack.c.l.b16 %v1379
      %v1412 = vunpack.c.l.b16 %v1380
      %v1413 = vunpack.c.l.b16 %v1381
      %v1414 = vpack.c.b16 %v1399, %v1398
      %v1415 = vpack.c.b16 %v1401, %v1400
      %v1416 = vpack.c.b16 %v1403, %v1402
      %v1417 = vpack.c.b16 %v1405, %v1404
      %v1418 = vpack.c.b16 %v1407, %v1406
      %v1419 = vpack.c.b16 %v1409, %v1408
      %v1420 = vpack.c.b16 %v1411, %v1410
      %v1421 = vpack.c.b16 %v1413, %v1412
      %1430 = vmatpush.bf16.msra.mxu0 %v1421
      %1431 = vmatpush.bf16.msra.mxu0 %v1420
      %1432 = vmatpush.bf16.msra.mxu0 %v1419
      %1433 = vmatpush.bf16.msra.mxu0 %v1418
      %1434 = vmatpush.bf16.msra.mxu0 %v1417
      %1435 = vmatpush.bf16.msra.mxu0 %v1416
      %1436 = vmatpush.bf16.msra.mxu0 %v1415
      %1437 = vmatpush.bf16.msra.mxu0 %v1414
      %1438 = vmatmul.bf16.gmra.mxu0 %v1349
      %v1439 = vpop.f32.mrf.mxu0
      %v1440 = vadd.f32 0.0, %v1439
      %v1441 = vpop.f32.mrf.mxu0
      %v1442 = vadd.f32 0.0, %v1441
      %1443 = vmatmul.bf16.gmra.mxu0 %v1350
      %v1444 = vpop.f32.mrf.mxu0
      %v1445 = vadd.f32 0.0, %v1444
      %v1446 = vpop.f32.mrf.mxu0
      %v1447 = vadd.f32 0.0, %v1446
      %1448 = vmatmul.bf16.gmra.mxu0 %v1351
      %v1449 = vpop.f32.mrf.mxu0
      %v1450 = vadd.f32 0.0, %v1449
      %v1451 = vpop.f32.mrf.mxu0
      %v1452 = vadd.f32 0.0, %v1451
      %1453 = vmatmul.bf16.gmra.mxu0 %v1352
      %v1454 = vpop.f32.mrf.mxu0
      %v1455 = vadd.f32 0.0, %v1454
      %v1456 = vpop.f32.mrf.mxu0
      %v1457 = vadd.f32 0.0, %v1456
      %1458 = vmatmul.bf16.gmra.mxu0 %v1353
      %v1459 = vpop.f32.mrf.mxu0
      %v1460 = vadd.f32 0.0, %v1459
      %v1461 = vpop.f32.mrf.mxu0
      %v1462 = vadd.f32 0.0, %v1461
      %1463 = vmatmul.bf16.gmra.mxu0 %v1354
      %v1464 = vpop.f32.mrf.mxu0
      %v1465 = vadd.f32 0.0, %v1464
      %v1466 = vpop.f32.mrf.mxu0
      %v1467 = vadd.f32 0.0, %v1466
      %1468 = vmatmul.bf16.gmra.mxu0 %v1355
      %v1469 = vpop.f32.mrf.mxu0
      %v1470 = vadd.f32 0.0, %v1469
      %v1471 = vpop.f32.mrf.mxu0
      %v1472 = vadd.f32 0.0, %v1471
      %1473 = vmatmul.bf16.gmra.mxu0 %v1356
      %v1474 = vpop.f32.mrf.mxu0
      %v1475 = vadd.f32 0.0, %v1474
      %v1476 = vpop.f32.mrf.mxu0
      %v1477 = vadd.f32 0.0, %v1476
      %1478 = vmatmul.bf16.gmra.mxu0 %v1357
      %v1479 = vpop.f32.mrf.mxu0
      %v1480 = vadd.f32 0.0, %v1479
      %v1481 = vpop.f32.mrf.mxu0
      %v1482 = vadd.f32 0.0, %v1481
      %1483 = vmatmul.bf16.gmra.mxu0 %v1358
      %v1484 = vpop.f32.mrf.mxu0
      %v1485 = vadd.f32 0.0, %v1484
      %v1486 = vpop.f32.mrf.mxu0
      %v1487 = vadd.f32 0.0, %v1486
      %1488 = vmatmul.bf16.gmra.mxu0 %v1359
      %v1489 = vpop.f32.mrf.mxu0
      %v1490 = vadd.f32 0.0, %v1489
      %v1491 = vpop.f32.mrf.mxu0
      %v1492 = vadd.f32 0.0, %v1491
      %1493 = vmatmul.bf16.gmra.mxu0 %v1360
      %v1494 = vpop.f32.mrf.mxu0
      %v1495 = vadd.f32 0.0, %v1494
      %v1496 = vpop.f32.mrf.mxu0
      %v1497 = vadd.f32 0.0, %v1496
      %1498 = vmatmul.bf16.gmra.mxu0 %v1361
      %v1499 = vpop.f32.mrf.mxu0
      %v1500 = vadd.f32 0.0, %v1499
      %v1501 = vpop.f32.mrf.mxu0
      %v1502 = vadd.f32 0.0, %v1501
      %1503 = vmatmul.bf16.gmra.mxu0 %v1362
      %v1504 = vpop.f32.mrf.mxu0
      %v1505 = vadd.f32 0.0, %v1504
      %v1506 = vpop.f32.mrf.mxu0
      %v1507 = vadd.f32 0.0, %v1506
      %1508 = vmatmul.bf16.gmra.mxu0 %v1363
      %v1509 = vpop.f32.mrf.mxu0
      %v1510 = vadd.f32 0.0, %v1509
      %v1511 = vpop.f32.mrf.mxu0
      %v1512 = vadd.f32 0.0, %v1511
      %1513 = vmatmul.bf16.gmra.mxu0 %v1364
      %v1514 = vpop.f32.mrf.mxu0
      %v1515 = vadd.f32 0.0, %v1514
      %v1516 = vpop.f32.mrf.mxu0
      %v1517 = vadd.f32 0.0, %v1516
      %1518 = vdwg.mxu0
      %v1519 = vadd.f32 %v1285, %v1440
      %v1520 = vadd.f32 %v1286, %v1442
      %v1521 = vadd.f32 %v1287, %v1445
      %v1522 = vadd.f32 %v1288, %v1447
      %v1523 = vadd.f32 %v1289, %v1450
      %v1524 = vadd.f32 %v1290, %v1452
      %v1525 = vadd.f32 %v1291, %v1455
      %v1526 = vadd.f32 %v1292, %v1457
      %v1527 = vadd.f32 %v1293, %v1460
      %v1528 = vadd.f32 %v1294, %v1462
      %v1529 = vadd.f32 %v1295, %v1465
      %v1530 = vadd.f32 %v1296, %v1467
      %v1531 = vadd.f32 %v1297, %v1470
      %v1532 = vadd.f32 %v1298, %v1472
      %v1533 = vadd.f32 %v1299, %v1475
      %v1534 = vadd.f32 %v1300, %v1477
      %v1535 = vadd.f32 %v1301, %v1480
      %v1536 = vadd.f32 %v1302, %v1482
      %v1537 = vadd.f32 %v1303, %v1485
      %v1538 = vadd.f32 %v1304, %v1487
      %v1539 = vadd.f32 %v1305, %v1490
      %v1540 = vadd.f32 %v1306, %v1492
      %v1541 = vadd.f32 %v1307, %v1495
      %v1542 = vadd.f32 %v1308, %v1497
      %v1543 = vadd.f32 %v1309, %v1500
      %v1544 = vadd.f32 %v1310, %v1502
      %v1545 = vadd.f32 %v1311, %v1505
      %v1546 = vadd.f32 %v1312, %v1507
      %v1547 = vadd.f32 %v1313, %v1510
      %v1548 = vadd.f32 %v1314, %v1512
      %v1549 = vadd.f32 %v1315, %v1515
      %v1550 = vadd.f32 %v1316, %v1517
      %v1551 = vld [vmem:[#allocation2 + $0x14] sm:$0xff]
      %v1552 = vld [vmem:[#allocation2 + $0x1c] sm:$0xff]
      %v1553 = vld [vmem:[#allocation2 + $0x24] sm:$0xff]
      %v1554 = vld [vmem:[#allocation2 + $0x2c] sm:$0xff]
      %v1555 = vld [vmem:[#allocation2 + $0x34] sm:$0xff]
      %v1556 = vld [vmem:[#allocation2 + $0x3c] sm:$0xff]
      %v1557 = vld [vmem:[#allocation2 + $0x44] sm:$0xff]
      %v1558 = vld [vmem:[#allocation2 + $0x4c] sm:$0xff]
      %v1559 = vld [vmem:[#allocation2 + $0x54] sm:$0xff]
      %v1560 = vld [vmem:[#allocation2 + $0x5c] sm:$0xff]
      %v1561 = vld [vmem:[#allocation2 + $0x64] sm:$0xff]
      %v1562 = vld [vmem:[#allocation2 + $0x6c] sm:$0xff]
      %v1563 = vld [vmem:[#allocation2 + $0x74] sm:$0xff]
      %v1564 = vld [vmem:[#allocation2 + $0x7c] sm:$0xff]
      %v1565 = vld [vmem:[#allocation2 + $0x84] sm:$0xff]
      %v1566 = vld [vmem:[#allocation2 + $0x8c] sm:$0xff]
      %v1567 = vld [vmem:[#allocation2 + $0x94] sm:$0xff]
      %v1568 = vld [vmem:[#allocation2 + $0x9c] sm:$0xff]
      %v1569 = vld [vmem:[#allocation2 + $0xa4] sm:$0xff]
      %v1570 = vld [vmem:[#allocation2 + $0xac] sm:$0xff]
      %v1571 = vld [vmem:[#allocation2 + $0xb4] sm:$0xff]
      %v1572 = vld [vmem:[#allocation2 + $0xbc] sm:$0xff]
      %v1573 = vld [vmem:[#allocation2 + $0xc4] sm:$0xff]
      %v1574 = vld [vmem:[#allocation2 + $0xcc] sm:$0xff]
      %v1575 = vld [vmem:[#allocation2 + $0xd4] sm:$0xff]
      %v1576 = vld [vmem:[#allocation2 + $0xdc] sm:$0xff]
      %v1577 = vld [vmem:[#allocation2 + $0xe4] sm:$0xff]
      %v1578 = vld [vmem:[#allocation2 + $0xec] sm:$0xff]
      %v1579 = vld [vmem:[#allocation2 + $0xf4] sm:$0xff]
      %v1580 = vld [vmem:[#allocation2 + $0xfc] sm:$0xff]
      %v1581 = vld [vmem:[#allocation2 + $0x104] sm:$0xff]
      %v1582 = vld [vmem:[#allocation2 + $0x10c] sm:$0xff]
      %v1583 = vpack.c.bf16 %v1552, %v1551
      %v1584 = vpack.c.bf16 %v1554, %v1553
      %v1585 = vpack.c.bf16 %v1556, %v1555
      %v1586 = vpack.c.bf16 %v1558, %v1557
      %v1587 = vpack.c.bf16 %v1560, %v1559
      %v1588 = vpack.c.bf16 %v1562, %v1561
      %v1589 = vpack.c.bf16 %v1564, %v1563
      %v1590 = vpack.c.bf16 %v1566, %v1565
      %v1591 = vpack.c.bf16 %v1568, %v1567
      %v1592 = vpack.c.bf16 %v1570, %v1569
      %v1593 = vpack.c.bf16 %v1572, %v1571
      %v1594 = vpack.c.bf16 %v1574, %v1573
      %v1595 = vpack.c.bf16 %v1576, %v1575
      %v1596 = vpack.c.bf16 %v1578, %v1577
      %v1597 = vpack.c.bf16 %v1580, %v1579
      %v1598 = vpack.c.bf16 %v1582, %v1581
      %s1599 = scalar_lea.vmem %s275, 320
      %v1600 = vld [vmem:[%s1599] sm:$0xf]
      %v1601 = vld [vmem:[%s1599 + $0x4] sm:$0xf]
      %v1602 = vld [vmem:[%s1599 + $0x8] sm:$0xf]
      %v1603 = vld [vmem:[%s1599 + $0xc] sm:$0xf]
      %v1604 = vld [vmem:[%s1599 + $0x10] sm:$0xf]
      %v1605 = vld [vmem:[%s1599 + $0x14] sm:$0xf]
      %v1606 = vld [vmem:[%s1599 + $0x18] sm:$0xf]
      %v1607 = vld [vmem:[%s1599 + $0x1c] sm:$0xf]
      %v1608 = vld [vmem:[%s1599 + $0x20] sm:$0xf]
      %v1609 = vld [vmem:[%s1599 + $0x24] sm:$0xf]
      %v1610 = vld [vmem:[%s1599 + $0x28] sm:$0xf]
      %v1611 = vld [vmem:[%s1599 + $0x2c] sm:$0xf]
      %v1612 = vld [vmem:[%s1599 + $0x30] sm:$0xf]
      %v1613 = vld [vmem:[%s1599 + $0x34] sm:$0xf]
      %v1614 = vld [vmem:[%s1599 + $0x38] sm:$0xf]
      %v1615 = vld [vmem:[%s1599 + $0x3c] sm:$0xf]
      %v1632 = vunpack.c.l.b16 %v1600
      %v1633 = vunpack.c.l.b16 %v1601
      %v1634 = vunpack.c.l.b16 %v1602
      %v1635 = vunpack.c.l.b16 %v1603
      %v1636 = vunpack.c.l.b16 %v1604
      %v1637 = vunpack.c.l.b16 %v1605
      %v1638 = vunpack.c.l.b16 %v1606
      %v1639 = vunpack.c.l.b16 %v1607
      %v1640 = vunpack.c.l.b16 %v1608
      %v1641 = vunpack.c.l.b16 %v1609
      %v1642 = vunpack.c.l.b16 %v1610
      %v1643 = vunpack.c.l.b16 %v1611
      %v1644 = vunpack.c.l.b16 %v1612
      %v1645 = vunpack.c.l.b16 %v1613
      %v1646 = vunpack.c.l.b16 %v1614
      %v1647 = vunpack.c.l.b16 %v1615
      %v1648 = vpack.c.b16 %v1633, %v1632
      %v1649 = vpack.c.b16 %v1635, %v1634
      %v1650 = vpack.c.b16 %v1637, %v1636
      %v1651 = vpack.c.b16 %v1639, %v1638
      %v1652 = vpack.c.b16 %v1641, %v1640
      %v1653 = vpack.c.b16 %v1643, %v1642
      %v1654 = vpack.c.b16 %v1645, %v1644
      %v1655 = vpack.c.b16 %v1647, %v1646
      %1664 = vmatpush.bf16.msra.mxu0 %v1655
      %1665 = vmatpush.bf16.msra.mxu0 %v1654
      %1666 = vmatpush.bf16.msra.mxu0 %v1653
      %1667 = vmatpush.bf16.msra.mxu0 %v1652
      %1668 = vmatpush.bf16.msra.mxu0 %v1651
      %1669 = vmatpush.bf16.msra.mxu0 %v1650
      %1670 = vmatpush.bf16.msra.mxu0 %v1649
      %1671 = vmatpush.bf16.msra.mxu0 %v1648
      %1672 = vmatmul.bf16.gmra.mxu0 %v1583
      %v1673 = vpop.f32.mrf.mxu0
      %v1674 = vadd.f32 0.0, %v1673
      %v1675 = vpop.f32.mrf.mxu0
      %v1676 = vadd.f32 0.0, %v1675
      %1677 = vmatmul.bf16.gmra.mxu0 %v1584
      %v1678 = vpop.f32.mrf.mxu0
      %v1679 = vadd.f32 0.0, %v1678
      %v1680 = vpop.f32.mrf.mxu0
      %v1681 = vadd.f32 0.0, %v1680
      %1682 = vmatmul.bf16.gmra.mxu0 %v1585
      %v1683 = vpop.f32.mrf.mxu0
      %v1684 = vadd.f32 0.0, %v1683
      %v1685 = vpop.f32.mrf.mxu0
      %v1686 = vadd.f32 0.0, %v1685
      %1687 = vmatmul.bf16.gmra.mxu0 %v1586
      %v1688 = vpop.f32.mrf.mxu0
      %v1689 = vadd.f32 0.0, %v1688
      %v1690 = vpop.f32.mrf.mxu0
      %v1691 = vadd.f32 0.0, %v1690
      %1692 = vmatmul.bf16.gmra.mxu0 %v1587
      %v1693 = vpop.f32.mrf.mxu0
      %v1694 = vadd.f32 0.0, %v1693
      %v1695 = vpop.f32.mrf.mxu0
      %v1696 = vadd.f32 0.0, %v1695
      %1697 = vmatmul.bf16.gmra.mxu0 %v1588
      %v1698 = vpop.f32.mrf.mxu0
      %v1699 = vadd.f32 0.0, %v1698
      %v1700 = vpop.f32.mrf.mxu0
      %v1701 = vadd.f32 0.0, %v1700
      %1702 = vmatmul.bf16.gmra.mxu0 %v1589
      %v1703 = vpop.f32.mrf.mxu0
      %v1704 = vadd.f32 0.0, %v1703
      %v1705 = vpop.f32.mrf.mxu0
      %v1706 = vadd.f32 0.0, %v1705
      %1707 = vmatmul.bf16.gmra.mxu0 %v1590
      %v1708 = vpop.f32.mrf.mxu0
      %v1709 = vadd.f32 0.0, %v1708
      %v1710 = vpop.f32.mrf.mxu0
      %v1711 = vadd.f32 0.0, %v1710
      %1712 = vmatmul.bf16.gmra.mxu0 %v1591
      %v1713 = vpop.f32.mrf.mxu0
      %v1714 = vadd.f32 0.0, %v1713
      %v1715 = vpop.f32.mrf.mxu0
      %v1716 = vadd.f32 0.0, %v1715
      %1717 = vmatmul.bf16.gmra.mxu0 %v1592
      %v1718 = vpop.f32.mrf.mxu0
      %v1719 = vadd.f32 0.0, %v1718
      %v1720 = vpop.f32.mrf.mxu0
      %v1721 = vadd.f32 0.0, %v1720
      %1722 = vmatmul.bf16.gmra.mxu0 %v1593
      %v1723 = vpop.f32.mrf.mxu0
      %v1724 = vadd.f32 0.0, %v1723
      %v1725 = vpop.f32.mrf.mxu0
      %v1726 = vadd.f32 0.0, %v1725
      %1727 = vmatmul.bf16.gmra.mxu0 %v1594
      %v1728 = vpop.f32.mrf.mxu0
      %v1729 = vadd.f32 0.0, %v1728
      %v1730 = vpop.f32.mrf.mxu0
      %v1731 = vadd.f32 0.0, %v1730
      %1732 = vmatmul.bf16.gmra.mxu0 %v1595
      %v1733 = vpop.f32.mrf.mxu0
      %v1734 = vadd.f32 0.0, %v1733
      %v1735 = vpop.f32.mrf.mxu0
      %v1736 = vadd.f32 0.0, %v1735
      %1737 = vmatmul.bf16.gmra.mxu0 %v1596
      %v1738 = vpop.f32.mrf.mxu0
      %v1739 = vadd.f32 0.0, %v1738
      %v1740 = vpop.f32.mrf.mxu0
      %v1741 = vadd.f32 0.0, %v1740
      %1742 = vmatmul.bf16.gmra.mxu0 %v1597
      %v1743 = vpop.f32.mrf.mxu0
      %v1744 = vadd.f32 0.0, %v1743
      %v1745 = vpop.f32.mrf.mxu0
      %v1746 = vadd.f32 0.0, %v1745
      %1747 = vmatmul.bf16.gmra.mxu0 %v1598
      %v1748 = vpop.f32.mrf.mxu0
      %v1749 = vadd.f32 0.0, %v1748
      %v1750 = vpop.f32.mrf.mxu0
      %v1751 = vadd.f32 0.0, %v1750
      %1752 = vdwg.mxu0
      %v1753 = vadd.f32 %v1519, %v1674
      %v1754 = vadd.f32 %v1520, %v1676
      %v1755 = vadd.f32 %v1521, %v1679
      %v1756 = vadd.f32 %v1522, %v1681
      %v1757 = vadd.f32 %v1523, %v1684
      %v1758 = vadd.f32 %v1524, %v1686
      %v1759 = vadd.f32 %v1525, %v1689
      %v1760 = vadd.f32 %v1526, %v1691
      %v1761 = vadd.f32 %v1527, %v1694
      %v1762 = vadd.f32 %v1528, %v1696
      %v1763 = vadd.f32 %v1529, %v1699
      %v1764 = vadd.f32 %v1530, %v1701
      %v1765 = vadd.f32 %v1531, %v1704
      %v1766 = vadd.f32 %v1532, %v1706
      %v1767 = vadd.f32 %v1533, %v1709
      %v1768 = vadd.f32 %v1534, %v1711
      %v1769 = vadd.f32 %v1535, %v1714
      %v1770 = vadd.f32 %v1536, %v1716
      %v1771 = vadd.f32 %v1537, %v1719
      %v1772 = vadd.f32 %v1538, %v1721
      %v1773 = vadd.f32 %v1539, %v1724
      %v1774 = vadd.f32 %v1540, %v1726
      %v1775 = vadd.f32 %v1541, %v1729
      %v1776 = vadd.f32 %v1542, %v1731
      %v1777 = vadd.f32 %v1543, %v1734
      %v1778 = vadd.f32 %v1544, %v1736
      %v1779 = vadd.f32 %v1545, %v1739
      %v1780 = vadd.f32 %v1546, %v1741
      %v1781 = vadd.f32 %v1547, %v1744
      %v1782 = vadd.f32 %v1548, %v1746
      %v1783 = vadd.f32 %v1549, %v1749
      %v1784 = vadd.f32 %v1550, %v1751
      %v1785 = vld [vmem:[#allocation2 + $0x24] sm:$0xff]
      %v1786 = vld [vmem:[#allocation2 + $0x2c] sm:$0xff]
      %v1787 = vld [vmem:[#allocation2 + $0x34] sm:$0xff]
      %v1788 = vld [vmem:[#allocation2 + $0x3c] sm:$0xff]
      %v1789 = vld [vmem:[#allocation2 + $0x44] sm:$0xff]
      %v1790 = vld [vmem:[#allocation2 + $0x4c] sm:$0xff]
      %v1791 = vld [vmem:[#allocation2 + $0x54] sm:$0xff]
      %v1792 = vld [vmem:[#allocation2 + $0x5c] sm:$0xff]
      %v1793 = vld [vmem:[#allocation2 + $0x64] sm:$0xff]
      %v1794 = vld [vmem:[#allocation2 + $0x6c] sm:$0xff]
      %v1795 = vld [vmem:[#allocation2 + $0x74] sm:$0xff]
      %v1796 = vld [vmem:[#allocation2 + $0x7c] sm:$0xff]
      %v1797 = vld [vmem:[#allocation2 + $0x84] sm:$0xff]
      %v1798 = vld [vmem:[#allocation2 + $0x8c] sm:$0xff]
      %v1799 = vld [vmem:[#allocation2 + $0x94] sm:$0xff]
      %v1800 = vld [vmem:[#allocation2 + $0x9c] sm:$0xff]
      %v1801 = vld [vmem:[#allocation2 + $0xa4] sm:$0xff]
      %v1802 = vld [vmem:[#allocation2 + $0xac] sm:$0xff]
      %v1803 = vld [vmem:[#allocation2 + $0xb4] sm:$0xff]
      %v1804 = vld [vmem:[#allocation2 + $0xbc] sm:$0xff]
      %v1805 = vld [vmem:[#allocation2 + $0xc4] sm:$0xff]
      %v1806 = vld [vmem:[#allocation2 + $0xcc] sm:$0xff]
      %v1807 = vld [vmem:[#allocation2 + $0xd4] sm:$0xff]
      %v1808 = vld [vmem:[#allocation2 + $0xdc] sm:$0xff]
      %v1809 = vld [vmem:[#allocation2 + $0xe4] sm:$0xff]
      %v1810 = vld [vmem:[#allocation2 + $0xec] sm:$0xff]
      %v1811 = vld [vmem:[#allocation2 + $0xf4] sm:$0xff]
      %v1812 = vld [vmem:[#allocation2 + $0xfc] sm:$0xff]
      %v1813 = vld [vmem:[#allocation2 + $0x104] sm:$0xff]
      %v1814 = vld [vmem:[#allocation2 + $0x10c] sm:$0xff]
      %v1815 = vld [vmem:[#allocation2 + $0x114] sm:$0xff]
      %v1816 = vld [vmem:[#allocation2 + $0x11c] sm:$0xff]
      %v1817 = vpack.c.bf16 %v1786, %v1785
      %v1818 = vpack.c.bf16 %v1788, %v1787
      %v1819 = vpack.c.bf16 %v1790, %v1789
      %v1820 = vpack.c.bf16 %v1792, %v1791
      %v1821 = vpack.c.bf16 %v1794, %v1793
      %v1822 = vpack.c.bf16 %v1796, %v1795
      %v1823 = vpack.c.bf16 %v1798, %v1797
      %v1824 = vpack.c.bf16 %v1800, %v1799
      %v1825 = vpack.c.bf16 %v1802, %v1801
      %v1826 = vpack.c.bf16 %v1804, %v1803
      %v1827 = vpack.c.bf16 %v1806, %v1805
      %v1828 = vpack.c.bf16 %v1808, %v1807
      %v1829 = vpack.c.bf16 %v1810, %v1809
      %v1830 = vpack.c.bf16 %v1812, %v1811
      %v1831 = vpack.c.bf16 %v1814, %v1813
      %v1832 = vpack.c.bf16 %v1816, %v1815
      %s1833 = scalar_lea.vmem %s275, 384
      %v1834 = vld [vmem:[%s1833] sm:$0xf]
      %v1835 = vld [vmem:[%s1833 + $0x4] sm:$0xf]
      %v1836 = vld [vmem:[%s1833 + $0x8] sm:$0xf]
      %v1837 = vld [vmem:[%s1833 + $0xc] sm:$0xf]
      %v1838 = vld [vmem:[%s1833 + $0x10] sm:$0xf]
      %v1839 = vld [vmem:[%s1833 + $0x14] sm:$0xf]
      %v1840 = vld [vmem:[%s1833 + $0x18] sm:$0xf]
      %v1841 = vld [vmem:[%s1833 + $0x1c] sm:$0xf]
      %v1842 = vld [vmem:[%s1833 + $0x20] sm:$0xf]
      %v1843 = vld [vmem:[%s1833 + $0x24] sm:$0xf]
      %v1844 = vld [vmem:[%s1833 + $0x28] sm:$0xf]
      %v1845 = vld [vmem:[%s1833 + $0x2c] sm:$0xf]
      %v1846 = vld [vmem:[%s1833 + $0x30] sm:$0xf]
      %v1847 = vld [vmem:[%s1833 + $0x34] sm:$0xf]
      %v1848 = vld [vmem:[%s1833 + $0x38] sm:$0xf]
      %v1849 = vld [vmem:[%s1833 + $0x3c] sm:$0xf]
      %v1866 = vunpack.c.l.b16 %v1834
      %v1867 = vunpack.c.l.b16 %v1835
      %v1868 = vunpack.c.l.b16 %v1836
      %v1869 = vunpack.c.l.b16 %v1837
      %v1870 = vunpack.c.l.b16 %v1838
      %v1871 = vunpack.c.l.b16 %v1839
      %v1872 = vunpack.c.l.b16 %v1840
      %v1873 = vunpack.c.l.b16 %v1841
      %v1874 = vunpack.c.l.b16 %v1842
      %v1875 = vunpack.c.l.b16 %v1843
      %v1876 = vunpack.c.l.b16 %v1844
      %v1877 = vunpack.c.l.b16 %v1845
      %v1878 = vunpack.c.l.b16 %v1846
      %v1879 = vunpack.c.l.b16 %v1847
      %v1880 = vunpack.c.l.b16 %v1848
      %v1881 = vunpack.c.l.b16 %v1849
      %v1882 = vpack.c.b16 %v1867, %v1866
      %v1883 = vpack.c.b16 %v1869, %v1868
      %v1884 = vpack.c.b16 %v1871, %v1870
      %v1885 = vpack.c.b16 %v1873, %v1872
      %v1886 = vpack.c.b16 %v1875, %v1874
      %v1887 = vpack.c.b16 %v1877, %v1876
      %v1888 = vpack.c.b16 %v1879, %v1878
      %v1889 = vpack.c.b16 %v1881, %v1880
      %1898 = vmatpush.bf16.msra.mxu0 %v1889
      %1899 = vmatpush.bf16.msra.mxu0 %v1888
      %1900 = vmatpush.bf16.msra.mxu0 %v1887
      %1901 = vmatpush.bf16.msra.mxu0 %v1886
      %1902 = vmatpush.bf16.msra.mxu0 %v1885
      %1903 = vmatpush.bf16.msra.mxu0 %v1884
      %1904 = vmatpush.bf16.msra.mxu0 %v1883
      %1905 = vmatpush.bf16.msra.mxu0 %v1882
      %1906 = vmatmul.bf16.gmra.mxu0 %v1817
      %v1907 = vpop.f32.mrf.mxu0
      %v1908 = vadd.f32 0.0, %v1907
      %v1909 = vpop.f32.mrf.mxu0
      %v1910 = vadd.f32 0.0, %v1909
      %1911 = vmatmul.bf16.gmra.mxu0 %v1818
      %v1912 = vpop.f32.mrf.mxu0
      %v1913 = vadd.f32 0.0, %v1912
      %v1914 = vpop.f32.mrf.mxu0
      %v1915 = vadd.f32 0.0, %v1914
      %1916 = vmatmul.bf16.gmra.mxu0 %v1819
      %v1917 = vpop.f32.mrf.mxu0
      %v1918 = vadd.f32 0.0, %v1917
      %v1919 = vpop.f32.mrf.mxu0
      %v1920 = vadd.f32 0.0, %v1919
      %1921 = vmatmul.bf16.gmra.mxu0 %v1820
      %v1922 = vpop.f32.mrf.mxu0
      %v1923 = vadd.f32 0.0, %v1922
      %v1924 = vpop.f32.mrf.mxu0
      %v1925 = vadd.f32 0.0, %v1924
      %1926 = vmatmul.bf16.gmra.mxu0 %v1821
      %v1927 = vpop.f32.mrf.mxu0
      %v1928 = vadd.f32 0.0, %v1927
      %v1929 = vpop.f32.mrf.mxu0
      %v1930 = vadd.f32 0.0, %v1929
      %1931 = vmatmul.bf16.gmra.mxu0 %v1822
      %v1932 = vpop.f32.mrf.mxu0
      %v1933 = vadd.f32 0.0, %v1932
      %v1934 = vpop.f32.mrf.mxu0
      %v1935 = vadd.f32 0.0, %v1934
      %1936 = vmatmul.bf16.gmra.mxu0 %v1823
      %v1937 = vpop.f32.mrf.mxu0
      %v1938 = vadd.f32 0.0, %v1937
      %v1939 = vpop.f32.mrf.mxu0
      %v1940 = vadd.f32 0.0, %v1939
      %1941 = vmatmul.bf16.gmra.mxu0 %v1824
      %v1942 = vpop.f32.mrf.mxu0
      %v1943 = vadd.f32 0.0, %v1942
      %v1944 = vpop.f32.mrf.mxu0
      %v1945 = vadd.f32 0.0, %v1944
      %1946 = vmatmul.bf16.gmra.mxu0 %v1825
      %v1947 = vpop.f32.mrf.mxu0
      %v1948 = vadd.f32 0.0, %v1947
      %v1949 = vpop.f32.mrf.mxu0
      %v1950 = vadd.f32 0.0, %v1949
      %1951 = vmatmul.bf16.gmra.mxu0 %v1826
      %v1952 = vpop.f32.mrf.mxu0
      %v1953 = vadd.f32 0.0, %v1952
      %v1954 = vpop.f32.mrf.mxu0
      %v1955 = vadd.f32 0.0, %v1954
      %1956 = vmatmul.bf16.gmra.mxu0 %v1827
      %v1957 = vpop.f32.mrf.mxu0
      %v1958 = vadd.f32 0.0, %v1957
      %v1959 = vpop.f32.mrf.mxu0
      %v1960 = vadd.f32 0.0, %v1959
      %1961 = vmatmul.bf16.gmra.mxu0 %v1828
      %v1962 = vpop.f32.mrf.mxu0
      %v1963 = vadd.f32 0.0, %v1962
      %v1964 = vpop.f32.mrf.mxu0
      %v1965 = vadd.f32 0.0, %v1964
      %1966 = vmatmul.bf16.gmra.mxu0 %v1829
      %v1967 = vpop.f32.mrf.mxu0
      %v1968 = vadd.f32 0.0, %v1967
      %v1969 = vpop.f32.mrf.mxu0
      %v1970 = vadd.f32 0.0, %v1969
      %1971 = vmatmul.bf16.gmra.mxu0 %v1830
      %v1972 = vpop.f32.mrf.mxu0
      %v1973 = vadd.f32 0.0, %v1972
      %v1974 = vpop.f32.mrf.mxu0
      %v1975 = vadd.f32 0.0, %v1974
      %1976 = vmatmul.bf16.gmra.mxu0 %v1831
      %v1977 = vpop.f32.mrf.mxu0
      %v1978 = vadd.f32 0.0, %v1977
      %v1979 = vpop.f32.mrf.mxu0
      %v1980 = vadd.f32 0.0, %v1979
      %1981 = vmatmul.bf16.gmra.mxu0 %v1832
      %v1982 = vpop.f32.mrf.mxu0
      %v1983 = vadd.f32 0.0, %v1982
      %v1984 = vpop.f32.mrf.mxu0
      %v1985 = vadd.f32 0.0, %v1984
      %1986 = vdwg.mxu0
      %v1987 = vadd.f32 %v1753, %v1908
      %v1988 = vadd.f32 %v1754, %v1910
      %v1989 = vadd.f32 %v1755, %v1913
      %v1990 = vadd.f32 %v1756, %v1915
      %v1991 = vadd.f32 %v1757, %v1918
      %v1992 = vadd.f32 %v1758, %v1920
      %v1993 = vadd.f32 %v1759, %v1923
      %v1994 = vadd.f32 %v1760, %v1925
      %v1995 = vadd.f32 %v1761, %v1928
      %v1996 = vadd.f32 %v1762, %v1930
      %v1997 = vadd.f32 %v1763, %v1933
      %v1998 = vadd.f32 %v1764, %v1935
      %v1999 = vadd.f32 %v1765, %v1938
      %v2000 = vadd.f32 %v1766, %v1940
      %v2001 = vadd.f32 %v1767, %v1943
      %v2002 = vadd.f32 %v1768, %v1945
      %v2003 = vadd.f32 %v1769, %v1948
      %v2004 = vadd.f32 %v1770, %v1950
      %v2005 = vadd.f32 %v1771, %v1953
      %v2006 = vadd.f32 %v1772, %v1955
      %v2007 = vadd.f32 %v1773, %v1958
      %v2008 = vadd.f32 %v1774, %v1960
      %v2009 = vadd.f32 %v1775, %v1963
      %v2010 = vadd.f32 %v1776, %v1965
      %v2011 = vadd.f32 %v1777, %v1968
      %v2012 = vadd.f32 %v1778, %v1970
      %v2013 = vadd.f32 %v1779, %v1973
      %v2014 = vadd.f32 %v1780, %v1975
      %v2015 = vadd.f32 %v1781, %v1978
      %v2016 = vadd.f32 %v1782, %v1980
      %v2017 = vadd.f32 %v1783, %v1983
      %v2018 = vadd.f32 %v1784, %v1985
      %v2019 = vld [vmem:[#allocation2 + $0x25] sm:$0xff]
      %v2020 = vld [vmem:[#allocation2 + $0x2d] sm:$0xff]
      %v2021 = vld [vmem:[#allocation2 + $0x35] sm:$0xff]
      %v2022 = vld [vmem:[#allocation2 + $0x3d] sm:$0xff]
      %v2023 = vld [vmem:[#allocation2 + $0x45] sm:$0xff]
      %v2024 = vld [vmem:[#allocation2 + $0x4d] sm:$0xff]
      %v2025 = vld [vmem:[#allocation2 + $0x55] sm:$0xff]
      %v2026 = vld [vmem:[#allocation2 + $0x5d] sm:$0xff]
      %v2027 = vld [vmem:[#allocation2 + $0x65] sm:$0xff]
      %v2028 = vld [vmem:[#allocation2 + $0x6d] sm:$0xff]
      %v2029 = vld [vmem:[#allocation2 + $0x75] sm:$0xff]
      %v2030 = vld [vmem:[#allocation2 + $0x7d] sm:$0xff]
      %v2031 = vld [vmem:[#allocation2 + $0x85] sm:$0xff]
      %v2032 = vld [vmem:[#allocation2 + $0x8d] sm:$0xff]
      %v2033 = vld [vmem:[#allocation2 + $0x95] sm:$0xff]
      %v2034 = vld [vmem:[#allocation2 + $0x9d] sm:$0xff]
      %v2035 = vld [vmem:[#allocation2 + $0xa5] sm:$0xff]
      %v2036 = vld [vmem:[#allocation2 + $0xad] sm:$0xff]
      %v2037 = vld [vmem:[#allocation2 + $0xb5] sm:$0xff]
      %v2038 = vld [vmem:[#allocation2 + $0xbd] sm:$0xff]
      %v2039 = vld [vmem:[#allocation2 + $0xc5] sm:$0xff]
      %v2040 = vld [vmem:[#allocation2 + $0xcd] sm:$0xff]
      %v2041 = vld [vmem:[#allocation2 + $0xd5] sm:$0xff]
      %v2042 = vld [vmem:[#allocation2 + $0xdd] sm:$0xff]
      %v2043 = vld [vmem:[#allocation2 + $0xe5] sm:$0xff]
      %v2044 = vld [vmem:[#allocation2 + $0xed] sm:$0xff]
      %v2045 = vld [vmem:[#allocation2 + $0xf5] sm:$0xff]
      %v2046 = vld [vmem:[#allocation2 + $0xfd] sm:$0xff]
      %v2047 = vld [vmem:[#allocation2 + $0x105] sm:$0xff]
      %v2048 = vld [vmem:[#allocation2 + $0x10d] sm:$0xff]
      %v2049 = vld [vmem:[#allocation2 + $0x115] sm:$0xff]
      %v2050 = vld [vmem:[#allocation2 + $0x11d] sm:$0xff]
      %v2051 = vpack.c.bf16 %v2020, %v2019
      %v2052 = vpack.c.bf16 %v2022, %v2021
      %v2053 = vpack.c.bf16 %v2024, %v2023
      %v2054 = vpack.c.bf16 %v2026, %v2025
      %v2055 = vpack.c.bf16 %v2028, %v2027
      %v2056 = vpack.c.bf16 %v2030, %v2029
      %v2057 = vpack.c.bf16 %v2032, %v2031
      %v2058 = vpack.c.bf16 %v2034, %v2033
      %v2059 = vpack.c.bf16 %v2036, %v2035
      %v2060 = vpack.c.bf16 %v2038, %v2037
      %v2061 = vpack.c.bf16 %v2040, %v2039
      %v2062 = vpack.c.bf16 %v2042, %v2041
      %v2063 = vpack.c.bf16 %v2044, %v2043
      %v2064 = vpack.c.bf16 %v2046, %v2045
      %v2065 = vpack.c.bf16 %v2048, %v2047
      %v2066 = vpack.c.bf16 %v2050, %v2049
      %s2067 = scalar_lea.vmem %s275, 448
      %v2068 = vld [vmem:[%s2067] sm:$0xf]
      %v2069 = vld [vmem:[%s2067 + $0x4] sm:$0xf]
      %v2070 = vld [vmem:[%s2067 + $0x8] sm:$0xf]
      %v2071 = vld [vmem:[%s2067 + $0xc] sm:$0xf]
      %v2072 = vld [vmem:[%s2067 + $0x10] sm:$0xf]
      %v2073 = vld [vmem:[%s2067 + $0x14] sm:$0xf]
      %v2074 = vld [vmem:[%s2067 + $0x18] sm:$0xf]
      %v2075 = vld [vmem:[%s2067 + $0x1c] sm:$0xf]
      %v2076 = vld [vmem:[%s2067 + $0x20] sm:$0xf]
      %v2077 = vld [vmem:[%s2067 + $0x24] sm:$0xf]
      %v2078 = vld [vmem:[%s2067 + $0x28] sm:$0xf]
      %v2079 = vld [vmem:[%s2067 + $0x2c] sm:$0xf]
      %v2080 = vld [vmem:[%s2067 + $0x30] sm:$0xf]
      %v2081 = vld [vmem:[%s2067 + $0x34] sm:$0xf]
      %v2082 = vld [vmem:[%s2067 + $0x38] sm:$0xf]
      %v2083 = vld [vmem:[%s2067 + $0x3c] sm:$0xf]
      %v2100 = vunpack.c.l.b16 %v2068
      %v2101 = vunpack.c.l.b16 %v2069
      %v2102 = vunpack.c.l.b16 %v2070
      %v2103 = vunpack.c.l.b16 %v2071
      %v2104 = vunpack.c.l.b16 %v2072
      %v2105 = vunpack.c.l.b16 %v2073
      %v2106 = vunpack.c.l.b16 %v2074
      %v2107 = vunpack.c.l.b16 %v2075
      %v2108 = vunpack.c.l.b16 %v2076
      %v2109 = vunpack.c.l.b16 %v2077
      %v2110 = vunpack.c.l.b16 %v2078
      %v2111 = vunpack.c.l.b16 %v2079
      %v2112 = vunpack.c.l.b16 %v2080
      %v2113 = vunpack.c.l.b16 %v2081
      %v2114 = vunpack.c.l.b16 %v2082
      %v2115 = vunpack.c.l.b16 %v2083
      %v2116 = vpack.c.b16 %v2101, %v2100
      %v2117 = vpack.c.b16 %v2103, %v2102
      %v2118 = vpack.c.b16 %v2105, %v2104
      %v2119 = vpack.c.b16 %v2107, %v2106
      %v2120 = vpack.c.b16 %v2109, %v2108
      %v2121 = vpack.c.b16 %v2111, %v2110
      %v2122 = vpack.c.b16 %v2113, %v2112
      %v2123 = vpack.c.b16 %v2115, %v2114
      %2132 = vmatpush.bf16.msra.mxu0 %v2123
      %2133 = vmatpush.bf16.msra.mxu0 %v2122
      %2134 = vmatpush.bf16.msra.mxu0 %v2121
      %2135 = vmatpush.bf16.msra.mxu0 %v2120
      %2136 = vmatpush.bf16.msra.mxu0 %v2119
      %2137 = vmatpush.bf16.msra.mxu0 %v2118
      %2138 = vmatpush.bf16.msra.mxu0 %v2117
      %2139 = vmatpush.bf16.msra.mxu0 %v2116
      %2140 = vmatmul.bf16.gmra.mxu0 %v2051
      %v2141 = vpop.f32.mrf.mxu0
      %v2142 = vadd.f32 0.0, %v2141
      %v2143 = vpop.f32.mrf.mxu0
      %v2144 = vadd.f32 0.0, %v2143
      %2145 = vmatmul.bf16.gmra.mxu0 %v2052
      %v2146 = vpop.f32.mrf.mxu0
      %v2147 = vadd.f32 0.0, %v2146
      %v2148 = vpop.f32.mrf.mxu0
      %v2149 = vadd.f32 0.0, %v2148
      %2150 = vmatmul.bf16.gmra.mxu0 %v2053
      %v2151 = vpop.f32.mrf.mxu0
      %v2152 = vadd.f32 0.0, %v2151
      %v2153 = vpop.f32.mrf.mxu0
      %v2154 = vadd.f32 0.0, %v2153
      %2155 = vmatmul.bf16.gmra.mxu0 %v2054
      %v2156 = vpop.f32.mrf.mxu0
      %v2157 = vadd.f32 0.0, %v2156
      %v2158 = vpop.f32.mrf.mxu0
      %v2159 = vadd.f32 0.0, %v2158
      %2160 = vmatmul.bf16.gmra.mxu0 %v2055
      %v2161 = vpop.f32.mrf.mxu0
      %v2162 = vadd.f32 0.0, %v2161
      %v2163 = vpop.f32.mrf.mxu0
      %v2164 = vadd.f32 0.0, %v2163
      %2165 = vmatmul.bf16.gmra.mxu0 %v2056
      %v2166 = vpop.f32.mrf.mxu0
      %v2167 = vadd.f32 0.0, %v2166
      %v2168 = vpop.f32.mrf.mxu0
      %v2169 = vadd.f32 0.0, %v2168
      %2170 = vmatmul.bf16.gmra.mxu0 %v2057
      %v2171 = vpop.f32.mrf.mxu0
      %v2172 = vadd.f32 0.0, %v2171
      %v2173 = vpop.f32.mrf.mxu0
      %v2174 = vadd.f32 0.0, %v2173
      %2175 = vmatmul.bf16.gmra.mxu0 %v2058
      %v2176 = vpop.f32.mrf.mxu0
      %v2177 = vadd.f32 0.0, %v2176
      %v2178 = vpop.f32.mrf.mxu0
      %v2179 = vadd.f32 0.0, %v2178
      %2180 = vmatmul.bf16.gmra.mxu0 %v2059
      %v2181 = vpop.f32.mrf.mxu0
      %v2182 = vadd.f32 0.0, %v2181
      %v2183 = vpop.f32.mrf.mxu0
      %v2184 = vadd.f32 0.0, %v2183
      %2185 = vmatmul.bf16.gmra.mxu0 %v2060
      %v2186 = vpop.f32.mrf.mxu0
      %v2187 = vadd.f32 0.0, %v2186
      %v2188 = vpop.f32.mrf.mxu0
      %v2189 = vadd.f32 0.0, %v2188
      %2190 = vmatmul.bf16.gmra.mxu0 %v2061
      %v2191 = vpop.f32.mrf.mxu0
      %v2192 = vadd.f32 0.0, %v2191
      %v2193 = vpop.f32.mrf.mxu0
      %v2194 = vadd.f32 0.0, %v2193
      %2195 = vmatmul.bf16.gmra.mxu0 %v2062
      %v2196 = vpop.f32.mrf.mxu0
      %v2197 = vadd.f32 0.0, %v2196
      %v2198 = vpop.f32.mrf.mxu0
      %v2199 = vadd.f32 0.0, %v2198
      %2200 = vmatmul.bf16.gmra.mxu0 %v2063
      %v2201 = vpop.f32.mrf.mxu0
      %v2202 = vadd.f32 0.0, %v2201
      %v2203 = vpop.f32.mrf.mxu0
      %v2204 = vadd.f32 0.0, %v2203
      %2205 = vmatmul.bf16.gmra.mxu0 %v2064
      %v2206 = vpop.f32.mrf.mxu0
      %v2207 = vadd.f32 0.0, %v2206
      %v2208 = vpop.f32.mrf.mxu0
      %v2209 = vadd.f32 0.0, %v2208
      %2210 = vmatmul.bf16.gmra.mxu0 %v2065
      %v2211 = vpop.f32.mrf.mxu0
      %v2212 = vadd.f32 0.0, %v2211
      %v2213 = vpop.f32.mrf.mxu0
      %v2214 = vadd.f32 0.0, %v2213
      %2215 = vmatmul.bf16.gmra.mxu0 %v2066
      %v2216 = vpop.f32.mrf.mxu0
      %v2217 = vadd.f32 0.0, %v2216
      %v2218 = vpop.f32.mrf.mxu0
      %v2219 = vadd.f32 0.0, %v2218
      %2220 = vdwg.mxu0
      %v2221 = vadd.f32 %v1987, %v2142
      %v2222 = vadd.f32 %v1988, %v2144
      %v2223 = vadd.f32 %v1989, %v2147
      %v2224 = vadd.f32 %v1990, %v2149
      %v2225 = vadd.f32 %v1991, %v2152
      %v2226 = vadd.f32 %v1992, %v2154
      %v2227 = vadd.f32 %v1993, %v2157
      %v2228 = vadd.f32 %v1994, %v2159
      %v2229 = vadd.f32 %v1995, %v2162
      %v2230 = vadd.f32 %v1996, %v2164
      %v2231 = vadd.f32 %v1997, %v2167
      %v2232 = vadd.f32 %v1998, %v2169
      %v2233 = vadd.f32 %v1999, %v2172
      %v2234 = vadd.f32 %v2000, %v2174
      %v2235 = vadd.f32 %v2001, %v2177
      %v2236 = vadd.f32 %v2002, %v2179
      %v2237 = vadd.f32 %v2003, %v2182
      %v2238 = vadd.f32 %v2004, %v2184
      %v2239 = vadd.f32 %v2005, %v2187
      %v2240 = vadd.f32 %v2006, %v2189
      %v2241 = vadd.f32 %v2007, %v2192
      %v2242 = vadd.f32 %v2008, %v2194
      %v2243 = vadd.f32 %v2009, %v2197
      %v2244 = vadd.f32 %v2010, %v2199
      %v2245 = vadd.f32 %v2011, %v2202
      %v2246 = vadd.f32 %v2012, %v2204
      %v2247 = vadd.f32 %v2013, %v2207
      %v2248 = vadd.f32 %v2014, %v2209
      %v2249 = vadd.f32 %v2015, %v2212
      %v2250 = vadd.f32 %v2016, %v2214
      %v2251 = vadd.f32 %v2017, %v2217
      %v2252 = vadd.f32 %v2018, %v2219
      %v2253 = vld [vmem:[#allocation2 + $0x26] sm:$0xff]
      %v2254 = vld [vmem:[#allocation2 + $0x2e] sm:$0xff]
      %v2255 = vld [vmem:[#allocation2 + $0x36] sm:$0xff]
      %v2256 = vld [vmem:[#allocation2 + $0x3e] sm:$0xff]
      %v2257 = vld [vmem:[#allocation2 + $0x46] sm:$0xff]
      %v2258 = vld [vmem:[#allocation2 + $0x4e] sm:$0xff]
      %v2259 = vld [vmem:[#allocation2 + $0x56] sm:$0xff]
      %v2260 = vld [vmem:[#allocation2 + $0x5e] sm:$0xff]
      %v2261 = vld [vmem:[#allocation2 + $0x66] sm:$0xff]
      %v2262 = vld [vmem:[#allocation2 + $0x6e] sm:$0xff]
      %v2263 = vld [vmem:[#allocation2 + $0x76] sm:$0xff]
      %v2264 = vld [vmem:[#allocation2 + $0x7e] sm:$0xff]
      %v2265 = vld [vmem:[#allocation2 + $0x86] sm:$0xff]
      %v2266 = vld [vmem:[#allocation2 + $0x8e] sm:$0xff]
      %v2267 = vld [vmem:[#allocation2 + $0x96] sm:$0xff]
      %v2268 = vld [vmem:[#allocation2 + $0x9e] sm:$0xff]
      %v2269 = vld [vmem:[#allocation2 + $0xa6] sm:$0xff]
      %v2270 = vld [vmem:[#allocation2 + $0xae] sm:$0xff]
      %v2271 = vld [vmem:[#allocation2 + $0xb6] sm:$0xff]
      %v2272 = vld [vmem:[#allocation2 + $0xbe] sm:$0xff]
      %v2273 = vld [vmem:[#allocation2 + $0xc6] sm:$0xff]
      %v2274 = vld [vmem:[#allocation2 + $0xce] sm:$0xff]
      %v2275 = vld [vmem:[#allocation2 + $0xd6] sm:$0xff]
      %v2276 = vld [vmem:[#allocation2 + $0xde] sm:$0xff]
      %v2277 = vld [vmem:[#allocation2 + $0xe6] sm:$0xff]
      %v2278 = vld [vmem:[#allocation2 + $0xee] sm:$0xff]
      %v2279 = vld [vmem:[#allocation2 + $0xf6] sm:$0xff]
      %v2280 = vld [vmem:[#allocation2 + $0xfe] sm:$0xff]
      %v2281 = vld [vmem:[#allocation2 + $0x106] sm:$0xff]
      %v2282 = vld [vmem:[#allocation2 + $0x10e] sm:$0xff]
      %v2283 = vld [vmem:[#allocation2 + $0x116] sm:$0xff]
      %v2284 = vld [vmem:[#allocation2 + $0x11e] sm:$0xff]
      %v2285 = vpack.c.bf16 %v2254, %v2253
      %v2286 = vpack.c.bf16 %v2256, %v2255
      %v2287 = vpack.c.bf16 %v2258, %v2257
      %v2288 = vpack.c.bf16 %v2260, %v2259
      %v2289 = vpack.c.bf16 %v2262, %v2261
      %v2290 = vpack.c.bf16 %v2264, %v2263
      %v2291 = vpack.c.bf16 %v2266, %v2265
      %v2292 = vpack.c.bf16 %v2268, %v2267
      %v2293 = vpack.c.bf16 %v2270, %v2269
      %v2294 = vpack.c.bf16 %v2272, %v2271
      %v2295 = vpack.c.bf16 %v2274, %v2273
      %v2296 = vpack.c.bf16 %v2276, %v2275
      %v2297 = vpack.c.bf16 %v2278, %v2277
      %v2298 = vpack.c.bf16 %v2280, %v2279
      %v2299 = vpack.c.bf16 %v2282, %v2281
      %v2300 = vpack.c.bf16 %v2284, %v2283
      %s2301 = scalar_lea.vmem %s275, 512
      %v2302 = vld [vmem:[%s2301] sm:$0xf]
      %v2303 = vld [vmem:[%s2301 + $0x4] sm:$0xf]
      %v2304 = vld [vmem:[%s2301 + $0x8] sm:$0xf]
      %v2305 = vld [vmem:[%s2301 + $0xc] sm:$0xf]
      %v2306 = vld [vmem:[%s2301 + $0x10] sm:$0xf]
      %v2307 = vld [vmem:[%s2301 + $0x14] sm:$0xf]
      %v2308 = vld [vmem:[%s2301 + $0x18] sm:$0xf]
      %v2309 = vld [vmem:[%s2301 + $0x1c] sm:$0xf]
      %v2310 = vld [vmem:[%s2301 + $0x20] sm:$0xf]
      %v2311 = vld [vmem:[%s2301 + $0x24] sm:$0xf]
      %v2312 = vld [vmem:[%s2301 + $0x28] sm:$0xf]
      %v2313 = vld [vmem:[%s2301 + $0x2c] sm:$0xf]
      %v2314 = vld [vmem:[%s2301 + $0x30] sm:$0xf]
      %v2315 = vld [vmem:[%s2301 + $0x34] sm:$0xf]
      %v2316 = vld [vmem:[%s2301 + $0x38] sm:$0xf]
      %v2317 = vld [vmem:[%s2301 + $0x3c] sm:$0xf]
      %v2334 = vunpack.c.l.b16 %v2302
      %v2335 = vunpack.c.l.b16 %v2303
      %v2336 = vunpack.c.l.b16 %v2304
      %v2337 = vunpack.c.l.b16 %v2305
      %v2338 = vunpack.c.l.b16 %v2306
      %v2339 = vunpack.c.l.b16 %v2307
      %v2340 = vunpack.c.l.b16 %v2308
      %v2341 = vunpack.c.l.b16 %v2309
      %v2342 = vunpack.c.l.b16 %v2310
      %v2343 = vunpack.c.l.b16 %v2311
      %v2344 = vunpack.c.l.b16 %v2312
      %v2345 = vunpack.c.l.b16 %v2313
      %v2346 = vunpack.c.l.b16 %v2314
      %v2347 = vunpack.c.l.b16 %v2315
      %v2348 = vunpack.c.l.b16 %v2316
      %v2349 = vunpack.c.l.b16 %v2317
      %v2350 = vpack.c.b16 %v2335, %v2334
      %v2351 = vpack.c.b16 %v2337, %v2336
      %v2352 = vpack.c.b16 %v2339, %v2338
      %v2353 = vpack.c.b16 %v2341, %v2340
      %v2354 = vpack.c.b16 %v2343, %v2342
      %v2355 = vpack.c.b16 %v2345, %v2344
      %v2356 = vpack.c.b16 %v2347, %v2346
      %v2357 = vpack.c.b16 %v2349, %v2348
      %2366 = vmatpush.bf16.msra.mxu0 %v2357
      %2367 = vmatpush.bf16.msra.mxu0 %v2356
      %2368 = vmatpush.bf16.msra.mxu0 %v2355
      %2369 = vmatpush.bf16.msra.mxu0 %v2354
      %2370 = vmatpush.bf16.msra.mxu0 %v2353
      %2371 = vmatpush.bf16.msra.mxu0 %v2352
      %2372 = vmatpush.bf16.msra.mxu0 %v2351
      %2373 = vmatpush.bf16.msra.mxu0 %v2350
      %2374 = vmatmul.bf16.gmra.mxu0 %v2285
      %v2375 = vpop.f32.mrf.mxu0
      %v2376 = vadd.f32 0.0, %v2375
      %v2377 = vpop.f32.mrf.mxu0
      %v2378 = vadd.f32 0.0, %v2377
      %2379 = vmatmul.bf16.gmra.mxu0 %v2286
      %v2380 = vpop.f32.mrf.mxu0
      %v2381 = vadd.f32 0.0, %v2380
      %v2382 = vpop.f32.mrf.mxu0
      %v2383 = vadd.f32 0.0, %v2382
      %2384 = vmatmul.bf16.gmra.mxu0 %v2287
      %v2385 = vpop.f32.mrf.mxu0
      %v2386 = vadd.f32 0.0, %v2385
      %v2387 = vpop.f32.mrf.mxu0
      %v2388 = vadd.f32 0.0, %v2387
      %2389 = vmatmul.bf16.gmra.mxu0 %v2288
      %v2390 = vpop.f32.mrf.mxu0
      %v2391 = vadd.f32 0.0, %v2390
      %v2392 = vpop.f32.mrf.mxu0
      %v2393 = vadd.f32 0.0, %v2392
      %2394 = vmatmul.bf16.gmra.mxu0 %v2289
      %v2395 = vpop.f32.mrf.mxu0
      %v2396 = vadd.f32 0.0, %v2395
      %v2397 = vpop.f32.mrf.mxu0
      %v2398 = vadd.f32 0.0, %v2397
      %2399 = vmatmul.bf16.gmra.mxu0 %v2290
      %v2400 = vpop.f32.mrf.mxu0
      %v2401 = vadd.f32 0.0, %v2400
      %v2402 = vpop.f32.mrf.mxu0
      %v2403 = vadd.f32 0.0, %v2402
      %2404 = vmatmul.bf16.gmra.mxu0 %v2291
      %v2405 = vpop.f32.mrf.mxu0
      %v2406 = vadd.f32 0.0, %v2405
      %v2407 = vpop.f32.mrf.mxu0
      %v2408 = vadd.f32 0.0, %v2407
      %2409 = vmatmul.bf16.gmra.mxu0 %v2292
      %v2410 = vpop.f32.mrf.mxu0
      %v2411 = vadd.f32 0.0, %v2410
      %v2412 = vpop.f32.mrf.mxu0
      %v2413 = vadd.f32 0.0, %v2412
      %2414 = vmatmul.bf16.gmra.mxu0 %v2293
      %v2415 = vpop.f32.mrf.mxu0
      %v2416 = vadd.f32 0.0, %v2415
      %v2417 = vpop.f32.mrf.mxu0
      %v2418 = vadd.f32 0.0, %v2417
      %2419 = vmatmul.bf16.gmra.mxu0 %v2294
      %v2420 = vpop.f32.mrf.mxu0
      %v2421 = vadd.f32 0.0, %v2420
      %v2422 = vpop.f32.mrf.mxu0
      %v2423 = vadd.f32 0.0, %v2422
      %2424 = vmatmul.bf16.gmra.mxu0 %v2295
      %v2425 = vpop.f32.mrf.mxu0
      %v2426 = vadd.f32 0.0, %v2425
      %v2427 = vpop.f32.mrf.mxu0
      %v2428 = vadd.f32 0.0, %v2427
      %2429 = vmatmul.bf16.gmra.mxu0 %v2296
      %v2430 = vpop.f32.mrf.mxu0
      %v2431 = vadd.f32 0.0, %v2430
      %v2432 = vpop.f32.mrf.mxu0
      %v2433 = vadd.f32 0.0, %v2432
      %2434 = vmatmul.bf16.gmra.mxu0 %v2297
      %v2435 = vpop.f32.mrf.mxu0
      %v2436 = vadd.f32 0.0, %v2435
      %v2437 = vpop.f32.mrf.mxu0
      %v2438 = vadd.f32 0.0, %v2437
      %2439 = vmatmul.bf16.gmra.mxu0 %v2298
      %v2440 = vpop.f32.mrf.mxu0
      %v2441 = vadd.f32 0.0, %v2440
      %v2442 = vpop.f32.mrf.mxu0
      %v2443 = vadd.f32 0.0, %v2442
      %2444 = vmatmul.bf16.gmra.mxu0 %v2299
      %v2445 = vpop.f32.mrf.mxu0
      %v2446 = vadd.f32 0.0, %v2445
      %v2447 = vpop.f32.mrf.mxu0
      %v2448 = vadd.f32 0.0, %v2447
      %2449 = vmatmul.bf16.gmra.mxu0 %v2300
      %v2450 = vpop.f32.mrf.mxu0
      %v2451 = vadd.f32 0.0, %v2450
      %v2452 = vpop.f32.mrf.mxu0
      %v2453 = vadd.f32 0.0, %v2452
      %2454 = vdwg.mxu0
      %v2455 = vadd.f32 %v2221, %v2376
      %v2456 = vadd.f32 %v2222, %v2378
      %v2457 = vadd.f32 %v2223, %v2381
      %v2458 = vadd.f32 %v2224, %v2383
      %v2459 = vadd.f32 %v2225, %v2386
      %v2460 = vadd.f32 %v2226, %v2388
      %v2461 = vadd.f32 %v2227, %v2391
      %v2462 = vadd.f32 %v2228, %v2393
      %v2463 = vadd.f32 %v2229, %v2396
      %v2464 = vadd.f32 %v2230, %v2398
      %v2465 = vadd.f32 %v2231, %v2401
      %v2466 = vadd.f32 %v2232, %v2403
      %v2467 = vadd.f32 %v2233, %v2406
      %v2468 = vadd.f32 %v2234, %v2408
      %v2469 = vadd.f32 %v2235, %v2411
      %v2470 = vadd.f32 %v2236, %v2413
      %v2471 = vadd.f32 %v2237, %v2416
      %v2472 = vadd.f32 %v2238, %v2418
      %v2473 = vadd.f32 %v2239, %v2421
      %v2474 = vadd.f32 %v2240, %v2423
      %v2475 = vadd.f32 %v2241, %v2426
      %v2476 = vadd.f32 %v2242, %v2428
      %v2477 = vadd.f32 %v2243, %v2431
      %v2478 = vadd.f32 %v2244, %v2433
      %v2479 = vadd.f32 %v2245, %v2436
      %v2480 = vadd.f32 %v2246, %v2438
      %v2481 = vadd.f32 %v2247, %v2441
      %v2482 = vadd.f32 %v2248, %v2443
      %v2483 = vadd.f32 %v2249, %v2446
      %v2484 = vadd.f32 %v2250, %v2448
      %v2485 = vadd.f32 %v2251, %v2451
      %v2486 = vadd.f32 %v2252, %v2453
      %v2488 = vperm.slane %v444, 0
      %v2490 = vmul.f32 %v2455, %v2488
      %v2491 = vmul.f32 %v2456, %v2488
      %v2492 = vmul.f32 %v2457, %v2488
      %v2493 = vmul.f32 %v2458, %v2488
      %v2494 = vmul.f32 %v2459, %v2488
      %v2495 = vmul.f32 %v2460, %v2488
      %v2496 = vmul.f32 %v2461, %v2488
      %v2497 = vmul.f32 %v2462, %v2488
      %v2498 = vmul.f32 %v2463, %v2488
      %v2499 = vmul.f32 %v2464, %v2488
      %v2500 = vmul.f32 %v2465, %v2488
      %v2501 = vmul.f32 %v2466, %v2488
      %v2502 = vmul.f32 %v2467, %v2488
      %v2503 = vmul.f32 %v2468, %v2488
      %v2504 = vmul.f32 %v2469, %v2488
      %v2505 = vmul.f32 %v2470, %v2488
      %v2506 = vmul.f32 %v2471, %v2488
      %v2507 = vmul.f32 %v2472, %v2488
      %v2508 = vmul.f32 %v2473, %v2488
      %v2509 = vmul.f32 %v2474, %v2488
      %v2510 = vmul.f32 %v2475, %v2488
      %v2511 = vmul.f32 %v2476, %v2488
      %v2512 = vmul.f32 %v2477, %v2488
      %v2513 = vmul.f32 %v2478, %v2488
      %v2514 = vmul.f32 %v2479, %v2488
      %v2515 = vmul.f32 %v2480, %v2488
      %v2516 = vmul.f32 %v2481, %v2488
      %v2517 = vmul.f32 %v2482, %v2488
      %v2518 = vmul.f32 %v2483, %v2488
      %v2519 = vmul.f32 %v2484, %v2488
      %v2520 = vmul.f32 %v2485, %v2488
      %v2521 = vmul.f32 %v2486, %v2488
      %v2523 = vperm.slane %v445, 0
      %v2525 = vadd.f32 %v2490, %v2523
      %v2526 = vadd.f32 %v2491, %v2523
      %v2527 = vadd.f32 %v2492, %v2523
      %v2528 = vadd.f32 %v2493, %v2523
      %v2529 = vadd.f32 %v2494, %v2523
      %v2530 = vadd.f32 %v2495, %v2523
      %v2531 = vadd.f32 %v2496, %v2523
      %v2532 = vadd.f32 %v2497, %v2523
      %v2533 = vadd.f32 %v2498, %v2523
      %v2534 = vadd.f32 %v2499, %v2523
      %v2535 = vadd.f32 %v2500, %v2523
      %v2536 = vadd.f32 %v2501, %v2523
      %v2537 = vadd.f32 %v2502, %v2523
      %v2538 = vadd.f32 %v2503, %v2523
      %v2539 = vadd.f32 %v2504, %v2523
      %v2540 = vadd.f32 %v2505, %v2523
      %v2541 = vadd.f32 %v2506, %v2523
      %v2542 = vadd.f32 %v2507, %v2523
      %v2543 = vadd.f32 %v2508, %v2523
      %v2544 = vadd.f32 %v2509, %v2523
      %v2545 = vadd.f32 %v2510, %v2523
      %v2546 = vadd.f32 %v2511, %v2523
      %v2547 = vadd.f32 %v2512, %v2523
      %v2548 = vadd.f32 %v2513, %v2523
      %v2549 = vadd.f32 %v2514, %v2523
      %v2550 = vadd.f32 %v2515, %v2523
      %v2551 = vadd.f32 %v2516, %v2523
      %v2552 = vadd.f32 %v2517, %v2523
      %v2553 = vadd.f32 %v2518, %v2523
      %v2554 = vadd.f32 %v2519, %v2523
      %v2555 = vadd.f32 %v2520, %v2523
      %v2556 = vadd.f32 %v2521, %v2523
      %v2557 = vmax.f32 %v2525, 0.0
      %v2558 = vmax.f32 %v2526, 0.0
      %v2559 = vmax.f32 %v2527, 0.0
      %v2560 = vmax.f32 %v2528, 0.0
      %v2561 = vmax.f32 %v2529, 0.0
      %v2562 = vmax.f32 %v2530, 0.0
      %v2563 = vmax.f32 %v2531, 0.0
      %v2564 = vmax.f32 %v2532, 0.0
      %v2565 = vmax.f32 %v2533, 0.0
      %v2566 = vmax.f32 %v2534, 0.0
      %v2567 = vmax.f32 %v2535, 0.0
      %v2568 = vmax.f32 %v2536, 0.0
      %v2569 = vmax.f32 %v2537, 0.0
      %v2570 = vmax.f32 %v2538, 0.0
      %v2571 = vmax.f32 %v2539, 0.0
      %v2572 = vmax.f32 %v2540, 0.0
      %v2573 = vmax.f32 %v2541, 0.0
      %v2574 = vmax.f32 %v2542, 0.0
      %v2575 = vmax.f32 %v2543, 0.0
      %v2576 = vmax.f32 %v2544, 0.0
      %v2577 = vmax.f32 %v2545, 0.0
      %v2578 = vmax.f32 %v2546, 0.0
      %v2579 = vmax.f32 %v2547, 0.0
      %v2580 = vmax.f32 %v2548, 0.0
      %v2581 = vmax.f32 %v2549, 0.0
      %v2582 = vmax.f32 %v2550, 0.0
      %v2583 = vmax.f32 %v2551, 0.0
      %v2584 = vmax.f32 %v2552, 0.0
      %v2585 = vmax.f32 %v2553, 0.0
      %v2586 = vmax.f32 %v2554, 0.0
      %v2587 = vmax.f32 %v2555, 0.0
      %v2588 = vmax.f32 %v2556, 0.0
      %v2589 = vld [vmem:[%s4] sm:$0xff]
      %v2590 = vld [vmem:[%s4 + $0x8] sm:$0xff]
      %v2591 = vld [vmem:[%s4 + $0x10] sm:$0xff]
      %v2592 = vld [vmem:[%s4 + $0x18] sm:$0xff]
      %v2593 = vld [vmem:[%s4 + $0x20] sm:$0xff]
      %v2594 = vld [vmem:[%s4 + $0x28] sm:$0xff]
      %v2595 = vld [vmem:[%s4 + $0x30] sm:$0xff]
      %v2596 = vld [vmem:[%s4 + $0x38] sm:$0xff]
      %v2597 = vld [vmem:[%s4 + $0x40] sm:$0xff]
      %v2598 = vld [vmem:[%s4 + $0x48] sm:$0xff]
      %v2599 = vld [vmem:[%s4 + $0x50] sm:$0xff]
      %v2600 = vld [vmem:[%s4 + $0x58] sm:$0xff]
      %v2601 = vld [vmem:[%s4 + $0x60] sm:$0xff]
      %v2602 = vld [vmem:[%s4 + $0x68] sm:$0xff]
      %v2603 = vld [vmem:[%s4 + $0x70] sm:$0xff]
      %v2604 = vld [vmem:[%s4 + $0x78] sm:$0xff]
      %v2605 = vld [vmem:[%s4 + $0x80] sm:$0xff]
      %v2606 = vld [vmem:[%s4 + $0x88] sm:$0xff]
      %v2607 = vld [vmem:[%s4 + $0x90] sm:$0xff]
      %v2608 = vld [vmem:[%s4 + $0x98] sm:$0xff]
      %v2609 = vld [vmem:[%s4 + $0xa0] sm:$0xff]
      %v2610 = vld [vmem:[%s4 + $0xa8] sm:$0xff]
      %v2611 = vld [vmem:[%s4 + $0xb0] sm:$0xff]
      %v2612 = vld [vmem:[%s4 + $0xb8] sm:$0xff]
      %v2613 = vld [vmem:[%s4 + $0xc0] sm:$0xff]
      %v2614 = vld [vmem:[%s4 + $0xc8] sm:$0xff]
      %v2615 = vld [vmem:[%s4 + $0xd0] sm:$0xff]
      %v2616 = vld [vmem:[%s4 + $0xd8] sm:$0xff]
      %v2617 = vld [vmem:[%s4 + $0xe0] sm:$0xff]
      %v2618 = vld [vmem:[%s4 + $0xe8] sm:$0xff]
      %v2619 = vld [vmem:[%s4 + $0xf0] sm:$0xff]
      %v2620 = vld [vmem:[%s4 + $0xf8] sm:$0xff]
      %2622 = vset.pattern.permute.xlu0 0
      %2623 = vperm.xlu0 %2622, %v2589
      %v2624 = vpop.permute.xlu0 %2623
      %2627 = vset.pattern.permute.xlu0 0
      %2628 = vperm.xlu0 %2627, %v2590
      %v2629 = vpop.permute.xlu0 %2628
      %2632 = vset.pattern.permute.xlu0 0
      %2633 = vperm.xlu0 %2632, %v2591
      %v2634 = vpop.permute.xlu0 %2633
      %2637 = vset.pattern.permute.xlu0 0
      %2638 = vperm.xlu0 %2637, %v2592
      %v2639 = vpop.permute.xlu0 %2638
      %2642 = vset.pattern.permute.xlu0 0
      %2643 = vperm.xlu0 %2642, %v2593
      %v2644 = vpop.permute.xlu0 %2643
      %2647 = vset.pattern.permute.xlu0 0
      %2648 = vperm.xlu0 %2647, %v2594
      %v2649 = vpop.permute.xlu0 %2648
      %2652 = vset.pattern.permute.xlu0 0
      %2653 = vperm.xlu0 %2652, %v2595
      %v2654 = vpop.permute.xlu0 %2653
      %2657 = vset.pattern.permute.xlu0 0
      %2658 = vperm.xlu0 %2657, %v2596
      %v2659 = vpop.permute.xlu0 %2658
      %2662 = vset.pattern.permute.xlu0 0
      %2663 = vperm.xlu0 %2662, %v2597
      %v2664 = vpop.permute.xlu0 %2663
      %2667 = vset.pattern.permute.xlu0 0
      %2668 = vperm.xlu0 %2667, %v2598
      %v2669 = vpop.permute.xlu0 %2668
      %2672 = vset.pattern.permute.xlu0 0
      %2673 = vperm.xlu0 %2672, %v2599
      %v2674 = vpop.permute.xlu0 %2673
      %2677 = vset.pattern.permute.xlu0 0
      %2678 = vperm.xlu0 %2677, %v2600
      %v2679 = vpop.permute.xlu0 %2678
      %2682 = vset.pattern.permute.xlu0 0
      %2683 = vperm.xlu0 %2682, %v2601
      %v2684 = vpop.permute.xlu0 %2683
      %2687 = vset.pattern.permute.xlu0 0
      %2688 = vperm.xlu0 %2687, %v2602
      %v2689 = vpop.permute.xlu0 %2688
      %2692 = vset.pattern.permute.xlu0 0
      %2693 = vperm.xlu0 %2692, %v2603
      %v2694 = vpop.permute.xlu0 %2693
      %2697 = vset.pattern.permute.xlu0 0
      %2698 = vperm.xlu0 %2697, %v2604
      %v2699 = vpop.permute.xlu0 %2698
      %2702 = vset.pattern.permute.xlu0 0
      %2703 = vperm.xlu0 %2702, %v2605
      %v2704 = vpop.permute.xlu0 %2703
      %2707 = vset.pattern.permute.xlu0 0
      %2708 = vperm.xlu0 %2707, %v2606
      %v2709 = vpop.permute.xlu0 %2708
      %2712 = vset.pattern.permute.xlu0 0
      %2713 = vperm.xlu0 %2712, %v2607
      %v2714 = vpop.permute.xlu0 %2713
      %2717 = vset.pattern.permute.xlu0 0
      %2718 = vperm.xlu0 %2717, %v2608
      %v2719 = vpop.permute.xlu0 %2718
      %2722 = vset.pattern.permute.xlu0 0
      %2723 = vperm.xlu0 %2722, %v2609
      %v2724 = vpop.permute.xlu0 %2723
      %2727 = vset.pattern.permute.xlu0 0
      %2728 = vperm.xlu0 %2727, %v2610
      %v2729 = vpop.permute.xlu0 %2728
      %2732 = vset.pattern.permute.xlu0 0
      %2733 = vperm.xlu0 %2732, %v2611
      %v2734 = vpop.permute.xlu0 %2733
      %2737 = vset.pattern.permute.xlu0 0
      %2738 = vperm.xlu0 %2737, %v2612
      %v2739 = vpop.permute.xlu0 %2738
      %2742 = vset.pattern.permute.xlu0 0
      %2743 = vperm.xlu0 %2742, %v2613
      %v2744 = vpop.permute.xlu0 %2743
      %2747 = vset.pattern.permute.xlu0 0
      %2748 = vperm.xlu0 %2747, %v2614
      %v2749 = vpop.permute.xlu0 %2748
      %2752 = vset.pattern.permute.xlu0 0
      %2753 = vperm.xlu0 %2752, %v2615
      %v2754 = vpop.permute.xlu0 %2753
      %2757 = vset.pattern.permute.xlu0 0
      %2758 = vperm.xlu0 %2757, %v2616
      %v2759 = vpop.permute.xlu0 %2758
      %2762 = vset.pattern.permute.xlu0 0
      %2763 = vperm.xlu0 %2762, %v2617
      %v2764 = vpop.permute.xlu0 %2763
      %2767 = vset.pattern.permute.xlu0 0
      %2768 = vperm.xlu0 %2767, %v2618
      %v2769 = vpop.permute.xlu0 %2768
      %2772 = vset.pattern.permute.xlu0 0
      %2773 = vperm.xlu0 %2772, %v2619
      %v2774 = vpop.permute.xlu0 %2773
      %2777 = vset.pattern.permute.xlu0 0
      %2778 = vperm.xlu0 %2777, %v2620
      %v2779 = vpop.permute.xlu0 %2778
      %v2781 = vmul.f32 %v2557, %v2624
      %v2782 = vmul.f32 %v2558, %v2629
      %v2783 = vmul.f32 %v2559, %v2634
      %v2784 = vmul.f32 %v2560, %v2639
      %v2785 = vmul.f32 %v2561, %v2644
      %v2786 = vmul.f32 %v2562, %v2649
      %v2787 = vmul.f32 %v2563, %v2654
      %v2788 = vmul.f32 %v2564, %v2659
      %v2789 = vmul.f32 %v2565, %v2664
      %v2790 = vmul.f32 %v2566, %v2669
      %v2791 = vmul.f32 %v2567, %v2674
      %v2792 = vmul.f32 %v2568, %v2679
      %v2793 = vmul.f32 %v2569, %v2684
      %v2794 = vmul.f32 %v2570, %v2689
      %v2795 = vmul.f32 %v2571, %v2694
      %v2796 = vmul.f32 %v2572, %v2699
      %v2797 = vmul.f32 %v2573, %v2704
      %v2798 = vmul.f32 %v2574, %v2709
      %v2799 = vmul.f32 %v2575, %v2714
      %v2800 = vmul.f32 %v2576, %v2719
      %v2801 = vmul.f32 %v2577, %v2724
      %v2802 = vmul.f32 %v2578, %v2729
      %v2803 = vmul.f32 %v2579, %v2734
      %v2804 = vmul.f32 %v2580, %v2739
      %v2805 = vmul.f32 %v2581, %v2744
      %v2806 = vmul.f32 %v2582, %v2749
      %v2807 = vmul.f32 %v2583, %v2754
      %v2808 = vmul.f32 %v2584, %v2759
      %v2809 = vmul.f32 %v2585, %v2764
      %v2810 = vmul.f32 %v2586, %v2769
      %v2811 = vmul.f32 %v2587, %v2774
      %v2812 = vmul.f32 %v2588, %v2779
      %v2813 = vpack.c.bf16 %v2781, %v2781
      %v2814 = vpack.c.bf16 %v2782, %v2782
      %v2815 = vpack.c.bf16 %v2783, %v2783
      %v2816 = vpack.c.bf16 %v2784, %v2784
      %v2817 = vpack.c.bf16 %v2785, %v2785
      %v2818 = vpack.c.bf16 %v2786, %v2786
      %v2819 = vpack.c.bf16 %v2787, %v2787
      %v2820 = vpack.c.bf16 %v2788, %v2788
      %v2821 = vpack.c.bf16 %v2789, %v2789
      %v2822 = vpack.c.bf16 %v2790, %v2790
      %v2823 = vpack.c.bf16 %v2791, %v2791
      %v2824 = vpack.c.bf16 %v2792, %v2792
      %v2825 = vpack.c.bf16 %v2793, %v2793
      %v2826 = vpack.c.bf16 %v2794, %v2794
      %v2827 = vpack.c.bf16 %v2795, %v2795
      %v2828 = vpack.c.bf16 %v2796, %v2796
      %v2829 = vpack.c.bf16 %v2797, %v2797
      %v2830 = vpack.c.bf16 %v2798, %v2798
      %v2831 = vpack.c.bf16 %v2799, %v2799
      %v2832 = vpack.c.bf16 %v2800, %v2800
      %v2833 = vpack.c.bf16 %v2801, %v2801
      %v2834 = vpack.c.bf16 %v2802, %v2802
      %v2835 = vpack.c.bf16 %v2803, %v2803
      %v2836 = vpack.c.bf16 %v2804, %v2804
      %v2837 = vpack.c.bf16 %v2805, %v2805
      %v2838 = vpack.c.bf16 %v2806, %v2806
      %v2839 = vpack.c.bf16 %v2807, %v2807
      %v2840 = vpack.c.bf16 %v2808, %v2808
      %v2841 = vpack.c.bf16 %v2809, %v2809
      %v2842 = vpack.c.bf16 %v2810, %v2810
      %v2843 = vpack.c.bf16 %v2811, %v2811
      %v2844 = vpack.c.bf16 %v2812, %v2812
      %2845 = vst [vmem:[%s289] sm:$0xf] %v2813
      %2846 = vst [vmem:[%s289 + $0x4] sm:$0xf] %v2814
      %2847 = vst [vmem:[%s289 + $0x8] sm:$0xf] %v2815
      %2848 = vst [vmem:[%s289 + $0xc] sm:$0xf] %v2816
      %2849 = vst [vmem:[%s289 + $0x10] sm:$0xf] %v2817
      %2850 = vst [vmem:[%s289 + $0x14] sm:$0xf] %v2818
      %2851 = vst [vmem:[%s289 + $0x18] sm:$0xf] %v2819
      %2852 = vst [vmem:[%s289 + $0x1c] sm:$0xf] %v2820
      %2853 = vst [vmem:[%s289 + $0x20] sm:$0xf] %v2821
      %2854 = vst [vmem:[%s289 + $0x24] sm:$0xf] %v2822
      %2855 = vst [vmem:[%s289 + $0x28] sm:$0xf] %v2823
      %2856 = vst [vmem:[%s289 + $0x2c] sm:$0xf] %v2824
      %2857 = vst [vmem:[%s289 + $0x30] sm:$0xf] %v2825
      %2858 = vst [vmem:[%s289 + $0x34] sm:$0xf] %v2826
      %2859 = vst [vmem:[%s289 + $0x38] sm:$0xf] %v2827
      %2860 = vst [vmem:[%s289 + $0x3c] sm:$0xf] %v2828
      %2861 = vst [vmem:[%s289 + $0x40] sm:$0xf] %v2829
      %2862 = vst [vmem:[%s289 + $0x44] sm:$0xf] %v2830
      %2863 = vst [vmem:[%s289 + $0x48] sm:$0xf] %v2831
      %2864 = vst [vmem:[%s289 + $0x4c] sm:$0xf] %v2832
      %2865 = vst [vmem:[%s289 + $0x50] sm:$0xf] %v2833
      %2866 = vst [vmem:[%s289 + $0x54] sm:$0xf] %v2834
      %2867 = vst [vmem:[%s289 + $0x58] sm:$0xf] %v2835
      %2868 = vst [vmem:[%s289 + $0x5c] sm:$0xf] %v2836
      %2869 = vst [vmem:[%s289 + $0x60] sm:$0xf] %v2837
      %2870 = vst [vmem:[%s289 + $0x64] sm:$0xf] %v2838
      %2871 = vst [vmem:[%s289 + $0x68] sm:$0xf] %v2839
      %2872 = vst [vmem:[%s289 + $0x6c] sm:$0xf] %v2840
      %2873 = vst [vmem:[%s289 + $0x70] sm:$0xf] %v2841
      %2874 = vst [vmem:[%s289 + $0x74] sm:$0xf] %v2842
      %2875 = vst [vmem:[%s289 + $0x78] sm:$0xf] %v2843
      %2876 = vst [vmem:[%s289 + $0x7c] sm:$0xf] %v2844
      %v2877 = vld [vmem:[#allocation2 + $0x100] sm:$0xff]
      %v2878 = vld [vmem:[#allocation2 + $0x108] sm:$0xff]
      %v2879 = vld [vmem:[#allocation2 + $0x110] sm:$0xff]
      %v2880 = vld [vmem:[#allocation2 + $0x118] sm:$0xff]
      %v2881 = vld [vmem:[#allocation2 + $0x120] sm:$0xff]
      %v2882 = vld [vmem:[#allocation2 + $0x128] sm:$0xff]
      %v2883 = vld [vmem:[#allocation2 + $0x130] sm:$0xff]
      %v2884 = vld [vmem:[#allocation2 + $0x138] sm:$0xff]
      %v2885 = vld [vmem:[#allocation2 + $0x140] sm:$0xff]
      %v2886 = vld [vmem:[#allocation2 + $0x148] sm:$0xff]
      %v2887 = vld [vmem:[#allocation2 + $0x150] sm:$0x3f]
      %v2888 = vpack.c.bf16 %v2878, %v2877
      %v2889 = vpack.c.bf16 %v2880, %v2879
      %v2890 = vpack.c.bf16 %v2882, %v2881
      %v2891 = vpack.c.bf16 %v2884, %v2883
      %v2892 = vpack.c.bf16 %v2886, %v2885
      %v2893 = vpack.c.bf16 %v2887, %v2887
      %v2894 = vld [vmem:[%s275] sm:$0xf]
      %v2895 = vld [vmem:[%s275 + $0x4] sm:$0xf]
      %v2896 = vld [vmem:[%s275 + $0x8] sm:$0xf]
      %v2897 = vld [vmem:[%s275 + $0xc] sm:$0xf]
      %v2898 = vld [vmem:[%s275 + $0x10] sm:$0xf]
      %v2899 = vld [vmem:[%s275 + $0x14] sm:$0xf]
      %v2900 = vld [vmem:[%s275 + $0x18] sm:$0xf]
      %v2901 = vld [vmem:[%s275 + $0x1c] sm:$0xf]
      %v2902 = vld [vmem:[%s275 + $0x20] sm:$0xf]
      %v2903 = vld [vmem:[%s275 + $0x24] sm:$0xf]
      %v2904 = vld [vmem:[%s275 + $0x28] sm:$0xf]
      %v2905 = vld [vmem:[%s275 + $0x2c] sm:$0xf]
      %v2906 = vld [vmem:[%s275 + $0x30] sm:$0xf]
      %v2907 = vld [vmem:[%s275 + $0x34] sm:$0xf]
      %v2908 = vld [vmem:[%s275 + $0x38] sm:$0xf]
      %v2909 = vld [vmem:[%s275 + $0x3c] sm:$0xf]
      %v2910 = vld [vmem:[#allocation2 + $0x101] sm:$0xff]
      %v2911 = vld [vmem:[#allocation2 + $0x109] sm:$0xff]
      %v2912 = vld [vmem:[#allocation2 + $0x111] sm:$0xff]
      %v2913 = vld [vmem:[#allocation2 + $0x119] sm:$0xff]
      %v2914 = vld [vmem:[#allocation2 + $0x121] sm:$0xff]
      %v2915 = vld [vmem:[#allocation2 + $0x129] sm:$0xff]
      %v2916 = vld [vmem:[#allocation2 + $0x131] sm:$0xff]
      %v2917 = vld [vmem:[#allocation2 + $0x139] sm:$0xff]
      %v2918 = vld [vmem:[#allocation2 + $0x141] sm:$0xff]
      %v2919 = vld [vmem:[#allocation2 + $0x149] sm:$0xff]
      %v2920 = vld [vmem:[#allocation2 + $0x151] sm:$0x3f]
      %v2921 = vpack.c.bf16 %v2911, %v2910
      %v2922 = vpack.c.bf16 %v2913, %v2912
      %v2923 = vpack.c.bf16 %v2915, %v2914
      %v2924 = vpack.c.bf16 %v2917, %v2916
      %v2925 = vpack.c.bf16 %v2919, %v2918
      %v2926 = vpack.c.bf16 %v2920, %v2920
      %v2927 = vld [vmem:[%s558] sm:$0xf]
      %v2928 = vld [vmem:[%s558 + $0x4] sm:$0xf]
      %v2929 = vld [vmem:[%s558 + $0x8] sm:$0xf]
      %v2930 = vld [vmem:[%s558 + $0xc] sm:$0xf]
      %v2931 = vld [vmem:[%s558 + $0x10] sm:$0xf]
      %v2932 = vld [vmem:[%s558 + $0x14] sm:$0xf]
      %v2933 = vld [vmem:[%s558 + $0x18] sm:$0xf]
      %v2934 = vld [vmem:[%s558 + $0x1c] sm:$0xf]
      %v2935 = vld [vmem:[%s558 + $0x20] sm:$0xf]
      %v2936 = vld [vmem:[%s558 + $0x24] sm:$0xf]
      %v2937 = vld [vmem:[%s558 + $0x28] sm:$0xf]
      %v2938 = vld [vmem:[%s558 + $0x2c] sm:$0xf]
      %v2939 = vld [vmem:[%s558 + $0x30] sm:$0xf]
      %v2940 = vld [vmem:[%s558 + $0x34] sm:$0xf]
      %v2941 = vld [vmem:[%s558 + $0x38] sm:$0xf]
      %v2942 = vld [vmem:[%s558 + $0x3c] sm:$0xf]
      %v2959 = vunpack.c.l.b16 %v2927
      %v2960 = vunpack.c.l.b16 %v2928
      %v2961 = vunpack.c.l.b16 %v2929
      %v2962 = vunpack.c.l.b16 %v2930
      %v2963 = vunpack.c.l.b16 %v2931
      %v2964 = vunpack.c.l.b16 %v2932
      %v2965 = vunpack.c.l.b16 %v2933
      %v2966 = vunpack.c.l.b16 %v2934
      %v2967 = vunpack.c.l.b16 %v2935
      %v2968 = vunpack.c.l.b16 %v2936
      %v2969 = vunpack.c.l.b16 %v2937
      %v2970 = vunpack.c.l.b16 %v2938
      %v2971 = vunpack.c.l.b16 %v2939
      %v2972 = vunpack.c.l.b16 %v2940
      %v2973 = vunpack.c.l.b16 %v2941
      %v2974 = vunpack.c.l.b16 %v2942
      %v2975 = vpack.c.b16 %v2960, %v2959
      %v2976 = vpack.c.b16 %v2962, %v2961
      %v2977 = vpack.c.b16 %v2964, %v2963
      %v2978 = vpack.c.b16 %v2966, %v2965
      %v2979 = vpack.c.b16 %v2968, %v2967
      %v2980 = vpack.c.b16 %v2970, %v2969
      %v2981 = vpack.c.b16 %v2972, %v2971
      %v2982 = vpack.c.b16 %v2974, %v2973
      %2991 = vmatpush.bf16.msra.mxu0 %v2982
      %2992 = vmatpush.bf16.msra.mxu0 %v2981
      %2993 = vmatpush.bf16.msra.mxu0 %v2980
      %2994 = vmatpush.bf16.msra.mxu0 %v2979
      %2995 = vmatpush.bf16.msra.mxu0 %v2978
      %2996 = vmatpush.bf16.msra.mxu0 %v2977
      %2997 = vmatpush.bf16.msra.mxu0 %v2976
      %2998 = vmatpush.bf16.msra.mxu0 %v2975
      %2999 = vmatmul.bf16.gmra.mxu0 %v2921
      %v3000 = vpop.f32.mrf.mxu0
      %v3001 = vadd.f32 0.0, %v3000
      %v3002 = vpop.f32.mrf.mxu0
      %v3003 = vadd.f32 0.0, %v3002
      %3004 = vmatmul.bf16.gmra.mxu0 %v2922
      %v3005 = vpop.f32.mrf.mxu0
      %v3006 = vadd.f32 0.0, %v3005
      %v3007 = vpop.f32.mrf.mxu0
      %v3008 = vadd.f32 0.0, %v3007
      %3009 = vmatmul.bf16.gmra.mxu0 %v2923
      %v3010 = vpop.f32.mrf.mxu0
      %v3011 = vadd.f32 0.0, %v3010
      %v3012 = vpop.f32.mrf.mxu0
      %v3013 = vadd.f32 0.0, %v3012
      %3014 = vmatmul.bf16.gmra.mxu0 %v2924
      %v3015 = vpop.f32.mrf.mxu0
      %v3016 = vadd.f32 0.0, %v3015
      %v3017 = vpop.f32.mrf.mxu0
      %v3018 = vadd.f32 0.0, %v3017
      %3019 = vmatmul.bf16.gmra.mxu0 %v2925
      %v3020 = vpop.f32.mrf.mxu0
      %v3021 = vadd.f32 0.0, %v3020
      %v3022 = vpop.f32.mrf.mxu0
      %v3023 = vadd.f32 0.0, %v3022
      %3024 = vmatmul.bf16.gmra.mxu0 %v2926
      %v3025 = vpop.f32.mrf.mxu0
      %v3026 = vadd.f32 0.0, %v3025
      %v3027 = vpop.f32.mrf.mxu0
      %3028 = vdwg.mxu0
      %v3045 = vunpack.c.l.b16 %v2894
      %v3046 = vunpack.c.l.b16 %v2895
      %v3047 = vunpack.c.l.b16 %v2896
      %v3048 = vunpack.c.l.b16 %v2897
      %v3049 = vunpack.c.l.b16 %v2898
      %v3050 = vunpack.c.l.b16 %v2899
      %v3051 = vunpack.c.l.b16 %v2900
      %v3052 = vunpack.c.l.b16 %v2901
      %v3053 = vunpack.c.l.b16 %v2902
      %v3054 = vunpack.c.l.b16 %v2903
      %v3055 = vunpack.c.l.b16 %v2904
      %v3056 = vunpack.c.l.b16 %v2905
      %v3057 = vunpack.c.l.b16 %v2906
      %v3058 = vunpack.c.l.b16 %v2907
      %v3059 = vunpack.c.l.b16 %v2908
      %v3060 = vunpack.c.l.b16 %v2909
      %v3061 = vpack.c.b16 %v3046, %v3045
      %v3062 = vpack.c.b16 %v3048, %v3047
      %v3063 = vpack.c.b16 %v3050, %v3049
      %v3064 = vpack.c.b16 %v3052, %v3051
      %v3065 = vpack.c.b16 %v3054, %v3053
      %v3066 = vpack.c.b16 %v3056, %v3055
      %v3067 = vpack.c.b16 %v3058, %v3057
      %v3068 = vpack.c.b16 %v3060, %v3059
      %3077 = vmatpush.bf16.msra.mxu0 %v3068
      %3078 = vmatpush.bf16.msra.mxu0 %v3067
      %3079 = vmatpush.bf16.msra.mxu0 %v3066
      %3080 = vmatpush.bf16.msra.mxu0 %v3065
      %3081 = vmatpush.bf16.msra.mxu0 %v3064
      %3082 = vmatpush.bf16.msra.mxu0 %v3063
      %3083 = vmatpush.bf16.msra.mxu0 %v3062
      %3084 = vmatpush.bf16.msra.mxu0 %v3061
      %3085 = vmatmul.bf16.gmra.mxu0 %v2888
      %v3086 = vpop.f32.mrf.mxu0
      %v3087 = vadd.f32 %v3001, %v3086
      %v3088 = vpop.f32.mrf.mxu0
      %v3089 = vadd.f32 %v3003, %v3088
      %3090 = vmatmul.bf16.gmra.mxu0 %v2889
      %v3091 = vpop.f32.mrf.mxu0
      %v3092 = vadd.f32 %v3006, %v3091
      %v3093 = vpop.f32.mrf.mxu0
      %v3094 = vadd.f32 %v3008, %v3093
      %3095 = vmatmul.bf16.gmra.mxu0 %v2890
      %v3096 = vpop.f32.mrf.mxu0
      %v3097 = vadd.f32 %v3011, %v3096
      %v3098 = vpop.f32.mrf.mxu0
      %v3099 = vadd.f32 %v3013, %v3098
      %3100 = vmatmul.bf16.gmra.mxu0 %v2891
      %v3101 = vpop.f32.mrf.mxu0
      %v3102 = vadd.f32 %v3016, %v3101
      %v3103 = vpop.f32.mrf.mxu0
      %v3104 = vadd.f32 %v3018, %v3103
      %3105 = vmatmul.bf16.gmra.mxu0 %v2892
      %v3106 = vpop.f32.mrf.mxu0
      %v3107 = vadd.f32 %v3021, %v3106
      %v3108 = vpop.f32.mrf.mxu0
      %v3109 = vadd.f32 %v3023, %v3108
      %3110 = vmatmul.bf16.gmra.mxu0 %v2893
      %v3111 = vpop.f32.mrf.mxu0
      %v3112 = vadd.f32 %v3026, %v3111
      %v3113 = vpop.f32.mrf.mxu0
      %3114 = vdwg.mxu0
      %v3115 = vld [vmem:[#allocation2 + $0x102] sm:$0xff]
      %v3116 = vld [vmem:[#allocation2 + $0x10a] sm:$0xff]
      %v3117 = vld [vmem:[#allocation2 + $0x112] sm:$0xff]
      %v3118 = vld [vmem:[#allocation2 + $0x11a] sm:$0xff]
      %v3119 = vld [vmem:[#allocation2 + $0x122] sm:$0xff]
      %v3120 = vld [vmem:[#allocation2 + $0x12a] sm:$0xff]
      %v3121 = vld [vmem:[#allocation2 + $0x132] sm:$0xff]
      %v3122 = vld [vmem:[#allocation2 + $0x13a] sm:$0xff]
      %v3123 = vld [vmem:[#allocation2 + $0x142] sm:$0xff]
      %v3124 = vld [vmem:[#allocation2 + $0x14a] sm:$0xff]
      %v3125 = vld [vmem:[#allocation2 + $0x152] sm:$0x3f]
      %v3126 = vpack.c.bf16 %v3116, %v3115
      %v3127 = vpack.c.bf16 %v3118, %v3117
      %v3128 = vpack.c.bf16 %v3120, %v3119
      %v3129 = vpack.c.bf16 %v3122, %v3121
      %v3130 = vpack.c.bf16 %v3124, %v3123
      %v3131 = vpack.c.bf16 %v3125, %v3125
      %v3132 = vld [vmem:[%s897] sm:$0xf]
      %v3133 = vld [vmem:[%s897 + $0x4] sm:$0xf]
      %v3134 = vld [vmem:[%s897 + $0x8] sm:$0xf]
      %v3135 = vld [vmem:[%s897 + $0xc] sm:$0xf]
      %v3136 = vld [vmem:[%s897 + $0x10] sm:$0xf]
      %v3137 = vld [vmem:[%s897 + $0x14] sm:$0xf]
      %v3138 = vld [vmem:[%s897 + $0x18] sm:$0xf]
      %v3139 = vld [vmem:[%s897 + $0x1c] sm:$0xf]
      %v3140 = vld [vmem:[%s897 + $0x20] sm:$0xf]
      %v3141 = vld [vmem:[%s897 + $0x24] sm:$0xf]
      %v3142 = vld [vmem:[%s897 + $0x28] sm:$0xf]
      %v3143 = vld [vmem:[%s897 + $0x2c] sm:$0xf]
      %v3144 = vld [vmem:[%s897 + $0x30] sm:$0xf]
      %v3145 = vld [vmem:[%s897 + $0x34] sm:$0xf]
      %v3146 = vld [vmem:[%s897 + $0x38] sm:$0xf]
      %v3147 = vld [vmem:[%s897 + $0x3c] sm:$0xf]
      %v3164 = vunpack.c.l.b16 %v3132
      %v3165 = vunpack.c.l.b16 %v3133
      %v3166 = vunpack.c.l.b16 %v3134
      %v3167 = vunpack.c.l.b16 %v3135
      %v3168 = vunpack.c.l.b16 %v3136
      %v3169 = vunpack.c.l.b16 %v3137
      %v3170 = vunpack.c.l.b16 %v3138
      %v3171 = vunpack.c.l.b16 %v3139
      %v3172 = vunpack.c.l.b16 %v3140
      %v3173 = vunpack.c.l.b16 %v3141
      %v3174 = vunpack.c.l.b16 %v3142
      %v3175 = vunpack.c.l.b16 %v3143
      %v3176 = vunpack.c.l.b16 %v3144
      %v3177 = vunpack.c.l.b16 %v3145
      %v3178 = vunpack.c.l.b16 %v3146
      %v3179 = vunpack.c.l.b16 %v3147
      %v3180 = vpack.c.b16 %v3165, %v3164
      %v3181 = vpack.c.b16 %v3167, %v3166
      %v3182 = vpack.c.b16 %v3169, %v3168
      %v3183 = vpack.c.b16 %v3171, %v3170
      %v3184 = vpack.c.b16 %v3173, %v3172
      %v3185 = vpack.c.b16 %v3175, %v3174
      %v3186 = vpack.c.b16 %v3177, %v3176
      %v3187 = vpack.c.b16 %v3179, %v3178
      %3196 = vmatpush.bf16.msra.mxu0 %v3187
      %3197 = vmatpush.bf16.msra.mxu0 %v3186
      %3198 = vmatpush.bf16.msra.mxu0 %v3185
      %3199 = vmatpush.bf16.msra.mxu0 %v3184
      %3200 = vmatpush.bf16.msra.mxu0 %v3183
      %3201 = vmatpush.bf16.msra.mxu0 %v3182
      %3202 = vmatpush.bf16.msra.mxu0 %v3181
      %3203 = vmatpush.bf16.msra.mxu0 %v3180
      %3204 = vmatmul.bf16.gmra.mxu0 %v3126
      %v3205 = vpop.f32.mrf.mxu0
      %v3206 = vadd.f32 0.0, %v3205
      %v3207 = vpop.f32.mrf.mxu0
      %v3208 = vadd.f32 0.0, %v3207
      %3209 = vmatmul.bf16.gmra.mxu0 %v3127
      %v3210 = vpop.f32.mrf.mxu0
      %v3211 = vadd.f32 0.0, %v3210
      %v3212 = vpop.f32.mrf.mxu0
      %v3213 = vadd.f32 0.0, %v3212
      %3214 = vmatmul.bf16.gmra.mxu0 %v3128
      %v3215 = vpop.f32.mrf.mxu0
      %v3216 = vadd.f32 0.0, %v3215
      %v3217 = vpop.f32.mrf.mxu0
      %v3218 = vadd.f32 0.0, %v3217
      %3219 = vmatmul.bf16.gmra.mxu0 %v3129
      %v3220 = vpop.f32.mrf.mxu0
      %v3221 = vadd.f32 0.0, %v3220
      %v3222 = vpop.f32.mrf.mxu0
      %v3223 = vadd.f32 0.0, %v3222
      %3224 = vmatmul.bf16.gmra.mxu0 %v3130
      %v3225 = vpop.f32.mrf.mxu0
      %v3226 = vadd.f32 0.0, %v3225
      %v3227 = vpop.f32.mrf.mxu0
      %v3228 = vadd.f32 0.0, %v3227
      %3229 = vmatmul.bf16.gmra.mxu0 %v3131
      %v3230 = vpop.f32.mrf.mxu0
      %v3231 = vadd.f32 0.0, %v3230
      %v3232 = vpop.f32.mrf.mxu0
      %3233 = vdwg.mxu0
      %v3234 = vadd.f32 %v3087, %v3206
      %v3235 = vadd.f32 %v3089, %v3208
      %v3236 = vadd.f32 %v3092, %v3211
      %v3237 = vadd.f32 %v3094, %v3213
      %v3238 = vadd.f32 %v3097, %v3216
      %v3239 = vadd.f32 %v3099, %v3218
      %v3240 = vadd.f32 %v3102, %v3221
      %v3241 = vadd.f32 %v3104, %v3223
      %v3242 = vadd.f32 %v3107, %v3226
      %v3243 = vadd.f32 %v3109, %v3228
      %v3244 = vadd.f32 %v3112, %v3231
      %v3245 = vld [vmem:[#allocation2 + $0x112] sm:$0xff]
      %v3246 = vld [vmem:[#allocation2 + $0x11a] sm:$0xff]
      %v3247 = vld [vmem:[#allocation2 + $0x122] sm:$0xff]
      %v3248 = vld [vmem:[#allocation2 + $0x12a] sm:$0xff]
      %v3249 = vld [vmem:[#allocation2 + $0x132] sm:$0xff]
      %v3250 = vld [vmem:[#allocation2 + $0x13a] sm:$0xff]
      %v3251 = vld [vmem:[#allocation2 + $0x142] sm:$0xff]
      %v3252 = vld [vmem:[#allocation2 + $0x14a] sm:$0xff]
      %v3253 = vld [vmem:[#allocation2 + $0x152] sm:$0xff]
      %v3254 = vld [vmem:[#allocation2 + $0x15a] sm:$0xff]
      %v3255 = vld [vmem:[#allocation2 + $0x162] sm:$0x3f]
      %v3256 = vpack.c.bf16 %v3246, %v3245
      %v3257 = vpack.c.bf16 %v3248, %v3247
      %v3258 = vpack.c.bf16 %v3250, %v3249
      %v3259 = vpack.c.bf16 %v3252, %v3251
      %v3260 = vpack.c.bf16 %v3254, %v3253
      %v3261 = vpack.c.bf16 %v3255, %v3255
      %v3262 = vld [vmem:[%s1131] sm:$0xf]
      %v3263 = vld [vmem:[%s1131 + $0x4] sm:$0xf]
      %v3264 = vld [vmem:[%s1131 + $0x8] sm:$0xf]
      %v3265 = vld [vmem:[%s1131 + $0xc] sm:$0xf]
      %v3266 = vld [vmem:[%s1131 + $0x10] sm:$0xf]
      %v3267 = vld [vmem:[%s1131 + $0x14] sm:$0xf]
      %v3268 = vld [vmem:[%s1131 + $0x18] sm:$0xf]
      %v3269 = vld [vmem:[%s1131 + $0x1c] sm:$0xf]
      %v3270 = vld [vmem:[%s1131 + $0x20] sm:$0xf]
      %v3271 = vld [vmem:[%s1131 + $0x24] sm:$0xf]
      %v3272 = vld [vmem:[%s1131 + $0x28] sm:$0xf]
      %v3273 = vld [vmem:[%s1131 + $0x2c] sm:$0xf]
      %v3274 = vld [vmem:[%s1131 + $0x30] sm:$0xf]
      %v3275 = vld [vmem:[%s1131 + $0x34] sm:$0xf]
      %v3276 = vld [vmem:[%s1131 + $0x38] sm:$0xf]
      %v3277 = vld [vmem:[%s1131 + $0x3c] sm:$0xf]
      %v3294 = vunpack.c.l.b16 %v3262
      %v3295 = vunpack.c.l.b16 %v3263
      %v3296 = vunpack.c.l.b16 %v3264
      %v3297 = vunpack.c.l.b16 %v3265
      %v3298 = vunpack.c.l.b16 %v3266
      %v3299 = vunpack.c.l.b16 %v3267
      %v3300 = vunpack.c.l.b16 %v3268
      %v3301 = vunpack.c.l.b16 %v3269
      %v3302 = vunpack.c.l.b16 %v3270
      %v3303 = vunpack.c.l.b16 %v3271
      %v3304 = vunpack.c.l.b16 %v3272
      %v3305 = vunpack.c.l.b16 %v3273
      %v3306 = vunpack.c.l.b16 %v3274
      %v3307 = vunpack.c.l.b16 %v3275
      %v3308 = vunpack.c.l.b16 %v3276
      %v3309 = vunpack.c.l.b16 %v3277
      %v3310 = vpack.c.b16 %v3295, %v3294
      %v3311 = vpack.c.b16 %v3297, %v3296
      %v3312 = vpack.c.b16 %v3299, %v3298
      %v3313 = vpack.c.b16 %v3301, %v3300
      %v3314 = vpack.c.b16 %v3303, %v3302
      %v3315 = vpack.c.b16 %v3305, %v3304
      %v3316 = vpack.c.b16 %v3307, %v3306
      %v3317 = vpack.c.b16 %v3309, %v3308
      %3326 = vmatpush.bf16.msra.mxu0 %v3317
      %3327 = vmatpush.bf16.msra.mxu0 %v3316
      %3328 = vmatpush.bf16.msra.mxu0 %v3315
      %3329 = vmatpush.bf16.msra.mxu0 %v3314
      %3330 = vmatpush.bf16.msra.mxu0 %v3313
      %3331 = vmatpush.bf16.msra.mxu0 %v3312
      %3332 = vmatpush.bf16.msra.mxu0 %v3311
      %3333 = vmatpush.bf16.msra.mxu0 %v3310
      %3334 = vmatmul.bf16.gmra.mxu0 %v3256
      %v3335 = vpop.f32.mrf.mxu0
      %v3336 = vadd.f32 0.0, %v3335
      %v3337 = vpop.f32.mrf.mxu0
      %v3338 = vadd.f32 0.0, %v3337
      %3339 = vmatmul.bf16.gmra.mxu0 %v3257
      %v3340 = vpop.f32.mrf.mxu0
      %v3341 = vadd.f32 0.0, %v3340
      %v3342 = vpop.f32.mrf.mxu0
      %v3343 = vadd.f32 0.0, %v3342
      %3344 = vmatmul.bf16.gmra.mxu0 %v3258
      %v3345 = vpop.f32.mrf.mxu0
      %v3346 = vadd.f32 0.0, %v3345
      %v3347 = vpop.f32.mrf.mxu0
      %v3348 = vadd.f32 0.0, %v3347
      %3349 = vmatmul.bf16.gmra.mxu0 %v3259
      %v3350 = vpop.f32.mrf.mxu0
      %v3351 = vadd.f32 0.0, %v3350
      %v3352 = vpop.f32.mrf.mxu0
      %v3353 = vadd.f32 0.0, %v3352
      %3354 = vmatmul.bf16.gmra.mxu0 %v3260
      %v3355 = vpop.f32.mrf.mxu0
      %v3356 = vadd.f32 0.0, %v3355
      %v3357 = vpop.f32.mrf.mxu0
      %v3358 = vadd.f32 0.0, %v3357
      %3359 = vmatmul.bf16.gmra.mxu0 %v3261
      %v3360 = vpop.f32.mrf.mxu0
      %v3361 = vadd.f32 0.0, %v3360
      %v3362 = vpop.f32.mrf.mxu0
      %3363 = vdwg.mxu0
      %v3364 = vadd.f32 %v3234, %v3336
      %v3365 = vadd.f32 %v3235, %v3338
      %v3366 = vadd.f32 %v3236, %v3341
      %v3367 = vadd.f32 %v3237, %v3343
      %v3368 = vadd.f32 %v3238, %v3346
      %v3369 = vadd.f32 %v3239, %v3348
      %v3370 = vadd.f32 %v3240, %v3351
      %v3371 = vadd.f32 %v3241, %v3353
      %v3372 = vadd.f32 %v3242, %v3356
      %v3373 = vadd.f32 %v3243, %v3358
      %v3374 = vadd.f32 %v3244, %v3361
      %v3375 = vld [vmem:[#allocation2 + $0x113] sm:$0xff]
      %v3376 = vld [vmem:[#allocation2 + $0x11b] sm:$0xff]
      %v3377 = vld [vmem:[#allocation2 + $0x123] sm:$0xff]
      %v3378 = vld [vmem:[#allocation2 + $0x12b] sm:$0xff]
      %v3379 = vld [vmem:[#allocation2 + $0x133] sm:$0xff]
      %v3380 = vld [vmem:[#allocation2 + $0x13b] sm:$0xff]
      %v3381 = vld [vmem:[#allocation2 + $0x143] sm:$0xff]
      %v3382 = vld [vmem:[#allocation2 + $0x14b] sm:$0xff]
      %v3383 = vld [vmem:[#allocation2 + $0x153] sm:$0xff]
      %v3384 = vld [vmem:[#allocation2 + $0x15b] sm:$0xff]
      %v3385 = vld [vmem:[#allocation2 + $0x163] sm:$0x3f]
      %v3386 = vpack.c.bf16 %v3376, %v3375
      %v3387 = vpack.c.bf16 %v3378, %v3377
      %v3388 = vpack.c.bf16 %v3380, %v3379
      %v3389 = vpack.c.bf16 %v3382, %v3381
      %v3390 = vpack.c.bf16 %v3384, %v3383
      %v3391 = vpack.c.bf16 %v3385, %v3385
      %v3392 = vld [vmem:[%s1365] sm:$0xf]
      %v3393 = vld [vmem:[%s1365 + $0x4] sm:$0xf]
      %v3394 = vld [vmem:[%s1365 + $0x8] sm:$0xf]
      %v3395 = vld [vmem:[%s1365 + $0xc] sm:$0xf]
      %v3396 = vld [vmem:[%s1365 + $0x10] sm:$0xf]
      %v3397 = vld [vmem:[%s1365 + $0x14] sm:$0xf]
      %v3398 = vld [vmem:[%s1365 + $0x18] sm:$0xf]
      %v3399 = vld [vmem:[%s1365 + $0x1c] sm:$0xf]
      %v3400 = vld [vmem:[%s1365 + $0x20] sm:$0xf]
      %v3401 = vld [vmem:[%s1365 + $0x24] sm:$0xf]
      %v3402 = vld [vmem:[%s1365 + $0x28] sm:$0xf]
      %v3403 = vld [vmem:[%s1365 + $0x2c] sm:$0xf]
      %v3404 = vld [vmem:[%s1365 + $0x30] sm:$0xf]
      %v3405 = vld [vmem:[%s1365 + $0x34] sm:$0xf]
      %v3406 = vld [vmem:[%s1365 + $0x38] sm:$0xf]
      %v3407 = vld [vmem:[%s1365 + $0x3c] sm:$0xf]
      %v3424 = vunpack.c.l.b16 %v3392
      %v3425 = vunpack.c.l.b16 %v3393
      %v3426 = vunpack.c.l.b16 %v3394
      %v3427 = vunpack.c.l.b16 %v3395
      %v3428 = vunpack.c.l.b16 %v3396
      %v3429 = vunpack.c.l.b16 %v3397
      %v3430 = vunpack.c.l.b16 %v3398
      %v3431 = vunpack.c.l.b16 %v3399
      %v3432 = vunpack.c.l.b16 %v3400
      %v3433 = vunpack.c.l.b16 %v3401
      %v3434 = vunpack.c.l.b16 %v3402
      %v3435 = vunpack.c.l.b16 %v3403
      %v3436 = vunpack.c.l.b16 %v3404
      %v3437 = vunpack.c.l.b16 %v3405
      %v3438 = vunpack.c.l.b16 %v3406
      %v3439 = vunpack.c.l.b16 %v3407
      %v3440 = vpack.c.b16 %v3425, %v3424
      %v3441 = vpack.c.b16 %v3427, %v3426
      %v3442 = vpack.c.b16 %v3429, %v3428
      %v3443 = vpack.c.b16 %v3431, %v3430
      %v3444 = vpack.c.b16 %v3433, %v3432
      %v3445 = vpack.c.b16 %v3435, %v3434
      %v3446 = vpack.c.b16 %v3437, %v3436
      %v3447 = vpack.c.b16 %v3439, %v3438
      %3456 = vmatpush.bf16.msra.mxu0 %v3447
      %3457 = vmatpush.bf16.msra.mxu0 %v3446
      %3458 = vmatpush.bf16.msra.mxu0 %v3445
      %3459 = vmatpush.bf16.msra.mxu0 %v3444
      %3460 = vmatpush.bf16.msra.mxu0 %v3443
      %3461 = vmatpush.bf16.msra.mxu0 %v3442
      %3462 = vmatpush.bf16.msra.mxu0 %v3441
      %3463 = vmatpush.bf16.msra.mxu0 %v3440
      %3464 = vmatmul.bf16.gmra.mxu0 %v3386
      %v3465 = vpop.f32.mrf.mxu0
      %v3466 = vadd.f32 0.0, %v3465
      %v3467 = vpop.f32.mrf.mxu0
      %v3468 = vadd.f32 0.0, %v3467
      %3469 = vmatmul.bf16.gmra.mxu0 %v3387
      %v3470 = vpop.f32.mrf.mxu0
      %v3471 = vadd.f32 0.0, %v3470
      %v3472 = vpop.f32.mrf.mxu0
      %v3473 = vadd.f32 0.0, %v3472
      %3474 = vmatmul.bf16.gmra.mxu0 %v3388
      %v3475 = vpop.f32.mrf.mxu0
      %v3476 = vadd.f32 0.0, %v3475
      %v3477 = vpop.f32.mrf.mxu0
      %v3478 = vadd.f32 0.0, %v3477
      %3479 = vmatmul.bf16.gmra.mxu0 %v3389
      %v3480 = vpop.f32.mrf.mxu0
      %v3481 = vadd.f32 0.0, %v3480
      %v3482 = vpop.f32.mrf.mxu0
      %v3483 = vadd.f32 0.0, %v3482
      %3484 = vmatmul.bf16.gmra.mxu0 %v3390
      %v3485 = vpop.f32.mrf.mxu0
      %v3486 = vadd.f32 0.0, %v3485
      %v3487 = vpop.f32.mrf.mxu0
      %v3488 = vadd.f32 0.0, %v3487
      %3489 = vmatmul.bf16.gmra.mxu0 %v3391
      %v3490 = vpop.f32.mrf.mxu0
      %v3491 = vadd.f32 0.0, %v3490
      %v3492 = vpop.f32.mrf.mxu0
      %3493 = vdwg.mxu0
      %v3494 = vadd.f32 %v3364, %v3466
      %v3495 = vadd.f32 %v3365, %v3468
      %v3496 = vadd.f32 %v3366, %v3471
      %v3497 = vadd.f32 %v3367, %v3473
      %v3498 = vadd.f32 %v3368, %v3476
      %v3499 = vadd.f32 %v3369, %v3478
      %v3500 = vadd.f32 %v3370, %v3481
      %v3501 = vadd.f32 %v3371, %v3483
      %v3502 = vadd.f32 %v3372, %v3486
      %v3503 = vadd.f32 %v3373, %v3488
      %v3504 = vadd.f32 %v3374, %v3491
      %v3505 = vld [vmem:[#allocation2 + $0x114] sm:$0xff]
      %v3506 = vld [vmem:[#allocation2 + $0x11c] sm:$0xff]
      %v3507 = vld [vmem:[#allocation2 + $0x124] sm:$0xff]
      %v3508 = vld [vmem:[#allocation2 + $0x12c] sm:$0xff]
      %v3509 = vld [vmem:[#allocation2 + $0x134] sm:$0xff]
      %v3510 = vld [vmem:[#allocation2 + $0x13c] sm:$0xff]
      %v3511 = vld [vmem:[#allocation2 + $0x144] sm:$0xff]
      %v3512 = vld [vmem:[#allocation2 + $0x14c] sm:$0xff]
      %v3513 = vld [vmem:[#allocation2 + $0x154] sm:$0xff]
      %v3514 = vld [vmem:[#allocation2 + $0x15c] sm:$0xff]
      %v3515 = vld [vmem:[#allocation2 + $0x164] sm:$0x3f]
      %v3516 = vpack.c.bf16 %v3506, %v3505
      %v3517 = vpack.c.bf16 %v3508, %v3507
      %v3518 = vpack.c.bf16 %v3510, %v3509
      %v3519 = vpack.c.bf16 %v3512, %v3511
      %v3520 = vpack.c.bf16 %v3514, %v3513
      %v3521 = vpack.c.bf16 %v3515, %v3515
      %v3522 = vld [vmem:[%s1599] sm:$0xf]
      %v3523 = vld [vmem:[%s1599 + $0x4] sm:$0xf]
      %v3524 = vld [vmem:[%s1599 + $0x8] sm:$0xf]
      %v3525 = vld [vmem:[%s1599 + $0xc] sm:$0xf]
      %v3526 = vld [vmem:[%s1599 + $0x10] sm:$0xf]
      %v3527 = vld [vmem:[%s1599 + $0x14] sm:$0xf]
      %v3528 = vld [vmem:[%s1599 + $0x18] sm:$0xf]
      %v3529 = vld [vmem:[%s1599 + $0x1c] sm:$0xf]
      %v3530 = vld [vmem:[%s1599 + $0x20] sm:$0xf]
      %v3531 = vld [vmem:[%s1599 + $0x24] sm:$0xf]
      %v3532 = vld [vmem:[%s1599 + $0x28] sm:$0xf]
      %v3533 = vld [vmem:[%s1599 + $0x2c] sm:$0xf]
      %v3534 = vld [vmem:[%s1599 + $0x30] sm:$0xf]
      %v3535 = vld [vmem:[%s1599 + $0x34] sm:$0xf]
      %v3536 = vld [vmem:[%s1599 + $0x38] sm:$0xf]
      %v3537 = vld [vmem:[%s1599 + $0x3c] sm:$0xf]
      %v3554 = vunpack.c.l.b16 %v3522
      %v3555 = vunpack.c.l.b16 %v3523
      %v3556 = vunpack.c.l.b16 %v3524
      %v3557 = vunpack.c.l.b16 %v3525
      %v3558 = vunpack.c.l.b16 %v3526
      %v3559 = vunpack.c.l.b16 %v3527
      %v3560 = vunpack.c.l.b16 %v3528
      %v3561 = vunpack.c.l.b16 %v3529
      %v3562 = vunpack.c.l.b16 %v3530
      %v3563 = vunpack.c.l.b16 %v3531
      %v3564 = vunpack.c.l.b16 %v3532
      %v3565 = vunpack.c.l.b16 %v3533
      %v3566 = vunpack.c.l.b16 %v3534
      %v3567 = vunpack.c.l.b16 %v3535
      %v3568 = vunpack.c.l.b16 %v3536
      %v3569 = vunpack.c.l.b16 %v3537
      %v3570 = vpack.c.b16 %v3555, %v3554
      %v3571 = vpack.c.b16 %v3557, %v3556
      %v3572 = vpack.c.b16 %v3559, %v3558
      %v3573 = vpack.c.b16 %v3561, %v3560
      %v3574 = vpack.c.b16 %v3563, %v3562
      %v3575 = vpack.c.b16 %v3565, %v3564
      %v3576 = vpack.c.b16 %v3567, %v3566
      %v3577 = vpack.c.b16 %v3569, %v3568
      %3586 = vmatpush.bf16.msra.mxu0 %v3577
      %3587 = vmatpush.bf16.msra.mxu0 %v3576
      %3588 = vmatpush.bf16.msra.mxu0 %v3575
      %3589 = vmatpush.bf16.msra.mxu0 %v3574
      %3590 = vmatpush.bf16.msra.mxu0 %v3573
      %3591 = vmatpush.bf16.msra.mxu0 %v3572
      %3592 = vmatpush.bf16.msra.mxu0 %v3571
      %3593 = vmatpush.bf16.msra.mxu0 %v3570
      %3594 = vmatmul.bf16.gmra.mxu0 %v3516
      %v3595 = vpop.f32.mrf.mxu0
      %v3596 = vadd.f32 0.0, %v3595
      %v3597 = vpop.f32.mrf.mxu0
      %v3598 = vadd.f32 0.0, %v3597
      %3599 = vmatmul.bf16.gmra.mxu0 %v3517
      %v3600 = vpop.f32.mrf.mxu0
      %v3601 = vadd.f32 0.0, %v3600
      %v3602 = vpop.f32.mrf.mxu0
      %v3603 = vadd.f32 0.0, %v3602
      %3604 = vmatmul.bf16.gmra.mxu0 %v3518
      %v3605 = vpop.f32.mrf.mxu0
      %v3606 = vadd.f32 0.0, %v3605
      %v3607 = vpop.f32.mrf.mxu0
      %v3608 = vadd.f32 0.0, %v3607
      %3609 = vmatmul.bf16.gmra.mxu0 %v3519
      %v3610 = vpop.f32.mrf.mxu0
      %v3611 = vadd.f32 0.0, %v3610
      %v3612 = vpop.f32.mrf.mxu0
      %v3613 = vadd.f32 0.0, %v3612
      %3614 = vmatmul.bf16.gmra.mxu0 %v3520
      %v3615 = vpop.f32.mrf.mxu0
      %v3616 = vadd.f32 0.0, %v3615
      %v3617 = vpop.f32.mrf.mxu0
      %v3618 = vadd.f32 0.0, %v3617
      %3619 = vmatmul.bf16.gmra.mxu0 %v3521
      %v3620 = vpop.f32.mrf.mxu0
      %v3621 = vadd.f32 0.0, %v3620
      %v3622 = vpop.f32.mrf.mxu0
      %3623 = vdwg.mxu0
      %v3624 = vadd.f32 %v3494, %v3596
      %v3625 = vadd.f32 %v3495, %v3598
      %v3626 = vadd.f32 %v3496, %v3601
      %v3627 = vadd.f32 %v3497, %v3603
      %v3628 = vadd.f32 %v3498, %v3606
      %v3629 = vadd.f32 %v3499, %v3608
      %v3630 = vadd.f32 %v3500, %v3611
      %v3631 = vadd.f32 %v3501, %v3613
      %v3632 = vadd.f32 %v3502, %v3616
      %v3633 = vadd.f32 %v3503, %v3618
      %v3634 = vadd.f32 %v3504, %v3621
      %v3635 = vld [vmem:[#allocation2 + $0x124] sm:$0xff]
      %v3636 = vld [vmem:[#allocation2 + $0x12c] sm:$0xff]
      %v3637 = vld [vmem:[#allocation2 + $0x134] sm:$0xff]
      %v3638 = vld [vmem:[#allocation2 + $0x13c] sm:$0xff]
      %v3639 = vld [vmem:[#allocation2 + $0x144] sm:$0xff]
      %v3640 = vld [vmem:[#allocation2 + $0x14c] sm:$0xff]
      %v3641 = vld [vmem:[#allocation2 + $0x154] sm:$0xff]
      %v3642 = vld [vmem:[#allocation2 + $0x15c] sm:$0xff]
      %v3643 = vld [vmem:[#allocation2 + $0x164] sm:$0xff]
      %v3644 = vld [vmem:[#allocation2 + $0x16c] sm:$0xff]
      %v3645 = vld [vmem:[#allocation2 + $0x174] sm:$0x3f]
      %v3646 = vpack.c.bf16 %v3636, %v3635
      %v3647 = vpack.c.bf16 %v3638, %v3637
      %v3648 = vpack.c.bf16 %v3640, %v3639
      %v3649 = vpack.c.bf16 %v3642, %v3641
      %v3650 = vpack.c.bf16 %v3644, %v3643
      %v3651 = vpack.c.bf16 %v3645, %v3645
      %v3652 = vld [vmem:[%s1833] sm:$0xf]
      %v3653 = vld [vmem:[%s1833 + $0x4] sm:$0xf]
      %v3654 = vld [vmem:[%s1833 + $0x8] sm:$0xf]
      %v3655 = vld [vmem:[%s1833 + $0xc] sm:$0xf]
      %v3656 = vld [vmem:[%s1833 + $0x10] sm:$0xf]
      %v3657 = vld [vmem:[%s1833 + $0x14] sm:$0xf]
      %v3658 = vld [vmem:[%s1833 + $0x18] sm:$0xf]
      %v3659 = vld [vmem:[%s1833 + $0x1c] sm:$0xf]
      %v3660 = vld [vmem:[%s1833 + $0x20] sm:$0xf]
      %v3661 = vld [vmem:[%s1833 + $0x24] sm:$0xf]
      %v3662 = vld [vmem:[%s1833 + $0x28] sm:$0xf]
      %v3663 = vld [vmem:[%s1833 + $0x2c] sm:$0xf]
      %v3664 = vld [vmem:[%s1833 + $0x30] sm:$0xf]
      %v3665 = vld [vmem:[%s1833 + $0x34] sm:$0xf]
      %v3666 = vld [vmem:[%s1833 + $0x38] sm:$0xf]
      %v3667 = vld [vmem:[%s1833 + $0x3c] sm:$0xf]
      %v3684 = vunpack.c.l.b16 %v3652
      %v3685 = vunpack.c.l.b16 %v3653
      %v3686 = vunpack.c.l.b16 %v3654
      %v3687 = vunpack.c.l.b16 %v3655
      %v3688 = vunpack.c.l.b16 %v3656
      %v3689 = vunpack.c.l.b16 %v3657
      %v3690 = vunpack.c.l.b16 %v3658
      %v3691 = vunpack.c.l.b16 %v3659
      %v3692 = vunpack.c.l.b16 %v3660
      %v3693 = vunpack.c.l.b16 %v3661
      %v3694 = vunpack.c.l.b16 %v3662
      %v3695 = vunpack.c.l.b16 %v3663
      %v3696 = vunpack.c.l.b16 %v3664
      %v3697 = vunpack.c.l.b16 %v3665
      %v3698 = vunpack.c.l.b16 %v3666
      %v3699 = vunpack.c.l.b16 %v3667
      %v3700 = vpack.c.b16 %v3685, %v3684
      %v3701 = vpack.c.b16 %v3687, %v3686
      %v3702 = vpack.c.b16 %v3689, %v3688
      %v3703 = vpack.c.b16 %v3691, %v3690
      %v3704 = vpack.c.b16 %v3693, %v3692
      %v3705 = vpack.c.b16 %v3695, %v3694
      %v3706 = vpack.c.b16 %v3697, %v3696
      %v3707 = vpack.c.b16 %v3699, %v3698
      %3716 = vmatpush.bf16.msra.mxu0 %v3707
      %3717 = vmatpush.bf16.msra.mxu0 %v3706
      %3718 = vmatpush.bf16.msra.mxu0 %v3705
      %3719 = vmatpush.bf16.msra.mxu0 %v3704
      %3720 = vmatpush.bf16.msra.mxu0 %v3703
      %3721 = vmatpush.bf16.msra.mxu0 %v3702
      %3722 = vmatpush.bf16.msra.mxu0 %v3701
      %3723 = vmatpush.bf16.msra.mxu0 %v3700
      %3724 = vmatmul.bf16.gmra.mxu0 %v3646
      %v3725 = vpop.f32.mrf.mxu0
      %v3726 = vadd.f32 0.0, %v3725
      %v3727 = vpop.f32.mrf.mxu0
      %v3728 = vadd.f32 0.0, %v3727
      %3729 = vmatmul.bf16.gmra.mxu0 %v3647
      %v3730 = vpop.f32.mrf.mxu0
      %v3731 = vadd.f32 0.0, %v3730
      %v3732 = vpop.f32.mrf.mxu0
      %v3733 = vadd.f32 0.0, %v3732
      %3734 = vmatmul.bf16.gmra.mxu0 %v3648
      %v3735 = vpop.f32.mrf.mxu0
      %v3736 = vadd.f32 0.0, %v3735
      %v3737 = vpop.f32.mrf.mxu0
      %v3738 = vadd.f32 0.0, %v3737
      %3739 = vmatmul.bf16.gmra.mxu0 %v3649
      %v3740 = vpop.f32.mrf.mxu0
      %v3741 = vadd.f32 0.0, %v3740
      %v3742 = vpop.f32.mrf.mxu0
      %v3743 = vadd.f32 0.0, %v3742
      %3744 = vmatmul.bf16.gmra.mxu0 %v3650
      %v3745 = vpop.f32.mrf.mxu0
      %v3746 = vadd.f32 0.0, %v3745
      %v3747 = vpop.f32.mrf.mxu0
      %v3748 = vadd.f32 0.0, %v3747
      %3749 = vmatmul.bf16.gmra.mxu0 %v3651
      %v3750 = vpop.f32.mrf.mxu0
      %v3751 = vadd.f32 0.0, %v3750
      %v3752 = vpop.f32.mrf.mxu0
      %3753 = vdwg.mxu0
      %v3754 = vadd.f32 %v3624, %v3726
      %v3755 = vadd.f32 %v3625, %v3728
      %v3756 = vadd.f32 %v3626, %v3731
      %v3757 = vadd.f32 %v3627, %v3733
      %v3758 = vadd.f32 %v3628, %v3736
      %v3759 = vadd.f32 %v3629, %v3738
      %v3760 = vadd.f32 %v3630, %v3741
      %v3761 = vadd.f32 %v3631, %v3743
      %v3762 = vadd.f32 %v3632, %v3746
      %v3763 = vadd.f32 %v3633, %v3748
      %v3764 = vadd.f32 %v3634, %v3751
      %v3765 = vld [vmem:[#allocation2 + $0x125] sm:$0xff]
      %v3766 = vld [vmem:[#allocation2 + $0x12d] sm:$0xff]
      %v3767 = vld [vmem:[#allocation2 + $0x135] sm:$0xff]
      %v3768 = vld [vmem:[#allocation2 + $0x13d] sm:$0xff]
      %v3769 = vld [vmem:[#allocation2 + $0x145] sm:$0xff]
      %v3770 = vld [vmem:[#allocation2 + $0x14d] sm:$0xff]
      %v3771 = vld [vmem:[#allocation2 + $0x155] sm:$0xff]
      %v3772 = vld [vmem:[#allocation2 + $0x15d] sm:$0xff]
      %v3773 = vld [vmem:[#allocation2 + $0x165] sm:$0xff]
      %v3774 = vld [vmem:[#allocation2 + $0x16d] sm:$0xff]
      %v3775 = vld [vmem:[#allocation2 + $0x175] sm:$0x3f]
      %v3776 = vpack.c.bf16 %v3766, %v3765
      %v3777 = vpack.c.bf16 %v3768, %v3767
      %v3778 = vpack.c.bf16 %v3770, %v3769
      %v3779 = vpack.c.bf16 %v3772, %v3771
      %v3780 = vpack.c.bf16 %v3774, %v3773
      %v3781 = vpack.c.bf16 %v3775, %v3775
      %v3782 = vld [vmem:[%s2067] sm:$0xf]
      %v3783 = vld [vmem:[%s2067 + $0x4] sm:$0xf]
      %v3784 = vld [vmem:[%s2067 + $0x8] sm:$0xf]
      %v3785 = vld [vmem:[%s2067 + $0xc] sm:$0xf]
      %v3786 = vld [vmem:[%s2067 + $0x10] sm:$0xf]
      %v3787 = vld [vmem:[%s2067 + $0x14] sm:$0xf]
      %v3788 = vld [vmem:[%s2067 + $0x18] sm:$0xf]
      %v3789 = vld [vmem:[%s2067 + $0x1c] sm:$0xf]
      %v3790 = vld [vmem:[%s2067 + $0x20] sm:$0xf]
      %v3791 = vld [vmem:[%s2067 + $0x24] sm:$0xf]
      %v3792 = vld [vmem:[%s2067 + $0x28] sm:$0xf]
      %v3793 = vld [vmem:[%s2067 + $0x2c] sm:$0xf]
      %v3794 = vld [vmem:[%s2067 + $0x30] sm:$0xf]
      %v3795 = vld [vmem:[%s2067 + $0x34] sm:$0xf]
      %v3796 = vld [vmem:[%s2067 + $0x38] sm:$0xf]
      %v3797 = vld [vmem:[%s2067 + $0x3c] sm:$0xf]
      %v3814 = vunpack.c.l.b16 %v3782
      %v3815 = vunpack.c.l.b16 %v3783
      %v3816 = vunpack.c.l.b16 %v3784
      %v3817 = vunpack.c.l.b16 %v3785
      %v3818 = vunpack.c.l.b16 %v3786
      %v3819 = vunpack.c.l.b16 %v3787
      %v3820 = vunpack.c.l.b16 %v3788
      %v3821 = vunpack.c.l.b16 %v3789
      %v3822 = vunpack.c.l.b16 %v3790
      %v3823 = vunpack.c.l.b16 %v3791
      %v3824 = vunpack.c.l.b16 %v3792
      %v3825 = vunpack.c.l.b16 %v3793
      %v3826 = vunpack.c.l.b16 %v3794
      %v3827 = vunpack.c.l.b16 %v3795
      %v3828 = vunpack.c.l.b16 %v3796
      %v3829 = vunpack.c.l.b16 %v3797
      %v3830 = vpack.c.b16 %v3815, %v3814
      %v3831 = vpack.c.b16 %v3817, %v3816
      %v3832 = vpack.c.b16 %v3819, %v3818
      %v3833 = vpack.c.b16 %v3821, %v3820
      %v3834 = vpack.c.b16 %v3823, %v3822
      %v3835 = vpack.c.b16 %v3825, %v3824
      %v3836 = vpack.c.b16 %v3827, %v3826
      %v3837 = vpack.c.b16 %v3829, %v3828
      %3846 = vmatpush.bf16.msra.mxu0 %v3837
      %3847 = vmatpush.bf16.msra.mxu0 %v3836
      %3848 = vmatpush.bf16.msra.mxu0 %v3835
      %3849 = vmatpush.bf16.msra.mxu0 %v3834
      %3850 = vmatpush.bf16.msra.mxu0 %v3833
      %3851 = vmatpush.bf16.msra.mxu0 %v3832
      %3852 = vmatpush.bf16.msra.mxu0 %v3831
      %3853 = vmatpush.bf16.msra.mxu0 %v3830
      %3854 = vmatmul.bf16.gmra.mxu0 %v3776
      %v3855 = vpop.f32.mrf.mxu0
      %v3856 = vadd.f32 0.0, %v3855
      %v3857 = vpop.f32.mrf.mxu0
      %v3858 = vadd.f32 0.0, %v3857
      %3859 = vmatmul.bf16.gmra.mxu0 %v3777
      %v3860 = vpop.f32.mrf.mxu0
      %v3861 = vadd.f32 0.0, %v3860
      %v3862 = vpop.f32.mrf.mxu0
      %v3863 = vadd.f32 0.0, %v3862
      %3864 = vmatmul.bf16.gmra.mxu0 %v3778
      %v3865 = vpop.f32.mrf.mxu0
      %v3866 = vadd.f32 0.0, %v3865
      %v3867 = vpop.f32.mrf.mxu0
      %v3868 = vadd.f32 0.0, %v3867
      %3869 = vmatmul.bf16.gmra.mxu0 %v3779
      %v3870 = vpop.f32.mrf.mxu0
      %v3871 = vadd.f32 0.0, %v3870
      %v3872 = vpop.f32.mrf.mxu0
      %v3873 = vadd.f32 0.0, %v3872
      %3874 = vmatmul.bf16.gmra.mxu0 %v3780
      %v3875 = vpop.f32.mrf.mxu0
      %v3876 = vadd.f32 0.0, %v3875
      %v3877 = vpop.f32.mrf.mxu0
      %v3878 = vadd.f32 0.0, %v3877
      %3879 = vmatmul.bf16.gmra.mxu0 %v3781
      %v3880 = vpop.f32.mrf.mxu0
      %v3881 = vadd.f32 0.0, %v3880
      %v3882 = vpop.f32.mrf.mxu0
      %3883 = vdwg.mxu0
      %v3884 = vadd.f32 %v3754, %v3856
      %v3885 = vadd.f32 %v3755, %v3858
      %v3886 = vadd.f32 %v3756, %v3861
      %v3887 = vadd.f32 %v3757, %v3863
      %v3888 = vadd.f32 %v3758, %v3866
      %v3889 = vadd.f32 %v3759, %v3868
      %v3890 = vadd.f32 %v3760, %v3871
      %v3891 = vadd.f32 %v3761, %v3873
      %v3892 = vadd.f32 %v3762, %v3876
      %v3893 = vadd.f32 %v3763, %v3878
      %v3894 = vadd.f32 %v3764, %v3881
      %v3895 = vld [vmem:[#allocation2 + $0x126] sm:$0xff]
      %v3896 = vld [vmem:[#allocation2 + $0x12e] sm:$0xff]
      %v3897 = vld [vmem:[#allocation2 + $0x136] sm:$0xff]
      %v3898 = vld [vmem:[#allocation2 + $0x13e] sm:$0xff]
      %v3899 = vld [vmem:[#allocation2 + $0x146] sm:$0xff]
      %v3900 = vld [vmem:[#allocation2 + $0x14e] sm:$0xff]
      %v3901 = vld [vmem:[#allocation2 + $0x156] sm:$0xff]
      %v3902 = vld [vmem:[#allocation2 + $0x15e] sm:$0xff]
      %v3903 = vld [vmem:[#allocation2 + $0x166] sm:$0xff]
      %v3904 = vld [vmem:[#allocation2 + $0x16e] sm:$0xff]
      %v3905 = vld [vmem:[#allocation2 + $0x176] sm:$0x3f]
      %v3906 = vpack.c.bf16 %v3896, %v3895
      %v3907 = vpack.c.bf16 %v3898, %v3897
      %v3908 = vpack.c.bf16 %v3900, %v3899
      %v3909 = vpack.c.bf16 %v3902, %v3901
      %v3910 = vpack.c.bf16 %v3904, %v3903
      %v3911 = vpack.c.bf16 %v3905, %v3905
      %v3912 = vld [vmem:[%s2301] sm:$0xf]
      %v3913 = vld [vmem:[%s2301 + $0x4] sm:$0xf]
      %v3914 = vld [vmem:[%s2301 + $0x8] sm:$0xf]
      %v3915 = vld [vmem:[%s2301 + $0xc] sm:$0xf]
      %v3916 = vld [vmem:[%s2301 + $0x10] sm:$0xf]
      %v3917 = vld [vmem:[%s2301 + $0x14] sm:$0xf]
      %v3918 = vld [vmem:[%s2301 + $0x18] sm:$0xf]
      %v3919 = vld [vmem:[%s2301 + $0x1c] sm:$0xf]
      %v3920 = vld [vmem:[%s2301 + $0x20] sm:$0xf]
      %v3921 = vld [vmem:[%s2301 + $0x24] sm:$0xf]
      %v3922 = vld [vmem:[%s2301 + $0x28] sm:$0xf]
      %v3923 = vld [vmem:[%s2301 + $0x2c] sm:$0xf]
      %v3924 = vld [vmem:[%s2301 + $0x30] sm:$0xf]
      %v3925 = vld [vmem:[%s2301 + $0x34] sm:$0xf]
      %v3926 = vld [vmem:[%s2301 + $0x38] sm:$0xf]
      %v3927 = vld [vmem:[%s2301 + $0x3c] sm:$0xf]
      %v3944 = vunpack.c.l.b16 %v3912
      %v3945 = vunpack.c.l.b16 %v3913
      %v3946 = vunpack.c.l.b16 %v3914
      %v3947 = vunpack.c.l.b16 %v3915
      %v3948 = vunpack.c.l.b16 %v3916
      %v3949 = vunpack.c.l.b16 %v3917
      %v3950 = vunpack.c.l.b16 %v3918
      %v3951 = vunpack.c.l.b16 %v3919
      %v3952 = vunpack.c.l.b16 %v3920
      %v3953 = vunpack.c.l.b16 %v3921
      %v3954 = vunpack.c.l.b16 %v3922
      %v3955 = vunpack.c.l.b16 %v3923
      %v3956 = vunpack.c.l.b16 %v3924
      %v3957 = vunpack.c.l.b16 %v3925
      %v3958 = vunpack.c.l.b16 %v3926
      %v3959 = vunpack.c.l.b16 %v3927
      %v3960 = vpack.c.b16 %v3945, %v3944
      %v3961 = vpack.c.b16 %v3947, %v3946
      %v3962 = vpack.c.b16 %v3949, %v3948
      %v3963 = vpack.c.b16 %v3951, %v3950
      %v3964 = vpack.c.b16 %v3953, %v3952
      %v3965 = vpack.c.b16 %v3955, %v3954
      %v3966 = vpack.c.b16 %v3957, %v3956
      %v3967 = vpack.c.b16 %v3959, %v3958
      %3976 = vmatpush.bf16.msra.mxu0 %v3967
      %3977 = vmatpush.bf16.msra.mxu0 %v3966
      %3978 = vmatpush.bf16.msra.mxu0 %v3965
      %3979 = vmatpush.bf16.msra.mxu0 %v3964
      %3980 = vmatpush.bf16.msra.mxu0 %v3963
      %3981 = vmatpush.bf16.msra.mxu0 %v3962
      %3982 = vmatpush.bf16.msra.mxu0 %v3961
      %3983 = vmatpush.bf16.msra.mxu0 %v3960
      %3984 = vmatmul.bf16.gmra.mxu0 %v3906
      %v3985 = vpop.f32.mrf.mxu0
      %v3986 = vadd.f32 0.0, %v3985
      %v3987 = vpop.f32.mrf.mxu0
      %v3988 = vadd.f32 0.0, %v3987
      %3989 = vmatmul.bf16.gmra.mxu0 %v3907
      %v3990 = vpop.f32.mrf.mxu0
      %v3991 = vadd.f32 0.0, %v3990
      %v3992 = vpop.f32.mrf.mxu0
      %v3993 = vadd.f32 0.0, %v3992
      %3994 = vmatmul.bf16.gmra.mxu0 %v3908
      %v3995 = vpop.f32.mrf.mxu0
      %v3996 = vadd.f32 0.0, %v3995
      %v3997 = vpop.f32.mrf.mxu0
      %v3998 = vadd.f32 0.0, %v3997
      %3999 = vmatmul.bf16.gmra.mxu0 %v3909
      %v4000 = vpop.f32.mrf.mxu0
      %v4001 = vadd.f32 0.0, %v4000
      %v4002 = vpop.f32.mrf.mxu0
      %v4003 = vadd.f32 0.0, %v4002
      %4004 = vmatmul.bf16.gmra.mxu0 %v3910
      %v4005 = vpop.f32.mrf.mxu0
      %v4006 = vadd.f32 0.0, %v4005
      %v4007 = vpop.f32.mrf.mxu0
      %v4008 = vadd.f32 0.0, %v4007
      %4009 = vmatmul.bf16.gmra.mxu0 %v3911
      %v4010 = vpop.f32.mrf.mxu0
      %v4011 = vadd.f32 0.0, %v4010
      %v4012 = vpop.f32.mrf.mxu0
      %4013 = vdwg.mxu0
      %v4014 = vadd.f32 %v3884, %v3986
      %v4015 = vadd.f32 %v3885, %v3988
      %v4016 = vadd.f32 %v3886, %v3991
      %v4017 = vadd.f32 %v3887, %v3993
      %v4018 = vadd.f32 %v3888, %v3996
      %v4019 = vadd.f32 %v3889, %v3998
      %v4020 = vadd.f32 %v3890, %v4001
      %v4021 = vadd.f32 %v3891, %v4003
      %v4022 = vadd.f32 %v3892, %v4006
      %v4023 = vadd.f32 %v3893, %v4008
      %v4024 = vadd.f32 %v3894, %v4011
      %v4025 = vmul.f32 %v4014, %v2488
      %v4026 = vmul.f32 %v4015, %v2488
      %v4027 = vmul.f32 %v4016, %v2488
      %v4028 = vmul.f32 %v4017, %v2488
      %v4029 = vmul.f32 %v4018, %v2488
      %v4030 = vmul.f32 %v4019, %v2488
      %v4031 = vmul.f32 %v4020, %v2488
      %v4032 = vmul.f32 %v4021, %v2488
      %v4033 = vmul.f32 %v4022, %v2488
      %v4034 = vmul.f32 %v4023, %v2488
      %v4035 = vmul.f32 %v4024, %v2488
      %v4036 = vadd.f32 %v4025, %v2523
      %v4037 = vadd.f32 %v4026, %v2523
      %v4038 = vadd.f32 %v4027, %v2523
      %v4039 = vadd.f32 %v4028, %v2523
      %v4040 = vadd.f32 %v4029, %v2523
      %v4041 = vadd.f32 %v4030, %v2523
      %v4042 = vadd.f32 %v4031, %v2523
      %v4043 = vadd.f32 %v4032, %v2523
      %v4044 = vadd.f32 %v4033, %v2523
      %v4045 = vadd.f32 %v4034, %v2523
      %v4046 = vadd.f32 %v4035, %v2523
      %v4047 = vmax.f32 %v4036, 0.0
      %v4048 = vmax.f32 %v4037, 0.0
      %v4049 = vmax.f32 %v4038, 0.0
      %v4050 = vmax.f32 %v4039, 0.0
      %v4051 = vmax.f32 %v4040, 0.0
      %v4052 = vmax.f32 %v4041, 0.0
      %v4053 = vmax.f32 %v4042, 0.0
      %v4054 = vmax.f32 %v4043, 0.0
      %v4055 = vmax.f32 %v4044, 0.0
      %v4056 = vmax.f32 %v4045, 0.0
      %v4057 = vmax.f32 %v4046, 0.0
      %v4058 = vld [vmem:[%s4 + $0x100] sm:$0xff]
      %v4059 = vld [vmem:[%s4 + $0x108] sm:$0xff]
      %v4060 = vld [vmem:[%s4 + $0x110] sm:$0xff]
      %v4061 = vld [vmem:[%s4 + $0x118] sm:$0xff]
      %v4062 = vld [vmem:[%s4 + $0x120] sm:$0xff]
      %v4063 = vld [vmem:[%s4 + $0x128] sm:$0xff]
      %v4064 = vld [vmem:[%s4 + $0x130] sm:$0xff]
      %v4065 = vld [vmem:[%s4 + $0x138] sm:$0xff]
      %v4066 = vld [vmem:[%s4 + $0x140] sm:$0xff]
      %v4067 = vld [vmem:[%s4 + $0x148] sm:$0xff]
      %v4068 = vld [vmem:[%s4 + $0x150] sm:$0x3f]
      %4070 = vset.pattern.permute.xlu0 0
      %4071 = vperm.xlu0 %4070, %v4058
      %v4072 = vpop.permute.xlu0 %4071
      %4075 = vset.pattern.permute.xlu0 0
      %4076 = vperm.xlu0 %4075, %v4059
      %v4077 = vpop.permute.xlu0 %4076
      %4080 = vset.pattern.permute.xlu0 0
      %4081 = vperm.xlu0 %4080, %v4060
      %v4082 = vpop.permute.xlu0 %4081
      %4085 = vset.pattern.permute.xlu0 0
      %4086 = vperm.xlu0 %4085, %v4061
      %v4087 = vpop.permute.xlu0 %4086
      %4090 = vset.pattern.permute.xlu0 0
      %4091 = vperm.xlu0 %4090, %v4062
      %v4092 = vpop.permute.xlu0 %4091
      %4095 = vset.pattern.permute.xlu0 0
      %4096 = vperm.xlu0 %4095, %v4063
      %v4097 = vpop.permute.xlu0 %4096
      %4100 = vset.pattern.permute.xlu0 0
      %4101 = vperm.xlu0 %4100, %v4064
      %v4102 = vpop.permute.xlu0 %4101
      %4105 = vset.pattern.permute.xlu0 0
      %4106 = vperm.xlu0 %4105, %v4065
      %v4107 = vpop.permute.xlu0 %4106
      %4110 = vset.pattern.permute.xlu0 0
      %4111 = vperm.xlu0 %4110, %v4066
      %v4112 = vpop.permute.xlu0 %4111
      %4115 = vset.pattern.permute.xlu0 0
      %4116 = vperm.xlu0 %4115, %v4067
      %v4117 = vpop.permute.xlu0 %4116
      %4120 = vset.pattern.permute.xlu0 0
      %4121 = vperm.xlu0 %4120, %v4068
      %v4122 = vpop.permute.xlu0 %4121
      %v4124 = vmul.f32 %v4047, %v4072
      %v4125 = vmul.f32 %v4048, %v4077
      %v4126 = vmul.f32 %v4049, %v4082
      %v4127 = vmul.f32 %v4050, %v4087
      %v4128 = vmul.f32 %v4051, %v4092
      %v4129 = vmul.f32 %v4052, %v4097
      %v4130 = vmul.f32 %v4053, %v4102
      %v4131 = vmul.f32 %v4054, %v4107
      %v4132 = vmul.f32 %v4055, %v4112
      %v4133 = vmul.f32 %v4056, %v4117
      %v4134 = vmul.f32 %v4057, %v4122
      %v4135 = vpack.c.bf16 %v4124, %v4124
      %v4136 = vpack.c.bf16 %v4125, %v4125
      %v4137 = vpack.c.bf16 %v4126, %v4126
      %v4138 = vpack.c.bf16 %v4127, %v4127
      %v4139 = vpack.c.bf16 %v4128, %v4128
      %v4140 = vpack.c.bf16 %v4129, %v4129
      %v4141 = vpack.c.bf16 %v4130, %v4130
      %v4142 = vpack.c.bf16 %v4131, %v4131
      %v4143 = vpack.c.bf16 %v4132, %v4132
      %v4144 = vpack.c.bf16 %v4133, %v4133
      %v4145 = vpack.c.bf16 %v4134, %v4134
      %4146 = vst [vmem:[%s289 + $0x80] sm:$0xf] %v4135
      %4147 = vst [vmem:[%s289 + $0x84] sm:$0xf] %v4136
      %4148 = vst [vmem:[%s289 + $0x88] sm:$0xf] %v4137
      %4149 = vst [vmem:[%s289 + $0x8c] sm:$0xf] %v4138
      %4150 = vst [vmem:[%s289 + $0x90] sm:$0xf] %v4139
      %4151 = vst [vmem:[%s289 + $0x94] sm:$0xf] %v4140
      %4152 = vst [vmem:[%s289 + $0x98] sm:$0xf] %v4141
      %4153 = vst [vmem:[%s289 + $0x9c] sm:$0xf] %v4142
      %4154 = vst [vmem:[%s289 + $0xa0] sm:$0xf] %v4143
      %4155 = vst [vmem:[%s289 + $0xa4] sm:$0xf] %v4144
      %4156 = vst [vmem:[%s289 + $0xa8] sm:$0x7] %v4145
      %p4157 = scmp.lt.s32.totalorder %s20, 1
      %s4158 = scalar_select %p4157, %s20, 1
      %p4159 = scmp.lt.s32.totalorder %s21, 0
      %s4160 = scalar_select %p4159, %s21, 0
      %s4161 = smul.addr %s4158, 43
      %s4162 = sadd.s32 %s4160, %s4161
      %s4163 = smul.addr %s4162, 4
      %s4164 = scalar_lea.vmem %s5, %s4163
      // Predicated region
      $region45: #{_lambda_.2} parent=39 // pred_check
        %p4165 = pneg %p173
      $region46: #{_lambda_.2} parent=39 // pred_check_branch
        %4167 = sbr.rel (%p4165) target = $region48
      $region47: #{_lambda_.2} parent=39 // pred_region
        _
      $region48: #{_lambda_.2} parent=39 // pred_fallthru
        _
    $region40: #{_lambda_.2} parent=5 // pred_fallthru
      _
    %p4168 = scmp.le.s32.totalorder 2, %s11
    // Predicated region
    $region49: #{_lambda_.2} parent=5 // pred_check
      %p4169 = pneg %p4168
    $region50: #{_lambda_.2} parent=5 // pred_check_branch
      %4171 = sbr.rel (%p4169) target = $region52
    $region51: #{_lambda_.2} parent=5 // pred_region
      %s4172 = ssub.s32 %s11, 2
      // Predicated region
      $region53: #{_lambda_.2} parent=51 // pred_check
        %p4173 = pneg %p179
      $region54: #{_lambda_.2} parent=51 // pred_check_branch
        %4175 = sbr.rel (%p4173) target = $region56
      $region55: #{_lambda_.2} parent=51 // pred_region
        %p4176 = scmp.lt.s32.totalorder %s22, 1
        %s4177 = scalar_select %p4176, %s22, 1
        %p4178 = scmp.lt.s32.totalorder %s23, 0
        %s4179 = scalar_select %p4178, %s23, 0
        %s4180 = smul.addr %s4177, 43
        %s4181 = sadd.s32 %s4179, %s4180
        %s4182 = smul.addr %s4181, 4
        %s4183 = scalar_lea.vmem %s5, %s4182
      $region56: #{_lambda_.2} parent=51 // pred_fallthru
        _
    $region52: #{_lambda_.2} parent=5 // pred_fallthru
      _
  $region6: #{_lambda_.2} parent=0 // loop_footer
    %s15 = sadd.s32 1, %s11
  $region7: #{_lambda_.2} parent=0 // loop_footer_branch
    %10 = sbr.rel target = $region3
  $region8: #{_lambda_.2} parent=0 // loop_exit
    _

// kernel: _lambda_.3
$region0: #{_lambda_.3}
  #allocation0 [shape = 'u32[]', space=smem, size = 0x4, offset = 0x4, fixed_abs, tag = 'smem constant byte address 0x4 - core index']
  #allocation1 [shape = 'u32[72,128]{1,0:T(1,128)}', space=vmem, size = 0x9000, scoped, tag = 'internal scratch']
  #allocation2 [shape = 'f32[342,128]{1,0:T(8,128)}', space=vmem, size = 0x2b000, scoped, tag = 'scratch operand']
  #allocation3 [shape = 'f32[396,128]{1,0:T(8,128)}', space=vmem, size = 0x32000, scoped, tag = 'scratch operand']
  %s0 = inlined_call_operand.vmem [shape: bf16[2,342,128], index: 0, kind: input, shape index: {}]
  %s1 = inlined_call_operand.vmem [shape: bf16[2,396,128], index: 1, kind: input, shape index: {}]
  %s2 = inlined_call_operand.vmem [shape: bf16[9,128,128], index: 2, kind: input, shape index: {}]
  %s3 = inlined_call_operand.vmem [shape: bf16[128,128], index: 3, kind: input, shape index: {}]
  %s4 = inlined_call_operand.vmem [shape: f32[1,128], index: 4, kind: input, shape index: {}, may-alias: {4,6}]
  %s5 = inlined_call_operand.vmem [shape: f32[1,128], index: 5, kind: input, shape index: {}]
  %s6 = inlined_call_operand.vmem [shape: f32[1,128], index: 6, kind: input, shape index: {}, may-alias: {4,6}]
  %s7 = inlined_call_operand.vmem [shape: f32[1,128], index: 7, kind: input, shape index: {}]
  %s8 = inlined_call_operand.vmem [shape: f32[2,288,128], index: 8, kind: output, shape index: {}]
  %s9 = sld [smem:[#allocation0]]
  $region69: #{_lambda_.3} parent=0
    _
  %s11 = ssub.s32 1, %s9
  %s12 = scalar_select 0, %s11, %s9
  loop: start=0, step=1, limit=4
  $region2: #{_lambda_.3} parent=0 // loop_pre_header
    _
  $region3: #{_lambda_.3} parent=0 // loop_header
    %s14 = sphi 0, %s18
    %p15 = scmp.ge.s32.totalorder %s14, 4
    %s21 = sphi 0, %s33
    %s22 = sphi 0, %s29
    %s23 = sphi 0, %s21
    %s24 = sphi 0, %s22
    %s25 = sphi 0, %s23
    %s26 = sphi 0, %s24
    %s36 = sphi 0, %s38
    %s39 = sphi 0, %s36
    %s40 = sphi 0, %s39
    %s56 = sphi 0, %s40
    %s62 = sphi 0, %s64
    %s65 = sphi 0, %s62
    %s66 = sphi 0, %s65
    %s82 = sphi 0, %s66
    %s88 = sphi 0, %s90
    %s91 = sphi 0, %s88
    %s92 = sphi 0, %s91
    %s108 = sphi 0, %s92
    %s114 = sphi 0, %s116
    %s117 = sphi 0, %s114
    %s118 = sphi 0, %s117
    %s134 = sphi 0, %s118
    %s140 = sphi 0, %s142
    %s143 = sphi 0, %s140
    %s144 = sphi 0, %s143
    %s160 = sphi 0, %s144
    %s166 = sphi 0, %s168
    %s169 = sphi 0, %s166
    %s170 = sphi 0, %s169
    %s186 = sphi 0, %s170
    %s192 = sphi 0, %s194
    %s195 = sphi 0, %s192
    %s196 = sphi 0, %s195
    %s212 = sphi 0, %s196
    %s218 = sphi 0, %s220
    %s221 = sphi 0, %s218
    %s222 = sphi 0, %s221
    %s238 = sphi 0, %s222
    %s246 = sphi 0, %s248
    %s249 = sphi 0, %s246
    %s250 = sphi 0, %s249
    %s266 = sphi 0, %s250
  $region4: #{_lambda_.3} parent=0 // loop_header_branch
    %17 = sbr.rel (%p15) target = $region8
  $region5: #{_lambda_.3} parent=0 // loop_body
    %s19 = ssub.s32 %s14, 1
    %s20 = ssub.s32 %s14, 2
    %s27 = sadd.s32 1, %s22
    %p28 = scmp.ge.s32.totalorder %s27, 1
    %s29 = scalar_select %p28, 0, %s27
    %s30 = sadd.s32 1, %s21
    %s31 = scalar_select %p28, %s30, %s21
    %p32 = scmp.ge.s32.totalorder %s31, 2
    %s33 = scalar_select %p32, 0, %s31
    %s34 = ssub.s32 %s21, %s33
    %p35 = scmp.eq.s32.totalorder %s34, 0
    %s37 = sadd.s32 %s36, 1
    %s38 = scalar_select %p35, %s36, %s37
    %p41 = pneg %p35
    %p42 = scmp.eq.s32.totalorder %s14, 1
    %p43 = por %p41, %p42
    %p44 = scmp.ne.s32.totalorder %s36, %s39
    %p45 = scmp.eq.s32.totalorder %s14, 0
    %p46 = por %p44, %p45
    %p47 = scmp.ne.s32.totalorder %s36, %s39
    %p48 = scmp.eq.s32.totalorder %s19, 1
    %p49 = por %p47, %p48
    %p50 = scmp.ne.s32.totalorder %s39, %s40
    %p51 = scmp.eq.s32.totalorder %s19, 0
    %p52 = por %p50, %p51
    %p53 = scmp.ne.s32.totalorder %s39, %s40
    %p54 = scmp.eq.s32.totalorder %s20, 1
    %p55 = por %p53, %p54
    %p57 = scmp.ne.s32.totalorder %s40, %s56
    %p58 = scmp.eq.s32.totalorder %s20, 0
    %p59 = por %p57, %p58
    %s60 = ssub.s32 %s21, %s33
    %p61 = scmp.eq.s32.totalorder %s60, 0
    %s63 = sadd.s32 %s62, 1
    %s64 = scalar_select %p61, %s62, %s63
    %p67 = pneg %p61
    %p68 = scmp.eq.s32.totalorder %s14, 1
    %p69 = por %p67, %p68
    %p70 = scmp.ne.s32.totalorder %s62, %s65
    %p71 = scmp.eq.s32.totalorder %s14, 0
    %p72 = por %p70, %p71
    %p73 = scmp.ne.s32.totalorder %s62, %s65
    %p74 = scmp.eq.s32.totalorder %s19, 1
    %p75 = por %p73, %p74
    %p76 = scmp.ne.s32.totalorder %s65, %s66
    %p77 = scmp.eq.s32.totalorder %s19, 0
    %p78 = por %p76, %p77
    %p79 = scmp.ne.s32.totalorder %s65, %s66
    %p80 = scmp.eq.s32.totalorder %s20, 1
    %p81 = por %p79, %p80
    %p83 = scmp.ne.s32.totalorder %s66, %s82
    %p84 = scmp.eq.s32.totalorder %s20, 0
    %p85 = por %p83, %p84
    %s86 = ssub.s32 %s22, %s29
    %p87 = scmp.eq.s32.totalorder %s86, 0
    %s89 = sadd.s32 %s88, 1
    %s90 = scalar_select %p87, %s88, %s89
    %p93 = pneg %p87
    %p94 = scmp.eq.s32.totalorder %s14, 1
    %p95 = por %p93, %p94
    %p96 = scmp.ne.s32.totalorder %s88, %s91
    %p97 = scmp.eq.s32.totalorder %s14, 0
    %p98 = por %p96, %p97
    %p99 = scmp.ne.s32.totalorder %s88, %s91
    %p100 = scmp.eq.s32.totalorder %s19, 1
    %p101 = por %p99, %p100
    %p102 = scmp.ne.s32.totalorder %s91, %s92
    %p103 = scmp.eq.s32.totalorder %s19, 0
    %p104 = por %p102, %p103
    %p105 = scmp.ne.s32.totalorder %s91, %s92
    %p106 = scmp.eq.s32.totalorder %s20, 1
    %p107 = por %p105, %p106
    %p109 = scmp.ne.s32.totalorder %s92, %s108
    %p110 = scmp.eq.s32.totalorder %s20, 0
    %p111 = por %p109, %p110
    %s112 = ssub.s32 %s22, %s29
    %p113 = scmp.eq.s32.totalorder %s112, 0
    %s115 = sadd.s32 %s114, 1
    %s116 = scalar_select %p113, %s114, %s115
    %p119 = pneg %p113
    %p120 = scmp.eq.s32.totalorder %s14, 1
    %p121 = por %p119, %p120
    %p122 = scmp.ne.s32.totalorder %s114, %s117
    %p123 = scmp.eq.s32.totalorder %s14, 0
    %p124 = por %p122, %p123
    %p125 = scmp.ne.s32.totalorder %s114, %s117
    %p126 = scmp.eq.s32.totalorder %s19, 1
    %p127 = por %p125, %p126
    %p128 = scmp.ne.s32.totalorder %s117, %s118
    %p129 = scmp.eq.s32.totalorder %s19, 0
    %p130 = por %p128, %p129
    %p131 = scmp.ne.s32.totalorder %s117, %s118
    %p132 = scmp.eq.s32.totalorder %s20, 1
    %p133 = por %p131, %p132
    %p135 = scmp.ne.s32.totalorder %s118, %s134
    %p136 = scmp.eq.s32.totalorder %s20, 0
    %p137 = por %p135, %p136
    %s138 = ssub.s32 %s22, %s29
    %p139 = scmp.eq.s32.totalorder %s138, 0
    %s141 = sadd.s32 %s140, 1
    %s142 = scalar_select %p139, %s140, %s141
    %p145 = pneg %p139
    %p146 = scmp.eq.s32.totalorder %s14, 1
    %p147 = por %p145, %p146
    %p148 = scmp.ne.s32.totalorder %s140, %s143
    %p149 = scmp.eq.s32.totalorder %s14, 0
    %p150 = por %p148, %p149
    %p151 = scmp.ne.s32.totalorder %s140, %s143
    %p152 = scmp.eq.s32.totalorder %s19, 1
    %p153 = por %p151, %p152
    %p154 = scmp.ne.s32.totalorder %s143, %s144
    %p155 = scmp.eq.s32.totalorder %s19, 0
    %p156 = por %p154, %p155
    %p157 = scmp.ne.s32.totalorder %s143, %s144
    %p158 = scmp.eq.s32.totalorder %s20, 1
    %p159 = por %p157, %p158
    %p161 = scmp.ne.s32.totalorder %s144, %s160
    %p162 = scmp.eq.s32.totalorder %s20, 0
    %p163 = por %p161, %p162
    %s164 = ssub.s32 %s22, %s29
    %p165 = scmp.eq.s32.totalorder %s164, 0
    %s167 = sadd.s32 %s166, 1
    %s168 = scalar_select %p165, %s166, %s167
    %p171 = pneg %p165
    %p172 = scmp.eq.s32.totalorder %s14, 1
    %p173 = por %p171, %p172
    %p174 = scmp.ne.s32.totalorder %s166, %s169
    %p175 = scmp.eq.s32.totalorder %s14, 0
    %p176 = por %p174, %p175
    %p177 = scmp.ne.s32.totalorder %s166, %s169
    %p178 = scmp.eq.s32.totalorder %s19, 1
    %p179 = por %p177, %p178
    %p180 = scmp.ne.s32.totalorder %s169, %s170
    %p181 = scmp.eq.s32.totalorder %s19, 0
    %p182 = por %p180, %p181
    %p183 = scmp.ne.s32.totalorder %s169, %s170
    %p184 = scmp.eq.s32.totalorder %s20, 1
    %p185 = por %p183, %p184
    %p187 = scmp.ne.s32.totalorder %s170, %s186
    %p188 = scmp.eq.s32.totalorder %s20, 0
    %p189 = por %p187, %p188
    %s190 = ssub.s32 %s22, %s29
    %p191 = scmp.eq.s32.totalorder %s190, 0
    %s193 = sadd.s32 %s192, 1
    %s194 = scalar_select %p191, %s192, %s193
    %p197 = pneg %p191
    %p198 = scmp.eq.s32.totalorder %s14, 1
    %p199 = por %p197, %p198
    %p200 = scmp.ne.s32.totalorder %s192, %s195
    %p201 = scmp.eq.s32.totalorder %s14, 0
    %p202 = por %p200, %p201
    %p203 = scmp.ne.s32.totalorder %s192, %s195
    %p204 = scmp.eq.s32.totalorder %s19, 1
    %p205 = por %p203, %p204
    %p206 = scmp.ne.s32.totalorder %s195, %s196
    %p207 = scmp.eq.s32.totalorder %s19, 0
    %p208 = por %p206, %p207
    %p209 = scmp.ne.s32.totalorder %s195, %s196
    %p210 = scmp.eq.s32.totalorder %s20, 1
    %p211 = por %p209, %p210
    %p213 = scmp.ne.s32.totalorder %s196, %s212
    %p214 = scmp.eq.s32.totalorder %s20, 0
    %p215 = por %p213, %p214
    %s216 = ssub.s32 %s22, %s29
    %p217 = scmp.eq.s32.totalorder %s216, 0
    %s219 = sadd.s32 %s218, 1
    %s220 = scalar_select %p217, %s218, %s219
    %p223 = pneg %p217
    %p224 = scmp.eq.s32.totalorder %s14, 1
    %p225 = por %p223, %p224
    %p226 = scmp.ne.s32.totalorder %s218, %s221
    %p227 = scmp.eq.s32.totalorder %s14, 0
    %p228 = por %p226, %p227
    %p229 = scmp.ne.s32.totalorder %s218, %s221
    %p230 = scmp.eq.s32.totalorder %s19, 1
    %p231 = por %p229, %p230
    %p232 = scmp.ne.s32.totalorder %s221, %s222
    %p233 = scmp.eq.s32.totalorder %s19, 0
    %p234 = por %p232, %p233
    %p235 = scmp.ne.s32.totalorder %s221, %s222
    %p236 = scmp.eq.s32.totalorder %s20, 1
    %p237 = por %p235, %p236
    %p239 = scmp.ne.s32.totalorder %s222, %s238
    %p240 = scmp.eq.s32.totalorder %s20, 0
    %p241 = por %p239, %p240
    %s242 = ssub.s32 %s21, %s33
    %s243 = ssub.s32 %s22, %s29
    %s244 = sor.u32 %s242, %s243
    %p245 = scmp.eq.s32.totalorder %s244, 0
    %s247 = sadd.s32 %s246, 1
    %s248 = scalar_select %p245, %s246, %s247
    %p251 = pneg %p245
    %p252 = scmp.eq.s32.totalorder %s14, 1
    %p253 = por %p251, %p252
    %p254 = scmp.ne.s32.totalorder %s246, %s249
    %p255 = scmp.eq.s32.totalorder %s14, 0
    %p256 = por %p254, %p255
    %p257 = scmp.ne.s32.totalorder %s246, %s249
    %p258 = scmp.eq.s32.totalorder %s19, 1
    %p259 = por %p257, %p258
    %p260 = scmp.ne.s32.totalorder %s249, %s250
    %p261 = scmp.eq.s32.totalorder %s19, 0
    %p262 = por %p260, %p261
    %p263 = scmp.ne.s32.totalorder %s249, %s250
    %p264 = scmp.eq.s32.totalorder %s20, 1
    %p265 = por %p263, %p264
    %p267 = scmp.ne.s32.totalorder %s250, %s266
    %p268 = scmp.eq.s32.totalorder %s20, 0
    %p269 = por %p267, %p268
    %p270 = scmp.le.s32.totalorder 1, %s14
    %p271 = scmp.lt.s32.totalorder %s14, 3
    %p272 = pnand %p270, %p271
    %p273 = pneg %p272
    // Predicated region
    $region9: #{_lambda_.3} parent=5 // pred_check
      _
    $region10: #{_lambda_.3} parent=5 // pred_check_branch
      %275 = sbr.rel (%p272) target = $region12
    $region11: #{_lambda_.3} parent=5 // pred_region
      %s276 = ssub.s32 %s14, 1
      // Predicated region
      $region13: #{_lambda_.3} parent=11 // pred_check
        %p277 = pneg %p104
      $region14: #{_lambda_.3} parent=11 // pred_check_branch
        %279 = sbr.rel (%p277) target = $region16
      $region15: #{_lambda_.3} parent=11 // pred_region
        %p280 = scmp.lt.s32.totalorder %s24, 0
        %s281 = scalar_select %p280, %s24, 0
        %s282 = smul.addr %s281, 4
        %s283 = scalar_lea.vmem %s2, %s282
      $region16: #{_lambda_.3} parent=11 // pred_fallthru
        _
      // Predicated region
      $region17: #{_lambda_.3} parent=11 // pred_check
        %p284 = pneg %p130
      $region18: #{_lambda_.3} parent=11 // pred_check_branch
        %286 = sbr.rel (%p284) target = $region20
      $region19: #{_lambda_.3} parent=11 // pred_region
        %p287 = scmp.lt.s32.totalorder %s24, 0
        %s288 = scalar_select %p287, %s24, 0
        %s289 = smul.addr %s288, 4
        %s290 = scalar_lea.vmem %s3, %s289
      $region20: #{_lambda_.3} parent=11 // pred_fallthru
        _
      // Predicated region
      $region21: #{_lambda_.3} parent=11 // pred_check
        %p291 = pneg %p156
      $region22: #{_lambda_.3} parent=11 // pred_check_branch
        %293 = sbr.rel (%p291) target = $region24
      $region23: #{_lambda_.3} parent=11 // pred_region
        %p294 = scmp.lt.s32.totalorder %s24, 0
        %s295 = scalar_select %p294, %s24, 0
        %s296 = scalar_lea.vmem %s4, %s295
      $region24: #{_lambda_.3} parent=11 // pred_fallthru
        _
      // Predicated region
      $region25: #{_lambda_.3} parent=11 // pred_check
        %p297 = pneg %p182
      $region26: #{_lambda_.3} parent=11 // pred_check_branch
        %299 = sbr.rel (%p297) target = $region28
      $region27: #{_lambda_.3} parent=11 // pred_region
        %p300 = scmp.lt.s32.totalorder %s24, 0
        %s301 = scalar_select %p300, %s24, 0
        %s302 = scalar_lea.vmem %s5, %s301
      $region28: #{_lambda_.3} parent=11 // pred_fallthru
        _
      // Predicated region
      $region29: #{_lambda_.3} parent=11 // pred_check
        %p303 = pneg %p208
      $region30: #{_lambda_.3} parent=11 // pred_check_branch
        %305 = sbr.rel (%p303) target = $region32
      $region31: #{_lambda_.3} parent=11 // pred_region
        %p306 = scmp.lt.s32.totalorder %s24, 0
        %s307 = scalar_select %p306, %s24, 0
        %s308 = scalar_lea.vmem %s6, %s307
      $region32: #{_lambda_.3} parent=11 // pred_fallthru
        _
      // Predicated region
      $region33: #{_lambda_.3} parent=11 // pred_check
        %p309 = pneg %p234
      $region34: #{_lambda_.3} parent=11 // pred_check_branch
        %311 = sbr.rel (%p309) target = $region36
      $region35: #{_lambda_.3} parent=11 // pred_region
        %p312 = scmp.lt.s32.totalorder %s24, 0
        %s313 = scalar_select %p312, %s24, 0
        %s314 = scalar_lea.vmem %s7, %s313
      $region36: #{_lambda_.3} parent=11 // pred_fallthru
        _
    $region12: #{_lambda_.3} parent=5 // pred_fallthru
      _
    %p315 = scmp.lt.s32.totalorder %s14, 2
    // Predicated region
    $region37: #{_lambda_.3} parent=5 // pred_check
      %p316 = pneg %p315
    $region38: #{_lambda_.3} parent=5 // pred_check_branch
      %318 = sbr.rel (%p316) target = $region40
    $region39: #{_lambda_.3} parent=5 // pred_region
      // Predicated region
      $region41: #{_lambda_.3} parent=39 // pred_check
        %p319 = pneg %p46
      $region42: #{_lambda_.3} parent=39 // pred_check_branch
        %321 = sbr.rel (%p319) target = $region44
      $region43: #{_lambda_.3} parent=39 // pred_region
        %p322 = scmp.lt.s32.totalorder %s21, 1
        %s323 = scalar_select %p322, %s21, 1
        %s324 = smul.addr %s323, 43
        %s325 = smul.addr %s324, 4
        %s326 = scalar_lea.vmem %s0, %s325
      $region44: #{_lambda_.3} parent=39 // pred_fallthru
        _
      // Predicated region
      $region45: #{_lambda_.3} parent=39 // pred_check
        %p327 = pneg %p72
      $region46: #{_lambda_.3} parent=39 // pred_check_branch
        %329 = sbr.rel (%p327) target = $region48
      $region47: #{_lambda_.3} parent=39 // pred_region
        %p330 = scmp.lt.s32.totalorder %s21, 1
        %s331 = scalar_select %p330, %s21, 1
        %s332 = smul.addr %s331, 50
        %s333 = smul.addr %s332, 4
        %s334 = scalar_lea.vmem %s1, %s333
      $region48: #{_lambda_.3} parent=39 // pred_fallthru
        _
    $region40: #{_lambda_.3} parent=5 // pred_fallthru
      _
    %p335 = scmp.le.s32.totalorder 1, %s14
    %p336 = scmp.lt.s32.totalorder %s14, 3
    %p337 = pnand %p335, %p336
    %p338 = pneg %p337
    // Predicated region
    $region49: #{_lambda_.3} parent=5 // pred_check
      _
    $region50: #{_lambda_.3} parent=5 // pred_check_branch
      %340 = sbr.rel (%p337) target = $region52
    $region51: #{_lambda_.3} parent=5 // pred_region
      %s341 = ssub.s32 %s14, 1
      %p342 = scmp.lt.s32.totalorder %s23, 1
      %s343 = scalar_select %p342, %s23, 1
      %s344 = smul.addr %s343, 43
      %s345 = smul.addr %s344, 4
      %s346 = scalar_lea.vmem %s0, %s345
      %p347 = pneg %p52
      %p348 = pneg %p49
      %p349 = scmp.lt.s32.totalorder %s23, 1
      %s350 = scalar_select %p349, %s23, 1
      %s351 = smul.addr %s350, 50
      %s352 = smul.addr %s351, 4
      %s353 = scalar_lea.vmem %s1, %s352
      %p354 = pneg %p78
      %p355 = pneg %p75
      %p356 = scmp.lt.s32.totalorder %s24, 0
      %s357 = scalar_select %p356, %s24, 0
      %s358 = smul.addr %s357, 4
      %s359 = scalar_lea.vmem %s2, %s358
      %p360 = pneg %p104
      %p361 = pneg %p101
      %p362 = scmp.lt.s32.totalorder %s24, 0
      %s363 = scalar_select %p362, %s24, 0
      %s364 = smul.addr %s363, 4
      %s365 = scalar_lea.vmem %s3, %s364
      %p366 = pneg %p130
      %p367 = pneg %p127
      %p368 = scmp.lt.s32.totalorder %s24, 0
      %s369 = scalar_select %p368, %s24, 0
      %s370 = scalar_lea.vmem %s4, %s369
      %p371 = pneg %p156
      %p372 = pneg %p153
      %p373 = scmp.lt.s32.totalorder %s24, 0
      %s374 = scalar_select %p373, %s24, 0
      %s375 = scalar_lea.vmem %s5, %s374
      %p376 = pneg %p182
      %p377 = pneg %p179
      %p378 = scmp.lt.s32.totalorder %s24, 0
      %s379 = scalar_select %p378, %s24, 0
      %s380 = scalar_lea.vmem %s6, %s379
      %p381 = pneg %p208
      %p382 = pneg %p205
      %p383 = scmp.lt.s32.totalorder %s24, 0
      %s384 = scalar_select %p383, %s24, 0
      %s385 = scalar_lea.vmem %s7, %s384
      %p386 = pneg %p234
      %p387 = pneg %p231
      %p388 = pneg %p262
      %p389 = pneg %p259
      %p390 = scmp.lt.s32.totalorder %s23, 1
      %s391 = scalar_select %p390, %s23, 1
      %p392 = scmp.lt.s32.totalorder %s24, 0
      %s393 = scalar_select %p392, %s24, 0
      %s394 = smul.addr %s391, 36
      %s395 = sadd.s32 %s393, %s394
      %s396 = smul.addr %s395, 8
      %s397 = scalar_lea.vmem %s8, %s396
      %p398 = scmp.lt.s32.totalorder %s23, 1
      %s399 = scalar_select %p398, %s23, 1
      %s400 = smul.addr %s399, 43
      %s401 = smul.addr %s400, 4
      %s402 = scalar_lea.vmem %s0, %s401
      %p403 = scmp.lt.s32.totalorder %s23, 1
      %s404 = scalar_select %p403, %s23, 1
      %s405 = smul.addr %s404, 50
      %s406 = smul.addr %s405, 4
      %s407 = scalar_lea.vmem %s1, %s406
      %p408 = scmp.lt.s32.totalorder %s24, 0
      %s409 = scalar_select %p408, %s24, 0
      %s410 = smul.addr %s409, 4
      %s411 = scalar_lea.vmem %s2, %s410
      %p412 = scmp.lt.s32.totalorder %s24, 0
      %s413 = scalar_select %p412, %s24, 0
      %s414 = smul.addr %s413, 4
      %s415 = scalar_lea.vmem %s3, %s414
      %p416 = scmp.lt.s32.totalorder %s24, 0
      %s417 = scalar_select %p416, %s24, 0
      %s418 = scalar_lea.vmem %s4, %s417
      %p419 = scmp.lt.s32.totalorder %s24, 0
      %s420 = scalar_select %p419, %s24, 0
      %s421 = scalar_lea.vmem %s5, %s420
      %p422 = scmp.lt.s32.totalorder %s24, 0
      %s423 = scalar_select %p422, %s24, 0
      %s424 = scalar_lea.vmem %s6, %s423
      %p425 = scmp.lt.s32.totalorder %s24, 0
      %s426 = scalar_select %p425, %s24, 0
      %s427 = scalar_lea.vmem %s7, %s426
      %p428 = scmp.lt.s32.totalorder %s23, 1
      %s429 = scalar_select %p428, %s23, 1
      %p430 = scmp.lt.s32.totalorder %s24, 0
      %s431 = scalar_select %p430, %s24, 0
      %s432 = smul.addr %s429, 36
      %s433 = sadd.s32 %s431, %s432
      %s434 = smul.addr %s433, 8
      %s435 = scalar_lea.vmem %s8, %s434
      %p436 = scmp.eq.s32.totalorder %s24, 0
      // Predicated region
      $region53: #{_lambda_.3} parent=51 // pred_check
        %p437 = pneg %p436
      $region54: #{_lambda_.3} parent=51 // pred_check_branch
        %439 = sbr.rel (%p437) target = $region56
      $region55: #{_lambda_.3} parent=51 // pred_region
        %v440 = vld [vmem:[%s402] sm:$0xf]
        %v441 = vld [vmem:[%s402 + $0x4] sm:$0xf]
        %v442 = vld [vmem:[%s402 + $0x8] sm:$0xf]
        %v443 = vld [vmem:[%s402 + $0xc] sm:$0xf]
        %v444 = vld [vmem:[%s402 + $0x10] sm:$0xf]
        %v445 = vld [vmem:[%s402 + $0x14] sm:$0xf]
        %v446 = vld [vmem:[%s402 + $0x18] sm:$0xf]
        %v447 = vld [vmem:[%s402 + $0x1c] sm:$0xf]
        %v448 = vld [vmem:[%s402 + $0x20] sm:$0xf]
        %v449 = vld [vmem:[%s402 + $0x24] sm:$0xf]
        %v450 = vld [vmem:[%s402 + $0x28] sm:$0xf]
        %v451 = vld [vmem:[%s402 + $0x2c] sm:$0xf]
        %v452 = vld [vmem:[%s402 + $0x30] sm:$0xf]
        %v453 = vld [vmem:[%s402 + $0x34] sm:$0xf]
        %v454 = vld [vmem:[%s402 + $0x38] sm:$0xf]
        %v455 = vld [vmem:[%s402 + $0x3c] sm:$0xf]
        %v456 = vld [vmem:[%s402 + $0x40] sm:$0xf]
        %v457 = vld [vmem:[%s402 + $0x44] sm:$0xf]
        %v458 = vld [vmem:[%s402 + $0x48] sm:$0xf]
        %v459 = vld [vmem:[%s402 + $0x4c] sm:$0xf]
        %v460 = vld [vmem:[%s402 + $0x50] sm:$0xf]
        %v461 = vld [vmem:[%s402 + $0x54] sm:$0xf]
        %v462 = vld [vmem:[%s402 + $0x58] sm:$0xf]
        %v463 = vld [vmem:[%s402 + $0x5c] sm:$0xf]
        %v464 = vld [vmem:[%s402 + $0x60] sm:$0xf]
        %v465 = vld [vmem:[%s402 + $0x64] sm:$0xf]
        %v466 = vld [vmem:[%s402 + $0x68] sm:$0xf]
        %v467 = vld [vmem:[%s402 + $0x6c] sm:$0xf]
        %v468 = vld [vmem:[%s402 + $0x70] sm:$0xf]
        %v469 = vld [vmem:[%s402 + $0x74] sm:$0xf]
        %v470 = vld [vmem:[%s402 + $0x78] sm:$0xf]
        %v471 = vld [vmem:[%s402 + $0x7c] sm:$0xf]
        %v472 = vld [vmem:[%s402 + $0x80] sm:$0xf]
        %v473 = vld [vmem:[%s402 + $0x84] sm:$0xf]
        %v474 = vld [vmem:[%s402 + $0x88] sm:$0xf]
        %v475 = vld [vmem:[%s402 + $0x8c] sm:$0xf]
        %v476 = vld [vmem:[%s402 + $0x90] sm:$0xf]
        %v477 = vld [vmem:[%s402 + $0x94] sm:$0xf]
        %v478 = vld [vmem:[%s402 + $0x98] sm:$0xf]
        %v479 = vld [vmem:[%s402 + $0x9c] sm:$0xf]
        %v480 = vld [vmem:[%s402 + $0xa0] sm:$0xf]
        %v481 = vld [vmem:[%s402 + $0xa4] sm:$0xf]
        %v482 = vld [vmem:[%s402 + $0xa8] sm:$0x7]
        %v483 = vunpack.c.l.bf16 %v440
        %v484 = vunpack.c.l.bf16 %v441
        %v485 = vunpack.c.l.bf16 %v442
        %v486 = vunpack.c.l.bf16 %v443
        %v487 = vunpack.c.l.bf16 %v444
        %v488 = vunpack.c.l.bf16 %v445
        %v489 = vunpack.c.l.bf16 %v446
        %v490 = vunpack.c.l.bf16 %v447
        %v491 = vunpack.c.l.bf16 %v448
        %v492 = vunpack.c.l.bf16 %v449
        %v493 = vunpack.c.l.bf16 %v450
        %v494 = vunpack.c.l.bf16 %v451
        %v495 = vunpack.c.l.bf16 %v452
        %v496 = vunpack.c.l.bf16 %v453
        %v497 = vunpack.c.l.bf16 %v454
        %v498 = vunpack.c.l.bf16 %v455
        %v499 = vunpack.c.l.bf16 %v456
        %v500 = vunpack.c.l.bf16 %v457
        %v501 = vunpack.c.l.bf16 %v458
        %v502 = vunpack.c.l.bf16 %v459
        %v503 = vunpack.c.l.bf16 %v460
        %v504 = vunpack.c.l.bf16 %v461
        %v505 = vunpack.c.l.bf16 %v462
        %v506 = vunpack.c.l.bf16 %v463
        %v507 = vunpack.c.l.bf16 %v464
        %v508 = vunpack.c.l.bf16 %v465
        %v509 = vunpack.c.l.bf16 %v466
        %v510 = vunpack.c.l.bf16 %v467
        %v511 = vunpack.c.l.bf16 %v468
        %v512 = vunpack.c.l.bf16 %v469
        %v513 = vunpack.c.l.bf16 %v470
        %v514 = vunpack.c.l.bf16 %v471
        %v515 = vunpack.c.l.bf16 %v472
        %v516 = vunpack.c.l.bf16 %v473
        %v517 = vunpack.c.l.bf16 %v474
        %v518 = vunpack.c.l.bf16 %v475
        %v519 = vunpack.c.l.bf16 %v476
        %v520 = vunpack.c.l.bf16 %v477
        %v521 = vunpack.c.l.bf16 %v478
        %v522 = vunpack.c.l.bf16 %v479
        %v523 = vunpack.c.l.bf16 %v480
        %v524 = vunpack.c.l.bf16 %v481
        %v525 = vunpack.c.l.bf16 %v482
        %526 = vst [vmem:[#allocation2] sm:$0xff] %v483
        %527 = vst [vmem:[#allocation2 + $0x8] sm:$0xff] %v484
        %528 = vst [vmem:[#allocation2 + $0x10] sm:$0xff] %v485
        %529 = vst [vmem:[#allocation2 + $0x18] sm:$0xff] %v486
        %530 = vst [vmem:[#allocation2 + $0x20] sm:$0xff] %v487
        %531 = vst [vmem:[#allocation2 + $0x28] sm:$0xff] %v488
        %532 = vst [vmem:[#allocation2 + $0x30] sm:$0xff] %v489
        %533 = vst [vmem:[#allocation2 + $0x38] sm:$0xff] %v490
        %534 = vst [vmem:[#allocation2 + $0x40] sm:$0xff] %v491
        %535 = vst [vmem:[#allocation2 + $0x48] sm:$0xff] %v492
        %536 = vst [vmem:[#allocation2 + $0x50] sm:$0xff] %v493
        %537 = vst [vmem:[#allocation2 + $0x58] sm:$0xff] %v494
        %538 = vst [vmem:[#allocation2 + $0x60] sm:$0xff] %v495
        %539 = vst [vmem:[#allocation2 + $0x68] sm:$0xff] %v496
        %540 = vst [vmem:[#allocation2 + $0x70] sm:$0xff] %v497
        %541 = vst [vmem:[#allocation2 + $0x78] sm:$0xff] %v498
        %542 = vst [vmem:[#allocation2 + $0x80] sm:$0xff] %v499
        %543 = vst [vmem:[#allocation2 + $0x88] sm:$0xff] %v500
        %544 = vst [vmem:[#allocation2 + $0x90] sm:$0xff] %v501
        %545 = vst [vmem:[#allocation2 + $0x98] sm:$0xff] %v502
        %546 = vst [vmem:[#allocation2 + $0xa0] sm:$0xff] %v503
        %547 = vst [vmem:[#allocation2 + $0xa8] sm:$0xff] %v504
        %548 = vst [vmem:[#allocation2 + $0xb0] sm:$0xff] %v505
        %549 = vst [vmem:[#allocation2 + $0xb8] sm:$0xff] %v506
        %550 = vst [vmem:[#allocation2 + $0xc0] sm:$0xff] %v507
        %551 = vst [vmem:[#allocation2 + $0xc8] sm:$0xff] %v508
        %552 = vst [vmem:[#allocation2 + $0xd0] sm:$0xff] %v509
        %553 = vst [vmem:[#allocation2 + $0xd8] sm:$0xff] %v510
        %554 = vst [vmem:[#allocation2 + $0xe0] sm:$0xff] %v511
        %555 = vst [vmem:[#allocation2 + $0xe8] sm:$0xff] %v512
        %556 = vst [vmem:[#allocation2 + $0xf0] sm:$0xff] %v513
        %557 = vst [vmem:[#allocation2 + $0xf8] sm:$0xff] %v514
        %558 = vst [vmem:[#allocation2 + $0x100] sm:$0xff] %v515
        %559 = vst [vmem:[#allocation2 + $0x108] sm:$0xff] %v516
        %560 = vst [vmem:[#allocation2 + $0x110] sm:$0xff] %v517
        %561 = vst [vmem:[#allocation2 + $0x118] sm:$0xff] %v518
        %562 = vst [vmem:[#allocation2 + $0x120] sm:$0xff] %v519
        %563 = vst [vmem:[#allocation2 + $0x128] sm:$0xff] %v520
        %564 = vst [vmem:[#allocation2 + $0x130] sm:$0xff] %v521
        %565 = vst [vmem:[#allocation2 + $0x138] sm:$0xff] %v522
        %566 = vst [vmem:[#allocation2 + $0x140] sm:$0xff] %v523
        %567 = vst [vmem:[#allocation2 + $0x148] sm:$0xff] %v524
        %568 = vst [vmem:[#allocation2 + $0x150] sm:$0x3f] %v525
        %v569 = vld [vmem:[%s407] sm:$0xf]
        %v570 = vld [vmem:[%s407 + $0x4] sm:$0xf]
        %v571 = vld [vmem:[%s407 + $0x8] sm:$0xf]
        %v572 = vld [vmem:[%s407 + $0xc] sm:$0xf]
        %v573 = vld [vmem:[%s407 + $0x10] sm:$0xf]
        %v574 = vld [vmem:[%s407 + $0x14] sm:$0xf]
        %v575 = vld [vmem:[%s407 + $0x18] sm:$0xf]
        %v576 = vld [vmem:[%s407 + $0x1c] sm:$0xf]
        %v577 = vld [vmem:[%s407 + $0x20] sm:$0xf]
        %v578 = vld [vmem:[%s407 + $0x24] sm:$0xf]
        %v579 = vld [vmem:[%s407 + $0x28] sm:$0xf]
        %v580 = vld [vmem:[%s407 + $0x2c] sm:$0xf]
        %v581 = vld [vmem:[%s407 + $0x30] sm:$0xf]
        %v582 = vld [vmem:[%s407 + $0x34] sm:$0xf]
        %v583 = vld [vmem:[%s407 + $0x38] sm:$0xf]
        %v584 = vld [vmem:[%s407 + $0x3c] sm:$0xf]
        %v585 = vld [vmem:[%s407 + $0x40] sm:$0xf]
        %v586 = vld [vmem:[%s407 + $0x44] sm:$0xf]
        %v587 = vld [vmem:[%s407 + $0x48] sm:$0xf]
        %v588 = vld [vmem:[%s407 + $0x4c] sm:$0xf]
        %v589 = vld [vmem:[%s407 + $0x50] sm:$0xf]
        %v590 = vld [vmem:[%s407 + $0x54] sm:$0xf]
        %v591 = vld [vmem:[%s407 + $0x58] sm:$0xf]
        %v592 = vld [vmem:[%s407 + $0x5c] sm:$0xf]
        %v593 = vld [vmem:[%s407 + $0x60] sm:$0xf]
        %v594 = vld [vmem:[%s407 + $0x64] sm:$0xf]
        %v595 = vld [vmem:[%s407 + $0x68] sm:$0xf]
        %v596 = vld [vmem:[%s407 + $0x6c] sm:$0xf]
        %v597 = vld [vmem:[%s407 + $0x70] sm:$0xf]
        %v598 = vld [vmem:[%s407 + $0x74] sm:$0xf]
        %v599 = vld [vmem:[%s407 + $0x78] sm:$0xf]
        %v600 = vld [vmem:[%s407 + $0x7c] sm:$0xf]
        %v601 = vld [vmem:[%s407 + $0x80] sm:$0xf]
        %v602 = vld [vmem:[%s407 + $0x84] sm:$0xf]
        %v603 = vld [vmem:[%s407 + $0x88] sm:$0xf]
        %v604 = vld [vmem:[%s407 + $0x8c] sm:$0xf]
        %v605 = vld [vmem:[%s407 + $0x90] sm:$0xf]
        %v606 = vld [vmem:[%s407 + $0x94] sm:$0xf]
        %v607 = vld [vmem:[%s407 + $0x98] sm:$0xf]
        %v608 = vld [vmem:[%s407 + $0x9c] sm:$0xf]
        %v609 = vld [vmem:[%s407 + $0xa0] sm:$0xf]
        %v610 = vld [vmem:[%s407 + $0xa4] sm:$0xf]
        %v611 = vld [vmem:[%s407 + $0xa8] sm:$0xf]
        %v612 = vld [vmem:[%s407 + $0xac] sm:$0xf]
        %v613 = vld [vmem:[%s407 + $0xb0] sm:$0xf]
        %v614 = vld [vmem:[%s407 + $0xb4] sm:$0xf]
        %v615 = vld [vmem:[%s407 + $0xb8] sm:$0xf]
        %v616 = vld [vmem:[%s407 + $0xbc] sm:$0xf]
        %v617 = vld [vmem:[%s407 + $0xc0] sm:$0xf]
        %v618 = vld [vmem:[%s407 + $0xc4] sm:$0x3]
        %v619 = vunpack.c.l.bf16 %v569
        %v620 = vunpack.c.l.bf16 %v570
        %v621 = vunpack.c.l.bf16 %v571
        %v622 = vunpack.c.l.bf16 %v572
        %v623 = vunpack.c.l.bf16 %v573
        %v624 = vunpack.c.l.bf16 %v574
        %v625 = vunpack.c.l.bf16 %v575
        %v626 = vunpack.c.l.bf16 %v576
        %v627 = vunpack.c.l.bf16 %v577
        %v628 = vunpack.c.l.bf16 %v578
        %v629 = vunpack.c.l.bf16 %v579
        %v630 = vunpack.c.l.bf16 %v580
        %v631 = vunpack.c.l.bf16 %v581
        %v632 = vunpack.c.l.bf16 %v582
        %v633 = vunpack.c.l.bf16 %v583
        %v634 = vunpack.c.l.bf16 %v584
        %v635 = vunpack.c.l.bf16 %v585
        %v636 = vunpack.c.l.bf16 %v586
        %v637 = vunpack.c.l.bf16 %v587
        %v638 = vunpack.c.l.bf16 %v588
        %v639 = vunpack.c.l.bf16 %v589
        %v640 = vunpack.c.l.bf16 %v590
        %v641 = vunpack.c.l.bf16 %v591
        %v642 = vunpack.c.l.bf16 %v592
        %v643 = vunpack.c.l.bf16 %v593
        %v644 = vunpack.c.l.bf16 %v594
        %v645 = vunpack.c.l.bf16 %v595
        %v646 = vunpack.c.l.bf16 %v596
        %v647 = vunpack.c.l.bf16 %v597
        %v648 = vunpack.c.l.bf16 %v598
        %v649 = vunpack.c.l.bf16 %v599
        %v650 = vunpack.c.l.bf16 %v600
        %v651 = vunpack.c.l.bf16 %v601
        %v652 = vunpack.c.l.bf16 %v602
        %v653 = vunpack.c.l.bf16 %v603
        %v654 = vunpack.c.l.bf16 %v604
        %v655 = vunpack.c.l.bf16 %v605
        %v656 = vunpack.c.l.bf16 %v606
        %v657 = vunpack.c.l.bf16 %v607
        %v658 = vunpack.c.l.bf16 %v608
        %v659 = vunpack.c.l.bf16 %v609
        %v660 = vunpack.c.l.bf16 %v610
        %v661 = vunpack.c.l.bf16 %v611
        %v662 = vunpack.c.l.bf16 %v612
        %v663 = vunpack.c.l.bf16 %v613
        %v664 = vunpack.c.l.bf16 %v614
        %v665 = vunpack.c.l.bf16 %v615
        %v666 = vunpack.c.l.bf16 %v616
        %v667 = vunpack.c.l.bf16 %v617
        %v668 = vunpack.c.l.bf16 %v618
        %669 = vst [vmem:[#allocation3] sm:$0xff] %v619
        %670 = vst [vmem:[#allocation3 + $0x8] sm:$0xff] %v620
        %671 = vst [vmem:[#allocation3 + $0x10] sm:$0xff] %v621
        %672 = vst [vmem:[#allocation3 + $0x18] sm:$0xff] %v622
        %673 = vst [vmem:[#allocation3 + $0x20] sm:$0xff] %v623
        %674 = vst [vmem:[#allocation3 + $0x28] sm:$0xff] %v624
        %675 = vst [vmem:[#allocation3 + $0x30] sm:$0xff] %v625
        %676 = vst [vmem:[#allocation3 + $0x38] sm:$0xff] %v626
        %677 = vst [vmem:[#allocation3 + $0x40] sm:$0xff] %v627
        %678 = vst [vmem:[#allocation3 + $0x48] sm:$0xff] %v628
        %679 = vst [vmem:[#allocation3 + $0x50] sm:$0xff] %v629
        %680 = vst [vmem:[#allocation3 + $0x58] sm:$0xff] %v630
        %681 = vst [vmem:[#allocation3 + $0x60] sm:$0xff] %v631
        %682 = vst [vmem:[#allocation3 + $0x68] sm:$0xff] %v632
        %683 = vst [vmem:[#allocation3 + $0x70] sm:$0xff] %v633
        %684 = vst [vmem:[#allocation3 + $0x78] sm:$0xff] %v634
        %685 = vst [vmem:[#allocation3 + $0x80] sm:$0xff] %v635
        %686 = vst [vmem:[#allocation3 + $0x88] sm:$0xff] %v636
        %687 = vst [vmem:[#allocation3 + $0x90] sm:$0xff] %v637
        %688 = vst [vmem:[#allocation3 + $0x98] sm:$0xff] %v638
        %689 = vst [vmem:[#allocation3 + $0xa0] sm:$0xff] %v639
        %690 = vst [vmem:[#allocation3 + $0xa8] sm:$0xff] %v640
        %691 = vst [vmem:[#allocation3 + $0xb0] sm:$0xff] %v641
        %692 = vst [vmem:[#allocation3 + $0xb8] sm:$0xff] %v642
        %693 = vst [vmem:[#allocation3 + $0xc0] sm:$0xff] %v643
        %694 = vst [vmem:[#allocation3 + $0xc8] sm:$0xff] %v644
        %695 = vst [vmem:[#allocation3 + $0xd0] sm:$0xff] %v645
        %696 = vst [vmem:[#allocation3 + $0xd8] sm:$0xff] %v646
        %697 = vst [vmem:[#allocation3 + $0xe0] sm:$0xff] %v647
        %698 = vst [vmem:[#allocation3 + $0xe8] sm:$0xff] %v648
        %699 = vst [vmem:[#allocation3 + $0xf0] sm:$0xff] %v649
        %700 = vst [vmem:[#allocation3 + $0xf8] sm:$0xff] %v650
        %701 = vst [vmem:[#allocation3 + $0x100] sm:$0xff] %v651
        %702 = vst [vmem:[#allocation3 + $0x108] sm:$0xff] %v652
        %703 = vst [vmem:[#allocation3 + $0x110] sm:$0xff] %v653
        %704 = vst [vmem:[#allocation3 + $0x118] sm:$0xff] %v654
        %705 = vst [vmem:[#allocation3 + $0x120] sm:$0xff] %v655
        %706 = vst [vmem:[#allocation3 + $0x128] sm:$0xff] %v656
        %707 = vst [vmem:[#allocation3 + $0x130] sm:$0xff] %v657
        %708 = vst [vmem:[#allocation3 + $0x138] sm:$0xff] %v658
        %709 = vst [vmem:[#allocation3 + $0x140] sm:$0xff] %v659
        %710 = vst [vmem:[#allocation3 + $0x148] sm:$0xff] %v660
        %711 = vst [vmem:[#allocation3 + $0x150] sm:$0xff] %v661
        %712 = vst [vmem:[#allocation3 + $0x158] sm:$0xff] %v662
        %713 = vst [vmem:[#allocation3 + $0x160] sm:$0xff] %v663
        %714 = vst [vmem:[#allocation3 + $0x168] sm:$0xff] %v664
        %715 = vst [vmem:[#allocation3 + $0x170] sm:$0xff] %v665
        %716 = vst [vmem:[#allocation3 + $0x178] sm:$0xff] %v666
        %717 = vst [vmem:[#allocation3 + $0x180] sm:$0xff] %v667
        %718 = vst [vmem:[#allocation3 + $0x188] sm:$0xf] %v668
      $region56: #{_lambda_.3} parent=51 // pred_fallthru
        _
      %v719 = vld [vmem:[%s418] sm:$0x1]
      %v720 = vld [vmem:[%s421] sm:$0x1]
      %v721 = vld [vmem:[%s424] sm:$0x1]
      %v722 = vld [vmem:[%s427] sm:$0x1]
      %v723 = vld [vmem:[#allocation2] sm:$0xff]
      %v724 = vld [vmem:[#allocation2 + $0x8] sm:$0xff]
      %v725 = vld [vmem:[#allocation2 + $0x10] sm:$0xff]
      %v726 = vld [vmem:[#allocation2 + $0x18] sm:$0xff]
      %v727 = vld [vmem:[#allocation2 + $0x20] sm:$0xff]
      %v728 = vld [vmem:[#allocation2 + $0x28] sm:$0xff]
      %v729 = vld [vmem:[#allocation2 + $0x30] sm:$0xff]
      %v730 = vld [vmem:[#allocation2 + $0x38] sm:$0xff]
      %v731 = vld [vmem:[#allocation2 + $0x40] sm:$0xff]
      %v732 = vld [vmem:[#allocation2 + $0x48] sm:$0xff]
      %v733 = vld [vmem:[#allocation2 + $0x50] sm:$0xff]
      %v734 = vld [vmem:[#allocation2 + $0x58] sm:$0xff]
      %v735 = vld [vmem:[#allocation2 + $0x60] sm:$0xff]
      %v736 = vld [vmem:[#allocation2 + $0x68] sm:$0xff]
      %v737 = vld [vmem:[#allocation2 + $0x70] sm:$0xff]
      %v738 = vld [vmem:[#allocation2 + $0x78] sm:$0xff]
      %v739 = vld [vmem:[#allocation2 + $0x80] sm:$0xff]
      %v740 = vld [vmem:[#allocation2 + $0x88] sm:$0xff]
      %v741 = vld [vmem:[#allocation2 + $0x90] sm:$0xff]
      %v742 = vld [vmem:[#allocation2 + $0x98] sm:$0xff]
      %v743 = vld [vmem:[#allocation2 + $0xa0] sm:$0xff]
      %v744 = vld [vmem:[#allocation2 + $0xa8] sm:$0xff]
      %v745 = vld [vmem:[#allocation2 + $0xb0] sm:$0xff]
      %v746 = vld [vmem:[#allocation2 + $0xb8] sm:$0xff]
      %v747 = vld [vmem:[#allocation2 + $0xc0] sm:$0xff]
      %v748 = vld [vmem:[#allocation2 + $0xc8] sm:$0xff]
      %v749 = vld [vmem:[#allocation2 + $0xd0] sm:$0xff]
      %v750 = vld [vmem:[#allocation2 + $0xd8] sm:$0xff]
      %v751 = vld [vmem:[#allocation2 + $0xe0] sm:$0xff]
      %v752 = vld [vmem:[#allocation2 + $0xe8] sm:$0xff]
      %v753 = vld [vmem:[#allocation2 + $0xf0] sm:$0xff]
      %v754 = vld [vmem:[#allocation2 + $0xf8] sm:$0xff]
      %v755 = vpack.c.bf16 %v724, %v723
      %v756 = vpack.c.bf16 %v726, %v725
      %v757 = vpack.c.bf16 %v728, %v727
      %v758 = vpack.c.bf16 %v730, %v729
      %v759 = vpack.c.bf16 %v732, %v731
      %v760 = vpack.c.bf16 %v734, %v733
      %v761 = vpack.c.bf16 %v736, %v735
      %v762 = vpack.c.bf16 %v738, %v737
      %v763 = vpack.c.bf16 %v740, %v739
      %v764 = vpack.c.bf16 %v742, %v741
      %v765 = vpack.c.bf16 %v744, %v743
      %v766 = vpack.c.bf16 %v746, %v745
      %v767 = vpack.c.bf16 %v748, %v747
      %v768 = vpack.c.bf16 %v750, %v749
      %v769 = vpack.c.bf16 %v752, %v751
      %v770 = vpack.c.bf16 %v754, %v753
      %v771 = vld [vmem:[%s411] sm:$0xf]
      %v772 = vld [vmem:[%s411 + $0x4] sm:$0xf]
      %v773 = vld [vmem:[%s411 + $0x8] sm:$0xf]
      %v774 = vld [vmem:[%s411 + $0xc] sm:$0xf]
      %v775 = vld [vmem:[%s411 + $0x10] sm:$0xf]
      %v776 = vld [vmem:[%s411 + $0x14] sm:$0xf]
      %v777 = vld [vmem:[%s411 + $0x18] sm:$0xf]
      %v778 = vld [vmem:[%s411 + $0x1c] sm:$0xf]
      %v779 = vld [vmem:[%s411 + $0x20] sm:$0xf]
      %v780 = vld [vmem:[%s411 + $0x24] sm:$0xf]
      %v781 = vld [vmem:[%s411 + $0x28] sm:$0xf]
      %v782 = vld [vmem:[%s411 + $0x2c] sm:$0xf]
      %v783 = vld [vmem:[%s411 + $0x30] sm:$0xf]
      %v784 = vld [vmem:[%s411 + $0x34] sm:$0xf]
      %v785 = vld [vmem:[%s411 + $0x38] sm:$0xf]
      %v786 = vld [vmem:[%s411 + $0x3c] sm:$0xf]
      %v787 = vld [vmem:[#allocation2 + $0x1] sm:$0xff]
      %v788 = vld [vmem:[#allocation2 + $0x9] sm:$0xff]
      %v789 = vld [vmem:[#allocation2 + $0x11] sm:$0xff]
      %v790 = vld [vmem:[#allocation2 + $0x19] sm:$0xff]
      %v791 = vld [vmem:[#allocation2 + $0x21] sm:$0xff]
      %v792 = vld [vmem:[#allocation2 + $0x29] sm:$0xff]
      %v793 = vld [vmem:[#allocation2 + $0x31] sm:$0xff]
      %v794 = vld [vmem:[#allocation2 + $0x39] sm:$0xff]
      %v795 = vld [vmem:[#allocation2 + $0x41] sm:$0xff]
      %v796 = vld [vmem:[#allocation2 + $0x49] sm:$0xff]
      %v797 = vld [vmem:[#allocation2 + $0x51] sm:$0xff]
      %v798 = vld [vmem:[#allocation2 + $0x59] sm:$0xff]
      %v799 = vld [vmem:[#allocation2 + $0x61] sm:$0xff]
      %v800 = vld [vmem:[#allocation2 + $0x69] sm:$0xff]
      %v801 = vld [vmem:[#allocation2 + $0x71] sm:$0xff]
      %v802 = vld [vmem:[#allocation2 + $0x79] sm:$0xff]
      %v803 = vld [vmem:[#allocation2 + $0x81] sm:$0xff]
      %v804 = vld [vmem:[#allocation2 + $0x89] sm:$0xff]
      %v805 = vld [vmem:[#allocation2 + $0x91] sm:$0xff]
      %v806 = vld [vmem:[#allocation2 + $0x99] sm:$0xff]
      %v807 = vld [vmem:[#allocation2 + $0xa1] sm:$0xff]
      %v808 = vld [vmem:[#allocation2 + $0xa9] sm:$0xff]
      %v809 = vld [vmem:[#allocation2 + $0xb1] sm:$0xff]
      %v810 = vld [vmem:[#allocation2 + $0xb9] sm:$0xff]
      %v811 = vld [vmem:[#allocation2 + $0xc1] sm:$0xff]
      %v812 = vld [vmem:[#allocation2 + $0xc9] sm:$0xff]
      %v813 = vld [vmem:[#allocation2 + $0xd1] sm:$0xff]
      %v814 = vld [vmem:[#allocation2 + $0xd9] sm:$0xff]
      %v815 = vld [vmem:[#allocation2 + $0xe1] sm:$0xff]
      %v816 = vld [vmem:[#allocation2 + $0xe9] sm:$0xff]
      %v817 = vld [vmem:[#allocation2 + $0xf1] sm:$0xff]
      %v818 = vld [vmem:[#allocation2 + $0xf9] sm:$0xff]
      %v819 = vpack.c.bf16 %v788, %v787
      %v820 = vpack.c.bf16 %v790, %v789
      %v821 = vpack.c.bf16 %v792, %v791
      %v822 = vpack.c.bf16 %v794, %v793
      %v823 = vpack.c.bf16 %v796, %v795
      %v824 = vpack.c.bf16 %v798, %v797
      %v825 = vpack.c.bf16 %v800, %v799
      %v826 = vpack.c.bf16 %v802, %v801
      %v827 = vpack.c.bf16 %v804, %v803
      %v828 = vpack.c.bf16 %v806, %v805
      %v829 = vpack.c.bf16 %v808, %v807
      %v830 = vpack.c.bf16 %v810, %v809
      %v831 = vpack.c.bf16 %v812, %v811
      %v832 = vpack.c.bf16 %v814, %v813
      %v833 = vpack.c.bf16 %v816, %v815
      %v834 = vpack.c.bf16 %v818, %v817
      %s835 = scalar_lea.vmem %s411, 64
      %v836 = vld [vmem:[%s835] sm:$0xf]
      %v837 = vld [vmem:[%s835 + $0x4] sm:$0xf]
      %v838 = vld [vmem:[%s835 + $0x8] sm:$0xf]
      %v839 = vld [vmem:[%s835 + $0xc] sm:$0xf]
      %v840 = vld [vmem:[%s835 + $0x10] sm:$0xf]
      %v841 = vld [vmem:[%s835 + $0x14] sm:$0xf]
      %v842 = vld [vmem:[%s835 + $0x18] sm:$0xf]
      %v843 = vld [vmem:[%s835 + $0x1c] sm:$0xf]
      %v844 = vld [vmem:[%s835 + $0x20] sm:$0xf]
      %v845 = vld [vmem:[%s835 + $0x24] sm:$0xf]
      %v846 = vld [vmem:[%s835 + $0x28] sm:$0xf]
      %v847 = vld [vmem:[%s835 + $0x2c] sm:$0xf]
      %v848 = vld [vmem:[%s835 + $0x30] sm:$0xf]
      %v849 = vld [vmem:[%s835 + $0x34] sm:$0xf]
      %v850 = vld [vmem:[%s835 + $0x38] sm:$0xf]
      %v851 = vld [vmem:[%s835 + $0x3c] sm:$0xf]
      %v868 = vunpack.c.l.b16 %v836
      %v869 = vunpack.c.l.b16 %v837
      %v870 = vunpack.c.l.b16 %v838
      %v871 = vunpack.c.l.b16 %v839
      %v872 = vunpack.c.l.b16 %v840
      %v873 = vunpack.c.l.b16 %v841
      %v874 = vunpack.c.l.b16 %v842
      %v875 = vunpack.c.l.b16 %v843
      %v876 = vunpack.c.l.b16 %v844
      %v877 = vunpack.c.l.b16 %v845
      %v878 = vunpack.c.l.b16 %v846
      %v879 = vunpack.c.l.b16 %v847
      %v880 = vunpack.c.l.b16 %v848
      %v881 = vunpack.c.l.b16 %v849
      %v882 = vunpack.c.l.b16 %v850
      %v883 = vunpack.c.l.b16 %v851
      %v884 = vpack.c.b16 %v869, %v868
      %v885 = vpack.c.b16 %v871, %v870
      %v886 = vpack.c.b16 %v873, %v872
      %v887 = vpack.c.b16 %v875, %v874
      %v888 = vpack.c.b16 %v877, %v876
      %v889 = vpack.c.b16 %v879, %v878
      %v890 = vpack.c.b16 %v881, %v880
      %v891 = vpack.c.b16 %v883, %v882
      %900 = vmatpush.bf16.msra.mxu0 %v891
      %901 = vmatpush.bf16.msra.mxu0 %v890
      %902 = vmatpush.bf16.msra.mxu0 %v889
      %903 = vmatpush.bf16.msra.mxu0 %v888
      %904 = vmatpush.bf16.msra.mxu0 %v887
      %905 = vmatpush.bf16.msra.mxu0 %v886
      %906 = vmatpush.bf16.msra.mxu0 %v885
      %907 = vmatpush.bf16.msra.mxu0 %v884
      %908 = vmatmul.bf16.gmra.mxu0 %v819
      %v909 = vpop.f32.mrf.mxu0
      %v910 = vadd.f32 0.0, %v909
      %v911 = vpop.f32.mrf.mxu0
      %v912 = vadd.f32 0.0, %v911
      %913 = vmatmul.bf16.gmra.mxu0 %v820
      %v914 = vpop.f32.mrf.mxu0
      %v915 = vadd.f32 0.0, %v914
      %v916 = vpop.f32.mrf.mxu0
      %v917 = vadd.f32 0.0, %v916
      %918 = vmatmul.bf16.gmra.mxu0 %v821
      %v919 = vpop.f32.mrf.mxu0
      %v920 = vadd.f32 0.0, %v919
      %v921 = vpop.f32.mrf.mxu0
      %v922 = vadd.f32 0.0, %v921
      %923 = vmatmul.bf16.gmra.mxu0 %v822
      %v924 = vpop.f32.mrf.mxu0
      %v925 = vadd.f32 0.0, %v924
      %v926 = vpop.f32.mrf.mxu0
      %v927 = vadd.f32 0.0, %v926
      %928 = vmatmul.bf16.gmra.mxu0 %v823
      %v929 = vpop.f32.mrf.mxu0
      %v930 = vadd.f32 0.0, %v929
      %v931 = vpop.f32.mrf.mxu0
      %v932 = vadd.f32 0.0, %v931
      %933 = vmatmul.bf16.gmra.mxu0 %v824
      %v934 = vpop.f32.mrf.mxu0
      %v935 = vadd.f32 0.0, %v934
      %v936 = vpop.f32.mrf.mxu0
      %v937 = vadd.f32 0.0, %v936
      %938 = vmatmul.bf16.gmra.mxu0 %v825
      %v939 = vpop.f32.mrf.mxu0
      %v940 = vadd.f32 0.0, %v939
      %v941 = vpop.f32.mrf.mxu0
      %v942 = vadd.f32 0.0, %v941
      %943 = vmatmul.bf16.gmra.mxu0 %v826
      %v944 = vpop.f32.mrf.mxu0
      %v945 = vadd.f32 0.0, %v944
      %v946 = vpop.f32.mrf.mxu0
      %v947 = vadd.f32 0.0, %v946
      %948 = vmatmul.bf16.gmra.mxu0 %v827
      %v949 = vpop.f32.mrf.mxu0
      %v950 = vadd.f32 0.0, %v949
      %v951 = vpop.f32.mrf.mxu0
      %v952 = vadd.f32 0.0, %v951
      %953 = vmatmul.bf16.gmra.mxu0 %v828
      %v954 = vpop.f32.mrf.mxu0
      %v955 = vadd.f32 0.0, %v954
      %v956 = vpop.f32.mrf.mxu0
      %v957 = vadd.f32 0.0, %v956
      %958 = vmatmul.bf16.gmra.mxu0 %v829
      %v959 = vpop.f32.mrf.mxu0
      %v960 = vadd.f32 0.0, %v959
      %v961 = vpop.f32.mrf.mxu0
      %v962 = vadd.f32 0.0, %v961
      %963 = vmatmul.bf16.gmra.mxu0 %v830
      %v964 = vpop.f32.mrf.mxu0
      %v965 = vadd.f32 0.0, %v964
      %v966 = vpop.f32.mrf.mxu0
      %v967 = vadd.f32 0.0, %v966
      %968 = vmatmul.bf16.gmra.mxu0 %v831
      %v969 = vpop.f32.mrf.mxu0
      %v970 = vadd.f32 0.0, %v969
      %v971 = vpop.f32.mrf.mxu0
      %v972 = vadd.f32 0.0, %v971
      %973 = vmatmul.bf16.gmra.mxu0 %v832
      %v974 = vpop.f32.mrf.mxu0
      %v975 = vadd.f32 0.0, %v974
      %v976 = vpop.f32.mrf.mxu0
      %v977 = vadd.f32 0.0, %v976
      %978 = vmatmul.bf16.gmra.mxu0 %v833
      %v979 = vpop.f32.mrf.mxu0
      %v980 = vadd.f32 0.0, %v979
      %v981 = vpop.f32.mrf.mxu0
      %v982 = vadd.f32 0.0, %v981
      %983 = vmatmul.bf16.gmra.mxu0 %v834
      %v984 = vpop.f32.mrf.mxu0
      %v985 = vadd.f32 0.0, %v984
      %v986 = vpop.f32.mrf.mxu0
      %v987 = vadd.f32 0.0, %v986
      %988 = vdwg.mxu0
      %v1005 = vunpack.c.l.b16 %v771
      %v1006 = vunpack.c.l.b16 %v772
      %v1007 = vunpack.c.l.b16 %v773
      %v1008 = vunpack.c.l.b16 %v774
      %v1009 = vunpack.c.l.b16 %v775
      %v1010 = vunpack.c.l.b16 %v776
      %v1011 = vunpack.c.l.b16 %v777
      %v1012 = vunpack.c.l.b16 %v778
      %v1013 = vunpack.c.l.b16 %v779
      %v1014 = vunpack.c.l.b16 %v780
      %v1015 = vunpack.c.l.b16 %v781
      %v1016 = vunpack.c.l.b16 %v782
      %v1017 = vunpack.c.l.b16 %v783
      %v1018 = vunpack.c.l.b16 %v784
      %v1019 = vunpack.c.l.b16 %v785
      %v1020 = vunpack.c.l.b16 %v786
      %v1021 = vpack.c.b16 %v1006, %v1005
      %v1022 = vpack.c.b16 %v1008, %v1007
      %v1023 = vpack.c.b16 %v1010, %v1009
      %v1024 = vpack.c.b16 %v1012, %v1011
      %v1025 = vpack.c.b16 %v1014, %v1013
      %v1026 = vpack.c.b16 %v1016, %v1015
      %v1027 = vpack.c.b16 %v1018, %v1017
      %v1028 = vpack.c.b16 %v1020, %v1019
      %1037 = vmatpush.bf16.msra.mxu0 %v1028
      %1038 = vmatpush.bf16.msra.mxu0 %v1027
      %1039 = vmatpush.bf16.msra.mxu0 %v1026
      %1040 = vmatpush.bf16.msra.mxu0 %v1025
      %1041 = vmatpush.bf16.msra.mxu0 %v1024
      %1042 = vmatpush.bf16.msra.mxu0 %v1023
      %1043 = vmatpush.bf16.msra.mxu0 %v1022
      %1044 = vmatpush.bf16.msra.mxu0 %v1021
      %1045 = vmatmul.bf16.gmra.mxu0 %v755
      %v1046 = vpop.f32.mrf.mxu0
      %v1047 = vadd.f32 %v910, %v1046
      %v1048 = vpop.f32.mrf.mxu0
      %v1049 = vadd.f32 %v912, %v1048
      %1050 = vmatmul.bf16.gmra.mxu0 %v756
      %v1051 = vpop.f32.mrf.mxu0
      %v1052 = vadd.f32 %v915, %v1051
      %v1053 = vpop.f32.mrf.mxu0
      %v1054 = vadd.f32 %v917, %v1053
      %1055 = vmatmul.bf16.gmra.mxu0 %v757
      %v1056 = vpop.f32.mrf.mxu0
      %v1057 = vadd.f32 %v920, %v1056
      %v1058 = vpop.f32.mrf.mxu0
      %v1059 = vadd.f32 %v922, %v1058
      %1060 = vmatmul.bf16.gmra.mxu0 %v758
      %v1061 = vpop.f32.mrf.mxu0
      %v1062 = vadd.f32 %v925, %v1061
      %v1063 = vpop.f32.mrf.mxu0
      %v1064 = vadd.f32 %v927, %v1063
      %1065 = vmatmul.bf16.gmra.mxu0 %v759
      %v1066 = vpop.f32.mrf.mxu0
      %v1067 = vadd.f32 %v930, %v1066
      %v1068 = vpop.f32.mrf.mxu0
      %v1069 = vadd.f32 %v932, %v1068
      %1070 = vmatmul.bf16.gmra.mxu0 %v760
      %v1071 = vpop.f32.mrf.mxu0
      %v1072 = vadd.f32 %v935, %v1071
      %v1073 = vpop.f32.mrf.mxu0
      %v1074 = vadd.f32 %v937, %v1073
      %1075 = vmatmul.bf16.gmra.mxu0 %v761
      %v1076 = vpop.f32.mrf.mxu0
      %v1077 = vadd.f32 %v940, %v1076
      %v1078 = vpop.f32.mrf.mxu0
      %v1079 = vadd.f32 %v942, %v1078
      %1080 = vmatmul.bf16.gmra.mxu0 %v762
      %v1081 = vpop.f32.mrf.mxu0
      %v1082 = vadd.f32 %v945, %v1081
      %v1083 = vpop.f32.mrf.mxu0
      %v1084 = vadd.f32 %v947, %v1083
      %1085 = vmatmul.bf16.gmra.mxu0 %v763
      %v1086 = vpop.f32.mrf.mxu0
      %v1087 = vadd.f32 %v950, %v1086
      %v1088 = vpop.f32.mrf.mxu0
      %v1089 = vadd.f32 %v952, %v1088
      %1090 = vmatmul.bf16.gmra.mxu0 %v764
      %v1091 = vpop.f32.mrf.mxu0
      %v1092 = vadd.f32 %v955, %v1091
      %v1093 = vpop.f32.mrf.mxu0
      %v1094 = vadd.f32 %v957, %v1093
      %1095 = vmatmul.bf16.gmra.mxu0 %v765
      %v1096 = vpop.f32.mrf.mxu0
      %v1097 = vadd.f32 %v960, %v1096
      %v1098 = vpop.f32.mrf.mxu0
      %v1099 = vadd.f32 %v962, %v1098
      %1100 = vmatmul.bf16.gmra.mxu0 %v766
      %v1101 = vpop.f32.mrf.mxu0
      %v1102 = vadd.f32 %v965, %v1101
      %v1103 = vpop.f32.mrf.mxu0
      %v1104 = vadd.f32 %v967, %v1103
      %1105 = vmatmul.bf16.gmra.mxu0 %v767
      %v1106 = vpop.f32.mrf.mxu0
      %v1107 = vadd.f32 %v970, %v1106
      %v1108 = vpop.f32.mrf.mxu0
      %v1109 = vadd.f32 %v972, %v1108
      %1110 = vmatmul.bf16.gmra.mxu0 %v768
      %v1111 = vpop.f32.mrf.mxu0
      %v1112 = vadd.f32 %v975, %v1111
      %v1113 = vpop.f32.mrf.mxu0
      %v1114 = vadd.f32 %v977, %v1113
      %1115 = vmatmul.bf16.gmra.mxu0 %v769
      %v1116 = vpop.f32.mrf.mxu0
      %v1117 = vadd.f32 %v980, %v1116
      %v1118 = vpop.f32.mrf.mxu0
      %v1119 = vadd.f32 %v982, %v1118
      %1120 = vmatmul.bf16.gmra.mxu0 %v770
      %v1121 = vpop.f32.mrf.mxu0
      %v1122 = vadd.f32 %v985, %v1121
      %v1123 = vpop.f32.mrf.mxu0
      %v1124 = vadd.f32 %v987, %v1123
      %1125 = vdwg.mxu0
      %v1126 = vld [vmem:[#allocation2 + $0x2] sm:$0xff]
      %v1127 = vld [vmem:[#allocation2 + $0xa] sm:$0xff]
      %v1128 = vld [vmem:[#allocation2 + $0x12] sm:$0xff]
      %v1129 = vld [vmem:[#allocation2 + $0x1a] sm:$0xff]
      %v1130 = vld [vmem:[#allocation2 + $0x22] sm:$0xff]
      %v1131 = vld [vmem:[#allocation2 + $0x2a] sm:$0xff]
      %v1132 = vld [vmem:[#allocation2 + $0x32] sm:$0xff]
      %v1133 = vld [vmem:[#allocation2 + $0x3a] sm:$0xff]
      %v1134 = vld [vmem:[#allocation2 + $0x42] sm:$0xff]
      %v1135 = vld [vmem:[#allocation2 + $0x4a] sm:$0xff]
      %v1136 = vld [vmem:[#allocation2 + $0x52] sm:$0xff]
      %v1137 = vld [vmem:[#allocation2 + $0x5a] sm:$0xff]
      %v1138 = vld [vmem:[#allocation2 + $0x62] sm:$0xff]
      %v1139 = vld [vmem:[#allocation2 + $0x6a] sm:$0xff]
      %v1140 = vld [vmem:[#allocation2 + $0x72] sm:$0xff]
      %v1141 = vld [vmem:[#allocation2 + $0x7a] sm:$0xff]
      %v1142 = vld [vmem:[#allocation2 + $0x82] sm:$0xff]
      %v1143 = vld [vmem:[#allocation2 + $0x8a] sm:$0xff]
      %v1144 = vld [vmem:[#allocation2 + $0x92] sm:$0xff]
      %v1145 = vld [vmem:[#allocation2 + $0x9a] sm:$0xff]
      %v1146 = vld [vmem:[#allocation2 + $0xa2] sm:$0xff]
      %v1147 = vld [vmem:[#allocation2 + $0xaa] sm:$0xff]
      %v1148 = vld [vmem:[#allocation2 + $0xb2] sm:$0xff]
      %v1149 = vld [vmem:[#allocation2 + $0xba] sm:$0xff]
      %v1150 = vld [vmem:[#allocation2 + $0xc2] sm:$0xff]
      %v1151 = vld [vmem:[#allocation2 + $0xca] sm:$0xff]
      %v1152 = vld [vmem:[#allocation2 + $0xd2] sm:$0xff]
      %v1153 = vld [vmem:[#allocation2 + $0xda] sm:$0xff]
      %v1154 = vld [vmem:[#allocation2 + $0xe2] sm:$0xff]
      %v1155 = vld [vmem:[#allocation2 + $0xea] sm:$0xff]
      %v1156 = vld [vmem:[#allocation2 + $0xf2] sm:$0xff]
      %v1157 = vld [vmem:[#allocation2 + $0xfa] sm:$0xff]
      %v1158 = vpack.c.bf16 %v1127, %v1126
      %v1159 = vpack.c.bf16 %v1129, %v1128
      %v1160 = vpack.c.bf16 %v1131, %v1130
      %v1161 = vpack.c.bf16 %v1133, %v1132
      %v1162 = vpack.c.bf16 %v1135, %v1134
      %v1163 = vpack.c.bf16 %v1137, %v1136
      %v1164 = vpack.c.bf16 %v1139, %v1138
      %v1165 = vpack.c.bf16 %v1141, %v1140
      %v1166 = vpack.c.bf16 %v1143, %v1142
      %v1167 = vpack.c.bf16 %v1145, %v1144
      %v1168 = vpack.c.bf16 %v1147, %v1146
      %v1169 = vpack.c.bf16 %v1149, %v1148
      %v1170 = vpack.c.bf16 %v1151, %v1150
      %v1171 = vpack.c.bf16 %v1153, %v1152
      %v1172 = vpack.c.bf16 %v1155, %v1154
      %v1173 = vpack.c.bf16 %v1157, %v1156
      %s1174 = scalar_lea.vmem %s411, 128
      %v1175 = vld [vmem:[%s1174] sm:$0xf]
      %v1176 = vld [vmem:[%s1174 + $0x4] sm:$0xf]
      %v1177 = vld [vmem:[%s1174 + $0x8] sm:$0xf]
      %v1178 = vld [vmem:[%s1174 + $0xc] sm:$0xf]
      %v1179 = vld [vmem:[%s1174 + $0x10] sm:$0xf]
      %v1180 = vld [vmem:[%s1174 + $0x14] sm:$0xf]
      %v1181 = vld [vmem:[%s1174 + $0x18] sm:$0xf]
      %v1182 = vld [vmem:[%s1174 + $0x1c] sm:$0xf]
      %v1183 = vld [vmem:[%s1174 + $0x20] sm:$0xf]
      %v1184 = vld [vmem:[%s1174 + $0x24] sm:$0xf]
      %v1185 = vld [vmem:[%s1174 + $0x28] sm:$0xf]
      %v1186 = vld [vmem:[%s1174 + $0x2c] sm:$0xf]
      %v1187 = vld [vmem:[%s1174 + $0x30] sm:$0xf]
      %v1188 = vld [vmem:[%s1174 + $0x34] sm:$0xf]
      %v1189 = vld [vmem:[%s1174 + $0x38] sm:$0xf]
      %v1190 = vld [vmem:[%s1174 + $0x3c] sm:$0xf]
      %v1207 = vunpack.c.l.b16 %v1175
      %v1208 = vunpack.c.l.b16 %v1176
      %v1209 = vunpack.c.l.b16 %v1177
      %v1210 = vunpack.c.l.b16 %v1178
      %v1211 = vunpack.c.l.b16 %v1179
      %v1212 = vunpack.c.l.b16 %v1180
      %v1213 = vunpack.c.l.b16 %v1181
      %v1214 = vunpack.c.l.b16 %v1182
      %v1215 = vunpack.c.l.b16 %v1183
      %v1216 = vunpack.c.l.b16 %v1184
      %v1217 = vunpack.c.l.b16 %v1185
      %v1218 = vunpack.c.l.b16 %v1186
      %v1219 = vunpack.c.l.b16 %v1187
      %v1220 = vunpack.c.l.b16 %v1188
      %v1221 = vunpack.c.l.b16 %v1189
      %v1222 = vunpack.c.l.b16 %v1190
      %v1223 = vpack.c.b16 %v1208, %v1207
      %v1224 = vpack.c.b16 %v1210, %v1209
      %v1225 = vpack.c.b16 %v1212, %v1211
      %v1226 = vpack.c.b16 %v1214, %v1213
      %v1227 = vpack.c.b16 %v1216, %v1215
      %v1228 = vpack.c.b16 %v1218, %v1217
      %v1229 = vpack.c.b16 %v1220, %v1219
      %v1230 = vpack.c.b16 %v1222, %v1221
      %1239 = vmatpush.bf16.msra.mxu0 %v1230
      %1240 = vmatpush.bf16.msra.mxu0 %v1229
      %1241 = vmatpush.bf16.msra.mxu0 %v1228
      %1242 = vmatpush.bf16.msra.mxu0 %v1227
      %1243 = vmatpush.bf16.msra.mxu0 %v1226
      %1244 = vmatpush.bf16.msra.mxu0 %v1225
      %1245 = vmatpush.bf16.msra.mxu0 %v1224
      %1246 = vmatpush.bf16.msra.mxu0 %v1223
      %1247 = vmatmul.bf16.gmra.mxu0 %v1158
      %v1248 = vpop.f32.mrf.mxu0
      %v1249 = vadd.f32 0.0, %v1248
      %v1250 = vpop.f32.mrf.mxu0
      %v1251 = vadd.f32 0.0, %v1250
      %1252 = vmatmul.bf16.gmra.mxu0 %v1159
      %v1253 = vpop.f32.mrf.mxu0
      %v1254 = vadd.f32 0.0, %v1253
      %v1255 = vpop.f32.mrf.mxu0
      %v1256 = vadd.f32 0.0, %v1255
      %1257 = vmatmul.bf16.gmra.mxu0 %v1160
      %v1258 = vpop.f32.mrf.mxu0
      %v1259 = vadd.f32 0.0, %v1258
      %v1260 = vpop.f32.mrf.mxu0
      %v1261 = vadd.f32 0.0, %v1260
      %1262 = vmatmul.bf16.gmra.mxu0 %v1161
      %v1263 = vpop.f32.mrf.mxu0
      %v1264 = vadd.f32 0.0, %v1263
      %v1265 = vpop.f32.mrf.mxu0
      %v1266 = vadd.f32 0.0, %v1265
      %1267 = vmatmul.bf16.gmra.mxu0 %v1162
      %v1268 = vpop.f32.mrf.mxu0
      %v1269 = vadd.f32 0.0, %v1268
      %v1270 = vpop.f32.mrf.mxu0
      %v1271 = vadd.f32 0.0, %v1270
      %1272 = vmatmul.bf16.gmra.mxu0 %v1163
      %v1273 = vpop.f32.mrf.mxu0
      %v1274 = vadd.f32 0.0, %v1273
      %v1275 = vpop.f32.mrf.mxu0
      %v1276 = vadd.f32 0.0, %v1275
      %1277 = vmatmul.bf16.gmra.mxu0 %v1164
      %v1278 = vpop.f32.mrf.mxu0
      %v1279 = vadd.f32 0.0, %v1278
      %v1280 = vpop.f32.mrf.mxu0
      %v1281 = vadd.f32 0.0, %v1280
      %1282 = vmatmul.bf16.gmra.mxu0 %v1165
      %v1283 = vpop.f32.mrf.mxu0
      %v1284 = vadd.f32 0.0, %v1283
      %v1285 = vpop.f32.mrf.mxu0
      %v1286 = vadd.f32 0.0, %v1285
      %1287 = vmatmul.bf16.gmra.mxu0 %v1166
      %v1288 = vpop.f32.mrf.mxu0
      %v1289 = vadd.f32 0.0, %v1288
      %v1290 = vpop.f32.mrf.mxu0
      %v1291 = vadd.f32 0.0, %v1290
      %1292 = vmatmul.bf16.gmra.mxu0 %v1167
      %v1293 = vpop.f32.mrf.mxu0
      %v1294 = vadd.f32 0.0, %v1293
      %v1295 = vpop.f32.mrf.mxu0
      %v1296 = vadd.f32 0.0, %v1295
      %1297 = vmatmul.bf16.gmra.mxu0 %v1168
      %v1298 = vpop.f32.mrf.mxu0
      %v1299 = vadd.f32 0.0, %v1298
      %v1300 = vpop.f32.mrf.mxu0
      %v1301 = vadd.f32 0.0, %v1300
      %1302 = vmatmul.bf16.gmra.mxu0 %v1169
      %v1303 = vpop.f32.mrf.mxu0
      %v1304 = vadd.f32 0.0, %v1303
      %v1305 = vpop.f32.mrf.mxu0
      %v1306 = vadd.f32 0.0, %v1305
      %1307 = vmatmul.bf16.gmra.mxu0 %v1170
      %v1308 = vpop.f32.mrf.mxu0
      %v1309 = vadd.f32 0.0, %v1308
      %v1310 = vpop.f32.mrf.mxu0
      %v1311 = vadd.f32 0.0, %v1310
      %1312 = vmatmul.bf16.gmra.mxu0 %v1171
      %v1313 = vpop.f32.mrf.mxu0
      %v1314 = vadd.f32 0.0, %v1313
      %v1315 = vpop.f32.mrf.mxu0
      %v1316 = vadd.f32 0.0, %v1315
      %1317 = vmatmul.bf16.gmra.mxu0 %v1172
      %v1318 = vpop.f32.mrf.mxu0
      %v1319 = vadd.f32 0.0, %v1318
      %v1320 = vpop.f32.mrf.mxu0
      %v1321 = vadd.f32 0.0, %v1320
      %1322 = vmatmul.bf16.gmra.mxu0 %v1173
      %v1323 = vpop.f32.mrf.mxu0
      %v1324 = vadd.f32 0.0, %v1323
      %v1325 = vpop.f32.mrf.mxu0
      %v1326 = vadd.f32 0.0, %v1325
      %1327 = vdwg.mxu0
      %v1328 = vadd.f32 %v1047, %v1249
      %v1329 = vadd.f32 %v1049, %v1251
      %v1330 = vadd.f32 %v1052, %v1254
      %v1331 = vadd.f32 %v1054, %v1256
      %v1332 = vadd.f32 %v1057, %v1259
      %v1333 = vadd.f32 %v1059, %v1261
      %v1334 = vadd.f32 %v1062, %v1264
      %v1335 = vadd.f32 %v1064, %v1266
      %v1336 = vadd.f32 %v1067, %v1269
      %v1337 = vadd.f32 %v1069, %v1271
      %v1338 = vadd.f32 %v1072, %v1274
      %v1339 = vadd.f32 %v1074, %v1276
      %v1340 = vadd.f32 %v1077, %v1279
      %v1341 = vadd.f32 %v1079, %v1281
      %v1342 = vadd.f32 %v1082, %v1284
      %v1343 = vadd.f32 %v1084, %v1286
      %v1344 = vadd.f32 %v1087, %v1289
      %v1345 = vadd.f32 %v1089, %v1291
      %v1346 = vadd.f32 %v1092, %v1294
      %v1347 = vadd.f32 %v1094, %v1296
      %v1348 = vadd.f32 %v1097, %v1299
      %v1349 = vadd.f32 %v1099, %v1301
      %v1350 = vadd.f32 %v1102, %v1304
      %v1351 = vadd.f32 %v1104, %v1306
      %v1352 = vadd.f32 %v1107, %v1309
      %v1353 = vadd.f32 %v1109, %v1311
      %v1354 = vadd.f32 %v1112, %v1314
      %v1355 = vadd.f32 %v1114, %v1316
      %v1356 = vadd.f32 %v1117, %v1319
      %v1357 = vadd.f32 %v1119, %v1321
      %v1358 = vadd.f32 %v1122, %v1324
      %v1359 = vadd.f32 %v1124, %v1326
      %v1360 = vld [vmem:[#allocation2 + $0x12] sm:$0xff]
      %v1361 = vld [vmem:[#allocation2 + $0x1a] sm:$0xff]
      %v1362 = vld [vmem:[#allocation2 + $0x22] sm:$0xff]
      %v1363 = vld [vmem:[#allocation2 + $0x2a] sm:$0xff]
      %v1364 = vld [vmem:[#allocation2 + $0x32] sm:$0xff]
      %v1365 = vld [vmem:[#allocation2 + $0x3a] sm:$0xff]
      %v1366 = vld [vmem:[#allocation2 + $0x42] sm:$0xff]
      %v1367 = vld [vmem:[#allocation2 + $0x4a] sm:$0xff]
      %v1368 = vld [vmem:[#allocation2 + $0x52] sm:$0xff]
      %v1369 = vld [vmem:[#allocation2 + $0x5a] sm:$0xff]
      %v1370 = vld [vmem:[#allocation2 + $0x62] sm:$0xff]
      %v1371 = vld [vmem:[#allocation2 + $0x6a] sm:$0xff]
      %v1372 = vld [vmem:[#allocation2 + $0x72] sm:$0xff]
      %v1373 = vld [vmem:[#allocation2 + $0x7a] sm:$0xff]
      %v1374 = vld [vmem:[#allocation2 + $0x82] sm:$0xff]
      %v1375 = vld [vmem:[#allocation2 + $0x8a] sm:$0xff]
      %v1376 = vld [vmem:[#allocation2 + $0x92] sm:$0xff]
      %v1377 = vld [vmem:[#allocation2 + $0x9a] sm:$0xff]
      %v1378 = vld [vmem:[#allocation2 + $0xa2] sm:$0xff]
      %v1379 = vld [vmem:[#allocation2 + $0xaa] sm:$0xff]
      %v1380 = vld [vmem:[#allocation2 + $0xb2] sm:$0xff]
      %v1381 = vld [vmem:[#allocation2 + $0xba] sm:$0xff]
      %v1382 = vld [vmem:[#allocation2 + $0xc2] sm:$0xff]
      %v1383 = vld [vmem:[#allocation2 + $0xca] sm:$0xff]
      %v1384 = vld [vmem:[#allocation2 + $0xd2] sm:$0xff]
      %v1385 = vld [vmem:[#allocation2 + $0xda] sm:$0xff]
      %v1386 = vld [vmem:[#allocation2 + $0xe2] sm:$0xff]
      %v1387 = vld [vmem:[#allocation2 + $0xea] sm:$0xff]
      %v1388 = vld [vmem:[#allocation2 + $0xf2] sm:$0xff]
      %v1389 = vld [vmem:[#allocation2 + $0xfa] sm:$0xff]
      %v1390 = vld [vmem:[#allocation2 + $0x102] sm:$0xff]
      %v1391 = vld [vmem:[#allocation2 + $0x10a] sm:$0xff]
      %v1392 = vpack.c.bf16 %v1361, %v1360
      %v1393 = vpack.c.bf16 %v1363, %v1362
      %v1394 = vpack.c.bf16 %v1365, %v1364
      %v1395 = vpack.c.bf16 %v1367, %v1366
      %v1396 = vpack.c.bf16 %v1369, %v1368
      %v1397 = vpack.c.bf16 %v1371, %v1370
      %v1398 = vpack.c.bf16 %v1373, %v1372
      %v1399 = vpack.c.bf16 %v1375, %v1374
      %v1400 = vpack.c.bf16 %v1377, %v1376
      %v1401 = vpack.c.bf16 %v1379, %v1378
      %v1402 = vpack.c.bf16 %v1381, %v1380
      %v1403 = vpack.c.bf16 %v1383, %v1382
      %v1404 = vpack.c.bf16 %v1385, %v1384
      %v1405 = vpack.c.bf16 %v1387, %v1386
      %v1406 = vpack.c.bf16 %v1389, %v1388
      %v1407 = vpack.c.bf16 %v1391, %v1390
      %s1408 = scalar_lea.vmem %s411, 192
      %v1409 = vld [vmem:[%s1408] sm:$0xf]
      %v1410 = vld [vmem:[%s1408 + $0x4] sm:$0xf]
      %v1411 = vld [vmem:[%s1408 + $0x8] sm:$0xf]
      %v1412 = vld [vmem:[%s1408 + $0xc] sm:$0xf]
      %v1413 = vld [vmem:[%s1408 + $0x10] sm:$0xf]
      %v1414 = vld [vmem:[%s1408 + $0x14] sm:$0xf]
      %v1415 = vld [vmem:[%s1408 + $0x18] sm:$0xf]
      %v1416 = vld [vmem:[%s1408 + $0x1c] sm:$0xf]
      %v1417 = vld [vmem:[%s1408 + $0x20] sm:$0xf]
      %v1418 = vld [vmem:[%s1408 + $0x24] sm:$0xf]
      %v1419 = vld [vmem:[%s1408 + $0x28] sm:$0xf]
      %v1420 = vld [vmem:[%s1408 + $0x2c] sm:$0xf]
      %v1421 = vld [vmem:[%s1408 + $0x30] sm:$0xf]
      %v1422 = vld [vmem:[%s1408 + $0x34] sm:$0xf]
      %v1423 = vld [vmem:[%s1408 + $0x38] sm:$0xf]
      %v1424 = vld [vmem:[%s1408 + $0x3c] sm:$0xf]
      %v1441 = vunpack.c.l.b16 %v1409
      %v1442 = vunpack.c.l.b16 %v1410
      %v1443 = vunpack.c.l.b16 %v1411
      %v1444 = vunpack.c.l.b16 %v1412
      %v1445 = vunpack.c.l.b16 %v1413
      %v1446 = vunpack.c.l.b16 %v1414
      %v1447 = vunpack.c.l.b16 %v1415
      %v1448 = vunpack.c.l.b16 %v1416
      %v1449 = vunpack.c.l.b16 %v1417
      %v1450 = vunpack.c.l.b16 %v1418
      %v1451 = vunpack.c.l.b16 %v1419
      %v1452 = vunpack.c.l.b16 %v1420
      %v1453 = vunpack.c.l.b16 %v1421
      %v1454 = vunpack.c.l.b16 %v1422
      %v1455 = vunpack.c.l.b16 %v1423
      %v1456 = vunpack.c.l.b16 %v1424
      %v1457 = vpack.c.b16 %v1442, %v1441
      %v1458 = vpack.c.b16 %v1444, %v1443
      %v1459 = vpack.c.b16 %v1446, %v1445
      %v1460 = vpack.c.b16 %v1448, %v1447
      %v1461 = vpack.c.b16 %v1450, %v1449
      %v1462 = vpack.c.b16 %v1452, %v1451
      %v1463 = vpack.c.b16 %v1454, %v1453
      %v1464 = vpack.c.b16 %v1456, %v1455
      %1473 = vmatpush.bf16.msra.mxu0 %v1464
      %1474 = vmatpush.bf16.msra.mxu0 %v1463
      %1475 = vmatpush.bf16.msra.mxu0 %v1462
      %1476 = vmatpush.bf16.msra.mxu0 %v1461
      %1477 = vmatpush.bf16.msra.mxu0 %v1460
      %1478 = vmatpush.bf16.msra.mxu0 %v1459
      %1479 = vmatpush.bf16.msra.mxu0 %v1458
      %1480 = vmatpush.bf16.msra.mxu0 %v1457
      %1481 = vmatmul.bf16.gmra.mxu0 %v1392
      %v1482 = vpop.f32.mrf.mxu0
      %v1483 = vadd.f32 0.0, %v1482
      %v1484 = vpop.f32.mrf.mxu0
      %v1485 = vadd.f32 0.0, %v1484
      %1486 = vmatmul.bf16.gmra.mxu0 %v1393
      %v1487 = vpop.f32.mrf.mxu0
      %v1488 = vadd.f32 0.0, %v1487
      %v1489 = vpop.f32.mrf.mxu0
      %v1490 = vadd.f32 0.0, %v1489
      %1491 = vmatmul.bf16.gmra.mxu0 %v1394
      %v1492 = vpop.f32.mrf.mxu0
      %v1493 = vadd.f32 0.0, %v1492
      %v1494 = vpop.f32.mrf.mxu0
      %v1495 = vadd.f32 0.0, %v1494
      %1496 = vmatmul.bf16.gmra.mxu0 %v1395
      %v1497 = vpop.f32.mrf.mxu0
      %v1498 = vadd.f32 0.0, %v1497
      %v1499 = vpop.f32.mrf.mxu0
      %v1500 = vadd.f32 0.0, %v1499
      %1501 = vmatmul.bf16.gmra.mxu0 %v1396
      %v1502 = vpop.f32.mrf.mxu0
      %v1503 = vadd.f32 0.0, %v1502
      %v1504 = vpop.f32.mrf.mxu0
      %v1505 = vadd.f32 0.0, %v1504
      %1506 = vmatmul.bf16.gmra.mxu0 %v1397
      %v1507 = vpop.f32.mrf.mxu0
      %v1508 = vadd.f32 0.0, %v1507
      %v1509 = vpop.f32.mrf.mxu0
      %v1510 = vadd.f32 0.0, %v1509
      %1511 = vmatmul.bf16.gmra.mxu0 %v1398
      %v1512 = vpop.f32.mrf.mxu0
      %v1513 = vadd.f32 0.0, %v1512
      %v1514 = vpop.f32.mrf.mxu0
      %v1515 = vadd.f32 0.0, %v1514
      %1516 = vmatmul.bf16.gmra.mxu0 %v1399
      %v1517 = vpop.f32.mrf.mxu0
      %v1518 = vadd.f32 0.0, %v1517
      %v1519 = vpop.f32.mrf.mxu0
      %v1520 = vadd.f32 0.0, %v1519
      %1521 = vmatmul.bf16.gmra.mxu0 %v1400
      %v1522 = vpop.f32.mrf.mxu0
      %v1523 = vadd.f32 0.0, %v1522
      %v1524 = vpop.f32.mrf.mxu0
      %v1525 = vadd.f32 0.0, %v1524
      %1526 = vmatmul.bf16.gmra.mxu0 %v1401
      %v1527 = vpop.f32.mrf.mxu0
      %v1528 = vadd.f32 0.0, %v1527
      %v1529 = vpop.f32.mrf.mxu0
      %v1530 = vadd.f32 0.0, %v1529
      %1531 = vmatmul.bf16.gmra.mxu0 %v1402
      %v1532 = vpop.f32.mrf.mxu0
      %v1533 = vadd.f32 0.0, %v1532
      %v1534 = vpop.f32.mrf.mxu0
      %v1535 = vadd.f32 0.0, %v1534
      %1536 = vmatmul.bf16.gmra.mxu0 %v1403
      %v1537 = vpop.f32.mrf.mxu0
      %v1538 = vadd.f32 0.0, %v1537
      %v1539 = vpop.f32.mrf.mxu0
      %v1540 = vadd.f32 0.0, %v1539
      %1541 = vmatmul.bf16.gmra.mxu0 %v1404
      %v1542 = vpop.f32.mrf.mxu0
      %v1543 = vadd.f32 0.0, %v1542
      %v1544 = vpop.f32.mrf.mxu0
      %v1545 = vadd.f32 0.0, %v1544
      %1546 = vmatmul.bf16.gmra.mxu0 %v1405
      %v1547 = vpop.f32.mrf.mxu0
      %v1548 = vadd.f32 0.0, %v1547
      %v1549 = vpop.f32.mrf.mxu0
      %v1550 = vadd.f32 0.0, %v1549
      %1551 = vmatmul.bf16.gmra.mxu0 %v1406
      %v1552 = vpop.f32.mrf.mxu0
      %v1553 = vadd.f32 0.0, %v1552
      %v1554 = vpop.f32.mrf.mxu0
      %v1555 = vadd.f32 0.0, %v1554
      %1556 = vmatmul.bf16.gmra.mxu0 %v1407
      %v1557 = vpop.f32.mrf.mxu0
      %v1558 = vadd.f32 0.0, %v1557
      %v1559 = vpop.f32.mrf.mxu0
      %v1560 = vadd.f32 0.0, %v1559
      %1561 = vdwg.mxu0
      %v1562 = vadd.f32 %v1328, %v1483
      %v1563 = vadd.f32 %v1329, %v1485
      %v1564 = vadd.f32 %v1330, %v1488
      %v1565 = vadd.f32 %v1331, %v1490
      %v1566 = vadd.f32 %v1332, %v1493
      %v1567 = vadd.f32 %v1333, %v1495
      %v1568 = vadd.f32 %v1334, %v1498
      %v1569 = vadd.f32 %v1335, %v1500
      %v1570 = vadd.f32 %v1336, %v1503
      %v1571 = vadd.f32 %v1337, %v1505
      %v1572 = vadd.f32 %v1338, %v1508
      %v1573 = vadd.f32 %v1339, %v1510
      %v1574 = vadd.f32 %v1340, %v1513
      %v1575 = vadd.f32 %v1341, %v1515
      %v1576 = vadd.f32 %v1342, %v1518
      %v1577 = vadd.f32 %v1343, %v1520
      %v1578 = vadd.f32 %v1344, %v1523
      %v1579 = vadd.f32 %v1345, %v1525
      %v1580 = vadd.f32 %v1346, %v1528
      %v1581 = vadd.f32 %v1347, %v1530
      %v1582 = vadd.f32 %v1348, %v1533
      %v1583 = vadd.f32 %v1349, %v1535
      %v1584 = vadd.f32 %v1350, %v1538
      %v1585 = vadd.f32 %v1351, %v1540
      %v1586 = vadd.f32 %v1352, %v1543
      %v1587 = vadd.f32 %v1353, %v1545
      %v1588 = vadd.f32 %v1354, %v1548
      %v1589 = vadd.f32 %v1355, %v1550
      %v1590 = vadd.f32 %v1356, %v1553
      %v1591 = vadd.f32 %v1357, %v1555
      %v1592 = vadd.f32 %v1358, %v1558
      %v1593 = vadd.f32 %v1359, %v1560
      %v1594 = vld [vmem:[#allocation2 + $0x13] sm:$0xff]
      %v1595 = vld [vmem:[#allocation2 + $0x1b] sm:$0xff]
      %v1596 = vld [vmem:[#allocation2 + $0x23] sm:$0xff]
      %v1597 = vld [vmem:[#allocation2 + $0x2b] sm:$0xff]
      %v1598 = vld [vmem:[#allocation2 + $0x33] sm:$0xff]
      %v1599 = vld [vmem:[#allocation2 + $0x3b] sm:$0xff]
      %v1600 = vld [vmem:[#allocation2 + $0x43] sm:$0xff]
      %v1601 = vld [vmem:[#allocation2 + $0x4b] sm:$0xff]
      %v1602 = vld [vmem:[#allocation2 + $0x53] sm:$0xff]
      %v1603 = vld [vmem:[#allocation2 + $0x5b] sm:$0xff]
      %v1604 = vld [vmem:[#allocation2 + $0x63] sm:$0xff]
      %v1605 = vld [vmem:[#allocation2 + $0x6b] sm:$0xff]
      %v1606 = vld [vmem:[#allocation2 + $0x73] sm:$0xff]
      %v1607 = vld [vmem:[#allocation2 + $0x7b] sm:$0xff]
      %v1608 = vld [vmem:[#allocation2 + $0x83] sm:$0xff]
      %v1609 = vld [vmem:[#allocation2 + $0x8b] sm:$0xff]
      %v1610 = vld [vmem:[#allocation2 + $0x93] sm:$0xff]
      %v1611 = vld [vmem:[#allocation2 + $0x9b] sm:$0xff]
      %v1612 = vld [vmem:[#allocation2 + $0xa3] sm:$0xff]
      %v1613 = vld [vmem:[#allocation2 + $0xab] sm:$0xff]
      %v1614 = vld [vmem:[#allocation2 + $0xb3] sm:$0xff]
      %v1615 = vld [vmem:[#allocation2 + $0xbb] sm:$0xff]
      %v1616 = vld [vmem:[#allocation2 + $0xc3] sm:$0xff]
      %v1617 = vld [vmem:[#allocation2 + $0xcb] sm:$0xff]
      %v1618 = vld [vmem:[#allocation2 + $0xd3] sm:$0xff]
      %v1619 = vld [vmem:[#allocation2 + $0xdb] sm:$0xff]
      %v1620 = vld [vmem:[#allocation2 + $0xe3] sm:$0xff]
      %v1621 = vld [vmem:[#allocation2 + $0xeb] sm:$0xff]
      %v1622 = vld [vmem:[#allocation2 + $0xf3] sm:$0xff]
      %v1623 = vld [vmem:[#allocation2 + $0xfb] sm:$0xff]
      %v1624 = vld [vmem:[#allocation2 + $0x103] sm:$0xff]
      %v1625 = vld [vmem:[#allocation2 + $0x10b] sm:$0xff]
      %v1626 = vpack.c.bf16 %v1595, %v1594
      %v1627 = vpack.c.bf16 %v1597, %v1596
      %v1628 = vpack.c.bf16 %v1599, %v1598
      %v1629 = vpack.c.bf16 %v1601, %v1600
      %v1630 = vpack.c.bf16 %v1603, %v1602
      %v1631 = vpack.c.bf16 %v1605, %v1604
      %v1632 = vpack.c.bf16 %v1607, %v1606
      %v1633 = vpack.c.bf16 %v1609, %v1608
      %v1634 = vpack.c.bf16 %v1611, %v1610
      %v1635 = vpack.c.bf16 %v1613, %v1612
      %v1636 = vpack.c.bf16 %v1615, %v1614
      %v1637 = vpack.c.bf16 %v1617, %v1616
      %v1638 = vpack.c.bf16 %v1619, %v1618
      %v1639 = vpack.c.bf16 %v1621, %v1620
      %v1640 = vpack.c.bf16 %v1623, %v1622
      %v1641 = vpack.c.bf16 %v1625, %v1624
      %s1642 = scalar_lea.vmem %s411, 256
      %v1643 = vld [vmem:[%s1642] sm:$0xf]
      %v1644 = vld [vmem:[%s1642 + $0x4] sm:$0xf]
      %v1645 = vld [vmem:[%s1642 + $0x8] sm:$0xf]
      %v1646 = vld [vmem:[%s1642 + $0xc] sm:$0xf]
      %v1647 = vld [vmem:[%s1642 + $0x10] sm:$0xf]
      %v1648 = vld [vmem:[%s1642 + $0x14] sm:$0xf]
      %v1649 = vld [vmem:[%s1642 + $0x18] sm:$0xf]
      %v1650 = vld [vmem:[%s1642 + $0x1c] sm:$0xf]
      %v1651 = vld [vmem:[%s1642 + $0x20] sm:$0xf]
      %v1652 = vld [vmem:[%s1642 + $0x24] sm:$0xf]
      %v1653 = vld [vmem:[%s1642 + $0x28] sm:$0xf]
      %v1654 = vld [vmem:[%s1642 + $0x2c] sm:$0xf]
      %v1655 = vld [vmem:[%s1642 + $0x30] sm:$0xf]
      %v1656 = vld [vmem:[%s1642 + $0x34] sm:$0xf]
      %v1657 = vld [vmem:[%s1642 + $0x38] sm:$0xf]
      %v1658 = vld [vmem:[%s1642 + $0x3c] sm:$0xf]
      %v1675 = vunpack.c.l.b16 %v1643
      %v1676 = vunpack.c.l.b16 %v1644
      %v1677 = vunpack.c.l.b16 %v1645
      %v1678 = vunpack.c.l.b16 %v1646
      %v1679 = vunpack.c.l.b16 %v1647
      %v1680 = vunpack.c.l.b16 %v1648
      %v1681 = vunpack.c.l.b16 %v1649
      %v1682 = vunpack.c.l.b16 %v1650
      %v1683 = vunpack.c.l.b16 %v1651
      %v1684 = vunpack.c.l.b16 %v1652
      %v1685 = vunpack.c.l.b16 %v1653
      %v1686 = vunpack.c.l.b16 %v1654
      %v1687 = vunpack.c.l.b16 %v1655
      %v1688 = vunpack.c.l.b16 %v1656
      %v1689 = vunpack.c.l.b16 %v1657
      %v1690 = vunpack.c.l.b16 %v1658
      %v1691 = vpack.c.b16 %v1676, %v1675
      %v1692 = vpack.c.b16 %v1678, %v1677
      %v1693 = vpack.c.b16 %v1680, %v1679
      %v1694 = vpack.c.b16 %v1682, %v1681
      %v1695 = vpack.c.b16 %v1684, %v1683
      %v1696 = vpack.c.b16 %v1686, %v1685
      %v1697 = vpack.c.b16 %v1688, %v1687
      %v1698 = vpack.c.b16 %v1690, %v1689
      %1707 = vmatpush.bf16.msra.mxu0 %v1698
      %1708 = vmatpush.bf16.msra.mxu0 %v1697
      %1709 = vmatpush.bf16.msra.mxu0 %v1696
      %1710 = vmatpush.bf16.msra.mxu0 %v1695
      %1711 = vmatpush.bf16.msra.mxu0 %v1694
      %1712 = vmatpush.bf16.msra.mxu0 %v1693
      %1713 = vmatpush.bf16.msra.mxu0 %v1692
      %1714 = vmatpush.bf16.msra.mxu0 %v1691
      %1715 = vmatmul.bf16.gmra.mxu0 %v1626
      %v1716 = vpop.f32.mrf.mxu0
      %v1717 = vadd.f32 0.0, %v1716
      %v1718 = vpop.f32.mrf.mxu0
      %v1719 = vadd.f32 0.0, %v1718
      %1720 = vmatmul.bf16.gmra.mxu0 %v1627
      %v1721 = vpop.f32.mrf.mxu0
      %v1722 = vadd.f32 0.0, %v1721
      %v1723 = vpop.f32.mrf.mxu0
      %v1724 = vadd.f32 0.0, %v1723
      %1725 = vmatmul.bf16.gmra.mxu0 %v1628
      %v1726 = vpop.f32.mrf.mxu0
      %v1727 = vadd.f32 0.0, %v1726
      %v1728 = vpop.f32.mrf.mxu0
      %v1729 = vadd.f32 0.0, %v1728
      %1730 = vmatmul.bf16.gmra.mxu0 %v1629
      %v1731 = vpop.f32.mrf.mxu0
      %v1732 = vadd.f32 0.0, %v1731
      %v1733 = vpop.f32.mrf.mxu0
      %v1734 = vadd.f32 0.0, %v1733
      %1735 = vmatmul.bf16.gmra.mxu0 %v1630
      %v1736 = vpop.f32.mrf.mxu0
      %v1737 = vadd.f32 0.0, %v1736
      %v1738 = vpop.f32.mrf.mxu0
      %v1739 = vadd.f32 0.0, %v1738
      %1740 = vmatmul.bf16.gmra.mxu0 %v1631
      %v1741 = vpop.f32.mrf.mxu0
      %v1742 = vadd.f32 0.0, %v1741
      %v1743 = vpop.f32.mrf.mxu0
      %v1744 = vadd.f32 0.0, %v1743
      %1745 = vmatmul.bf16.gmra.mxu0 %v1632
      %v1746 = vpop.f32.mrf.mxu0
      %v1747 = vadd.f32 0.0, %v1746
      %v1748 = vpop.f32.mrf.mxu0
      %v1749 = vadd.f32 0.0, %v1748
      %1750 = vmatmul.bf16.gmra.mxu0 %v1633
      %v1751 = vpop.f32.mrf.mxu0
      %v1752 = vadd.f32 0.0, %v1751
      %v1753 = vpop.f32.mrf.mxu0
      %v1754 = vadd.f32 0.0, %v1753
      %1755 = vmatmul.bf16.gmra.mxu0 %v1634
      %v1756 = vpop.f32.mrf.mxu0
      %v1757 = vadd.f32 0.0, %v1756
      %v1758 = vpop.f32.mrf.mxu0
      %v1759 = vadd.f32 0.0, %v1758
      %1760 = vmatmul.bf16.gmra.mxu0 %v1635
      %v1761 = vpop.f32.mrf.mxu0
      %v1762 = vadd.f32 0.0, %v1761
      %v1763 = vpop.f32.mrf.mxu0
      %v1764 = vadd.f32 0.0, %v1763
      %1765 = vmatmul.bf16.gmra.mxu0 %v1636
      %v1766 = vpop.f32.mrf.mxu0
      %v1767 = vadd.f32 0.0, %v1766
      %v1768 = vpop.f32.mrf.mxu0
      %v1769 = vadd.f32 0.0, %v1768
      %1770 = vmatmul.bf16.gmra.mxu0 %v1637
      %v1771 = vpop.f32.mrf.mxu0
      %v1772 = vadd.f32 0.0, %v1771
      %v1773 = vpop.f32.mrf.mxu0
      %v1774 = vadd.f32 0.0, %v1773
      %1775 = vmatmul.bf16.gmra.mxu0 %v1638
      %v1776 = vpop.f32.mrf.mxu0
      %v1777 = vadd.f32 0.0, %v1776
      %v1778 = vpop.f32.mrf.mxu0
      %v1779 = vadd.f32 0.0, %v1778
      %1780 = vmatmul.bf16.gmra.mxu0 %v1639
      %v1781 = vpop.f32.mrf.mxu0
      %v1782 = vadd.f32 0.0, %v1781
      %v1783 = vpop.f32.mrf.mxu0
      %v1784 = vadd.f32 0.0, %v1783
      %1785 = vmatmul.bf16.gmra.mxu0 %v1640
      %v1786 = vpop.f32.mrf.mxu0
      %v1787 = vadd.f32 0.0, %v1786
      %v1788 = vpop.f32.mrf.mxu0
      %v1789 = vadd.f32 0.0, %v1788
      %1790 = vmatmul.bf16.gmra.mxu0 %v1641
      %v1791 = vpop.f32.mrf.mxu0
      %v1792 = vadd.f32 0.0, %v1791
      %v1793 = vpop.f32.mrf.mxu0
      %v1794 = vadd.f32 0.0, %v1793
      %1795 = vdwg.mxu0
      %v1796 = vadd.f32 %v1562, %v1717
      %v1797 = vadd.f32 %v1563, %v1719
      %v1798 = vadd.f32 %v1564, %v1722
      %v1799 = vadd.f32 %v1565, %v1724
      %v1800 = vadd.f32 %v1566, %v1727
      %v1801 = vadd.f32 %v1567, %v1729
      %v1802 = vadd.f32 %v1568, %v1732
      %v1803 = vadd.f32 %v1569, %v1734
      %v1804 = vadd.f32 %v1570, %v1737
      %v1805 = vadd.f32 %v1571, %v1739
      %v1806 = vadd.f32 %v1572, %v1742
      %v1807 = vadd.f32 %v1573, %v1744
      %v1808 = vadd.f32 %v1574, %v1747
      %v1809 = vadd.f32 %v1575, %v1749
      %v1810 = vadd.f32 %v1576, %v1752
      %v1811 = vadd.f32 %v1577, %v1754
      %v1812 = vadd.f32 %v1578, %v1757
      %v1813 = vadd.f32 %v1579, %v1759
      %v1814 = vadd.f32 %v1580, %v1762
      %v1815 = vadd.f32 %v1581, %v1764
      %v1816 = vadd.f32 %v1582, %v1767
      %v1817 = vadd.f32 %v1583, %v1769
      %v1818 = vadd.f32 %v1584, %v1772
      %v1819 = vadd.f32 %v1585, %v1774
      %v1820 = vadd.f32 %v1586, %v1777
      %v1821 = vadd.f32 %v1587, %v1779
      %v1822 = vadd.f32 %v1588, %v1782
      %v1823 = vadd.f32 %v1589, %v1784
      %v1824 = vadd.f32 %v1590, %v1787
      %v1825 = vadd.f32 %v1591, %v1789
      %v1826 = vadd.f32 %v1592, %v1792
      %v1827 = vadd.f32 %v1593, %v1794
      %v1828 = vld [vmem:[#allocation2 + $0x14] sm:$0xff]
      %v1829 = vld [vmem:[#allocation2 + $0x1c] sm:$0xff]
      %v1830 = vld [vmem:[#allocation2 + $0x24] sm:$0xff]
      %v1831 = vld [vmem:[#allocation2 + $0x2c] sm:$0xff]
      %v1832 = vld [vmem:[#allocation2 + $0x34] sm:$0xff]
      %v1833 = vld [vmem:[#allocation2 + $0x3c] sm:$0xff]
      %v1834 = vld [vmem:[#allocation2 + $0x44] sm:$0xff]
      %v1835 = vld [vmem:[#allocation2 + $0x4c] sm:$0xff]
      %v1836 = vld [vmem:[#allocation2 + $0x54] sm:$0xff]
      %v1837 = vld [vmem:[#allocation2 + $0x5c] sm:$0xff]
      %v1838 = vld [vmem:[#allocation2 + $0x64] sm:$0xff]
      %v1839 = vld [vmem:[#allocation2 + $0x6c] sm:$0xff]
      %v1840 = vld [vmem:[#allocation2 + $0x74] sm:$0xff]
      %v1841 = vld [vmem:[#allocation2 + $0x7c] sm:$0xff]
      %v1842 = vld [vmem:[#allocation2 + $0x84] sm:$0xff]
      %v1843 = vld [vmem:[#allocation2 + $0x8c] sm:$0xff]
      %v1844 = vld [vmem:[#allocation2 + $0x94] sm:$0xff]
      %v1845 = vld [vmem:[#allocation2 + $0x9c] sm:$0xff]
      %v1846 = vld [vmem:[#allocation2 + $0xa4] sm:$0xff]
      %v1847 = vld [vmem:[#allocation2 + $0xac] sm:$0xff]
      %v1848 = vld [vmem:[#allocation2 + $0xb4] sm:$0xff]
      %v1849 = vld [vmem:[#allocation2 + $0xbc] sm:$0xff]
      %v1850 = vld [vmem:[#allocation2 + $0xc4] sm:$0xff]
      %v1851 = vld [vmem:[#allocation2 + $0xcc] sm:$0xff]
      %v1852 = vld [vmem:[#allocation2 + $0xd4] sm:$0xff]
      %v1853 = vld [vmem:[#allocation2 + $0xdc] sm:$0xff]
      %v1854 = vld [vmem:[#allocation2 + $0xe4] sm:$0xff]
      %v1855 = vld [vmem:[#allocation2 + $0xec] sm:$0xff]
      %v1856 = vld [vmem:[#allocation2 + $0xf4] sm:$0xff]
      %v1857 = vld [vmem:[#allocation2 + $0xfc] sm:$0xff]
      %v1858 = vld [vmem:[#allocation2 + $0x104] sm:$0xff]
      %v1859 = vld [vmem:[#allocation2 + $0x10c] sm:$0xff]
      %v1860 = vpack.c.bf16 %v1829, %v1828
      %v1861 = vpack.c.bf16 %v1831, %v1830
      %v1862 = vpack.c.bf16 %v1833, %v1832
      %v1863 = vpack.c.bf16 %v1835, %v1834
      %v1864 = vpack.c.bf16 %v1837, %v1836
      %v1865 = vpack.c.bf16 %v1839, %v1838
      %v1866 = vpack.c.bf16 %v1841, %v1840
      %v1867 = vpack.c.bf16 %v1843, %v1842
      %v1868 = vpack.c.bf16 %v1845, %v1844
      %v1869 = vpack.c.bf16 %v1847, %v1846
      %v1870 = vpack.c.bf16 %v1849, %v1848
      %v1871 = vpack.c.bf16 %v1851, %v1850
      %v1872 = vpack.c.bf16 %v1853, %v1852
      %v1873 = vpack.c.bf16 %v1855, %v1854
      %v1874 = vpack.c.bf16 %v1857, %v1856
      %v1875 = vpack.c.bf16 %v1859, %v1858
      %s1876 = scalar_lea.vmem %s411, 320
      %v1877 = vld [vmem:[%s1876] sm:$0xf]
      %v1878 = vld [vmem:[%s1876 + $0x4] sm:$0xf]
      %v1879 = vld [vmem:[%s1876 + $0x8] sm:$0xf]
      %v1880 = vld [vmem:[%s1876 + $0xc] sm:$0xf]
      %v1881 = vld [vmem:[%s1876 + $0x10] sm:$0xf]
      %v1882 = vld [vmem:[%s1876 + $0x14] sm:$0xf]
      %v1883 = vld [vmem:[%s1876 + $0x18] sm:$0xf]
      %v1884 = vld [vmem:[%s1876 + $0x1c] sm:$0xf]
      %v1885 = vld [vmem:[%s1876 + $0x20] sm:$0xf]
      %v1886 = vld [vmem:[%s1876 + $0x24] sm:$0xf]
      %v1887 = vld [vmem:[%s1876 + $0x28] sm:$0xf]
      %v1888 = vld [vmem:[%s1876 + $0x2c] sm:$0xf]
      %v1889 = vld [vmem:[%s1876 + $0x30] sm:$0xf]
      %v1890 = vld [vmem:[%s1876 + $0x34] sm:$0xf]
      %v1891 = vld [vmem:[%s1876 + $0x38] sm:$0xf]
      %v1892 = vld [vmem:[%s1876 + $0x3c] sm:$0xf]
      %v1909 = vunpack.c.l.b16 %v1877
      %v1910 = vunpack.c.l.b16 %v1878
      %v1911 = vunpack.c.l.b16 %v1879
      %v1912 = vunpack.c.l.b16 %v1880
      %v1913 = vunpack.c.l.b16 %v1881
      %v1914 = vunpack.c.l.b16 %v1882
      %v1915 = vunpack.c.l.b16 %v1883
      %v1916 = vunpack.c.l.b16 %v1884
      %v1917 = vunpack.c.l.b16 %v1885
      %v1918 = vunpack.c.l.b16 %v1886
      %v1919 = vunpack.c.l.b16 %v1887
      %v1920 = vunpack.c.l.b16 %v1888
      %v1921 = vunpack.c.l.b16 %v1889
      %v1922 = vunpack.c.l.b16 %v1890
      %v1923 = vunpack.c.l.b16 %v1891
      %v1924 = vunpack.c.l.b16 %v1892
      %v1925 = vpack.c.b16 %v1910, %v1909
      %v1926 = vpack.c.b16 %v1912, %v1911
      %v1927 = vpack.c.b16 %v1914, %v1913
      %v1928 = vpack.c.b16 %v1916, %v1915
      %v1929 = vpack.c.b16 %v1918, %v1917
      %v1930 = vpack.c.b16 %v1920, %v1919
      %v1931 = vpack.c.b16 %v1922, %v1921
      %v1932 = vpack.c.b16 %v1924, %v1923
      %1941 = vmatpush.bf16.msra.mxu0 %v1932
      %1942 = vmatpush.bf16.msra.mxu0 %v1931
      %1943 = vmatpush.bf16.msra.mxu0 %v1930
      %1944 = vmatpush.bf16.msra.mxu0 %v1929
      %1945 = vmatpush.bf16.msra.mxu0 %v1928
      %1946 = vmatpush.bf16.msra.mxu0 %v1927
      %1947 = vmatpush.bf16.msra.mxu0 %v1926
      %1948 = vmatpush.bf16.msra.mxu0 %v1925
      %1949 = vmatmul.bf16.gmra.mxu0 %v1860
      %v1950 = vpop.f32.mrf.mxu0
      %v1951 = vadd.f32 0.0, %v1950
      %v1952 = vpop.f32.mrf.mxu0
      %v1953 = vadd.f32 0.0, %v1952
      %1954 = vmatmul.bf16.gmra.mxu0 %v1861
      %v1955 = vpop.f32.mrf.mxu0
      %v1956 = vadd.f32 0.0, %v1955
      %v1957 = vpop.f32.mrf.mxu0
      %v1958 = vadd.f32 0.0, %v1957
      %1959 = vmatmul.bf16.gmra.mxu0 %v1862
      %v1960 = vpop.f32.mrf.mxu0
      %v1961 = vadd.f32 0.0, %v1960
      %v1962 = vpop.f32.mrf.mxu0
      %v1963 = vadd.f32 0.0, %v1962
      %1964 = vmatmul.bf16.gmra.mxu0 %v1863
      %v1965 = vpop.f32.mrf.mxu0
      %v1966 = vadd.f32 0.0, %v1965
      %v1967 = vpop.f32.mrf.mxu0
      %v1968 = vadd.f32 0.0, %v1967
      %1969 = vmatmul.bf16.gmra.mxu0 %v1864
      %v1970 = vpop.f32.mrf.mxu0
      %v1971 = vadd.f32 0.0, %v1970
      %v1972 = vpop.f32.mrf.mxu0
      %v1973 = vadd.f32 0.0, %v1972
      %1974 = vmatmul.bf16.gmra.mxu0 %v1865
      %v1975 = vpop.f32.mrf.mxu0
      %v1976 = vadd.f32 0.0, %v1975
      %v1977 = vpop.f32.mrf.mxu0
      %v1978 = vadd.f32 0.0, %v1977
      %1979 = vmatmul.bf16.gmra.mxu0 %v1866
      %v1980 = vpop.f32.mrf.mxu0
      %v1981 = vadd.f32 0.0, %v1980
      %v1982 = vpop.f32.mrf.mxu0
      %v1983 = vadd.f32 0.0, %v1982
      %1984 = vmatmul.bf16.gmra.mxu0 %v1867
      %v1985 = vpop.f32.mrf.mxu0
      %v1986 = vadd.f32 0.0, %v1985
      %v1987 = vpop.f32.mrf.mxu0
      %v1988 = vadd.f32 0.0, %v1987
      %1989 = vmatmul.bf16.gmra.mxu0 %v1868
      %v1990 = vpop.f32.mrf.mxu0
      %v1991 = vadd.f32 0.0, %v1990
      %v1992 = vpop.f32.mrf.mxu0
      %v1993 = vadd.f32 0.0, %v1992
      %1994 = vmatmul.bf16.gmra.mxu0 %v1869
      %v1995 = vpop.f32.mrf.mxu0
      %v1996 = vadd.f32 0.0, %v1995
      %v1997 = vpop.f32.mrf.mxu0
      %v1998 = vadd.f32 0.0, %v1997
      %1999 = vmatmul.bf16.gmra.mxu0 %v1870
      %v2000 = vpop.f32.mrf.mxu0
      %v2001 = vadd.f32 0.0, %v2000
      %v2002 = vpop.f32.mrf.mxu0
      %v2003 = vadd.f32 0.0, %v2002
      %2004 = vmatmul.bf16.gmra.mxu0 %v1871
      %v2005 = vpop.f32.mrf.mxu0
      %v2006 = vadd.f32 0.0, %v2005
      %v2007 = vpop.f32.mrf.mxu0
      %v2008 = vadd.f32 0.0, %v2007
      %2009 = vmatmul.bf16.gmra.mxu0 %v1872
      %v2010 = vpop.f32.mrf.mxu0
      %v2011 = vadd.f32 0.0, %v2010
      %v2012 = vpop.f32.mrf.mxu0
      %v2013 = vadd.f32 0.0, %v2012
      %2014 = vmatmul.bf16.gmra.mxu0 %v1873
      %v2015 = vpop.f32.mrf.mxu0
      %v2016 = vadd.f32 0.0, %v2015
      %v2017 = vpop.f32.mrf.mxu0
      %v2018 = vadd.f32 0.0, %v2017
      %2019 = vmatmul.bf16.gmra.mxu0 %v1874
      %v2020 = vpop.f32.mrf.mxu0
      %v2021 = vadd.f32 0.0, %v2020
      %v2022 = vpop.f32.mrf.mxu0
      %v2023 = vadd.f32 0.0, %v2022
      %2024 = vmatmul.bf16.gmra.mxu0 %v1875
      %v2025 = vpop.f32.mrf.mxu0
      %v2026 = vadd.f32 0.0, %v2025
      %v2027 = vpop.f32.mrf.mxu0
      %v2028 = vadd.f32 0.0, %v2027
      %2029 = vdwg.mxu0
      %v2030 = vadd.f32 %v1796, %v1951
      %v2031 = vadd.f32 %v1797, %v1953
      %v2032 = vadd.f32 %v1798, %v1956
      %v2033 = vadd.f32 %v1799, %v1958
      %v2034 = vadd.f32 %v1800, %v1961
      %v2035 = vadd.f32 %v1801, %v1963
      %v2036 = vadd.f32 %v1802, %v1966
      %v2037 = vadd.f32 %v1803, %v1968
      %v2038 = vadd.f32 %v1804, %v1971
      %v2039 = vadd.f32 %v1805, %v1973
      %v2040 = vadd.f32 %v1806, %v1976
      %v2041 = vadd.f32 %v1807, %v1978
      %v2042 = vadd.f32 %v1808, %v1981
      %v2043 = vadd.f32 %v1809, %v1983
      %v2044 = vadd.f32 %v1810, %v1986
      %v2045 = vadd.f32 %v1811, %v1988
      %v2046 = vadd.f32 %v1812, %v1991
      %v2047 = vadd.f32 %v1813, %v1993
      %v2048 = vadd.f32 %v1814, %v1996
      %v2049 = vadd.f32 %v1815, %v1998
      %v2050 = vadd.f32 %v1816, %v2001
      %v2051 = vadd.f32 %v1817, %v2003
      %v2052 = vadd.f32 %v1818, %v2006
      %v2053 = vadd.f32 %v1819, %v2008
      %v2054 = vadd.f32 %v1820, %v2011
      %v2055 = vadd.f32 %v1821, %v2013
      %v2056 = vadd.f32 %v1822, %v2016
      %v2057 = vadd.f32 %v1823, %v2018
      %v2058 = vadd.f32 %v1824, %v2021
      %v2059 = vadd.f32 %v1825, %v2023
      %v2060 = vadd.f32 %v1826, %v2026
      %v2061 = vadd.f32 %v1827, %v2028
      %v2062 = vld [vmem:[#allocation2 + $0x24] sm:$0xff]
      %v2063 = vld [vmem:[#allocation2 + $0x2c] sm:$0xff]
      %v2064 = vld [vmem:[#allocation2 + $0x34] sm:$0xff]
      %v2065 = vld [vmem:[#allocation2 + $0x3c] sm:$0xff]
      %v2066 = vld [vmem:[#allocation2 + $0x44] sm:$0xff]
      %v2067 = vld [vmem:[#allocation2 + $0x4c] sm:$0xff]
      %v2068 = vld [vmem:[#allocation2 + $0x54] sm:$0xff]
      %v2069 = vld [vmem:[#allocation2 + $0x5c] sm:$0xff]
      %v2070 = vld [vmem:[#allocation2 + $0x64] sm:$0xff]
      %v2071 = vld [vmem:[#allocation2 + $0x6c] sm:$0xff]
      %v2072 = vld [vmem:[#allocation2 + $0x74] sm:$0xff]
      %v2073 = vld [vmem:[#allocation2 + $0x7c] sm:$0xff]
      %v2074 = vld [vmem:[#allocation2 + $0x84] sm:$0xff]
      %v2075 = vld [vmem:[#allocation2 + $0x8c] sm:$0xff]
      %v2076 = vld [vmem:[#allocation2 + $0x94] sm:$0xff]
      %v2077 = vld [vmem:[#allocation2 + $0x9c] sm:$0xff]
      %v2078 = vld [vmem:[#allocation2 + $0xa4] sm:$0xff]
      %v2079 = vld [vmem:[#allocation2 + $0xac] sm:$0xff]
      %v2080 = vld [vmem:[#allocation2 + $0xb4] sm:$0xff]
      %v2081 = vld [vmem:[#allocation2 + $0xbc] sm:$0xff]
      %v2082 = vld [vmem:[#allocation2 + $0xc4] sm:$0xff]
      %v2083 = vld [vmem:[#allocation2 + $0xcc] sm:$0xff]
      %v2084 = vld [vmem:[#allocation2 + $0xd4] sm:$0xff]
      %v2085 = vld [vmem:[#allocation2 + $0xdc] sm:$0xff]
      %v2086 = vld [vmem:[#allocation2 + $0xe4] sm:$0xff]
      %v2087 = vld [vmem:[#allocation2 + $0xec] sm:$0xff]
      %v2088 = vld [vmem:[#allocation2 + $0xf4] sm:$0xff]
      %v2089 = vld [vmem:[#allocation2 + $0xfc] sm:$0xff]
      %v2090 = vld [vmem:[#allocation2 + $0x104] sm:$0xff]
      %v2091 = vld [vmem:[#allocation2 + $0x10c] sm:$0xff]
      %v2092 = vld [vmem:[#allocation2 + $0x114] sm:$0xff]
      %v2093 = vld [vmem:[#allocation2 + $0x11c] sm:$0xff]
      %v2094 = vpack.c.bf16 %v2063, %v2062
      %v2095 = vpack.c.bf16 %v2065, %v2064
      %v2096 = vpack.c.bf16 %v2067, %v2066
      %v2097 = vpack.c.bf16 %v2069, %v2068
      %v2098 = vpack.c.bf16 %v2071, %v2070
      %v2099 = vpack.c.bf16 %v2073, %v2072
      %v2100 = vpack.c.bf16 %v2075, %v2074
      %v2101 = vpack.c.bf16 %v2077, %v2076
      %v2102 = vpack.c.bf16 %v2079, %v2078
      %v2103 = vpack.c.bf16 %v2081, %v2080
      %v2104 = vpack.c.bf16 %v2083, %v2082
      %v2105 = vpack.c.bf16 %v2085, %v2084
      %v2106 = vpack.c.bf16 %v2087, %v2086
      %v2107 = vpack.c.bf16 %v2089, %v2088
      %v2108 = vpack.c.bf16 %v2091, %v2090
      %v2109 = vpack.c.bf16 %v2093, %v2092
      %s2110 = scalar_lea.vmem %s411, 384
      %v2111 = vld [vmem:[%s2110] sm:$0xf]
      %v2112 = vld [vmem:[%s2110 + $0x4] sm:$0xf]
      %v2113 = vld [vmem:[%s2110 + $0x8] sm:$0xf]
      %v2114 = vld [vmem:[%s2110 + $0xc] sm:$0xf]
      %v2115 = vld [vmem:[%s2110 + $0x10] sm:$0xf]
      %v2116 = vld [vmem:[%s2110 + $0x14] sm:$0xf]
      %v2117 = vld [vmem:[%s2110 + $0x18] sm:$0xf]
      %v2118 = vld [vmem:[%s2110 + $0x1c] sm:$0xf]
      %v2119 = vld [vmem:[%s2110 + $0x20] sm:$0xf]
      %v2120 = vld [vmem:[%s2110 + $0x24] sm:$0xf]
      %v2121 = vld [vmem:[%s2110 + $0x28] sm:$0xf]
      %v2122 = vld [vmem:[%s2110 + $0x2c] sm:$0xf]
      %v2123 = vld [vmem:[%s2110 + $0x30] sm:$0xf]
      %v2124 = vld [vmem:[%s2110 + $0x34] sm:$0xf]
      %v2125 = vld [vmem:[%s2110 + $0x38] sm:$0xf]
      %v2126 = vld [vmem:[%s2110 + $0x3c] sm:$0xf]
      %v2143 = vunpack.c.l.b16 %v2111
      %v2144 = vunpack.c.l.b16 %v2112
      %v2145 = vunpack.c.l.b16 %v2113
      %v2146 = vunpack.c.l.b16 %v2114
      %v2147 = vunpack.c.l.b16 %v2115
      %v2148 = vunpack.c.l.b16 %v2116
      %v2149 = vunpack.c.l.b16 %v2117
      %v2150 = vunpack.c.l.b16 %v2118
      %v2151 = vunpack.c.l.b16 %v2119
      %v2152 = vunpack.c.l.b16 %v2120
      %v2153 = vunpack.c.l.b16 %v2121
      %v2154 = vunpack.c.l.b16 %v2122
      %v2155 = vunpack.c.l.b16 %v2123
      %v2156 = vunpack.c.l.b16 %v2124
      %v2157 = vunpack.c.l.b16 %v2125
      %v2158 = vunpack.c.l.b16 %v2126
      %v2159 = vpack.c.b16 %v2144, %v2143
      %v2160 = vpack.c.b16 %v2146, %v2145
      %v2161 = vpack.c.b16 %v2148, %v2147
      %v2162 = vpack.c.b16 %v2150, %v2149
      %v2163 = vpack.c.b16 %v2152, %v2151
      %v2164 = vpack.c.b16 %v2154, %v2153
      %v2165 = vpack.c.b16 %v2156, %v2155
      %v2166 = vpack.c.b16 %v2158, %v2157
      %2175 = vmatpush.bf16.msra.mxu0 %v2166
      %2176 = vmatpush.bf16.msra.mxu0 %v2165
      %2177 = vmatpush.bf16.msra.mxu0 %v2164
      %2178 = vmatpush.bf16.msra.mxu0 %v2163
      %2179 = vmatpush.bf16.msra.mxu0 %v2162
      %2180 = vmatpush.bf16.msra.mxu0 %v2161
      %2181 = vmatpush.bf16.msra.mxu0 %v2160
      %2182 = vmatpush.bf16.msra.mxu0 %v2159
      %2183 = vmatmul.bf16.gmra.mxu0 %v2094
      %v2184 = vpop.f32.mrf.mxu0
      %v2185 = vadd.f32 0.0, %v2184
      %v2186 = vpop.f32.mrf.mxu0
      %v2187 = vadd.f32 0.0, %v2186
      %2188 = vmatmul.bf16.gmra.mxu0 %v2095
      %v2189 = vpop.f32.mrf.mxu0
      %v2190 = vadd.f32 0.0, %v2189
      %v2191 = vpop.f32.mrf.mxu0
      %v2192 = vadd.f32 0.0, %v2191
      %2193 = vmatmul.bf16.gmra.mxu0 %v2096
      %v2194 = vpop.f32.mrf.mxu0
      %v2195 = vadd.f32 0.0, %v2194
      %v2196 = vpop.f32.mrf.mxu0
      %v2197 = vadd.f32 0.0, %v2196
      %2198 = vmatmul.bf16.gmra.mxu0 %v2097
      %v2199 = vpop.f32.mrf.mxu0
      %v2200 = vadd.f32 0.0, %v2199
      %v2201 = vpop.f32.mrf.mxu0
      %v2202 = vadd.f32 0.0, %v2201
      %2203 = vmatmul.bf16.gmra.mxu0 %v2098
      %v2204 = vpop.f32.mrf.mxu0
      %v2205 = vadd.f32 0.0, %v2204
      %v2206 = vpop.f32.mrf.mxu0
      %v2207 = vadd.f32 0.0, %v2206
      %2208 = vmatmul.bf16.gmra.mxu0 %v2099
      %v2209 = vpop.f32.mrf.mxu0
      %v2210 = vadd.f32 0.0, %v2209
      %v2211 = vpop.f32.mrf.mxu0
      %v2212 = vadd.f32 0.0, %v2211
      %2213 = vmatmul.bf16.gmra.mxu0 %v2100
      %v2214 = vpop.f32.mrf.mxu0
      %v2215 = vadd.f32 0.0, %v2214
      %v2216 = vpop.f32.mrf.mxu0
      %v2217 = vadd.f32 0.0, %v2216
      %2218 = vmatmul.bf16.gmra.mxu0 %v2101
      %v2219 = vpop.f32.mrf.mxu0
      %v2220 = vadd.f32 0.0, %v2219
      %v2221 = vpop.f32.mrf.mxu0
      %v2222 = vadd.f32 0.0, %v2221
      %2223 = vmatmul.bf16.gmra.mxu0 %v2102
      %v2224 = vpop.f32.mrf.mxu0
      %v2225 = vadd.f32 0.0, %v2224
      %v2226 = vpop.f32.mrf.mxu0
      %v2227 = vadd.f32 0.0, %v2226
      %2228 = vmatmul.bf16.gmra.mxu0 %v2103
      %v2229 = vpop.f32.mrf.mxu0
      %v2230 = vadd.f32 0.0, %v2229
      %v2231 = vpop.f32.mrf.mxu0
      %v2232 = vadd.f32 0.0, %v2231
      %2233 = vmatmul.bf16.gmra.mxu0 %v2104
      %v2234 = vpop.f32.mrf.mxu0
      %v2235 = vadd.f32 0.0, %v2234
      %v2236 = vpop.f32.mrf.mxu0
      %v2237 = vadd.f32 0.0, %v2236
      %2238 = vmatmul.bf16.gmra.mxu0 %v2105
      %v2239 = vpop.f32.mrf.mxu0
      %v2240 = vadd.f32 0.0, %v2239
      %v2241 = vpop.f32.mrf.mxu0
      %v2242 = vadd.f32 0.0, %v2241
      %2243 = vmatmul.bf16.gmra.mxu0 %v2106
      %v2244 = vpop.f32.mrf.mxu0
      %v2245 = vadd.f32 0.0, %v2244
      %v2246 = vpop.f32.mrf.mxu0
      %v2247 = vadd.f32 0.0, %v2246
      %2248 = vmatmul.bf16.gmra.mxu0 %v2107
      %v2249 = vpop.f32.mrf.mxu0
      %v2250 = vadd.f32 0.0, %v2249
      %v2251 = vpop.f32.mrf.mxu0
      %v2252 = vadd.f32 0.0, %v2251
      %2253 = vmatmul.bf16.gmra.mxu0 %v2108
      %v2254 = vpop.f32.mrf.mxu0
      %v2255 = vadd.f32 0.0, %v2254
      %v2256 = vpop.f32.mrf.mxu0
      %v2257 = vadd.f32 0.0, %v2256
      %2258 = vmatmul.bf16.gmra.mxu0 %v2109
      %v2259 = vpop.f32.mrf.mxu0
      %v2260 = vadd.f32 0.0, %v2259
      %v2261 = vpop.f32.mrf.mxu0
      %v2262 = vadd.f32 0.0, %v2261
      %2263 = vdwg.mxu0
      %v2264 = vadd.f32 %v2030, %v2185
      %v2265 = vadd.f32 %v2031, %v2187
      %v2266 = vadd.f32 %v2032, %v2190
      %v2267 = vadd.f32 %v2033, %v2192
      %v2268 = vadd.f32 %v2034, %v2195
      %v2269 = vadd.f32 %v2035, %v2197
      %v2270 = vadd.f32 %v2036, %v2200
      %v2271 = vadd.f32 %v2037, %v2202
      %v2272 = vadd.f32 %v2038, %v2205
      %v2273 = vadd.f32 %v2039, %v2207
      %v2274 = vadd.f32 %v2040, %v2210
      %v2275 = vadd.f32 %v2041, %v2212
      %v2276 = vadd.f32 %v2042, %v2215
      %v2277 = vadd.f32 %v2043, %v2217
      %v2278 = vadd.f32 %v2044, %v2220
      %v2279 = vadd.f32 %v2045, %v2222
      %v2280 = vadd.f32 %v2046, %v2225
      %v2281 = vadd.f32 %v2047, %v2227
      %v2282 = vadd.f32 %v2048, %v2230
      %v2283 = vadd.f32 %v2049, %v2232
      %v2284 = vadd.f32 %v2050, %v2235
      %v2285 = vadd.f32 %v2051, %v2237
      %v2286 = vadd.f32 %v2052, %v2240
      %v2287 = vadd.f32 %v2053, %v2242
      %v2288 = vadd.f32 %v2054, %v2245
      %v2289 = vadd.f32 %v2055, %v2247
      %v2290 = vadd.f32 %v2056, %v2250
      %v2291 = vadd.f32 %v2057, %v2252
      %v2292 = vadd.f32 %v2058, %v2255
      %v2293 = vadd.f32 %v2059, %v2257
      %v2294 = vadd.f32 %v2060, %v2260
      %v2295 = vadd.f32 %v2061, %v2262
      %v2296 = vld [vmem:[#allocation2 + $0x25] sm:$0xff]
      %v2297 = vld [vmem:[#allocation2 + $0x2d] sm:$0xff]
      %v2298 = vld [vmem:[#allocation2 + $0x35] sm:$0xff]
      %v2299 = vld [vmem:[#allocation2 + $0x3d] sm:$0xff]
      %v2300 = vld [vmem:[#allocation2 + $0x45] sm:$0xff]
      %v2301 = vld [vmem:[#allocation2 + $0x4d] sm:$0xff]
      %v2302 = vld [vmem:[#allocation2 + $0x55] sm:$0xff]
      %v2303 = vld [vmem:[#allocation2 + $0x5d] sm:$0xff]
      %v2304 = vld [vmem:[#allocation2 + $0x65] sm:$0xff]
      %v2305 = vld [vmem:[#allocation2 + $0x6d] sm:$0xff]
      %v2306 = vld [vmem:[#allocation2 + $0x75] sm:$0xff]
      %v2307 = vld [vmem:[#allocation2 + $0x7d] sm:$0xff]
      %v2308 = vld [vmem:[#allocation2 + $0x85] sm:$0xff]
      %v2309 = vld [vmem:[#allocation2 + $0x8d] sm:$0xff]
      %v2310 = vld [vmem:[#allocation2 + $0x95] sm:$0xff]
      %v2311 = vld [vmem:[#allocation2 + $0x9d] sm:$0xff]
      %v2312 = vld [vmem:[#allocation2 + $0xa5] sm:$0xff]
      %v2313 = vld [vmem:[#allocation2 + $0xad] sm:$0xff]
      %v2314 = vld [vmem:[#allocation2 + $0xb5] sm:$0xff]
      %v2315 = vld [vmem:[#allocation2 + $0xbd] sm:$0xff]
      %v2316 = vld [vmem:[#allocation2 + $0xc5] sm:$0xff]
      %v2317 = vld [vmem:[#allocation2 + $0xcd] sm:$0xff]
      %v2318 = vld [vmem:[#allocation2 + $0xd5] sm:$0xff]
      %v2319 = vld [vmem:[#allocation2 + $0xdd] sm:$0xff]
      %v2320 = vld [vmem:[#allocation2 + $0xe5] sm:$0xff]
      %v2321 = vld [vmem:[#allocation2 + $0xed] sm:$0xff]
      %v2322 = vld [vmem:[#allocation2 + $0xf5] sm:$0xff]
      %v2323 = vld [vmem:[#allocation2 + $0xfd] sm:$0xff]
      %v2324 = vld [vmem:[#allocation2 + $0x105] sm:$0xff]
      %v2325 = vld [vmem:[#allocation2 + $0x10d] sm:$0xff]
      %v2326 = vld [vmem:[#allocation2 + $0x115] sm:$0xff]
      %v2327 = vld [vmem:[#allocation2 + $0x11d] sm:$0xff]
      %v2328 = vpack.c.bf16 %v2297, %v2296
      %v2329 = vpack.c.bf16 %v2299, %v2298
      %v2330 = vpack.c.bf16 %v2301, %v2300
      %v2331 = vpack.c.bf16 %v2303, %v2302
      %v2332 = vpack.c.bf16 %v2305, %v2304
      %v2333 = vpack.c.bf16 %v2307, %v2306
      %v2334 = vpack.c.bf16 %v2309, %v2308
      %v2335 = vpack.c.bf16 %v2311, %v2310
      %v2336 = vpack.c.bf16 %v2313, %v2312
      %v2337 = vpack.c.bf16 %v2315, %v2314
      %v2338 = vpack.c.bf16 %v2317, %v2316
      %v2339 = vpack.c.bf16 %v2319, %v2318
      %v2340 = vpack.c.bf16 %v2321, %v2320
      %v2341 = vpack.c.bf16 %v2323, %v2322
      %v2342 = vpack.c.bf16 %v2325, %v2324
      %v2343 = vpack.c.bf16 %v2327, %v2326
      %s2344 = scalar_lea.vmem %s411, 448
      %v2345 = vld [vmem:[%s2344] sm:$0xf]
      %v2346 = vld [vmem:[%s2344 + $0x4] sm:$0xf]
      %v2347 = vld [vmem:[%s2344 + $0x8] sm:$0xf]
      %v2348 = vld [vmem:[%s2344 + $0xc] sm:$0xf]
      %v2349 = vld [vmem:[%s2344 + $0x10] sm:$0xf]
      %v2350 = vld [vmem:[%s2344 + $0x14] sm:$0xf]
      %v2351 = vld [vmem:[%s2344 + $0x18] sm:$0xf]
      %v2352 = vld [vmem:[%s2344 + $0x1c] sm:$0xf]
      %v2353 = vld [vmem:[%s2344 + $0x20] sm:$0xf]
      %v2354 = vld [vmem:[%s2344 + $0x24] sm:$0xf]
      %v2355 = vld [vmem:[%s2344 + $0x28] sm:$0xf]
      %v2356 = vld [vmem:[%s2344 + $0x2c] sm:$0xf]
      %v2357 = vld [vmem:[%s2344 + $0x30] sm:$0xf]
      %v2358 = vld [vmem:[%s2344 + $0x34] sm:$0xf]
      %v2359 = vld [vmem:[%s2344 + $0x38] sm:$0xf]
      %v2360 = vld [vmem:[%s2344 + $0x3c] sm:$0xf]
      %v2377 = vunpack.c.l.b16 %v2345
      %v2378 = vunpack.c.l.b16 %v2346
      %v2379 = vunpack.c.l.b16 %v2347
      %v2380 = vunpack.c.l.b16 %v2348
      %v2381 = vunpack.c.l.b16 %v2349
      %v2382 = vunpack.c.l.b16 %v2350
      %v2383 = vunpack.c.l.b16 %v2351
      %v2384 = vunpack.c.l.b16 %v2352
      %v2385 = vunpack.c.l.b16 %v2353
      %v2386 = vunpack.c.l.b16 %v2354
      %v2387 = vunpack.c.l.b16 %v2355
      %v2388 = vunpack.c.l.b16 %v2356
      %v2389 = vunpack.c.l.b16 %v2357
      %v2390 = vunpack.c.l.b16 %v2358
      %v2391 = vunpack.c.l.b16 %v2359
      %v2392 = vunpack.c.l.b16 %v2360
      %v2393 = vpack.c.b16 %v2378, %v2377
      %v2394 = vpack.c.b16 %v2380, %v2379
      %v2395 = vpack.c.b16 %v2382, %v2381
      %v2396 = vpack.c.b16 %v2384, %v2383
      %v2397 = vpack.c.b16 %v2386, %v2385
      %v2398 = vpack.c.b16 %v2388, %v2387
      %v2399 = vpack.c.b16 %v2390, %v2389
      %v2400 = vpack.c.b16 %v2392, %v2391
      %2409 = vmatpush.bf16.msra.mxu0 %v2400
      %2410 = vmatpush.bf16.msra.mxu0 %v2399
      %2411 = vmatpush.bf16.msra.mxu0 %v2398
      %2412 = vmatpush.bf16.msra.mxu0 %v2397
      %2413 = vmatpush.bf16.msra.mxu0 %v2396
      %2414 = vmatpush.bf16.msra.mxu0 %v2395
      %2415 = vmatpush.bf16.msra.mxu0 %v2394
      %2416 = vmatpush.bf16.msra.mxu0 %v2393
      %2417 = vmatmul.bf16.gmra.mxu0 %v2328
      %v2418 = vpop.f32.mrf.mxu0
      %v2419 = vadd.f32 0.0, %v2418
      %v2420 = vpop.f32.mrf.mxu0
      %v2421 = vadd.f32 0.0, %v2420
      %2422 = vmatmul.bf16.gmra.mxu0 %v2329
      %v2423 = vpop.f32.mrf.mxu0
      %v2424 = vadd.f32 0.0, %v2423
      %v2425 = vpop.f32.mrf.mxu0
      %v2426 = vadd.f32 0.0, %v2425
      %2427 = vmatmul.bf16.gmra.mxu0 %v2330
      %v2428 = vpop.f32.mrf.mxu0
      %v2429 = vadd.f32 0.0, %v2428
      %v2430 = vpop.f32.mrf.mxu0
      %v2431 = vadd.f32 0.0, %v2430
      %2432 = vmatmul.bf16.gmra.mxu0 %v2331
      %v2433 = vpop.f32.mrf.mxu0
      %v2434 = vadd.f32 0.0, %v2433
      %v2435 = vpop.f32.mrf.mxu0
      %v2436 = vadd.f32 0.0, %v2435
      %2437 = vmatmul.bf16.gmra.mxu0 %v2332
      %v2438 = vpop.f32.mrf.mxu0
      %v2439 = vadd.f32 0.0, %v2438
      %v2440 = vpop.f32.mrf.mxu0
      %v2441 = vadd.f32 0.0, %v2440
      %2442 = vmatmul.bf16.gmra.mxu0 %v2333
      %v2443 = vpop.f32.mrf.mxu0
      %v2444 = vadd.f32 0.0, %v2443
      %v2445 = vpop.f32.mrf.mxu0
      %v2446 = vadd.f32 0.0, %v2445
      %2447 = vmatmul.bf16.gmra.mxu0 %v2334
      %v2448 = vpop.f32.mrf.mxu0
      %v2449 = vadd.f32 0.0, %v2448
      %v2450 = vpop.f32.mrf.mxu0
      %v2451 = vadd.f32 0.0, %v2450
      %2452 = vmatmul.bf16.gmra.mxu0 %v2335
      %v2453 = vpop.f32.mrf.mxu0
      %v2454 = vadd.f32 0.0, %v2453
      %v2455 = vpop.f32.mrf.mxu0
      %v2456 = vadd.f32 0.0, %v2455
      %2457 = vmatmul.bf16.gmra.mxu0 %v2336
      %v2458 = vpop.f32.mrf.mxu0
      %v2459 = vadd.f32 0.0, %v2458
      %v2460 = vpop.f32.mrf.mxu0
      %v2461 = vadd.f32 0.0, %v2460
      %2462 = vmatmul.bf16.gmra.mxu0 %v2337
      %v2463 = vpop.f32.mrf.mxu0
      %v2464 = vadd.f32 0.0, %v2463
      %v2465 = vpop.f32.mrf.mxu0
      %v2466 = vadd.f32 0.0, %v2465
      %2467 = vmatmul.bf16.gmra.mxu0 %v2338
      %v2468 = vpop.f32.mrf.mxu0
      %v2469 = vadd.f32 0.0, %v2468
      %v2470 = vpop.f32.mrf.mxu0
      %v2471 = vadd.f32 0.0, %v2470
      %2472 = vmatmul.bf16.gmra.mxu0 %v2339
      %v2473 = vpop.f32.mrf.mxu0
      %v2474 = vadd.f32 0.0, %v2473
      %v2475 = vpop.f32.mrf.mxu0
      %v2476 = vadd.f32 0.0, %v2475
      %2477 = vmatmul.bf16.gmra.mxu0 %v2340
      %v2478 = vpop.f32.mrf.mxu0
      %v2479 = vadd.f32 0.0, %v2478
      %v2480 = vpop.f32.mrf.mxu0
      %v2481 = vadd.f32 0.0, %v2480
      %2482 = vmatmul.bf16.gmra.mxu0 %v2341
      %v2483 = vpop.f32.mrf.mxu0
      %v2484 = vadd.f32 0.0, %v2483
      %v2485 = vpop.f32.mrf.mxu0
      %v2486 = vadd.f32 0.0, %v2485
      %2487 = vmatmul.bf16.gmra.mxu0 %v2342
      %v2488 = vpop.f32.mrf.mxu0
      %v2489 = vadd.f32 0.0, %v2488
      %v2490 = vpop.f32.mrf.mxu0
      %v2491 = vadd.f32 0.0, %v2490
      %2492 = vmatmul.bf16.gmra.mxu0 %v2343
      %v2493 = vpop.f32.mrf.mxu0
      %v2494 = vadd.f32 0.0, %v2493
      %v2495 = vpop.f32.mrf.mxu0
      %v2496 = vadd.f32 0.0, %v2495
      %2497 = vdwg.mxu0
      %v2498 = vadd.f32 %v2264, %v2419
      %v2499 = vadd.f32 %v2265, %v2421
      %v2500 = vadd.f32 %v2266, %v2424
      %v2501 = vadd.f32 %v2267, %v2426
      %v2502 = vadd.f32 %v2268, %v2429
      %v2503 = vadd.f32 %v2269, %v2431
      %v2504 = vadd.f32 %v2270, %v2434
      %v2505 = vadd.f32 %v2271, %v2436
      %v2506 = vadd.f32 %v2272, %v2439
      %v2507 = vadd.f32 %v2273, %v2441
      %v2508 = vadd.f32 %v2274, %v2444
      %v2509 = vadd.f32 %v2275, %v2446
      %v2510 = vadd.f32 %v2276, %v2449
      %v2511 = vadd.f32 %v2277, %v2451
      %v2512 = vadd.f32 %v2278, %v2454
      %v2513 = vadd.f32 %v2279, %v2456
      %v2514 = vadd.f32 %v2280, %v2459
      %v2515 = vadd.f32 %v2281, %v2461
      %v2516 = vadd.f32 %v2282, %v2464
      %v2517 = vadd.f32 %v2283, %v2466
      %v2518 = vadd.f32 %v2284, %v2469
      %v2519 = vadd.f32 %v2285, %v2471
      %v2520 = vadd.f32 %v2286, %v2474
      %v2521 = vadd.f32 %v2287, %v2476
      %v2522 = vadd.f32 %v2288, %v2479
      %v2523 = vadd.f32 %v2289, %v2481
      %v2524 = vadd.f32 %v2290, %v2484
      %v2525 = vadd.f32 %v2291, %v2486
      %v2526 = vadd.f32 %v2292, %v2489
      %v2527 = vadd.f32 %v2293, %v2491
      %v2528 = vadd.f32 %v2294, %v2494
      %v2529 = vadd.f32 %v2295, %v2496
      %v2530 = vld [vmem:[#allocation2 + $0x26] sm:$0xff]
      %v2531 = vld [vmem:[#allocation2 + $0x2e] sm:$0xff]
      %v2532 = vld [vmem:[#allocation2 + $0x36] sm:$0xff]
      %v2533 = vld [vmem:[#allocation2 + $0x3e] sm:$0xff]
      %v2534 = vld [vmem:[#allocation2 + $0x46] sm:$0xff]
      %v2535 = vld [vmem:[#allocation2 + $0x4e] sm:$0xff]
      %v2536 = vld [vmem:[#allocation2 + $0x56] sm:$0xff]
      %v2537 = vld [vmem:[#allocation2 + $0x5e] sm:$0xff]
      %v2538 = vld [vmem:[#allocation2 + $0x66] sm:$0xff]
      %v2539 = vld [vmem:[#allocation2 + $0x6e] sm:$0xff]
      %v2540 = vld [vmem:[#allocation2 + $0x76] sm:$0xff]
      %v2541 = vld [vmem:[#allocation2 + $0x7e] sm:$0xff]
      %v2542 = vld [vmem:[#allocation2 + $0x86] sm:$0xff]
      %v2543 = vld [vmem:[#allocation2 + $0x8e] sm:$0xff]
      %v2544 = vld [vmem:[#allocation2 + $0x96] sm:$0xff]
      %v2545 = vld [vmem:[#allocation2 + $0x9e] sm:$0xff]
      %v2546 = vld [vmem:[#allocation2 + $0xa6] sm:$0xff]
      %v2547 = vld [vmem:[#allocation2 + $0xae] sm:$0xff]
      %v2548 = vld [vmem:[#allocation2 + $0xb6] sm:$0xff]
      %v2549 = vld [vmem:[#allocation2 + $0xbe] sm:$0xff]
      %v2550 = vld [vmem:[#allocation2 + $0xc6] sm:$0xff]
      %v2551 = vld [vmem:[#allocation2 + $0xce] sm:$0xff]
      %v2552 = vld [vmem:[#allocation2 + $0xd6] sm:$0xff]
      %v2553 = vld [vmem:[#allocation2 + $0xde] sm:$0xff]
      %v2554 = vld [vmem:[#allocation2 + $0xe6] sm:$0xff]
      %v2555 = vld [vmem:[#allocation2 + $0xee] sm:$0xff]
      %v2556 = vld [vmem:[#allocation2 + $0xf6] sm:$0xff]
      %v2557 = vld [vmem:[#allocation2 + $0xfe] sm:$0xff]
      %v2558 = vld [vmem:[#allocation2 + $0x106] sm:$0xff]
      %v2559 = vld [vmem:[#allocation2 + $0x10e] sm:$0xff]
      %v2560 = vld [vmem:[#allocation2 + $0x116] sm:$0xff]
      %v2561 = vld [vmem:[#allocation2 + $0x11e] sm:$0xff]
      %v2562 = vpack.c.bf16 %v2531, %v2530
      %v2563 = vpack.c.bf16 %v2533, %v2532
      %v2564 = vpack.c.bf16 %v2535, %v2534
      %v2565 = vpack.c.bf16 %v2537, %v2536
      %v2566 = vpack.c.bf16 %v2539, %v2538
      %v2567 = vpack.c.bf16 %v2541, %v2540
      %v2568 = vpack.c.bf16 %v2543, %v2542
      %v2569 = vpack.c.bf16 %v2545, %v2544
      %v2570 = vpack.c.bf16 %v2547, %v2546
      %v2571 = vpack.c.bf16 %v2549, %v2548
      %v2572 = vpack.c.bf16 %v2551, %v2550
      %v2573 = vpack.c.bf16 %v2553, %v2552
      %v2574 = vpack.c.bf16 %v2555, %v2554
      %v2575 = vpack.c.bf16 %v2557, %v2556
      %v2576 = vpack.c.bf16 %v2559, %v2558
      %v2577 = vpack.c.bf16 %v2561, %v2560
      %s2578 = scalar_lea.vmem %s411, 512
      %v2579 = vld [vmem:[%s2578] sm:$0xf]
      %v2580 = vld [vmem:[%s2578 + $0x4] sm:$0xf]
      %v2581 = vld [vmem:[%s2578 + $0x8] sm:$0xf]
      %v2582 = vld [vmem:[%s2578 + $0xc] sm:$0xf]
      %v2583 = vld [vmem:[%s2578 + $0x10] sm:$0xf]
      %v2584 = vld [vmem:[%s2578 + $0x14] sm:$0xf]
      %v2585 = vld [vmem:[%s2578 + $0x18] sm:$0xf]
      %v2586 = vld [vmem:[%s2578 + $0x1c] sm:$0xf]
      %v2587 = vld [vmem:[%s2578 + $0x20] sm:$0xf]
      %v2588 = vld [vmem:[%s2578 + $0x24] sm:$0xf]
      %v2589 = vld [vmem:[%s2578 + $0x28] sm:$0xf]
      %v2590 = vld [vmem:[%s2578 + $0x2c] sm:$0xf]
      %v2591 = vld [vmem:[%s2578 + $0x30] sm:$0xf]
      %v2592 = vld [vmem:[%s2578 + $0x34] sm:$0xf]
      %v2593 = vld [vmem:[%s2578 + $0x38] sm:$0xf]
      %v2594 = vld [vmem:[%s2578 + $0x3c] sm:$0xf]
      %v2611 = vunpack.c.l.b16 %v2579
      %v2612 = vunpack.c.l.b16 %v2580
      %v2613 = vunpack.c.l.b16 %v2581
      %v2614 = vunpack.c.l.b16 %v2582
      %v2615 = vunpack.c.l.b16 %v2583
      %v2616 = vunpack.c.l.b16 %v2584
      %v2617 = vunpack.c.l.b16 %v2585
      %v2618 = vunpack.c.l.b16 %v2586
      %v2619 = vunpack.c.l.b16 %v2587
      %v2620 = vunpack.c.l.b16 %v2588
      %v2621 = vunpack.c.l.b16 %v2589
      %v2622 = vunpack.c.l.b16 %v2590
      %v2623 = vunpack.c.l.b16 %v2591
      %v2624 = vunpack.c.l.b16 %v2592
      %v2625 = vunpack.c.l.b16 %v2593
      %v2626 = vunpack.c.l.b16 %v2594
      %v2627 = vpack.c.b16 %v2612, %v2611
      %v2628 = vpack.c.b16 %v2614, %v2613
      %v2629 = vpack.c.b16 %v2616, %v2615
      %v2630 = vpack.c.b16 %v2618, %v2617
      %v2631 = vpack.c.b16 %v2620, %v2619
      %v2632 = vpack.c.b16 %v2622, %v2621
      %v2633 = vpack.c.b16 %v2624, %v2623
      %v2634 = vpack.c.b16 %v2626, %v2625
      %2643 = vmatpush.bf16.msra.mxu0 %v2634
      %2644 = vmatpush.bf16.msra.mxu0 %v2633
      %2645 = vmatpush.bf16.msra.mxu0 %v2632
      %2646 = vmatpush.bf16.msra.mxu0 %v2631
      %2647 = vmatpush.bf16.msra.mxu0 %v2630
      %2648 = vmatpush.bf16.msra.mxu0 %v2629
      %2649 = vmatpush.bf16.msra.mxu0 %v2628
      %2650 = vmatpush.bf16.msra.mxu0 %v2627
      %2651 = vmatmul.bf16.gmra.mxu0 %v2562
      %v2652 = vpop.f32.mrf.mxu0
      %v2653 = vadd.f32 0.0, %v2652
      %v2654 = vpop.f32.mrf.mxu0
      %v2655 = vadd.f32 0.0, %v2654
      %2656 = vmatmul.bf16.gmra.mxu0 %v2563
      %v2657 = vpop.f32.mrf.mxu0
      %v2658 = vadd.f32 0.0, %v2657
      %v2659 = vpop.f32.mrf.mxu0
      %v2660 = vadd.f32 0.0, %v2659
      %2661 = vmatmul.bf16.gmra.mxu0 %v2564
      %v2662 = vpop.f32.mrf.mxu0
      %v2663 = vadd.f32 0.0, %v2662
      %v2664 = vpop.f32.mrf.mxu0
      %v2665 = vadd.f32 0.0, %v2664
      %2666 = vmatmul.bf16.gmra.mxu0 %v2565
      %v2667 = vpop.f32.mrf.mxu0
      %v2668 = vadd.f32 0.0, %v2667
      %v2669 = vpop.f32.mrf.mxu0
      %v2670 = vadd.f32 0.0, %v2669
      %2671 = vmatmul.bf16.gmra.mxu0 %v2566
      %v2672 = vpop.f32.mrf.mxu0
      %v2673 = vadd.f32 0.0, %v2672
      %v2674 = vpop.f32.mrf.mxu0
      %v2675 = vadd.f32 0.0, %v2674
      %2676 = vmatmul.bf16.gmra.mxu0 %v2567
      %v2677 = vpop.f32.mrf.mxu0
      %v2678 = vadd.f32 0.0, %v2677
      %v2679 = vpop.f32.mrf.mxu0
      %v2680 = vadd.f32 0.0, %v2679
      %2681 = vmatmul.bf16.gmra.mxu0 %v2568
      %v2682 = vpop.f32.mrf.mxu0
      %v2683 = vadd.f32 0.0, %v2682
      %v2684 = vpop.f32.mrf.mxu0
      %v2685 = vadd.f32 0.0, %v2684
      %2686 = vmatmul.bf16.gmra.mxu0 %v2569
      %v2687 = vpop.f32.mrf.mxu0
      %v2688 = vadd.f32 0.0, %v2687
      %v2689 = vpop.f32.mrf.mxu0
      %v2690 = vadd.f32 0.0, %v2689
      %2691 = vmatmul.bf16.gmra.mxu0 %v2570
      %v2692 = vpop.f32.mrf.mxu0
      %v2693 = vadd.f32 0.0, %v2692
      %v2694 = vpop.f32.mrf.mxu0
      %v2695 = vadd.f32 0.0, %v2694
      %2696 = vmatmul.bf16.gmra.mxu0 %v2571
      %v2697 = vpop.f32.mrf.mxu0
      %v2698 = vadd.f32 0.0, %v2697
      %v2699 = vpop.f32.mrf.mxu0
      %v2700 = vadd.f32 0.0, %v2699
      %2701 = vmatmul.bf16.gmra.mxu0 %v2572
      %v2702 = vpop.f32.mrf.mxu0
      %v2703 = vadd.f32 0.0, %v2702
      %v2704 = vpop.f32.mrf.mxu0
      %v2705 = vadd.f32 0.0, %v2704
      %2706 = vmatmul.bf16.gmra.mxu0 %v2573
      %v2707 = vpop.f32.mrf.mxu0
      %v2708 = vadd.f32 0.0, %v2707
      %v2709 = vpop.f32.mrf.mxu0
      %v2710 = vadd.f32 0.0, %v2709
      %2711 = vmatmul.bf16.gmra.mxu0 %v2574
      %v2712 = vpop.f32.mrf.mxu0
      %v2713 = vadd.f32 0.0, %v2712
      %v2714 = vpop.f32.mrf.mxu0
      %v2715 = vadd.f32 0.0, %v2714
      %2716 = vmatmul.bf16.gmra.mxu0 %v2575
      %v2717 = vpop.f32.mrf.mxu0
      %v2718 = vadd.f32 0.0, %v2717
      %v2719 = vpop.f32.mrf.mxu0
      %v2720 = vadd.f32 0.0, %v2719
      %2721 = vmatmul.bf16.gmra.mxu0 %v2576
      %v2722 = vpop.f32.mrf.mxu0
      %v2723 = vadd.f32 0.0, %v2722
      %v2724 = vpop.f32.mrf.mxu0
      %v2725 = vadd.f32 0.0, %v2724
      %2726 = vmatmul.bf16.gmra.mxu0 %v2577
      %v2727 = vpop.f32.mrf.mxu0
      %v2728 = vadd.f32 0.0, %v2727
      %v2729 = vpop.f32.mrf.mxu0
      %v2730 = vadd.f32 0.0, %v2729
      %2731 = vdwg.mxu0
      %v2732 = vadd.f32 %v2498, %v2653
      %v2733 = vadd.f32 %v2499, %v2655
      %v2734 = vadd.f32 %v2500, %v2658
      %v2735 = vadd.f32 %v2501, %v2660
      %v2736 = vadd.f32 %v2502, %v2663
      %v2737 = vadd.f32 %v2503, %v2665
      %v2738 = vadd.f32 %v2504, %v2668
      %v2739 = vadd.f32 %v2505, %v2670
      %v2740 = vadd.f32 %v2506, %v2673
      %v2741 = vadd.f32 %v2507, %v2675
      %v2742 = vadd.f32 %v2508, %v2678
      %v2743 = vadd.f32 %v2509, %v2680
      %v2744 = vadd.f32 %v2510, %v2683
      %v2745 = vadd.f32 %v2511, %v2685
      %v2746 = vadd.f32 %v2512, %v2688
      %v2747 = vadd.f32 %v2513, %v2690
      %v2748 = vadd.f32 %v2514, %v2693
      %v2749 = vadd.f32 %v2515, %v2695
      %v2750 = vadd.f32 %v2516, %v2698
      %v2751 = vadd.f32 %v2517, %v2700
      %v2752 = vadd.f32 %v2518, %v2703
      %v2753 = vadd.f32 %v2519, %v2705
      %v2754 = vadd.f32 %v2520, %v2708
      %v2755 = vadd.f32 %v2521, %v2710
      %v2756 = vadd.f32 %v2522, %v2713
      %v2757 = vadd.f32 %v2523, %v2715
      %v2758 = vadd.f32 %v2524, %v2718
      %v2759 = vadd.f32 %v2525, %v2720
      %v2760 = vadd.f32 %v2526, %v2723
      %v2761 = vadd.f32 %v2527, %v2725
      %v2762 = vadd.f32 %v2528, %v2728
      %v2763 = vadd.f32 %v2529, %v2730
      %v2765 = vperm.slane %v719, 0
      %v2767 = vmul.f32 %v2732, %v2765
      %v2768 = vmul.f32 %v2733, %v2765
      %v2769 = vmul.f32 %v2734, %v2765
      %v2770 = vmul.f32 %v2735, %v2765
      %v2771 = vmul.f32 %v2736, %v2765
      %v2772 = vmul.f32 %v2737, %v2765
      %v2773 = vmul.f32 %v2738, %v2765
      %v2774 = vmul.f32 %v2739, %v2765
      %v2775 = vmul.f32 %v2740, %v2765
      %v2776 = vmul.f32 %v2741, %v2765
      %v2777 = vmul.f32 %v2742, %v2765
      %v2778 = vmul.f32 %v2743, %v2765
      %v2779 = vmul.f32 %v2744, %v2765
      %v2780 = vmul.f32 %v2745, %v2765
      %v2781 = vmul.f32 %v2746, %v2765
      %v2782 = vmul.f32 %v2747, %v2765
      %v2783 = vmul.f32 %v2748, %v2765
      %v2784 = vmul.f32 %v2749, %v2765
      %v2785 = vmul.f32 %v2750, %v2765
      %v2786 = vmul.f32 %v2751, %v2765
      %v2787 = vmul.f32 %v2752, %v2765
      %v2788 = vmul.f32 %v2753, %v2765
      %v2789 = vmul.f32 %v2754, %v2765
      %v2790 = vmul.f32 %v2755, %v2765
      %v2791 = vmul.f32 %v2756, %v2765
      %v2792 = vmul.f32 %v2757, %v2765
      %v2793 = vmul.f32 %v2758, %v2765
      %v2794 = vmul.f32 %v2759, %v2765
      %v2795 = vmul.f32 %v2760, %v2765
      %v2796 = vmul.f32 %v2761, %v2765
      %v2797 = vmul.f32 %v2762, %v2765
      %v2798 = vmul.f32 %v2763, %v2765
      %v2800 = vperm.slane %v720, 0
      %v2802 = vadd.f32 %v2767, %v2800
      %v2803 = vadd.f32 %v2768, %v2800
      %v2804 = vadd.f32 %v2769, %v2800
      %v2805 = vadd.f32 %v2770, %v2800
      %v2806 = vadd.f32 %v2771, %v2800
      %v2807 = vadd.f32 %v2772, %v2800
      %v2808 = vadd.f32 %v2773, %v2800
      %v2809 = vadd.f32 %v2774, %v2800
      %v2810 = vadd.f32 %v2775, %v2800
      %v2811 = vadd.f32 %v2776, %v2800
      %v2812 = vadd.f32 %v2777, %v2800
      %v2813 = vadd.f32 %v2778, %v2800
      %v2814 = vadd.f32 %v2779, %v2800
      %v2815 = vadd.f32 %v2780, %v2800
      %v2816 = vadd.f32 %v2781, %v2800
      %v2817 = vadd.f32 %v2782, %v2800
      %v2818 = vadd.f32 %v2783, %v2800
      %v2819 = vadd.f32 %v2784, %v2800
      %v2820 = vadd.f32 %v2785, %v2800
      %v2821 = vadd.f32 %v2786, %v2800
      %v2822 = vadd.f32 %v2787, %v2800
      %v2823 = vadd.f32 %v2788, %v2800
      %v2824 = vadd.f32 %v2789, %v2800
      %v2825 = vadd.f32 %v2790, %v2800
      %v2826 = vadd.f32 %v2791, %v2800
      %v2827 = vadd.f32 %v2792, %v2800
      %v2828 = vadd.f32 %v2793, %v2800
      %v2829 = vadd.f32 %v2794, %v2800
      %v2830 = vadd.f32 %v2795, %v2800
      %v2831 = vadd.f32 %v2796, %v2800
      %v2832 = vadd.f32 %v2797, %v2800
      %v2833 = vadd.f32 %v2798, %v2800
      %v2834 = vld [vmem:[#allocation3 + $0x26] sm:$0xff]
      %v2835 = vld [vmem:[#allocation3 + $0x2e] sm:$0xff]
      %v2836 = vld [vmem:[#allocation3 + $0x36] sm:$0xff]
      %v2837 = vld [vmem:[#allocation3 + $0x3e] sm:$0xff]
      %v2838 = vld [vmem:[#allocation3 + $0x46] sm:$0xff]
      %v2839 = vld [vmem:[#allocation3 + $0x4e] sm:$0xff]
      %v2840 = vld [vmem:[#allocation3 + $0x56] sm:$0xff]
      %v2841 = vld [vmem:[#allocation3 + $0x5e] sm:$0xff]
      %v2842 = vld [vmem:[#allocation3 + $0x66] sm:$0xff]
      %v2843 = vld [vmem:[#allocation3 + $0x6e] sm:$0xff]
      %v2844 = vld [vmem:[#allocation3 + $0x76] sm:$0xff]
      %v2845 = vld [vmem:[#allocation3 + $0x7e] sm:$0xff]
      %v2846 = vld [vmem:[#allocation3 + $0x86] sm:$0xff]
      %v2847 = vld [vmem:[#allocation3 + $0x8e] sm:$0xff]
      %v2848 = vld [vmem:[#allocation3 + $0x96] sm:$0xff]
      %v2849 = vld [vmem:[#allocation3 + $0x9e] sm:$0xff]
      %v2850 = vld [vmem:[#allocation3 + $0xa6] sm:$0xff]
      %v2851 = vld [vmem:[#allocation3 + $0xae] sm:$0xff]
      %v2852 = vld [vmem:[#allocation3 + $0xb6] sm:$0xff]
      %v2853 = vld [vmem:[#allocation3 + $0xbe] sm:$0xff]
      %v2854 = vld [vmem:[#allocation3 + $0xc6] sm:$0xff]
      %v2855 = vld [vmem:[#allocation3 + $0xce] sm:$0xff]
      %v2856 = vld [vmem:[#allocation3 + $0xd6] sm:$0xff]
      %v2857 = vld [vmem:[#allocation3 + $0xde] sm:$0xff]
      %v2858 = vld [vmem:[#allocation3 + $0xe6] sm:$0xff]
      %v2859 = vld [vmem:[#allocation3 + $0xee] sm:$0xff]
      %v2860 = vld [vmem:[#allocation3 + $0xf6] sm:$0xff]
      %v2861 = vld [vmem:[#allocation3 + $0xfe] sm:$0xff]
      %v2862 = vld [vmem:[#allocation3 + $0x106] sm:$0xff]
      %v2863 = vld [vmem:[#allocation3 + $0x10e] sm:$0xff]
      %v2864 = vld [vmem:[#allocation3 + $0x116] sm:$0xff]
      %v2865 = vld [vmem:[#allocation3 + $0x11e] sm:$0xff]
      %v2866 = vpack.c.bf16 %v2835, %v2834
      %v2867 = vpack.c.bf16 %v2837, %v2836
      %v2868 = vpack.c.bf16 %v2839, %v2838
      %v2869 = vpack.c.bf16 %v2841, %v2840
      %v2870 = vpack.c.bf16 %v2843, %v2842
      %v2871 = vpack.c.bf16 %v2845, %v2844
      %v2872 = vpack.c.bf16 %v2847, %v2846
      %v2873 = vpack.c.bf16 %v2849, %v2848
      %v2874 = vpack.c.bf16 %v2851, %v2850
      %v2875 = vpack.c.bf16 %v2853, %v2852
      %v2876 = vpack.c.bf16 %v2855, %v2854
      %v2877 = vpack.c.bf16 %v2857, %v2856
      %v2878 = vpack.c.bf16 %v2859, %v2858
      %v2879 = vpack.c.bf16 %v2861, %v2860
      %v2880 = vpack.c.bf16 %v2863, %v2862
      %v2881 = vpack.c.bf16 %v2865, %v2864
      %v2882 = vld [vmem:[%s415] sm:$0xf]
      %v2883 = vld [vmem:[%s415 + $0x4] sm:$0xf]
      %v2884 = vld [vmem:[%s415 + $0x8] sm:$0xf]
      %v2885 = vld [vmem:[%s415 + $0xc] sm:$0xf]
      %v2886 = vld [vmem:[%s415 + $0x10] sm:$0xf]
      %v2887 = vld [vmem:[%s415 + $0x14] sm:$0xf]
      %v2888 = vld [vmem:[%s415 + $0x18] sm:$0xf]
      %v2889 = vld [vmem:[%s415 + $0x1c] sm:$0xf]
      %v2890 = vld [vmem:[%s415 + $0x20] sm:$0xf]
      %v2891 = vld [vmem:[%s415 + $0x24] sm:$0xf]
      %v2892 = vld [vmem:[%s415 + $0x28] sm:$0xf]
      %v2893 = vld [vmem:[%s415 + $0x2c] sm:$0xf]
      %v2894 = vld [vmem:[%s415 + $0x30] sm:$0xf]
      %v2895 = vld [vmem:[%s415 + $0x34] sm:$0xf]
      %v2896 = vld [vmem:[%s415 + $0x38] sm:$0xf]
      %v2897 = vld [vmem:[%s415 + $0x3c] sm:$0xf]
      %v2914 = vunpack.c.l.b16 %v2882
      %v2915 = vunpack.c.l.b16 %v2883
      %v2916 = vunpack.c.l.b16 %v2884
      %v2917 = vunpack.c.l.b16 %v2885
      %v2918 = vunpack.c.l.b16 %v2886
      %v2919 = vunpack.c.l.b16 %v2887
      %v2920 = vunpack.c.l.b16 %v2888
      %v2921 = vunpack.c.l.b16 %v2889
      %v2922 = vunpack.c.l.b16 %v2890
      %v2923 = vunpack.c.l.b16 %v2891
      %v2924 = vunpack.c.l.b16 %v2892
      %v2925 = vunpack.c.l.b16 %v2893
      %v2926 = vunpack.c.l.b16 %v2894
      %v2927 = vunpack.c.l.b16 %v2895
      %v2928 = vunpack.c.l.b16 %v2896
      %v2929 = vunpack.c.l.b16 %v2897
      %v2930 = vpack.c.b16 %v2915, %v2914
      %v2931 = vpack.c.b16 %v2917, %v2916
      %v2932 = vpack.c.b16 %v2919, %v2918
      %v2933 = vpack.c.b16 %v2921, %v2920
      %v2934 = vpack.c.b16 %v2923, %v2922
      %v2935 = vpack.c.b16 %v2925, %v2924
      %v2936 = vpack.c.b16 %v2927, %v2926
      %v2937 = vpack.c.b16 %v2929, %v2928
      %2946 = vmatpush.bf16.msra.mxu0 %v2937
      %2947 = vmatpush.bf16.msra.mxu0 %v2936
      %2948 = vmatpush.bf16.msra.mxu0 %v2935
      %2949 = vmatpush.bf16.msra.mxu0 %v2934
      %2950 = vmatpush.bf16.msra.mxu0 %v2933
      %2951 = vmatpush.bf16.msra.mxu0 %v2932
      %2952 = vmatpush.bf16.msra.mxu0 %v2931
      %2953 = vmatpush.bf16.msra.mxu0 %v2930
      %2954 = vmatmul.bf16.gmra.mxu0 %v2866
      %v2955 = vpop.f32.mrf.mxu0
      %v2956 = vadd.f32 0.0, %v2955
      %v2957 = vpop.f32.mrf.mxu0
      %v2958 = vadd.f32 0.0, %v2957
      %2959 = vmatmul.bf16.gmra.mxu0 %v2867
      %v2960 = vpop.f32.mrf.mxu0
      %v2961 = vadd.f32 0.0, %v2960
      %v2962 = vpop.f32.mrf.mxu0
      %v2963 = vadd.f32 0.0, %v2962
      %2964 = vmatmul.bf16.gmra.mxu0 %v2868
      %v2965 = vpop.f32.mrf.mxu0
      %v2966 = vadd.f32 0.0, %v2965
      %v2967 = vpop.f32.mrf.mxu0
      %v2968 = vadd.f32 0.0, %v2967
      %2969 = vmatmul.bf16.gmra.mxu0 %v2869
      %v2970 = vpop.f32.mrf.mxu0
      %v2971 = vadd.f32 0.0, %v2970
      %v2972 = vpop.f32.mrf.mxu0
      %v2973 = vadd.f32 0.0, %v2972
      %2974 = vmatmul.bf16.gmra.mxu0 %v2870
      %v2975 = vpop.f32.mrf.mxu0
      %v2976 = vadd.f32 0.0, %v2975
      %v2977 = vpop.f32.mrf.mxu0
      %v2978 = vadd.f32 0.0, %v2977
      %2979 = vmatmul.bf16.gmra.mxu0 %v2871
      %v2980 = vpop.f32.mrf.mxu0
      %v2981 = vadd.f32 0.0, %v2980
      %v2982 = vpop.f32.mrf.mxu0
      %v2983 = vadd.f32 0.0, %v2982
      %2984 = vmatmul.bf16.gmra.mxu0 %v2872
      %v2985 = vpop.f32.mrf.mxu0
      %v2986 = vadd.f32 0.0, %v2985
      %v2987 = vpop.f32.mrf.mxu0
      %v2988 = vadd.f32 0.0, %v2987
      %2989 = vmatmul.bf16.gmra.mxu0 %v2873
      %v2990 = vpop.f32.mrf.mxu0
      %v2991 = vadd.f32 0.0, %v2990
      %v2992 = vpop.f32.mrf.mxu0
      %v2993 = vadd.f32 0.0, %v2992
      %2994 = vmatmul.bf16.gmra.mxu0 %v2874
      %v2995 = vpop.f32.mrf.mxu0
      %v2996 = vadd.f32 0.0, %v2995
      %v2997 = vpop.f32.mrf.mxu0
      %v2998 = vadd.f32 0.0, %v2997
      %2999 = vmatmul.bf16.gmra.mxu0 %v2875
      %v3000 = vpop.f32.mrf.mxu0
      %v3001 = vadd.f32 0.0, %v3000
      %v3002 = vpop.f32.mrf.mxu0
      %v3003 = vadd.f32 0.0, %v3002
      %3004 = vmatmul.bf16.gmra.mxu0 %v2876
      %v3005 = vpop.f32.mrf.mxu0
      %v3006 = vadd.f32 0.0, %v3005
      %v3007 = vpop.f32.mrf.mxu0
      %v3008 = vadd.f32 0.0, %v3007
      %3009 = vmatmul.bf16.gmra.mxu0 %v2877
      %v3010 = vpop.f32.mrf.mxu0
      %v3011 = vadd.f32 0.0, %v3010
      %v3012 = vpop.f32.mrf.mxu0
      %v3013 = vadd.f32 0.0, %v3012
      %3014 = vmatmul.bf16.gmra.mxu0 %v2878
      %v3015 = vpop.f32.mrf.mxu0
      %v3016 = vadd.f32 0.0, %v3015
      %v3017 = vpop.f32.mrf.mxu0
      %v3018 = vadd.f32 0.0, %v3017
      %3019 = vmatmul.bf16.gmra.mxu0 %v2879
      %v3020 = vpop.f32.mrf.mxu0
      %v3021 = vadd.f32 0.0, %v3020
      %v3022 = vpop.f32.mrf.mxu0
      %v3023 = vadd.f32 0.0, %v3022
      %3024 = vmatmul.bf16.gmra.mxu0 %v2880
      %v3025 = vpop.f32.mrf.mxu0
      %v3026 = vadd.f32 0.0, %v3025
      %v3027 = vpop.f32.mrf.mxu0
      %v3028 = vadd.f32 0.0, %v3027
      %3029 = vmatmul.bf16.gmra.mxu0 %v2881
      %v3030 = vpop.f32.mrf.mxu0
      %v3031 = vadd.f32 0.0, %v3030
      %v3032 = vpop.f32.mrf.mxu0
      %v3033 = vadd.f32 0.0, %v3032
      %3034 = vdwg.mxu0
      %v3036 = vperm.slane %v721, 0
      %v3038 = vmul.f32 %v2956, %v3036
      %v3039 = vmul.f32 %v2958, %v3036
      %v3040 = vmul.f32 %v2961, %v3036
      %v3041 = vmul.f32 %v2963, %v3036
      %v3042 = vmul.f32 %v2966, %v3036
      %v3043 = vmul.f32 %v2968, %v3036
      %v3044 = vmul.f32 %v2971, %v3036
      %v3045 = vmul.f32 %v2973, %v3036
      %v3046 = vmul.f32 %v2976, %v3036
      %v3047 = vmul.f32 %v2978, %v3036
      %v3048 = vmul.f32 %v2981, %v3036
      %v3049 = vmul.f32 %v2983, %v3036
      %v3050 = vmul.f32 %v2986, %v3036
      %v3051 = vmul.f32 %v2988, %v3036
      %v3052 = vmul.f32 %v2991, %v3036
      %v3053 = vmul.f32 %v2993, %v3036
      %v3054 = vmul.f32 %v2996, %v3036
      %v3055 = vmul.f32 %v2998, %v3036
      %v3056 = vmul.f32 %v3001, %v3036
      %v3057 = vmul.f32 %v3003, %v3036
      %v3058 = vmul.f32 %v3006, %v3036
      %v3059 = vmul.f32 %v3008, %v3036
      %v3060 = vmul.f32 %v3011, %v3036
      %v3061 = vmul.f32 %v3013, %v3036
      %v3062 = vmul.f32 %v3016, %v3036
      %v3063 = vmul.f32 %v3018, %v3036
      %v3064 = vmul.f32 %v3021, %v3036
      %v3065 = vmul.f32 %v3023, %v3036
      %v3066 = vmul.f32 %v3026, %v3036
      %v3067 = vmul.f32 %v3028, %v3036
      %v3068 = vmul.f32 %v3031, %v3036
      %v3069 = vmul.f32 %v3033, %v3036
      %v3071 = vperm.slane %v722, 0
      %v3073 = vadd.f32 %v3038, %v3071
      %v3074 = vadd.f32 %v3039, %v3071
      %v3075 = vadd.f32 %v3040, %v3071
      %v3076 = vadd.f32 %v3041, %v3071
      %v3077 = vadd.f32 %v3042, %v3071
      %v3078 = vadd.f32 %v3043, %v3071
      %v3079 = vadd.f32 %v3044, %v3071
      %v3080 = vadd.f32 %v3045, %v3071
      %v3081 = vadd.f32 %v3046, %v3071
      %v3082 = vadd.f32 %v3047, %v3071
      %v3083 = vadd.f32 %v3048, %v3071
      %v3084 = vadd.f32 %v3049, %v3071
      %v3085 = vadd.f32 %v3050, %v3071
      %v3086 = vadd.f32 %v3051, %v3071
      %v3087 = vadd.f32 %v3052, %v3071
      %v3088 = vadd.f32 %v3053, %v3071
      %v3089 = vadd.f32 %v3054, %v3071
      %v3090 = vadd.f32 %v3055, %v3071
      %v3091 = vadd.f32 %v3056, %v3071
      %v3092 = vadd.f32 %v3057, %v3071
      %v3093 = vadd.f32 %v3058, %v3071
      %v3094 = vadd.f32 %v3059, %v3071
      %v3095 = vadd.f32 %v3060, %v3071
      %v3096 = vadd.f32 %v3061, %v3071
      %v3097 = vadd.f32 %v3062, %v3071
      %v3098 = vadd.f32 %v3063, %v3071
      %v3099 = vadd.f32 %v3064, %v3071
      %v3100 = vadd.f32 %v3065, %v3071
      %v3101 = vadd.f32 %v3066, %v3071
      %v3102 = vadd.f32 %v3067, %v3071
      %v3103 = vadd.f32 %v3068, %v3071
      %v3104 = vadd.f32 %v3069, %v3071
      %v3105 = vadd.f32 %v2802, %v3073
      %v3106 = vadd.f32 %v2803, %v3074
      %v3107 = vadd.f32 %v2804, %v3075
      %v3108 = vadd.f32 %v2805, %v3076
      %v3109 = vadd.f32 %v2806, %v3077
      %v3110 = vadd.f32 %v2807, %v3078
      %v3111 = vadd.f32 %v2808, %v3079
      %v3112 = vadd.f32 %v2809, %v3080
      %v3113 = vadd.f32 %v2810, %v3081
      %v3114 = vadd.f32 %v2811, %v3082
      %v3115 = vadd.f32 %v2812, %v3083
      %v3116 = vadd.f32 %v2813, %v3084
      %v3117 = vadd.f32 %v2814, %v3085
      %v3118 = vadd.f32 %v2815, %v3086
      %v3119 = vadd.f32 %v2816, %v3087
      %v3120 = vadd.f32 %v2817, %v3088
      %v3121 = vadd.f32 %v2818, %v3089
      %v3122 = vadd.f32 %v2819, %v3090
      %v3123 = vadd.f32 %v2820, %v3091
      %v3124 = vadd.f32 %v2821, %v3092
      %v3125 = vadd.f32 %v2822, %v3093
      %v3126 = vadd.f32 %v2823, %v3094
      %v3127 = vadd.f32 %v2824, %v3095
      %v3128 = vadd.f32 %v2825, %v3096
      %v3129 = vadd.f32 %v2826, %v3097
      %v3130 = vadd.f32 %v2827, %v3098
      %v3131 = vadd.f32 %v2828, %v3099
      %v3132 = vadd.f32 %v2829, %v3100
      %v3133 = vadd.f32 %v2830, %v3101
      %v3134 = vadd.f32 %v2831, %v3102
      %v3135 = vadd.f32 %v2832, %v3103
      %v3136 = vadd.f32 %v2833, %v3104
      %v3137 = vmax.f32 %v3105, 0.0
      %v3138 = vmax.f32 %v3106, 0.0
      %v3139 = vmax.f32 %v3107, 0.0
      %v3140 = vmax.f32 %v3108, 0.0
      %v3141 = vmax.f32 %v3109, 0.0
      %v3142 = vmax.f32 %v3110, 0.0
      %v3143 = vmax.f32 %v3111, 0.0
      %v3144 = vmax.f32 %v3112, 0.0
      %v3145 = vmax.f32 %v3113, 0.0
      %v3146 = vmax.f32 %v3114, 0.0
      %v3147 = vmax.f32 %v3115, 0.0
      %v3148 = vmax.f32 %v3116, 0.0
      %v3149 = vmax.f32 %v3117, 0.0
      %v3150 = vmax.f32 %v3118, 0.0
      %v3151 = vmax.f32 %v3119, 0.0
      %v3152 = vmax.f32 %v3120, 0.0
      %v3153 = vmax.f32 %v3121, 0.0
      %v3154 = vmax.f32 %v3122, 0.0
      %v3155 = vmax.f32 %v3123, 0.0
      %v3156 = vmax.f32 %v3124, 0.0
      %v3157 = vmax.f32 %v3125, 0.0
      %v3158 = vmax.f32 %v3126, 0.0
      %v3159 = vmax.f32 %v3127, 0.0
      %v3160 = vmax.f32 %v3128, 0.0
      %v3161 = vmax.f32 %v3129, 0.0
      %v3162 = vmax.f32 %v3130, 0.0
      %v3163 = vmax.f32 %v3131, 0.0
      %v3164 = vmax.f32 %v3132, 0.0
      %v3165 = vmax.f32 %v3133, 0.0
      %v3166 = vmax.f32 %v3134, 0.0
      %v3167 = vmax.f32 %v3135, 0.0
      %v3168 = vmax.f32 %v3136, 0.0
      %3169 = vst [vmem:[%s435] sm:$0xff] %v3137
      %3170 = vst [vmem:[%s435 + $0x8] sm:$0xff] %v3138
      %3171 = vst [vmem:[%s435 + $0x10] sm:$0xff] %v3139
      %3172 = vst [vmem:[%s435 + $0x18] sm:$0xff] %v3140
      %3173 = vst [vmem:[%s435 + $0x20] sm:$0xff] %v3141
      %3174 = vst [vmem:[%s435 + $0x28] sm:$0xff] %v3142
      %3175 = vst [vmem:[%s435 + $0x30] sm:$0xff] %v3143
      %3176 = vst [vmem:[%s435 + $0x38] sm:$0xff] %v3144
      %3177 = vst [vmem:[%s435 + $0x40] sm:$0xff] %v3145
      %3178 = vst [vmem:[%s435 + $0x48] sm:$0xff] %v3146
      %3179 = vst [vmem:[%s435 + $0x50] sm:$0xff] %v3147
      %3180 = vst [vmem:[%s435 + $0x58] sm:$0xff] %v3148
      %3181 = vst [vmem:[%s435 + $0x60] sm:$0xff] %v3149
      %3182 = vst [vmem:[%s435 + $0x68] sm:$0xff] %v3150
      %3183 = vst [vmem:[%s435 + $0x70] sm:$0xff] %v3151
      %3184 = vst [vmem:[%s435 + $0x78] sm:$0xff] %v3152
      %3185 = vst [vmem:[%s435 + $0x80] sm:$0xff] %v3153
      %3186 = vst [vmem:[%s435 + $0x88] sm:$0xff] %v3154
      %3187 = vst [vmem:[%s435 + $0x90] sm:$0xff] %v3155
      %3188 = vst [vmem:[%s435 + $0x98] sm:$0xff] %v3156
      %3189 = vst [vmem:[%s435 + $0xa0] sm:$0xff] %v3157
      %3190 = vst [vmem:[%s435 + $0xa8] sm:$0xff] %v3158
      %3191 = vst [vmem:[%s435 + $0xb0] sm:$0xff] %v3159
      %3192 = vst [vmem:[%s435 + $0xb8] sm:$0xff] %v3160
      %3193 = vst [vmem:[%s435 + $0xc0] sm:$0xff] %v3161
      %3194 = vst [vmem:[%s435 + $0xc8] sm:$0xff] %v3162
      %3195 = vst [vmem:[%s435 + $0xd0] sm:$0xff] %v3163
      %3196 = vst [vmem:[%s435 + $0xd8] sm:$0xff] %v3164
      %3197 = vst [vmem:[%s435 + $0xe0] sm:$0xff] %v3165
      %3198 = vst [vmem:[%s435 + $0xe8] sm:$0xff] %v3166
      %3199 = vst [vmem:[%s435 + $0xf0] sm:$0xff] %v3167
      %3200 = vst [vmem:[%s435 + $0xf8] sm:$0xff] %v3168
      %v3201 = vld [vmem:[#allocation2 + $0x100] sm:$0xff]
      %v3202 = vld [vmem:[#allocation2 + $0x108] sm:$0xff]
      %v3203 = vld [vmem:[#allocation2 + $0x110] sm:$0xff]
      %v3204 = vld [vmem:[#allocation2 + $0x118] sm:$0xff]
      %v3205 = vpack.c.bf16 %v3202, %v3201
      %v3206 = vpack.c.bf16 %v3204, %v3203
      %v3207 = vld [vmem:[%s411] sm:$0xf]
      %v3208 = vld [vmem:[%s411 + $0x4] sm:$0xf]
      %v3209 = vld [vmem:[%s411 + $0x8] sm:$0xf]
      %v3210 = vld [vmem:[%s411 + $0xc] sm:$0xf]
      %v3211 = vld [vmem:[%s411 + $0x10] sm:$0xf]
      %v3212 = vld [vmem:[%s411 + $0x14] sm:$0xf]
      %v3213 = vld [vmem:[%s411 + $0x18] sm:$0xf]
      %v3214 = vld [vmem:[%s411 + $0x1c] sm:$0xf]
      %v3215 = vld [vmem:[%s411 + $0x20] sm:$0xf]
      %v3216 = vld [vmem:[%s411 + $0x24] sm:$0xf]
      %v3217 = vld [vmem:[%s411 + $0x28] sm:$0xf]
      %v3218 = vld [vmem:[%s411 + $0x2c] sm:$0xf]
      %v3219 = vld [vmem:[%s411 + $0x30] sm:$0xf]
      %v3220 = vld [vmem:[%s411 + $0x34] sm:$0xf]
      %v3221 = vld [vmem:[%s411 + $0x38] sm:$0xf]
      %v3222 = vld [vmem:[%s411 + $0x3c] sm:$0xf]
      %v3223 = vld [vmem:[#allocation2 + $0x101] sm:$0xff]
      %v3224 = vld [vmem:[#allocation2 + $0x109] sm:$0xff]
      %v3225 = vld [vmem:[#allocation2 + $0x111] sm:$0xff]
      %v3226 = vld [vmem:[#allocation2 + $0x119] sm:$0xff]
      %v3227 = vpack.c.bf16 %v3224, %v3223
      %v3228 = vpack.c.bf16 %v3226, %v3225
      %v3229 = vld [vmem:[%s835] sm:$0xf]
      %v3230 = vld [vmem:[%s835 + $0x4] sm:$0xf]
      %v3231 = vld [vmem:[%s835 + $0x8] sm:$0xf]
      %v3232 = vld [vmem:[%s835 + $0xc] sm:$0xf]
      %v3233 = vld [vmem:[%s835 + $0x10] sm:$0xf]
      %v3234 = vld [vmem:[%s835 + $0x14] sm:$0xf]
      %v3235 = vld [vmem:[%s835 + $0x18] sm:$0xf]
      %v3236 = vld [vmem:[%s835 + $0x1c] sm:$0xf]
      %v3237 = vld [vmem:[%s835 + $0x20] sm:$0xf]
      %v3238 = vld [vmem:[%s835 + $0x24] sm:$0xf]
      %v3239 = vld [vmem:[%s835 + $0x28] sm:$0xf]
      %v3240 = vld [vmem:[%s835 + $0x2c] sm:$0xf]
      %v3241 = vld [vmem:[%s835 + $0x30] sm:$0xf]
      %v3242 = vld [vmem:[%s835 + $0x34] sm:$0xf]
      %v3243 = vld [vmem:[%s835 + $0x38] sm:$0xf]
      %v3244 = vld [vmem:[%s835 + $0x3c] sm:$0xf]
      %v3261 = vunpack.c.l.b16 %v3229
      %v3262 = vunpack.c.l.b16 %v3230
      %v3263 = vunpack.c.l.b16 %v3231
      %v3264 = vunpack.c.l.b16 %v3232
      %v3265 = vunpack.c.l.b16 %v3233
      %v3266 = vunpack.c.l.b16 %v3234
      %v3267 = vunpack.c.l.b16 %v3235
      %v3268 = vunpack.c.l.b16 %v3236
      %v3269 = vunpack.c.l.b16 %v3237
      %v3270 = vunpack.c.l.b16 %v3238
      %v3271 = vunpack.c.l.b16 %v3239
      %v3272 = vunpack.c.l.b16 %v3240
      %v3273 = vunpack.c.l.b16 %v3241
      %v3274 = vunpack.c.l.b16 %v3242
      %v3275 = vunpack.c.l.b16 %v3243
      %v3276 = vunpack.c.l.b16 %v3244
      %v3277 = vpack.c.b16 %v3262, %v3261
      %v3278 = vpack.c.b16 %v3264, %v3263
      %v3279 = vpack.c.b16 %v3266, %v3265
      %v3280 = vpack.c.b16 %v3268, %v3267
      %v3281 = vpack.c.b16 %v3270, %v3269
      %v3282 = vpack.c.b16 %v3272, %v3271
      %v3283 = vpack.c.b16 %v3274, %v3273
      %v3284 = vpack.c.b16 %v3276, %v3275
      %3293 = vmatpush.bf16.msra.mxu0 %v3284
      %3294 = vmatpush.bf16.msra.mxu0 %v3283
      %3295 = vmatpush.bf16.msra.mxu0 %v3282
      %3296 = vmatpush.bf16.msra.mxu0 %v3281
      %3297 = vmatpush.bf16.msra.mxu0 %v3280
      %3298 = vmatpush.bf16.msra.mxu0 %v3279
      %3299 = vmatpush.bf16.msra.mxu0 %v3278
      %3300 = vmatpush.bf16.msra.mxu0 %v3277
      %3301 = vmatmul.bf16.gmra.mxu0 %v3227
      %v3302 = vpop.f32.mrf.mxu0
      %v3303 = vadd.f32 0.0, %v3302
      %v3304 = vpop.f32.mrf.mxu0
      %v3305 = vadd.f32 0.0, %v3304
      %3306 = vmatmul.bf16.gmra.mxu0 %v3228
      %v3307 = vpop.f32.mrf.mxu0
      %v3308 = vadd.f32 0.0, %v3307
      %v3309 = vpop.f32.mrf.mxu0
      %v3310 = vadd.f32 0.0, %v3309
      %3311 = vdwg.mxu0
      %v3328 = vunpack.c.l.b16 %v3207
      %v3329 = vunpack.c.l.b16 %v3208
      %v3330 = vunpack.c.l.b16 %v3209
      %v3331 = vunpack.c.l.b16 %v3210
      %v3332 = vunpack.c.l.b16 %v3211
      %v3333 = vunpack.c.l.b16 %v3212
      %v3334 = vunpack.c.l.b16 %v3213
      %v3335 = vunpack.c.l.b16 %v3214
      %v3336 = vunpack.c.l.b16 %v3215
      %v3337 = vunpack.c.l.b16 %v3216
      %v3338 = vunpack.c.l.b16 %v3217
      %v3339 = vunpack.c.l.b16 %v3218
      %v3340 = vunpack.c.l.b16 %v3219
      %v3341 = vunpack.c.l.b16 %v3220
      %v3342 = vunpack.c.l.b16 %v3221
      %v3343 = vunpack.c.l.b16 %v3222
      %v3344 = vpack.c.b16 %v3329, %v3328
      %v3345 = vpack.c.b16 %v3331, %v3330
      %v3346 = vpack.c.b16 %v3333, %v3332
      %v3347 = vpack.c.b16 %v3335, %v3334
      %v3348 = vpack.c.b16 %v3337, %v3336
      %v3349 = vpack.c.b16 %v3339, %v3338
      %v3350 = vpack.c.b16 %v3341, %v3340
      %v3351 = vpack.c.b16 %v3343, %v3342
      %3360 = vmatpush.bf16.msra.mxu0 %v3351
      %3361 = vmatpush.bf16.msra.mxu0 %v3350
      %3362 = vmatpush.bf16.msra.mxu0 %v3349
      %3363 = vmatpush.bf16.msra.mxu0 %v3348
      %3364 = vmatpush.bf16.msra.mxu0 %v3347
      %3365 = vmatpush.bf16.msra.mxu0 %v3346
      %3366 = vmatpush.bf16.msra.mxu0 %v3345
      %3367 = vmatpush.bf16.msra.mxu0 %v3344
      %3368 = vmatmul.bf16.gmra.mxu0 %v3205
      %v3369 = vpop.f32.mrf.mxu0
      %v3370 = vadd.f32 %v3303, %v3369
      %v3371 = vpop.f32.mrf.mxu0
      %v3372 = vadd.f32 %v3305, %v3371
      %3373 = vmatmul.bf16.gmra.mxu0 %v3206
      %v3374 = vpop.f32.mrf.mxu0
      %v3375 = vadd.f32 %v3308, %v3374
      %v3376 = vpop.f32.mrf.mxu0
      %v3377 = vadd.f32 %v3310, %v3376
      %3378 = vdwg.mxu0
      %v3379 = vld [vmem:[#allocation2 + $0x102] sm:$0xff]
      %v3380 = vld [vmem:[#allocation2 + $0x10a] sm:$0xff]
      %v3381 = vld [vmem:[#allocation2 + $0x112] sm:$0xff]
      %v3382 = vld [vmem:[#allocation2 + $0x11a] sm:$0xff]
      %v3383 = vpack.c.bf16 %v3380, %v3379
      %v3384 = vpack.c.bf16 %v3382, %v3381
      %v3385 = vld [vmem:[%s1174] sm:$0xf]
      %v3386 = vld [vmem:[%s1174 + $0x4] sm:$0xf]
      %v3387 = vld [vmem:[%s1174 + $0x8] sm:$0xf]
      %v3388 = vld [vmem:[%s1174 + $0xc] sm:$0xf]
      %v3389 = vld [vmem:[%s1174 + $0x10] sm:$0xf]
      %v3390 = vld [vmem:[%s1174 + $0x14] sm:$0xf]
      %v3391 = vld [vmem:[%s1174 + $0x18] sm:$0xf]
      %v3392 = vld [vmem:[%s1174 + $0x1c] sm:$0xf]
      %v3393 = vld [vmem:[%s1174 + $0x20] sm:$0xf]
      %v3394 = vld [vmem:[%s1174 + $0x24] sm:$0xf]
      %v3395 = vld [vmem:[%s1174 + $0x28] sm:$0xf]
      %v3396 = vld [vmem:[%s1174 + $0x2c] sm:$0xf]
      %v3397 = vld [vmem:[%s1174 + $0x30] sm:$0xf]
      %v3398 = vld [vmem:[%s1174 + $0x34] sm:$0xf]
      %v3399 = vld [vmem:[%s1174 + $0x38] sm:$0xf]
      %v3400 = vld [vmem:[%s1174 + $0x3c] sm:$0xf]
      %v3417 = vunpack.c.l.b16 %v3385
      %v3418 = vunpack.c.l.b16 %v3386
      %v3419 = vunpack.c.l.b16 %v3387
      %v3420 = vunpack.c.l.b16 %v3388
      %v3421 = vunpack.c.l.b16 %v3389
      %v3422 = vunpack.c.l.b16 %v3390
      %v3423 = vunpack.c.l.b16 %v3391
      %v3424 = vunpack.c.l.b16 %v3392
      %v3425 = vunpack.c.l.b16 %v3393
      %v3426 = vunpack.c.l.b16 %v3394
      %v3427 = vunpack.c.l.b16 %v3395
      %v3428 = vunpack.c.l.b16 %v3396
      %v3429 = vunpack.c.l.b16 %v3397
      %v3430 = vunpack.c.l.b16 %v3398
      %v3431 = vunpack.c.l.b16 %v3399
      %v3432 = vunpack.c.l.b16 %v3400
      %v3433 = vpack.c.b16 %v3418, %v3417
      %v3434 = vpack.c.b16 %v3420, %v3419
      %v3435 = vpack.c.b16 %v3422, %v3421
      %v3436 = vpack.c.b16 %v3424, %v3423
      %v3437 = vpack.c.b16 %v3426, %v3425
      %v3438 = vpack.c.b16 %v3428, %v3427
      %v3439 = vpack.c.b16 %v3430, %v3429
      %v3440 = vpack.c.b16 %v3432, %v3431
      %3449 = vmatpush.bf16.msra.mxu0 %v3440
      %3450 = vmatpush.bf16.msra.mxu0 %v3439
      %3451 = vmatpush.bf16.msra.mxu0 %v3438
      %3452 = vmatpush.bf16.msra.mxu0 %v3437
      %3453 = vmatpush.bf16.msra.mxu0 %v3436
      %3454 = vmatpush.bf16.msra.mxu0 %v3435
      %3455 = vmatpush.bf16.msra.mxu0 %v3434
      %3456 = vmatpush.bf16.msra.mxu0 %v3433
      %3457 = vmatmul.bf16.gmra.mxu0 %v3383
      %v3458 = vpop.f32.mrf.mxu0
      %v3459 = vadd.f32 0.0, %v3458
      %v3460 = vpop.f32.mrf.mxu0
      %v3461 = vadd.f32 0.0, %v3460
      %3462 = vmatmul.bf16.gmra.mxu0 %v3384
      %v3463 = vpop.f32.mrf.mxu0
      %v3464 = vadd.f32 0.0, %v3463
      %v3465 = vpop.f32.mrf.mxu0
      %v3466 = vadd.f32 0.0, %v3465
      %3467 = vdwg.mxu0
      %v3468 = vadd.f32 %v3370, %v3459
      %v3469 = vadd.f32 %v3372, %v3461
      %v3470 = vadd.f32 %v3375, %v3464
      %v3471 = vadd.f32 %v3377, %v3466
      %v3472 = vld [vmem:[#allocation2 + $0x112] sm:$0xff]
      %v3473 = vld [vmem:[#allocation2 + $0x11a] sm:$0xff]
      %v3474 = vld [vmem:[#allocation2 + $0x122] sm:$0xff]
      %v3475 = vld [vmem:[#allocation2 + $0x12a] sm:$0xff]
      %v3476 = vpack.c.bf16 %v3473, %v3472
      %v3477 = vpack.c.bf16 %v3475, %v3474
      %v3478 = vld [vmem:[%s1408] sm:$0xf]
      %v3479 = vld [vmem:[%s1408 + $0x4] sm:$0xf]
      %v3480 = vld [vmem:[%s1408 + $0x8] sm:$0xf]
      %v3481 = vld [vmem:[%s1408 + $0xc] sm:$0xf]
      %v3482 = vld [vmem:[%s1408 + $0x10] sm:$0xf]
      %v3483 = vld [vmem:[%s1408 + $0x14] sm:$0xf]
      %v3484 = vld [vmem:[%s1408 + $0x18] sm:$0xf]
      %v3485 = vld [vmem:[%s1408 + $0x1c] sm:$0xf]
      %v3486 = vld [vmem:[%s1408 + $0x20] sm:$0xf]
      %v3487 = vld [vmem:[%s1408 + $0x24] sm:$0xf]
      %v3488 = vld [vmem:[%s1408 + $0x28] sm:$0xf]
      %v3489 = vld [vmem:[%s1408 + $0x2c] sm:$0xf]
      %v3490 = vld [vmem:[%s1408 + $0x30] sm:$0xf]
      %v3491 = vld [vmem:[%s1408 + $0x34] sm:$0xf]
      %v3492 = vld [vmem:[%s1408 + $0x38] sm:$0xf]
      %v3493 = vld [vmem:[%s1408 + $0x3c] sm:$0xf]
      %v3510 = vunpack.c.l.b16 %v3478
      %v3511 = vunpack.c.l.b16 %v3479
      %v3512 = vunpack.c.l.b16 %v3480
      %v3513 = vunpack.c.l.b16 %v3481
      %v3514 = vunpack.c.l.b16 %v3482
      %v3515 = vunpack.c.l.b16 %v3483
      %v3516 = vunpack.c.l.b16 %v3484
      %v3517 = vunpack.c.l.b16 %v3485
      %v3518 = vunpack.c.l.b16 %v3486
      %v3519 = vunpack.c.l.b16 %v3487
      %v3520 = vunpack.c.l.b16 %v3488
      %v3521 = vunpack.c.l.b16 %v3489
      %v3522 = vunpack.c.l.b16 %v3490
      %v3523 = vunpack.c.l.b16 %v3491
      %v3524 = vunpack.c.l.b16 %v3492
      %v3525 = vunpack.c.l.b16 %v3493
      %v3526 = vpack.c.b16 %v3511, %v3510
      %v3527 = vpack.c.b16 %v3513, %v3512
      %v3528 = vpack.c.b16 %v3515, %v3514
      %v3529 = vpack.c.b16 %v3517, %v3516
      %v3530 = vpack.c.b16 %v3519, %v3518
      %v3531 = vpack.c.b16 %v3521, %v3520
      %v3532 = vpack.c.b16 %v3523, %v3522
      %v3533 = vpack.c.b16 %v3525, %v3524
      %3542 = vmatpush.bf16.msra.mxu0 %v3533
      %3543 = vmatpush.bf16.msra.mxu0 %v3532
      %3544 = vmatpush.bf16.msra.mxu0 %v3531
      %3545 = vmatpush.bf16.msra.mxu0 %v3530
      %3546 = vmatpush.bf16.msra.mxu0 %v3529
      %3547 = vmatpush.bf16.msra.mxu0 %v3528
      %3548 = vmatpush.bf16.msra.mxu0 %v3527
      %3549 = vmatpush.bf16.msra.mxu0 %v3526
      %3550 = vmatmul.bf16.gmra.mxu0 %v3476
      %v3551 = vpop.f32.mrf.mxu0
      %v3552 = vadd.f32 0.0, %v3551
      %v3553 = vpop.f32.mrf.mxu0
      %v3554 = vadd.f32 0.0, %v3553
      %3555 = vmatmul.bf16.gmra.mxu0 %v3477
      %v3556 = vpop.f32.mrf.mxu0
      %v3557 = vadd.f32 0.0, %v3556
      %v3558 = vpop.f32.mrf.mxu0
      %v3559 = vadd.f32 0.0, %v3558
      %3560 = vdwg.mxu0
      %v3561 = vadd.f32 %v3468, %v3552
      %v3562 = vadd.f32 %v3469, %v3554
      %v3563 = vadd.f32 %v3470, %v3557
      %v3564 = vadd.f32 %v3471, %v3559
      %v3565 = vld [vmem:[#allocation2 + $0x113] sm:$0xff]
      %v3566 = vld [vmem:[#allocation2 + $0x11b] sm:$0xff]
      %v3567 = vld [vmem:[#allocation2 + $0x123] sm:$0xff]
      %v3568 = vld [vmem:[#allocation2 + $0x12b] sm:$0xff]
      %v3569 = vpack.c.bf16 %v3566, %v3565
      %v3570 = vpack.c.bf16 %v3568, %v3567
      %v3571 = vld [vmem:[%s1642] sm:$0xf]
      %v3572 = vld [vmem:[%s1642 + $0x4] sm:$0xf]
      %v3573 = vld [vmem:[%s1642 + $0x8] sm:$0xf]
      %v3574 = vld [vmem:[%s1642 + $0xc] sm:$0xf]
      %v3575 = vld [vmem:[%s1642 + $0x10] sm:$0xf]
      %v3576 = vld [vmem:[%s1642 + $0x14] sm:$0xf]
      %v3577 = vld [vmem:[%s1642 + $0x18] sm:$0xf]
      %v3578 = vld [vmem:[%s1642 + $0x1c] sm:$0xf]
      %v3579 = vld [vmem:[%s1642 + $0x20] sm:$0xf]
      %v3580 = vld [vmem:[%s1642 + $0x24] sm:$0xf]
      %v3581 = vld [vmem:[%s1642 + $0x28] sm:$0xf]
      %v3582 = vld [vmem:[%s1642 + $0x2c] sm:$0xf]
      %v3583 = vld [vmem:[%s1642 + $0x30] sm:$0xf]
      %v3584 = vld [vmem:[%s1642 + $0x34] sm:$0xf]
      %v3585 = vld [vmem:[%s1642 + $0x38] sm:$0xf]
      %v3586 = vld [vmem:[%s1642 + $0x3c] sm:$0xf]
      %v3603 = vunpack.c.l.b16 %v3571
      %v3604 = vunpack.c.l.b16 %v3572
      %v3605 = vunpack.c.l.b16 %v3573
      %v3606 = vunpack.c.l.b16 %v3574
      %v3607 = vunpack.c.l.b16 %v3575
      %v3608 = vunpack.c.l.b16 %v3576
      %v3609 = vunpack.c.l.b16 %v3577
      %v3610 = vunpack.c.l.b16 %v3578
      %v3611 = vunpack.c.l.b16 %v3579
      %v3612 = vunpack.c.l.b16 %v3580
      %v3613 = vunpack.c.l.b16 %v3581
      %v3614 = vunpack.c.l.b16 %v3582
      %v3615 = vunpack.c.l.b16 %v3583
      %v3616 = vunpack.c.l.b16 %v3584
      %v3617 = vunpack.c.l.b16 %v3585
      %v3618 = vunpack.c.l.b16 %v3586
      %v3619 = vpack.c.b16 %v3604, %v3603
      %v3620 = vpack.c.b16 %v3606, %v3605
      %v3621 = vpack.c.b16 %v3608, %v3607
      %v3622 = vpack.c.b16 %v3610, %v3609
      %v3623 = vpack.c.b16 %v3612, %v3611
      %v3624 = vpack.c.b16 %v3614, %v3613
      %v3625 = vpack.c.b16 %v3616, %v3615
      %v3626 = vpack.c.b16 %v3618, %v3617
      %3635 = vmatpush.bf16.msra.mxu0 %v3626
      %3636 = vmatpush.bf16.msra.mxu0 %v3625
      %3637 = vmatpush.bf16.msra.mxu0 %v3624
      %3638 = vmatpush.bf16.msra.mxu0 %v3623
      %3639 = vmatpush.bf16.msra.mxu0 %v3622
      %3640 = vmatpush.bf16.msra.mxu0 %v3621
      %3641 = vmatpush.bf16.msra.mxu0 %v3620
      %3642 = vmatpush.bf16.msra.mxu0 %v3619
      %3643 = vmatmul.bf16.gmra.mxu0 %v3569
      %v3644 = vpop.f32.mrf.mxu0
      %v3645 = vadd.f32 0.0, %v3644
      %v3646 = vpop.f32.mrf.mxu0
      %v3647 = vadd.f32 0.0, %v3646
      %3648 = vmatmul.bf16.gmra.mxu0 %v3570
      %v3649 = vpop.f32.mrf.mxu0
      %v3650 = vadd.f32 0.0, %v3649
      %v3651 = vpop.f32.mrf.mxu0
      %v3652 = vadd.f32 0.0, %v3651
      %3653 = vdwg.mxu0
      %v3654 = vadd.f32 %v3561, %v3645
      %v3655 = vadd.f32 %v3562, %v3647
      %v3656 = vadd.f32 %v3563, %v3650
      %v3657 = vadd.f32 %v3564, %v3652
      %v3658 = vld [vmem:[#allocation2 + $0x114] sm:$0xff]
      %v3659 = vld [vmem:[#allocation2 + $0x11c] sm:$0xff]
      %v3660 = vld [vmem:[#allocation2 + $0x124] sm:$0xff]
      %v3661 = vld [vmem:[#allocation2 + $0x12c] sm:$0xff]
      %v3662 = vpack.c.bf16 %v3659, %v3658
      %v3663 = vpack.c.bf16 %v3661, %v3660
      %v3664 = vld [vmem:[%s1876] sm:$0xf]
      %v3665 = vld [vmem:[%s1876 + $0x4] sm:$0xf]
      %v3666 = vld [vmem:[%s1876 + $0x8] sm:$0xf]
      %v3667 = vld [vmem:[%s1876 + $0xc] sm:$0xf]
      %v3668 = vld [vmem:[%s1876 + $0x10] sm:$0xf]
      %v3669 = vld [vmem:[%s1876 + $0x14] sm:$0xf]
      %v3670 = vld [vmem:[%s1876 + $0x18] sm:$0xf]
      %v3671 = vld [vmem:[%s1876 + $0x1c] sm:$0xf]
      %v3672 = vld [vmem:[%s1876 + $0x20] sm:$0xf]
      %v3673 = vld [vmem:[%s1876 + $0x24] sm:$0xf]
      %v3674 = vld [vmem:[%s1876 + $0x28] sm:$0xf]
      %v3675 = vld [vmem:[%s1876 + $0x2c] sm:$0xf]
      %v3676 = vld [vmem:[%s1876 + $0x30] sm:$0xf]
      %v3677 = vld [vmem:[%s1876 + $0x34] sm:$0xf]
      %v3678 = vld [vmem:[%s1876 + $0x38] sm:$0xf]
      %v3679 = vld [vmem:[%s1876 + $0x3c] sm:$0xf]
      %v3696 = vunpack.c.l.b16 %v3664
      %v3697 = vunpack.c.l.b16 %v3665
      %v3698 = vunpack.c.l.b16 %v3666
      %v3699 = vunpack.c.l.b16 %v3667
      %v3700 = vunpack.c.l.b16 %v3668
      %v3701 = vunpack.c.l.b16 %v3669
      %v3702 = vunpack.c.l.b16 %v3670
      %v3703 = vunpack.c.l.b16 %v3671
      %v3704 = vunpack.c.l.b16 %v3672
      %v3705 = vunpack.c.l.b16 %v3673
      %v3706 = vunpack.c.l.b16 %v3674
      %v3707 = vunpack.c.l.b16 %v3675
      %v3708 = vunpack.c.l.b16 %v3676
      %v3709 = vunpack.c.l.b16 %v3677
      %v3710 = vunpack.c.l.b16 %v3678
      %v3711 = vunpack.c.l.b16 %v3679
      %v3712 = vpack.c.b16 %v3697, %v3696
      %v3713 = vpack.c.b16 %v3699, %v3698
      %v3714 = vpack.c.b16 %v3701, %v3700
      %v3715 = vpack.c.b16 %v3703, %v3702
      %v3716 = vpack.c.b16 %v3705, %v3704
      %v3717 = vpack.c.b16 %v3707, %v3706
      %v3718 = vpack.c.b16 %v3709, %v3708
      %v3719 = vpack.c.b16 %v3711, %v3710
      %3728 = vmatpush.bf16.msra.mxu0 %v3719
      %3729 = vmatpush.bf16.msra.mxu0 %v3718
      %3730 = vmatpush.bf16.msra.mxu0 %v3717
      %3731 = vmatpush.bf16.msra.mxu0 %v3716
      %3732 = vmatpush.bf16.msra.mxu0 %v3715
      %3733 = vmatpush.bf16.msra.mxu0 %v3714
      %3734 = vmatpush.bf16.msra.mxu0 %v3713
      %3735 = vmatpush.bf16.msra.mxu0 %v3712
      %3736 = vmatmul.bf16.gmra.mxu0 %v3662
      %v3737 = vpop.f32.mrf.mxu0
      %v3738 = vadd.f32 0.0, %v3737
      %v3739 = vpop.f32.mrf.mxu0
      %v3740 = vadd.f32 0.0, %v3739
      %3741 = vmatmul.bf16.gmra.mxu0 %v3663
      %v3742 = vpop.f32.mrf.mxu0
      %v3743 = vadd.f32 0.0, %v3742
      %v3744 = vpop.f32.mrf.mxu0
      %v3745 = vadd.f32 0.0, %v3744
      %3746 = vdwg.mxu0
      %v3747 = vadd.f32 %v3654, %v3738
      %v3748 = vadd.f32 %v3655, %v3740
      %v3749 = vadd.f32 %v3656, %v3743
      %v3750 = vadd.f32 %v3657, %v3745
      %v3751 = vld [vmem:[#allocation2 + $0x124] sm:$0xff]
      %v3752 = vld [vmem:[#allocation2 + $0x12c] sm:$0xff]
      %v3753 = vld [vmem:[#allocation2 + $0x134] sm:$0xff]
      %v3754 = vld [vmem:[#allocation2 + $0x13c] sm:$0xff]
      %v3755 = vpack.c.bf16 %v3752, %v3751
      %v3756 = vpack.c.bf16 %v3754, %v3753
      %v3757 = vld [vmem:[%s2110] sm:$0xf]
      %v3758 = vld [vmem:[%s2110 + $0x4] sm:$0xf]
      %v3759 = vld [vmem:[%s2110 + $0x8] sm:$0xf]
      %v3760 = vld [vmem:[%s2110 + $0xc] sm:$0xf]
      %v3761 = vld [vmem:[%s2110 + $0x10] sm:$0xf]
      %v3762 = vld [vmem:[%s2110 + $0x14] sm:$0xf]
      %v3763 = vld [vmem:[%s2110 + $0x18] sm:$0xf]
      %v3764 = vld [vmem:[%s2110 + $0x1c] sm:$0xf]
      %v3765 = vld [vmem:[%s2110 + $0x20] sm:$0xf]
      %v3766 = vld [vmem:[%s2110 + $0x24] sm:$0xf]
      %v3767 = vld [vmem:[%s2110 + $0x28] sm:$0xf]
      %v3768 = vld [vmem:[%s2110 + $0x2c] sm:$0xf]
      %v3769 = vld [vmem:[%s2110 + $0x30] sm:$0xf]
      %v3770 = vld [vmem:[%s2110 + $0x34] sm:$0xf]
      %v3771 = vld [vmem:[%s2110 + $0x38] sm:$0xf]
      %v3772 = vld [vmem:[%s2110 + $0x3c] sm:$0xf]
      %v3789 = vunpack.c.l.b16 %v3757
      %v3790 = vunpack.c.l.b16 %v3758
      %v3791 = vunpack.c.l.b16 %v3759
      %v3792 = vunpack.c.l.b16 %v3760
      %v3793 = vunpack.c.l.b16 %v3761
      %v3794 = vunpack.c.l.b16 %v3762
      %v3795 = vunpack.c.l.b16 %v3763
      %v3796 = vunpack.c.l.b16 %v3764
      %v3797 = vunpack.c.l.b16 %v3765
      %v3798 = vunpack.c.l.b16 %v3766
      %v3799 = vunpack.c.l.b16 %v3767
      %v3800 = vunpack.c.l.b16 %v3768
      %v3801 = vunpack.c.l.b16 %v3769
      %v3802 = vunpack.c.l.b16 %v3770
      %v3803 = vunpack.c.l.b16 %v3771
      %v3804 = vunpack.c.l.b16 %v3772
      %v3805 = vpack.c.b16 %v3790, %v3789
      %v3806 = vpack.c.b16 %v3792, %v3791
      %v3807 = vpack.c.b16 %v3794, %v3793
      %v3808 = vpack.c.b16 %v3796, %v3795
      %v3809 = vpack.c.b16 %v3798, %v3797
      %v3810 = vpack.c.b16 %v3800, %v3799
      %v3811 = vpack.c.b16 %v3802, %v3801
      %v3812 = vpack.c.b16 %v3804, %v3803
      %3821 = vmatpush.bf16.msra.mxu0 %v3812
      %3822 = vmatpush.bf16.msra.mxu0 %v3811
      %3823 = vmatpush.bf16.msra.mxu0 %v3810
      %3824 = vmatpush.bf16.msra.mxu0 %v3809
      %3825 = vmatpush.bf16.msra.mxu0 %v3808
      %3826 = vmatpush.bf16.msra.mxu0 %v3807
      %3827 = vmatpush.bf16.msra.mxu0 %v3806
      %3828 = vmatpush.bf16.msra.mxu0 %v3805
      %3829 = vmatmul.bf16.gmra.mxu0 %v3755
      %v3830 = vpop.f32.mrf.mxu0
      %v3831 = vadd.f32 0.0, %v3830
      %v3832 = vpop.f32.mrf.mxu0
      %v3833 = vadd.f32 0.0, %v3832
      %3834 = vmatmul.bf16.gmra.mxu0 %v3756
      %v3835 = vpop.f32.mrf.mxu0
      %v3836 = vadd.f32 0.0, %v3835
      %v3837 = vpop.f32.mrf.mxu0
      %v3838 = vadd.f32 0.0, %v3837
      %3839 = vdwg.mxu0
      %v3840 = vadd.f32 %v3747, %v3831
      %v3841 = vadd.f32 %v3748, %v3833
      %v3842 = vadd.f32 %v3749, %v3836
      %v3843 = vadd.f32 %v3750, %v3838
      %v3844 = vld [vmem:[#allocation2 + $0x125] sm:$0xff]
      %v3845 = vld [vmem:[#allocation2 + $0x12d] sm:$0xff]
      %v3846 = vld [vmem:[#allocation2 + $0x135] sm:$0xff]
      %v3847 = vld [vmem:[#allocation2 + $0x13d] sm:$0xff]
      %v3848 = vpack.c.bf16 %v3845, %v3844
      %v3849 = vpack.c.bf16 %v3847, %v3846
      %v3850 = vld [vmem:[%s2344] sm:$0xf]
      %v3851 = vld [vmem:[%s2344 + $0x4] sm:$0xf]
      %v3852 = vld [vmem:[%s2344 + $0x8] sm:$0xf]
      %v3853 = vld [vmem:[%s2344 + $0xc] sm:$0xf]
      %v3854 = vld [vmem:[%s2344 + $0x10] sm:$0xf]
      %v3855 = vld [vmem:[%s2344 + $0x14] sm:$0xf]
      %v3856 = vld [vmem:[%s2344 + $0x18] sm:$0xf]
      %v3857 = vld [vmem:[%s2344 + $0x1c] sm:$0xf]
      %v3858 = vld [vmem:[%s2344 + $0x20] sm:$0xf]
      %v3859 = vld [vmem:[%s2344 + $0x24] sm:$0xf]
      %v3860 = vld [vmem:[%s2344 + $0x28] sm:$0xf]
      %v3861 = vld [vmem:[%s2344 + $0x2c] sm:$0xf]
      %v3862 = vld [vmem:[%s2344 + $0x30] sm:$0xf]
      %v3863 = vld [vmem:[%s2344 + $0x34] sm:$0xf]
      %v3864 = vld [vmem:[%s2344 + $0x38] sm:$0xf]
      %v3865 = vld [vmem:[%s2344 + $0x3c] sm:$0xf]
      %v3882 = vunpack.c.l.b16 %v3850
      %v3883 = vunpack.c.l.b16 %v3851
      %v3884 = vunpack.c.l.b16 %v3852
      %v3885 = vunpack.c.l.b16 %v3853
      %v3886 = vunpack.c.l.b16 %v3854
      %v3887 = vunpack.c.l.b16 %v3855
      %v3888 = vunpack.c.l.b16 %v3856
      %v3889 = vunpack.c.l.b16 %v3857
      %v3890 = vunpack.c.l.b16 %v3858
      %v3891 = vunpack.c.l.b16 %v3859
      %v3892 = vunpack.c.l.b16 %v3860
      %v3893 = vunpack.c.l.b16 %v3861
      %v3894 = vunpack.c.l.b16 %v3862
      %v3895 = vunpack.c.l.b16 %v3863
      %v3896 = vunpack.c.l.b16 %v3864
      %v3897 = vunpack.c.l.b16 %v3865
      %v3898 = vpack.c.b16 %v3883, %v3882
      %v3899 = vpack.c.b16 %v3885, %v3884
      %v3900 = vpack.c.b16 %v3887, %v3886
      %v3901 = vpack.c.b16 %v3889, %v3888
      %v3902 = vpack.c.b16 %v3891, %v3890
      %v3903 = vpack.c.b16 %v3893, %v3892
      %v3904 = vpack.c.b16 %v3895, %v3894
      %v3905 = vpack.c.b16 %v3897, %v3896
      %3914 = vmatpush.bf16.msra.mxu0 %v3905
      %3915 = vmatpush.bf16.msra.mxu0 %v3904
      %3916 = vmatpush.bf16.msra.mxu0 %v3903
      %3917 = vmatpush.bf16.msra.mxu0 %v3902
      %3918 = vmatpush.bf16.msra.mxu0 %v3901
      %3919 = vmatpush.bf16.msra.mxu0 %v3900
      %3920 = vmatpush.bf16.msra.mxu0 %v3899
      %3921 = vmatpush.bf16.msra.mxu0 %v3898
      %3922 = vmatmul.bf16.gmra.mxu0 %v3848
      %v3923 = vpop.f32.mrf.mxu0
      %v3924 = vadd.f32 0.0, %v3923
      %v3925 = vpop.f32.mrf.mxu0
      %v3926 = vadd.f32 0.0, %v3925
      %3927 = vmatmul.bf16.gmra.mxu0 %v3849
      %v3928 = vpop.f32.mrf.mxu0
      %v3929 = vadd.f32 0.0, %v3928
      %v3930 = vpop.f32.mrf.mxu0
      %v3931 = vadd.f32 0.0, %v3930
      %3932 = vdwg.mxu0
      %v3933 = vadd.f32 %v3840, %v3924
      %v3934 = vadd.f32 %v3841, %v3926
      %v3935 = vadd.f32 %v3842, %v3929
      %v3936 = vadd.f32 %v3843, %v3931
      %v3937 = vld [vmem:[#allocation2 + $0x126] sm:$0xff]
      %v3938 = vld [vmem:[#allocation2 + $0x12e] sm:$0xff]
      %v3939 = vld [vmem:[#allocation2 + $0x136] sm:$0xff]
      %v3940 = vld [vmem:[#allocation2 + $0x13e] sm:$0xff]
      %v3941 = vpack.c.bf16 %v3938, %v3937
      %v3942 = vpack.c.bf16 %v3940, %v3939
      %v3943 = vld [vmem:[%s2578] sm:$0xf]
      %v3944 = vld [vmem:[%s2578 + $0x4] sm:$0xf]
      %v3945 = vld [vmem:[%s2578 + $0x8] sm:$0xf]
      %v3946 = vld [vmem:[%s2578 + $0xc] sm:$0xf]
      %v3947 = vld [vmem:[%s2578 + $0x10] sm:$0xf]
      %v3948 = vld [vmem:[%s2578 + $0x14] sm:$0xf]
      %v3949 = vld [vmem:[%s2578 + $0x18] sm:$0xf]
      %v3950 = vld [vmem:[%s2578 + $0x1c] sm:$0xf]
      %v3951 = vld [vmem:[%s2578 + $0x20] sm:$0xf]
      %v3952 = vld [vmem:[%s2578 + $0x24] sm:$0xf]
      %v3953 = vld [vmem:[%s2578 + $0x28] sm:$0xf]
      %v3954 = vld [vmem:[%s2578 + $0x2c] sm:$0xf]
      %v3955 = vld [vmem:[%s2578 + $0x30] sm:$0xf]
      %v3956 = vld [vmem:[%s2578 + $0x34] sm:$0xf]
      %v3957 = vld [vmem:[%s2578 + $0x38] sm:$0xf]
      %v3958 = vld [vmem:[%s2578 + $0x3c] sm:$0xf]
      %v3975 = vunpack.c.l.b16 %v3943
      %v3976 = vunpack.c.l.b16 %v3944
      %v3977 = vunpack.c.l.b16 %v3945
      %v3978 = vunpack.c.l.b16 %v3946
      %v3979 = vunpack.c.l.b16 %v3947
      %v3980 = vunpack.c.l.b16 %v3948
      %v3981 = vunpack.c.l.b16 %v3949
      %v3982 = vunpack.c.l.b16 %v3950
      %v3983 = vunpack.c.l.b16 %v3951
      %v3984 = vunpack.c.l.b16 %v3952
      %v3985 = vunpack.c.l.b16 %v3953
      %v3986 = vunpack.c.l.b16 %v3954
      %v3987 = vunpack.c.l.b16 %v3955
      %v3988 = vunpack.c.l.b16 %v3956
      %v3989 = vunpack.c.l.b16 %v3957
      %v3990 = vunpack.c.l.b16 %v3958
      %v3991 = vpack.c.b16 %v3976, %v3975
      %v3992 = vpack.c.b16 %v3978, %v3977
      %v3993 = vpack.c.b16 %v3980, %v3979
      %v3994 = vpack.c.b16 %v3982, %v3981
      %v3995 = vpack.c.b16 %v3984, %v3983
      %v3996 = vpack.c.b16 %v3986, %v3985
      %v3997 = vpack.c.b16 %v3988, %v3987
      %v3998 = vpack.c.b16 %v3990, %v3989
      %4007 = vmatpush.bf16.msra.mxu0 %v3998
      %4008 = vmatpush.bf16.msra.mxu0 %v3997
      %4009 = vmatpush.bf16.msra.mxu0 %v3996
      %4010 = vmatpush.bf16.msra.mxu0 %v3995
      %4011 = vmatpush.bf16.msra.mxu0 %v3994
      %4012 = vmatpush.bf16.msra.mxu0 %v3993
      %4013 = vmatpush.bf16.msra.mxu0 %v3992
      %4014 = vmatpush.bf16.msra.mxu0 %v3991
      %4015 = vmatmul.bf16.gmra.mxu0 %v3941
      %v4016 = vpop.f32.mrf.mxu0
      %v4017 = vadd.f32 0.0, %v4016
      %v4018 = vpop.f32.mrf.mxu0
      %v4019 = vadd.f32 0.0, %v4018
      %4020 = vmatmul.bf16.gmra.mxu0 %v3942
      %v4021 = vpop.f32.mrf.mxu0
      %v4022 = vadd.f32 0.0, %v4021
      %v4023 = vpop.f32.mrf.mxu0
      %v4024 = vadd.f32 0.0, %v4023
      %4025 = vdwg.mxu0
      %v4026 = vadd.f32 %v3933, %v4017
      %v4027 = vadd.f32 %v3934, %v4019
      %v4028 = vadd.f32 %v3935, %v4022
      %v4029 = vadd.f32 %v3936, %v4024
      %v4030 = vmul.f32 %v4026, %v2765
      %v4031 = vmul.f32 %v4027, %v2765
      %v4032 = vmul.f32 %v4028, %v2765
      %v4033 = vmul.f32 %v4029, %v2765
      %v4034 = vadd.f32 %v4030, %v2800
      %v4035 = vadd.f32 %v4031, %v2800
      %v4036 = vadd.f32 %v4032, %v2800
      %v4037 = vadd.f32 %v4033, %v2800
      %v4038 = vld [vmem:[#allocation3 + $0x126] sm:$0xff]
      %v4039 = vld [vmem:[#allocation3 + $0x12e] sm:$0xff]
      %v4040 = vld [vmem:[#allocation3 + $0x136] sm:$0xff]
      %v4041 = vld [vmem:[#allocation3 + $0x13e] sm:$0xff]
      %v4042 = vpack.c.bf16 %v4039, %v4038
      %v4043 = vpack.c.bf16 %v4041, %v4040
      %v4044 = vld [vmem:[%s415] sm:$0xf]
      %v4045 = vld [vmem:[%s415 + $0x4] sm:$0xf]
      %v4046 = vld [vmem:[%s415 + $0x8] sm:$0xf]
      %v4047 = vld [vmem:[%s415 + $0xc] sm:$0xf]
      %v4048 = vld [vmem:[%s415 + $0x10] sm:$0xf]
      %v4049 = vld [vmem:[%s415 + $0x14] sm:$0xf]
      %v4050 = vld [vmem:[%s415 + $0x18] sm:$0xf]
      %v4051 = vld [vmem:[%s415 + $0x1c] sm:$0xf]
      %v4052 = vld [vmem:[%s415 + $0x20] sm:$0xf]
      %v4053 = vld [vmem:[%s415 + $0x24] sm:$0xf]
      %v4054 = vld [vmem:[%s415 + $0x28] sm:$0xf]
      %v4055 = vld [vmem:[%s415 + $0x2c] sm:$0xf]
      %v4056 = vld [vmem:[%s415 + $0x30] sm:$0xf]
      %v4057 = vld [vmem:[%s415 + $0x34] sm:$0xf]
      %v4058 = vld [vmem:[%s415 + $0x38] sm:$0xf]
      %v4059 = vld [vmem:[%s415 + $0x3c] sm:$0xf]
      %v4076 = vunpack.c.l.b16 %v4044
      %v4077 = vunpack.c.l.b16 %v4045
      %v4078 = vunpack.c.l.b16 %v4046
      %v4079 = vunpack.c.l.b16 %v4047
      %v4080 = vunpack.c.l.b16 %v4048
      %v4081 = vunpack.c.l.b16 %v4049
      %v4082 = vunpack.c.l.b16 %v4050
      %v4083 = vunpack.c.l.b16 %v4051
      %v4084 = vunpack.c.l.b16 %v4052
      %v4085 = vunpack.c.l.b16 %v4053
      %v4086 = vunpack.c.l.b16 %v4054
      %v4087 = vunpack.c.l.b16 %v4055
      %v4088 = vunpack.c.l.b16 %v4056
      %v4089 = vunpack.c.l.b16 %v4057
      %v4090 = vunpack.c.l.b16 %v4058
      %v4091 = vunpack.c.l.b16 %v4059
      %v4092 = vpack.c.b16 %v4077, %v4076
      %v4093 = vpack.c.b16 %v4079, %v4078
      %v4094 = vpack.c.b16 %v4081, %v4080
      %v4095 = vpack.c.b16 %v4083, %v4082
      %v4096 = vpack.c.b16 %v4085, %v4084
      %v4097 = vpack.c.b16 %v4087, %v4086
      %v4098 = vpack.c.b16 %v4089, %v4088
      %v4099 = vpack.c.b16 %v4091, %v4090
      %4108 = vmatpush.bf16.msra.mxu0 %v4099
      %4109 = vmatpush.bf16.msra.mxu0 %v4098
      %4110 = vmatpush.bf16.msra.mxu0 %v4097
      %4111 = vmatpush.bf16.msra.mxu0 %v4096
      %4112 = vmatpush.bf16.msra.mxu0 %v4095
      %4113 = vmatpush.bf16.msra.mxu0 %v4094
      %4114 = vmatpush.bf16.msra.mxu0 %v4093
      %4115 = vmatpush.bf16.msra.mxu0 %v4092
      %4116 = vmatmul.bf16.gmra.mxu0 %v4042
      %v4117 = vpop.f32.mrf.mxu0
      %v4118 = vadd.f32 0.0, %v4117
      %v4119 = vpop.f32.mrf.mxu0
      %v4120 = vadd.f32 0.0, %v4119
      %4121 = vmatmul.bf16.gmra.mxu0 %v4043
      %v4122 = vpop.f32.mrf.mxu0
      %v4123 = vadd.f32 0.0, %v4122
      %v4124 = vpop.f32.mrf.mxu0
      %v4125 = vadd.f32 0.0, %v4124
      %4126 = vdwg.mxu0
      %v4127 = vmul.f32 %v4118, %v3036
      %v4128 = vmul.f32 %v4120, %v3036
      %v4129 = vmul.f32 %v4123, %v3036
      %v4130 = vmul.f32 %v4125, %v3036
      %v4131 = vadd.f32 %v4127, %v3071
      %v4132 = vadd.f32 %v4128, %v3071
      %v4133 = vadd.f32 %v4129, %v3071
      %v4134 = vadd.f32 %v4130, %v3071
      %v4135 = vadd.f32 %v4034, %v4131
      %v4136 = vadd.f32 %v4035, %v4132
      %v4137 = vadd.f32 %v4036, %v4133
      %v4138 = vadd.f32 %v4037, %v4134
      %v4139 = vmax.f32 %v4135, 0.0
      %v4140 = vmax.f32 %v4136, 0.0
      %v4141 = vmax.f32 %v4137, 0.0
      %v4142 = vmax.f32 %v4138, 0.0
      %4143 = vst [vmem:[%s435 + $0x100] sm:$0xff] %v4139
      %4144 = vst [vmem:[%s435 + $0x108] sm:$0xff] %v4140
      %4145 = vst [vmem:[%s435 + $0x110] sm:$0xff] %v4141
      %4146 = vst [vmem:[%s435 + $0x118] sm:$0xff] %v4142
      %p4147 = scmp.lt.s32.totalorder %s23, 1
      %s4148 = scalar_select %p4147, %s23, 1
      %p4149 = scmp.lt.s32.totalorder %s24, 0
      %s4150 = scalar_select %p4149, %s24, 0
      %s4151 = smul.addr %s4148, 36
      %s4152 = sadd.s32 %s4150, %s4151
      %s4153 = smul.addr %s4152, 8
      %s4154 = scalar_lea.vmem %s8, %s4153
      // Predicated region
      $region57: #{_lambda_.3} parent=51 // pred_check
        %p4155 = pneg %p259
      $region58: #{_lambda_.3} parent=51 // pred_check_branch
        %4157 = sbr.rel (%p4155) target = $region60
      $region59: #{_lambda_.3} parent=51 // pred_region
        _
      $region60: #{_lambda_.3} parent=51 // pred_fallthru
        _
    $region52: #{_lambda_.3} parent=5 // pred_fallthru
      _
    %p4158 = scmp.le.s32.totalorder 2, %s14
    // Predicated region
    $region61: #{_lambda_.3} parent=5 // pred_check
      %p4159 = pneg %p4158
    $region62: #{_lambda_.3} parent=5 // pred_check_branch
      %4161 = sbr.rel (%p4159) target = $region64
    $region63: #{_lambda_.3} parent=5 // pred_region
      %s4162 = ssub.s32 %s14, 2
      // Predicated region
      $region65: #{_lambda_.3} parent=63 // pred_check
        %p4163 = pneg %p265
      $region66: #{_lambda_.3} parent=63 // pred_check_branch
        %4165 = sbr.rel (%p4163) target = $region68
      $region67: #{_lambda_.3} parent=63 // pred_region
        %p4166 = scmp.lt.s32.totalorder %s25, 1
        %s4167 = scalar_select %p4166, %s25, 1
        %p4168 = scmp.lt.s32.totalorder %s26, 0
        %s4169 = scalar_select %p4168, %s26, 0
        %s4170 = smul.addr %s4167, 36
        %s4171 = sadd.s32 %s4169, %s4170
        %s4172 = smul.addr %s4171, 8
        %s4173 = scalar_lea.vmem %s8, %s4172
      $region68: #{_lambda_.3} parent=63 // pred_fallthru
        _
    $region64: #{_lambda_.3} parent=5 // pred_fallthru
      _
  $region6: #{_lambda_.3} parent=0 // loop_footer
    %s18 = sadd.s32 1, %s14
  $region7: #{_lambda_.3} parent=0 // loop_footer_branch
    %13 = sbr.rel target = $region3
  $region8: #{_lambda_.3} parent=0 // loop_exit
    _

</llo_original>
